<compile_context>
chip_gen: v6e
topology: v6e:2x2x1
jax: 0.10.0
libtpu: 0.0.40
codegen_flags: <defaults>
</compile_context>

<pallas_src>
import functools

import jax
import jax.numpy as jnp
from jax.experimental import pallas as pl
from jax.experimental.pallas import tpu as pltpu

BF16 = jnp.bfloat16
VMEM_LIMIT_BYTES = 32 * 1024 * 1024          # scoped budget legal on v5e/v6e/v7x
VMEM_TILE_BUDGET = (3 * VMEM_LIMIT_BYTES) // 4   # leave headroom for pipeline buffers


# ----------------------------------------------------------------------------- helpers

def _cost(flops, bytes_accessed):
    return pl.CostEstimate(flops=int(flops), transcendentals=0,
                           bytes_accessed=int(bytes_accessed))


def _pick_row_tile(n_rows, streamed_bytes_per_row=0, resident_bytes=0,
                   budget=VMEM_TILE_BUDGET):
    """Largest aligned row tile whose double-buffered streams + residents fit VMEM."""
    best = None
    for t in (1024, 512, 256, 128, 64, 32, 16, 8):
        if t <= n_rows and n_rows % t == 0:
            if best is None:
                best = t                      # largest aligned divisor as fallback
            if resident_bytes + 2 * t * streamed_bytes_per_row <= budget:
                return t
    return best if best is not None else n_rows   # full dim is always a legal block


# ----------------------------------------------------------------------------- kernels

def _cell_prologue_kernel(xg_ref, xd_ref, a_dg_ref, wcat_ref, wdg_ref, bgd_ref,
                          xwc_out_ref, xdw_out_ref, drug_out_ref):
    """Per-layer prologue (runs once): fused feature transforms + full drug path.

    xw_cat   = Xg @ [Wc | Wgd]            (one 2*half-wide MXU matmul, shared LHS)
    xwc_out  = xw_cat[:, :half]           (bf16, streamed to the node kernel)
    xdw_out  = Xd @ Wdg                   (bf16, streamed to the node kernel)
    drug_out = A_dg @ xw_cat[:, half:] + b_gd   (gene -> drug bipartite conv)
    """
    half = wdg_ref.shape[1]

    xg = xg_ref[...]                                            # (N, Fg) bf16
    xw_cat = jnp.dot(xg, wcat_ref[...], preferred_element_type=jnp.float32)
    xwc_out_ref[...] = xw_cat[:, :half].astype(xwc_out_ref.dtype)
    xgw = xw_cat[:, half:].astype(BF16)

    xdw = jnp.dot(xd_ref[...], wdg_ref[...], preferred_element_type=jnp.float32)
    xdw_out_ref[...] = xdw.astype(xdw_out_ref.dtype)

    drug = jnp.dot(a_dg_ref[...], xgw,
                   preferred_element_type=jnp.float32) + bgd_ref[...]
    drug_out_ref[...] = drug.astype(drug_out_ref.dtype)


def _cell_node_kernel(a_gg_ref, a_gd_ref, xwc_ref, xdw_ref, bc_ref, bdg_ref,
                      node_alias_ref, o_ref):
    """Row-tiled node path: homogeneous conv (+ReLU) and drug->gene bipartite conv,
    concatenated directly into one lane-aligned (tm, H) column slab of node_all."""
    del node_alias_ref            # aliased output slab; present only for input_output_aliases
    half = xwc_ref.shape[1]

    h = jnp.dot(a_gg_ref[...], xwc_ref[...],
                preferred_element_type=jnp.float32) + bc_ref[...]
    h = jnp.maximum(h, 0.0)       # act_map -> ReLU (only the homogeneous conv half, per spec)

    g = jnp.dot(a_gd_ref[...], xdw_ref[...],
                preferred_element_type=jnp.float32) + bdg_ref[...]

    o_ref[:, 0:half] = h.astype(o_ref.dtype)
    o_ref[:, half:2 * half] = g.astype(o_ref.dtype)


def _post_kernel(use_reduce_fusion, src_ref, dst_ref,
                 sw1_ref, sb1_ref, sw2_ref, sb2_ref,
                 dw1_ref, db1_ref, dw2_ref, db2_ref,
                 fw_ref, fb_ref, o_ref):
    """Fused Post_Pro: src MLP, dst MLP and product-fusion head for one sample tile."""
    bf = sw1_ref.dtype

    s1 = jnp.dot(src_ref[...], sw1_ref[...],
                 preferred_element_type=jnp.float32) + sb1_ref[...]
    s1 = jnp.maximum(s1, 0.0)
    # TODO(synk): nn.Dropout(0.5) is identity here (eval-mode); training parity needs pltpu.prng_* masks.
    s2 = jnp.dot(s1.astype(bf), sw2_ref[...],
                 preferred_element_type=jnp.float32) + sb2_ref[...]

    d1 = jnp.dot(dst_ref[...], dw1_ref[...],
                 preferred_element_type=jnp.float32) + db1_ref[...]
    d1 = jnp.maximum(d1, 0.0)
    d2 = jnp.dot(d1.astype(bf), dw2_ref[...],
                 preferred_element_type=jnp.float32) + db2_ref[...]

    prod = s2 * d2                                   # element-wise product fusion (f32)
    if use_reduce_fusion:
        # out_dim == 1: VPU reduction instead of a 1-lane MXU matmul.
        score = jnp.sum(prod * fw_ref[...], axis=-1, keepdims=True) + fb_ref[...]
    else:
        score = jnp.dot(prod.astype(bf), fw_ref[...],
                        preferred_element_type=jnp.float32) + fb_ref[...]
    o_ref[...] = score.astype(o_ref.dtype)


# ----------------------------------------------------------------------------- wrappers

def gnn_cell_prologue(xg_buf, xg_cols, xg_col_block, xd, a_dg, wcat, wdg, bgd):
    """Feature transforms + gene->drug conv for one layer.

    xg_buf: (N, C_total) bf16; gene features are column block `xg_col_block` of width xg_cols.
    Returns (xwc (N, half) bf16, xdw (M, half) bf16, drug_new (M, half) bf16).
    """
    n = xg_buf.shape[0]
    m, fd = xd.shape
    half = wdg.shape[1]

    flops = 2 * (n * xg_cols * 2 * half + m * fd * half + m * n * half)
    bytes_acc = 2 * (n * xg_cols + m * fd + m * n + wcat.size + wdg.size
                     + n * half + 2 * m * half) + 4 * bgd.size

    return pl.pallas_call(
        _cell_prologue_kernel,
        out_shape=(jax.ShapeDtypeStruct((n, half), BF16),
                   jax.ShapeDtypeStruct((m, half), BF16),
                   jax.ShapeDtypeStruct((m, half), BF16)),
        grid=(1,),
        in_specs=[
            pl.BlockSpec((n, xg_cols), lambda i, cb=xg_col_block: (0, cb)),  # gene features slab
            pl.BlockSpec(xd.shape, lambda i: (0, 0)),
            pl.BlockSpec(a_dg.shape, lambda i: (0, 0)),
            pl.BlockSpec(wcat.shape, lambda i: (0, 0)),
            pl.BlockSpec(wdg.shape, lambda i: (0, 0)),
            pl.BlockSpec(bgd.shape, lambda i: (0, 0)),
        ],
        out_specs=(pl.BlockSpec((n, half), lambda i: (0, 0)),
                   pl.BlockSpec((m, half), lambda i: (0, 0)),
                   pl.BlockSpec((m, half), lambda i: (0, 0))),
        compiler_params=pltpu.CompilerParams(
            dimension_semantics=("arbitrary",),
            vmem_limit_bytes=VMEM_LIMIT_BYTES),
        cost_estimate=_cost(flops, bytes_acc),
    )(xg_buf, xd, a_dg, wcat, wdg, bgd)


def gnn_cell_node(a_gg, a_gd, xwc, xdw, bc, bdg, node_all, layer_idx):
    """Row-tiled node path; writes column slab `layer_idx` of node_all in place."""
    n, m = a_gg.shape[0], a_gd.shape[1]
    half = xwc.shape[1]
    hdim = 2 * half

    streamed = 2 * (n + m + hdim)                       # bf16 bytes per gene row per step
    resident = 2 * (n * half + m * half) + 4 * 2 * half
    tm = _pick_row_tile(n, streamed, resident)
    grid = (n // tm,)
    # TODO(synk): for graphs where even tm=8 row tiles of (tm, N) A blocks exceed the VMEM
    # budget, add a source-node (K) grid axis with an f32 accumulator scratch.

    flops = 2 * (n * n * half + n * m * half)
    bytes_acc = 2 * (a_gg.size + a_gd.size + xwc.size + xdw.size + n * hdim) \
        + 4 * (bc.size + bdg.size)

    return pl.pallas_call(
        _cell_node_kernel,
        out_shape=jax.ShapeDtypeStruct(node_all.shape, node_all.dtype),
        grid=grid,
        in_specs=[
            pl.BlockSpec((tm, n), lambda i: (i, 0)),        # A_gg row tile (streamed)
            pl.BlockSpec((tm, m), lambda i: (i, 0)),        # A_gd row tile (streamed)
            pl.BlockSpec((n, half), lambda i: (0, 0)),      # Xg @ Wc (resident, bf16)
            pl.BlockSpec((m, half), lambda i: (0, 0)),      # Xd @ Wdg (resident, bf16)
            pl.BlockSpec(bc.shape, lambda i: (0, 0)),
            pl.BlockSpec(bdg.shape, lambda i: (0, 0)),
            pl.BlockSpec(memory_space=pl.ANY),              # aliased node_all slab (no DMA)
        ],
        out_specs=pl.BlockSpec((tm, hdim), lambda i, L=layer_idx: (i, L)),
        input_output_aliases={6: 0},                        # node_all updated in place
        compiler_params=pltpu.CompilerParams(
            dimension_semantics=("parallel",),              # drug path removed -> shardable
            vmem_limit_bytes=VMEM_LIMIT_BYTES),
        cost_estimate=_cost(flops, bytes_acc),
    )(a_gg, a_gd, xwc, xdw, bc, bdg, node_all)


def post_process(src_in, dst_in, p):
    """Fused Post_Pro: (S, H*L) gathered src/dst bf16 -> (S, out_dim) f32 scores."""
    s, hl = src_in.shape
    hdim = p["src_w1"].shape[1]
    out_dim = p["fus_w"].shape[1]
    use_reduce = (out_dim == 1)

    sw1 = p["src_w1"].astype(BF16); sw2 = p["src_w2"].astype(BF16)
    dw1 = p["dst_w1"].astype(BF16); dw2 = p["dst_w2"].astype(BF16)
    sb1, sb2 = p["src_b1"], p["src_b2"]
    db1, db2 = p["dst_b1"], p["dst_b2"]
    fb = p["fus_b"]
    if use_reduce:
        fw = p["fus_w"].T.astype(jnp.float32)               # (1, H) row for VPU reduction
    else:
        fw = p["fus_w"].astype(BF16)                         # (H, out_dim) MXU path

    streamed = 2 * (2 * hl) + 4 * out_dim
    resident = 2 * (2 * hl * hdim + 2 * hdim * hdim) + fw.size * fw.dtype.itemsize
    ts = _pick_row_tile(s, streamed, resident)
    grid = (s // ts,)

    flops = 2 * s * (2 * hl * hdim + 2 * hdim * hdim + hdim * out_dim) + s * hdim
    bytes_acc = 2 * (2 * s * hl + 2 * hl * hdim + 2 * hdim * hdim) + 4 * s * out_dim

    return pl.pallas_call(
        functools.partial(_post_kernel, use_reduce),
        out_shape=jax.ShapeDtypeStruct((s, out_dim), jnp.float32),
        grid=grid,
        in_specs=[
            pl.BlockSpec((ts, hl), lambda i: (i, 0)),
            pl.BlockSpec((ts, hl), lambda i: (i, 0)),
            pl.BlockSpec(sw1.shape, lambda i: (0, 0)),
            pl.BlockSpec(sb1.shape, lambda i: (0, 0)),
            pl.BlockSpec(sw2.shape, lambda i: (0, 0)),
            pl.BlockSpec(sb2.shape, lambda i: (0, 0)),
            pl.BlockSpec(dw1.shape, lambda i: (0, 0)),
            pl.BlockSpec(db1.shape, lambda i: (0, 0)),
            pl.BlockSpec(dw2.shape, lambda i: (0, 0)),
            pl.BlockSpec(db2.shape, lambda i: (0, 0)),
            pl.BlockSpec(fw.shape, lambda i: (0, 0)),
            pl.BlockSpec(fb.shape, lambda i: (0, 0)),
        ],
        out_specs=pl.BlockSpec((ts, out_dim), lambda i: (i, 0)),
        compiler_params=pltpu.CompilerParams(
            dimension_semantics=("parallel",),
            vmem_limit_bytes=VMEM_LIMIT_BYTES),
        cost_estimate=_cost(flops, bytes_acc),
    )(src_in, dst_in, sw1, sb1, sw2, sb2, dw1, db1, dw2, db2, fw, fb)


# ----------------------------------------------------------------------------- model

def init_params(key, in_dim, hidden_dim, out_dim, layer, drug_dim):
    """Deterministic parameter init mirroring GNN_Model.__init__ shapes."""
    half = hidden_dim // 2
    params = {"cells": []}
    k = key

    def nxt(shape, scale=0.1):
        nonlocal k
        k, sub = jax.random.split(k)
        return jax.random.normal(sub, shape, jnp.float32) * scale

    gene_in, drug_in = in_dim, drug_dim
    for _ in range(layer):
        cell = {
            "w_conv": nxt((gene_in, half)), "b_conv": nxt((1, half)),   # homogeneous conv
            "w_dg": nxt((drug_in, half)), "b_dg": nxt((1, half)),       # drug -> gene
            "w_gd": nxt((gene_in, half)), "b_gd": nxt((1, half)),       # gene -> drug
        }
        params["cells"].append(cell)
        gene_in, drug_in = hidden_dim, half

    params["src_w1"] = nxt((hidden_dim * layer, hidden_dim)); params["src_b1"] = nxt((1, hidden_dim))
    params["src_w2"] = nxt((hidden_dim, hidden_dim));         params["src_b2"] = nxt((1, hidden_dim))
    params["dst_w1"] = nxt((hidden_dim * layer, hidden_dim)); params["dst_b1"] = nxt((1, hidden_dim))
    params["dst_w2"] = nxt((hidden_dim, hidden_dim));         params["dst_b2"] = nxt((1, hidden_dim))
    params["fus_w"]  = nxt((hidden_dim, out_dim));            params["fus_b"]  = nxt((1, out_dim))
    return params


def gnn_model_forward(params, a_gg, a_gd, a_dg, gene_feat, drug_feat, samples, layer):
    """Forward pass of GNN_Model.

    a_gg: (N,N) normalized gene-gene adjacency; a_gd: (N,M) drug->gene; a_dg: (M,N) gene->drug.
    gene_feat: (N, in_dim); drug_feat: (M, in_dim); samples: (S, 2) int32 gene indices.
    """
    n = gene_feat.shape[0]
    hdim = params["src_w1"].shape[1]
    half = hdim // 2

    # Hoist all adjacency / feature / weight bf16 casts out of the per-layer loop.
    a_gg = a_gg.astype(BF16)
    a_gd = a_gd.astype(BF16)
    a_dg = a_dg.astype(BF16)
    xg0 = gene_feat.astype(BF16)
    xd = drug_feat.astype(BF16)
    # TODO(synk): adjacency int8 (v5e/v6e) / fp8 (v7x) quantization with per-row scales
    # would further halve the HBM-bound A stream; needs accuracy validation.

    cells = []
    for c in params["cells"]:
        cells.append({
            # Fuse the two shared-LHS transforms: Xg @ [Wc | Wgd] is one 2*half-wide matmul.
            "wcat": jnp.concatenate([c["w_conv"], c["w_gd"]], axis=1).astype(BF16),
            "wdg": c["w_dg"].astype(BF16),
            "b_conv": c["b_conv"], "b_dg": c["b_dg"], "b_gd": c["b_gd"],
        })

    # Per-layer embeddings are written directly into column slabs of this buffer
    # (input_output_aliases), replacing the torch.cat(reprs, dim=1) round trip.
    node_all = jnp.zeros((n, hdim * layer), BF16)

    xg_buf, xg_cols, xg_cb = xg0, xg0.shape[1], 0
    for i in range(layer):
        c = cells[i]
        xwc, xdw, drug_new = gnn_cell_prologue(
            xg_buf, xg_cols, xg_cb, xd, a_dg, c["wcat"], c["wdg"], c["b_gd"])
        node_all = gnn_cell_node(
            a_gg, a_gd, xwc, xdw, c["b_conv"], c["b_dg"], node_all, layer_idx=i)
        # Next layer's gene features are the column slab just written (read in place).
        xg_buf, xg_cols, xg_cb = node_all, hdim, i
        xd = drug_new

    # Post_Pro: gather sample rows (glue), then one fused MLP+fusion kernel.
    # TODO(synk): arbitrary-index row gather is left to XLA; an in-kernel scalar-prefetch
    # gather would remove these two (S, H*L) copies for large S.
    src_idx, dst_idx = samples[:, 0], samples[:, 1]
    src_in = jnp.take(node_all, src_idx, axis=0)
    dst_in = jnp.take(node_all, dst_idx, axis=0)
    return post_process(src_in, dst_in, params)                # (S, out_dim) f32


# ----------------------------------------------------------------------------- main

def _normalize_sym(adj):
    deg = jnp.sum(adj, axis=1)
    d = jnp.where(deg > 0, 1.0 / jnp.sqrt(deg), 0.0)
    return adj * d[:, None] * d[None, :]


def _normalize_row(adj):
    deg = jnp.sum(adj, axis=1, keepdims=True)
    return adj / jnp.where(deg > 0, deg, 1.0)


if __name__ == "__main__":
    key = jax.random.PRNGKey(0)
    N, M = 128, 32            # gene nodes, drug nodes
    IN_DIM = 64
    HIDDEN = 256              # -> half = 128: lane-dense conv outputs
    OUT_DIM = 1
    LAYER = 3
    S = 64                    # number of (src, dst) sample pairs

    k_feat, k_dfeat, k_adj, k_badj, k_smp, k_par = jax.random.split(key, 6)

    gene_feat = jax.random.normal(k_feat, (N, IN_DIM), jnp.float32)
    drug_feat = jax.random.normal(k_dfeat, (M, IN_DIM), jnp.float32)

    a = jax.random.bernoulli(k_adj, 0.1, (N, N)).astype(jnp.float32)
    a = jnp.clip(a + a.T + jnp.eye(N, dtype=jnp.float32), 0.0, 1.0)
    a_gg = _normalize_sym(a)

    b = jax.random.bernoulli(k_badj, 0.2, (N, M)).astype(jnp.float32)
    a_gd = _normalize_row(b)          # messages drug -> gene
    a_dg = _normalize_row(b.T)        # messages gene -> drug

    samples = jax.random.randint(k_smp, (S, 2), 0, N, dtype=jnp.int32)

    params = init_params(k_par, IN_DIM, HIDDEN, OUT_DIM, LAYER, drug_dim=IN_DIM)

    fwd = jax.jit(functools.partial(gnn_model_forward, layer=LAYER))
    score = fwd(params, a_gg, a_gd, a_dg, gene_feat, drug_feat, samples)
    jax.block_until_ready(score)
    assert score.shape == (S, OUT_DIM) and score.dtype == jnp.float32
    print("KERNEL_OK")
</pallas_src>

<mosaic_0001>
module attributes {stable_mosaic.version = 11 : i64} {
  func.func @_cell_prologue_kernel(%arg0: i32, %arg1: memref<128x64xbf16, #tpu.memory_space<vmem>>, %arg2: memref<32x64xbf16, #tpu.memory_space<vmem>>, %arg3: memref<32x128xbf16, #tpu.memory_space<vmem>>, %arg4: memref<64x256xbf16, #tpu.memory_space<vmem>>, %arg5: memref<64x128xbf16, #tpu.memory_space<vmem>>, %arg6: memref<1x128xf32, #tpu.memory_space<vmem>>, %arg7: memref<128x128xbf16, #tpu.memory_space<vmem>>, %arg8: memref<32x128xbf16, #tpu.memory_space<vmem>>, %arg9: memref<32x128xbf16, #tpu.memory_space<vmem>>) attributes {dimension_semantics = [#tpu.dimension_semantics<arbitrary>], iteration_bounds = array<i64: 1>, scalar_prefetch = 0 : i64, scratch_operands = 0 : i64, tpu.core_type = #tpu.core_type<tc>, window_params = [{pipeline_mode = #tpu.pipeline_mode<synchronous>, transform_indices = @transform_0, window_bounds = array<i64: 128, 64>}, {pipeline_mode = #tpu.pipeline_mode<synchronous>, transform_indices = @transform_1, window_bounds = array<i64: 32, 64>}, {pipeline_mode = #tpu.pipeline_mode<synchronous>, transform_indices = @transform_2, window_bounds = array<i64: 32, 128>}, {pipeline_mode = #tpu.pipeline_mode<synchronous>, transform_indices = @transform_3, window_bounds = array<i64: 64, 256>}, {pipeline_mode = #tpu.pipeline_mode<synchronous>, transform_indices = @transform_4, window_bounds = array<i64: 64, 128>}, {pipeline_mode = #tpu.pipeline_mode<synchronous>, transform_indices = @transform_5, window_bounds = array<i64: 1, 128>}, {pipeline_mode = #tpu.pipeline_mode<synchronous>, transform_indices = @transform_6, window_bounds = array<i64: 128, 128>}, {pipeline_mode = #tpu.pipeline_mode<synchronous>, transform_indices = @transform_7, window_bounds = array<i64: 32, 128>}, {pipeline_mode = #tpu.pipeline_mode<synchronous>, transform_indices = @transform_8, window_bounds = array<i64: 32, 128>}]} {
    %c0 = arith.constant 0 : index
    %c0_0 = arith.constant 0 : index
    %0 = vector.load %arg1[%c0, %c0_0] : memref<128x64xbf16, #tpu.memory_space<vmem>>, vector<128x64xbf16>
    %c0_1 = arith.constant 0 : index
    %c0_2 = arith.constant 0 : index
    %1 = vector.load %arg4[%c0_1, %c0_2] : memref<64x256xbf16, #tpu.memory_space<vmem>>, vector<64x256xbf16>
    %cst = arith.constant dense<0.000000e+00> : vector<128x256xf32>
    %2 = tpu.matmul %0, %1, %cst {dimension_numbers = #tpu.dot_dimension_numbers<[1], [0], [0], [1], [0, 0, 1, 1], [], []>} : vector<128x64xbf16>, vector<64x256xbf16>, vector<128x256xf32> -> vector<128x256xf32>
    %3 = vector.extract_strided_slice %2 {offsets = [0, 0], sizes = [128, 128], strides = [1, 1]} : vector<128x256xf32> to vector<128x128xf32>
    %4 = arith.truncf %3 : vector<128x128xf32> to vector<128x128xbf16>
    %c0_3 = arith.constant 0 : index
    %c0_4 = arith.constant 0 : index
    %5 = vector.load %arg7[%c0_3, %c0_4] : memref<128x128xbf16, #tpu.memory_space<vmem>>, vector<128x128xbf16>
    tpu.vector_store %arg7[%c0_3, %c0_4], %4 {strides = array<i32>} : memref<128x128xbf16, #tpu.memory_space<vmem>>, vector<128x128xbf16>,
    %6 = vector.extract_strided_slice %2 {offsets = [0, 128], sizes = [128, 128], strides = [1, 1]} : vector<128x256xf32> to vector<128x128xf32>
    %7 = arith.truncf %6 : vector<128x128xf32> to vector<128x128xbf16>
    %c0_5 = arith.constant 0 : index
    %c0_6 = arith.constant 0 : index
    %8 = vector.load %arg2[%c0_5, %c0_6] : memref<32x64xbf16, #tpu.memory_space<vmem>>, vector<32x64xbf16>
    %c0_7 = arith.constant 0 : index
    %c0_8 = arith.constant 0 : index
    %9 = vector.load %arg5[%c0_7, %c0_8] : memref<64x128xbf16, #tpu.memory_space<vmem>>, vector<64x128xbf16>
    %cst_9 = arith.constant dense<0.000000e+00> : vector<32x128xf32>
    %10 = tpu.matmul %8, %9, %cst_9 {dimension_numbers = #tpu.dot_dimension_numbers<[1], [0], [0], [1], [0, 0, 1, 1], [], []>} : vector<32x64xbf16>, vector<64x128xbf16>, vector<32x128xf32> -> vector<32x128xf32>
    %11 = arith.truncf %10 : vector<32x128xf32> to vector<32x128xbf16>
    %c0_10 = arith.constant 0 : index
    %c0_11 = arith.constant 0 : index
    %12 = vector.load %arg8[%c0_10, %c0_11] : memref<32x128xbf16, #tpu.memory_space<vmem>>, vector<32x128xbf16>
    tpu.vector_store %arg8[%c0_10, %c0_11], %11 {strides = array<i32>} : memref<32x128xbf16, #tpu.memory_space<vmem>>, vector<32x128xbf16>,
    %c0_12 = arith.constant 0 : index
    %c0_13 = arith.constant 0 : index
    %13 = vector.load %arg3[%c0_12, %c0_13] : memref<32x128xbf16, #tpu.memory_space<vmem>>, vector<32x128xbf16>
    %cst_14 = arith.constant dense<0.000000e+00> : vector<32x128xf32>
    %14 = tpu.matmul %13, %7, %cst_14 {dimension_numbers = #tpu.dot_dimension_numbers<[1], [0], [0], [1], [0, 0, 1, 1], [], []>} : vector<32x128xbf16>, vector<128x128xbf16>, vector<32x128xf32> -> vector<32x128xf32>
    %c0_15 = arith.constant 0 : index
    %c0_16 = arith.constant 0 : index
    %15 = vector.load %arg6[%c0_15, %c0_16] : memref<1x128xf32, #tpu.memory_space<vmem>>, vector<1x128xf32>
    %16 = vector.broadcast %15 : vector<1x128xf32> to vector<32x128xf32>
    %17 = arith.addf %14, %16 : vector<32x128xf32>
    %18 = arith.truncf %17 : vector<32x128xf32> to vector<32x128xbf16>
    %c0_17 = arith.constant 0 : index
    %c0_18 = arith.constant 0 : index
    %19 = vector.load %arg9[%c0_17, %c0_18] : memref<32x128xbf16, #tpu.memory_space<vmem>>, vector<32x128xbf16>
    tpu.vector_store %arg9[%c0_17, %c0_18], %18 {strides = array<i32>} : memref<32x128xbf16, #tpu.memory_space<vmem>>, vector<32x128xbf16>,
    return
  }
  func.func @transform_0(%arg0: i32) -> (i32, i32) {
    %c0_i32 = arith.constant 0 : i32
    %c0_i32_0 = arith.constant 0 : i32
    %c0_i32_1 = arith.constant 0 : i32
    return %c0_i32, %c0_i32_0 : i32, i32
  }
  func.func @transform_1(%arg0: i32) -> (i32, i32) {
    %c0_i32 = arith.constant 0 : i32
    %c0_i32_0 = arith.constant 0 : i32
    %c0_i32_1 = arith.constant 0 : i32
    return %c0_i32, %c0_i32_0 : i32, i32
  }
  func.func @transform_2(%arg0: i32) -> (i32, i32) {
    %c0_i32 = arith.constant 0 : i32
    %c0_i32_0 = arith.constant 0 : i32
    %c0_i32_1 = arith.constant 0 : i32
    return %c0_i32, %c0_i32_0 : i32, i32
  }
  func.func @transform_3(%arg0: i32) -> (i32, i32) {
    %c0_i32 = arith.constant 0 : i32
    %c0_i32_0 = arith.constant 0 : i32
    %c0_i32_1 = arith.constant 0 : i32
    return %c0_i32, %c0_i32_0 : i32, i32
  }
  func.func @transform_4(%arg0: i32) -> (i32, i32) {
    %c0_i32 = arith.constant 0 : i32
    %c0_i32_0 = arith.constant 0 : i32
    %c0_i32_1 = arith.constant 0 : i32
    return %c0_i32, %c0_i32_0 : i32, i32
  }
  func.func @transform_5(%arg0: i32) -> (i32, i32) {
    %c0_i32 = arith.constant 0 : i32
    %c0_i32_0 = arith.constant 0 : i32
    %c0_i32_1 = arith.constant 0 : i32
    return %c0_i32, %c0_i32_0 : i32, i32
  }
  func.func @transform_6(%arg0: i32) -> (i32, i32) {
    %c0_i32 = arith.constant 0 : i32
    %c0_i32_0 = arith.constant 0 : i32
    %c0_i32_1 = arith.constant 0 : i32
    return %c0_i32, %c0_i32_0 : i32, i32
  }
  func.func @transform_7(%arg0: i32) -> (i32, i32) {
    %c0_i32 = arith.constant 0 : i32
    %c0_i32_0 = arith.constant 0 : i32
    %c0_i32_1 = arith.constant 0 : i32
    return %c0_i32, %c0_i32_0 : i32, i32
  }
  func.func @transform_8(%arg0: i32) -> (i32, i32) {
    %c0_i32 = arith.constant 0 : i32
    %c0_i32_0 = arith.constant 0 : i32
    %c0_i32_1 = arith.constant 0 : i32
    return %c0_i32, %c0_i32_0 : i32, i32
  }
}

module attributes {stable_mosaic.version = 11 : i64} {
  func.func @_cell_prologue_kernel(%arg0: i32, %arg1: memref<128x256xbf16, #tpu.memory_space<vmem>>, %arg2: memref<32x128xbf16, #tpu.memory_space<vmem>>, %arg3: memref<32x128xbf16, #tpu.memory_space<vmem>>, %arg4: memref<256x256xbf16, #tpu.memory_space<vmem>>, %arg5: memref<128x128xbf16, #tpu.memory_space<vmem>>, %arg6: memref<1x128xf32, #tpu.memory_space<vmem>>, %arg7: memref<128x128xbf16, #tpu.memory_space<vmem>>, %arg8: memref<32x128xbf16, #tpu.memory_space<vmem>>, %arg9: memref<32x128xbf16, #tpu.memory_space<vmem>>) attributes {dimension_semantics = [#tpu.dimension_semantics<arbitrary>], iteration_bounds = array<i64: 1>, scalar_prefetch = 0 : i64, scratch_operands = 0 : i64, tpu.core_type = #tpu.core_type<tc>, window_params = [{transform_indices = @transform_0, window_bounds = array<i64: 128, 256>}, {pipeline_mode = #tpu.pipeline_mode<synchronous>, transform_indices = @transform_1, window_bounds = array<i64: 32, 128>}, {pipeline_mode = #tpu.pipeline_mode<synchronous>, transform_indices = @transform_2, window_bounds = array<i64: 32, 128>}, {pipeline_mode = #tpu.pipeline_mode<synchronous>, transform_indices = @transform_3, window_bounds = array<i64: 256, 256>}, {pipeline_mode = #tpu.pipeline_mode<synchronous>, transform_indices = @transform_4, window_bounds = array<i64: 128, 128>}, {pipeline_mode = #tpu.pipeline_mode<synchronous>, transform_indices = @transform_5, window_bounds = array<i64: 1, 128>}, {pipeline_mode = #tpu.pipeline_mode<synchronous>, transform_indices = @transform_6, window_bounds = array<i64: 128, 128>}, {pipeline_mode = #tpu.pipeline_mode<synchronous>, transform_indices = @transform_7, window_bounds = array<i64: 32, 128>}, {pipeline_mode = #tpu.pipeline_mode<synchronous>, transform_indices = @transform_8, window_bounds = array<i64: 32, 128>}]} {
    %c0 = arith.constant 0 : index
    %c0_0 = arith.constant 0 : index
    %0 = vector.load %arg1[%c0, %c0_0] : memref<128x256xbf16, #tpu.memory_space<vmem>>, vector<128x256xbf16>
    %c0_1 = arith.constant 0 : index
    %c0_2 = arith.constant 0 : index
    %1 = vector.load %arg4[%c0_1, %c0_2] : memref<256x256xbf16, #tpu.memory_space<vmem>>, vector<256x256xbf16>
    %cst = arith.constant dense<0.000000e+00> : vector<128x256xf32>
    %2 = tpu.matmul %0, %1, %cst {dimension_numbers = #tpu.dot_dimension_numbers<[1], [0], [0], [1], [0, 0, 1, 1], [], []>} : vector<128x256xbf16>, vector<256x256xbf16>, vector<128x256xf32> -> vector<128x256xf32>
    %3 = vector.extract_strided_slice %2 {offsets = [0, 0], sizes = [128, 128], strides = [1, 1]} : vector<128x256xf32> to vector<128x128xf32>
    %4 = arith.truncf %3 : vector<128x128xf32> to vector<128x128xbf16>
    %c0_3 = arith.constant 0 : index
    %c0_4 = arith.constant 0 : index
    %5 = vector.load %arg7[%c0_3, %c0_4] : memref<128x128xbf16, #tpu.memory_space<vmem>>, vector<128x128xbf16>
    tpu.vector_store %arg7[%c0_3, %c0_4], %4 {strides = array<i32>} : memref<128x128xbf16, #tpu.memory_space<vmem>>, vector<128x128xbf16>,
    %6 = vector.extract_strided_slice %2 {offsets = [0, 128], sizes = [128, 128], strides = [1, 1]} : vector<128x256xf32> to vector<128x128xf32>
    %7 = arith.truncf %6 : vector<128x128xf32> to vector<128x128xbf16>
    %c0_5 = arith.constant 0 : index
    %c0_6 = arith.constant 0 : index
    %8 = vector.load %arg2[%c0_5, %c0_6] : memref<32x128xbf16, #tpu.memory_space<vmem>>, vector<32x128xbf16>
    %c0_7 = arith.constant 0 : index
    %c0_8 = arith.constant 0 : index
    %9 = vector.load %arg5[%c0_7, %c0_8] : memref<128x128xbf16, #tpu.memory_space<vmem>>, vector<128x128xbf16>
    %cst_9 = arith.constant dense<0.000000e+00> : vector<32x128xf32>
    %10 = tpu.matmul %8, %9, %cst_9 {dimension_numbers = #tpu.dot_dimension_numbers<[1], [0], [0], [1], [0, 0, 1, 1], [], []>} : vector<32x128xbf16>, vector<128x128xbf16>, vector<32x128xf32> -> vector<32x128xf32>
    %11 = arith.truncf %10 : vector<32x128xf32> to vector<32x128xbf16>
    %c0_10 = arith.constant 0 : index
    %c0_11 = arith.constant 0 : index
    %12 = vector.load %arg8[%c0_10, %c0_11] : memref<32x128xbf16, #tpu.memory_space<vmem>>, vector<32x128xbf16>
    tpu.vector_store %arg8[%c0_10, %c0_11], %11 {strides = array<i32>} : memref<32x128xbf16, #tpu.memory_space<vmem>>, vector<32x128xbf16>,
    %c0_12 = arith.constant 0 : index
    %c0_13 = arith.constant 0 : index
    %13 = vector.load %arg3[%c0_12, %c0_13] : memref<32x128xbf16, #tpu.memory_space<vmem>>, vector<32x128xbf16>
    %cst_14 = arith.constant dense<0.000000e+00> : vector<32x128xf32>
    %14 = tpu.matmul %13, %7, %cst_14 {dimension_numbers = #tpu.dot_dimension_numbers<[1], [0], [0], [1], [0, 0, 1, 1], [], []>} : vector<32x128xbf16>, vector<128x128xbf16>, vector<32x128xf32> -> vector<32x128xf32>
    %c0_15 = arith.constant 0 : index
    %c0_16 = arith.constant 0 : index
    %15 = vector.load %arg6[%c0_15, %c0_16] : memref<1x128xf32, #tpu.memory_space<vmem>>, vector<1x128xf32>
    %16 = vector.broadcast %15 : vector<1x128xf32> to vector<32x128xf32>
    %17 = arith.addf %14, %16 : vector<32x128xf32>
    %18 = arith.truncf %17 : vector<32x128xf32> to vector<32x128xbf16>
    %c0_17 = arith.constant 0 : index
    %c0_18 = arith.constant 0 : index
    %19 = vector.load %arg9[%c0_17, %c0_18] : memref<32x128xbf16, #tpu.memory_space<vmem>>, vector<32x128xbf16>
    tpu.vector_store %arg9[%c0_17, %c0_18], %18 {strides = array<i32>} : memref<32x128xbf16, #tpu.memory_space<vmem>>, vector<32x128xbf16>,
    return
  }
  func.func @transform_0(%arg0: i32) -> (i32, i32) {
    %c0_i32 = arith.constant 0 : i32
    %c0_i32_0 = arith.constant 0 : i32
    %c0_i32_1 = arith.constant 0 : i32
    return %c0_i32, %c0_i32_0 : i32, i32
  }
  func.func @transform_1(%arg0: i32) -> (i32, i32) {
    %c0_i32 = arith.constant 0 : i32
    %c0_i32_0 = arith.constant 0 : i32
    %c0_i32_1 = arith.constant 0 : i32
    return %c0_i32, %c0_i32_0 : i32, i32
  }
  func.func @transform_2(%arg0: i32) -> (i32, i32) {
    %c0_i32 = arith.constant 0 : i32
    %c0_i32_0 = arith.constant 0 : i32
    %c0_i32_1 = arith.constant 0 : i32
    return %c0_i32, %c0_i32_0 : i32, i32
  }
  func.func @transform_3(%arg0: i32) -> (i32, i32) {
    %c0_i32 = arith.constant 0 : i32
    %c0_i32_0 = arith.constant 0 : i32
    %c0_i32_1 = arith.constant 0 : i32
    return %c0_i32, %c0_i32_0 : i32, i32
  }
  func.func @transform_4(%arg0: i32) -> (i32, i32) {
    %c0_i32 = arith.constant 0 : i32
    %c0_i32_0 = arith.constant 0 : i32
    %c0_i32_1 = arith.constant 0 : i32
    return %c0_i32, %c0_i32_0 : i32, i32
  }
  func.func @transform_5(%arg0: i32) -> (i32, i32) {
    %c0_i32 = arith.constant 0 : i32
    %c0_i32_0 = arith.constant 0 : i32
    %c0_i32_1 = arith.constant 0 : i32
    return %c0_i32, %c0_i32_0 : i32, i32
  }
  func.func @transform_6(%arg0: i32) -> (i32, i32) {
    %c0_i32 = arith.constant 0 : i32
    %c0_i32_0 = arith.constant 0 : i32
    %c0_i32_1 = arith.constant 0 : i32
    return %c0_i32, %c0_i32_0 : i32, i32
  }
  func.func @transform_7(%arg0: i32) -> (i32, i32) {
    %c0_i32 = arith.constant 0 : i32
    %c0_i32_0 = arith.constant 0 : i32
    %c0_i32_1 = arith.constant 0 : i32
    return %c0_i32, %c0_i32_0 : i32, i32
  }
  func.func @transform_8(%arg0: i32) -> (i32, i32) {
    %c0_i32 = arith.constant 0 : i32
    %c0_i32_0 = arith.constant 0 : i32
    %c0_i32_1 = arith.constant 0 : i32
    return %c0_i32, %c0_i32_0 : i32, i32
  }
}

module attributes {stable_mosaic.version = 11 : i64} {
  func.func @_cell_node_kernel(%arg0: i32, %arg1: memref<128x128xbf16, #tpu.memory_space<vmem>>, %arg2: memref<128x32xbf16, #tpu.memory_space<vmem>>, %arg3: memref<128x128xbf16, #tpu.memory_space<vmem>>, %arg4: memref<32x128xbf16, #tpu.memory_space<vmem>>, %arg5: memref<1x128xf32, #tpu.memory_space<vmem>>, %arg6: memref<1x128xf32, #tpu.memory_space<vmem>>, %arg7: memref<128x768xbf16, #tpu.memory_space<any>>, %arg8: memref<128x256xbf16, #tpu.memory_space<vmem>>) attributes {dimension_semantics = [#tpu.dimension_semantics<parallel>], iteration_bounds = array<i64: 1>, scalar_prefetch = 0 : i64, scratch_operands = 0 : i64, tpu.core_type = #tpu.core_type<tc>, window_params = [{transform_indices = @transform_0, window_bounds = array<i64: 128, 128>}, {transform_indices = @transform_1, window_bounds = array<i64: 128, 32>}, {pipeline_mode = #tpu.pipeline_mode<synchronous>, transform_indices = @transform_2, window_bounds = array<i64: 128, 128>}, {pipeline_mode = #tpu.pipeline_mode<synchronous>, transform_indices = @transform_3, window_bounds = array<i64: 32, 128>}, {pipeline_mode = #tpu.pipeline_mode<synchronous>, transform_indices = @transform_4, window_bounds = array<i64: 1, 128>}, {pipeline_mode = #tpu.pipeline_mode<synchronous>, transform_indices = @transform_5, window_bounds = array<i64: 1, 128>}, {}, {transform_indices = @transform_7, window_bounds = array<i64: 128, 256>}]} {
    %c0 = arith.constant 0 : index
    %c0_0 = arith.constant 0 : index
    %0 = vector.load %arg1[%c0, %c0_0] : memref<128x128xbf16, #tpu.memory_space<vmem>>, vector<128x128xbf16>
    %c0_1 = arith.constant 0 : index
    %c0_2 = arith.constant 0 : index
    %1 = vector.load %arg3[%c0_1, %c0_2] : memref<128x128xbf16, #tpu.memory_space<vmem>>, vector<128x128xbf16>
    %cst = arith.constant dense<0.000000e+00> : vector<128x128xf32>
    %2 = tpu.matmul %0, %1, %cst {dimension_numbers = #tpu.dot_dimension_numbers<[1], [0], [0], [1], [0, 0, 1, 1], [], []>} : vector<128x128xbf16>, vector<128x128xbf16>, vector<128x128xf32> -> vector<128x128xf32>
    %c0_3 = arith.constant 0 : index
    %c0_4 = arith.constant 0 : index
    %3 = vector.load %arg5[%c0_3, %c0_4] : memref<1x128xf32, #tpu.memory_space<vmem>>, vector<1x128xf32>
    %4 = vector.broadcast %3 : vector<1x128xf32> to vector<128x128xf32>
    %5 = arith.addf %2, %4 : vector<128x128xf32>
    %cst_5 = arith.constant 0.000000e+00 : f32
    %6 = vector.broadcast %cst_5 : f32 to vector<128x128xf32>
    %7 = arith.maximumf %5, %6 : vector<128x128xf32>
    %c0_6 = arith.constant 0 : index
    %c0_7 = arith.constant 0 : index
    %8 = vector.load %arg2[%c0_6, %c0_7] : memref<128x32xbf16, #tpu.memory_space<vmem>>, vector<128x32xbf16>
    %c0_8 = arith.constant 0 : index
    %c0_9 = arith.constant 0 : index
    %9 = vector.load %arg4[%c0_8, %c0_9] : memref<32x128xbf16, #tpu.memory_space<vmem>>, vector<32x128xbf16>
    %cst_10 = arith.constant dense<0.000000e+00> : vector<128x128xf32>
    %10 = tpu.matmul %8, %9, %cst_10 {dimension_numbers = #tpu.dot_dimension_numbers<[1], [0], [0], [1], [0, 0, 1, 1], [], []>} : vector<128x32xbf16>, vector<32x128xbf16>, vector<128x128xf32> -> vector<128x128xf32>
    %c0_11 = arith.constant 0 : index
    %c0_12 = arith.constant 0 : index
    %11 = vector.load %arg6[%c0_11, %c0_12] : memref<1x128xf32, #tpu.memory_space<vmem>>, vector<1x128xf32>
    %12 = vector.broadcast %11 : vector<1x128xf32> to vector<128x128xf32>
    %13 = arith.addf %10, %12 : vector<128x128xf32>
    %14 = arith.truncf %7 : vector<128x128xf32> to vector<128x128xbf16>
    %c0_13 = arith.constant 0 : index
    %c0_14 = arith.constant 0 : index
    %15 = vector.load %arg8[%c0_13, %c0_14] : memref<128x256xbf16, #tpu.memory_space<vmem>>, vector<128x128xbf16>
    tpu.vector_store %arg8[%c0_13, %c0_14], %14 {strides = array<i32>} : memref<128x256xbf16, #tpu.memory_space<vmem>>, vector<128x128xbf16>,
    %16 = arith.truncf %13 : vector<128x128xf32> to vector<128x128xbf16>
    %c0_15 = arith.constant 0 : index
    %c128 = arith.constant 128 : index
    %17 = vector.load %arg8[%c0_15, %c128] : memref<128x256xbf16, #tpu.memory_space<vmem>>, vector<128x128xbf16>
    tpu.vector_store %arg8[%c0_15, %c128], %16 {strides = array<i32>} : memref<128x256xbf16, #tpu.memory_space<vmem>>, vector<128x128xbf16>,
    return
  }
  func.func @transform_0(%arg0: i32) -> (i32, i32) {
    %c0_i32 = arith.constant 0 : i32
    %c0_i32_0 = arith.constant 0 : i32
    return %arg0, %c0_i32 : i32, i32
  }
  func.func @transform_1(%arg0: i32) -> (i32, i32) {
    %c0_i32 = arith.constant 0 : i32
    %c0_i32_0 = arith.constant 0 : i32
    return %arg0, %c0_i32 : i32, i32
  }
  func.func @transform_2(%arg0: i32) -> (i32, i32) {
    %c0_i32 = arith.constant 0 : i32
    %c0_i32_0 = arith.constant 0 : i32
    %c0_i32_1 = arith.constant 0 : i32
    return %c0_i32, %c0_i32_0 : i32, i32
  }
  func.func @transform_3(%arg0: i32) -> (i32, i32) {
    %c0_i32 = arith.constant 0 : i32
    %c0_i32_0 = arith.constant 0 : i32
    %c0_i32_1 = arith.constant 0 : i32
    return %c0_i32, %c0_i32_0 : i32, i32
  }
  func.func @transform_4(%arg0: i32) -> (i32, i32) {
    %c0_i32 = arith.constant 0 : i32
    %c0_i32_0 = arith.constant 0 : i32
    %c0_i32_1 = arith.constant 0 : i32
    return %c0_i32, %c0_i32_0 : i32, i32
  }
  func.func @transform_5(%arg0: i32) -> (i32, i32) {
    %c0_i32 = arith.constant 0 : i32
    %c0_i32_0 = arith.constant 0 : i32
    %c0_i32_1 = arith.constant 0 : i32
    return %c0_i32, %c0_i32_0 : i32, i32
  }
  func.func @transform_7(%arg0: i32) -> (i32, i32) {
    %c1_i32 = arith.constant 1 : i32
    %c0_i32 = arith.constant 0 : i32
    return %arg0, %c1_i32 : i32, i32
  }
}

module attributes {stable_mosaic.version = 11 : i64} {
  func.func @_cell_node_kernel(%arg0: i32, %arg1: memref<128x128xbf16, #tpu.memory_space<vmem>>, %arg2: memref<128x32xbf16, #tpu.memory_space<vmem>>, %arg3: memref<128x128xbf16, #tpu.memory_space<vmem>>, %arg4: memref<32x128xbf16, #tpu.memory_space<vmem>>, %arg5: memref<1x128xf32, #tpu.memory_space<vmem>>, %arg6: memref<1x128xf32, #tpu.memory_space<vmem>>, %arg7: memref<128x768xbf16, #tpu.memory_space<any>>, %arg8: memref<128x256xbf16, #tpu.memory_space<vmem>>) attributes {dimension_semantics = [#tpu.dimension_semantics<parallel>], iteration_bounds = array<i64: 1>, scalar_prefetch = 0 : i64, scratch_operands = 0 : i64, tpu.core_type = #tpu.core_type<tc>, window_params = [{transform_indices = @transform_0, window_bounds = array<i64: 128, 128>}, {transform_indices = @transform_1, window_bounds = array<i64: 128, 32>}, {pipeline_mode = #tpu.pipeline_mode<synchronous>, transform_indices = @transform_2, window_bounds = array<i64: 128, 128>}, {pipeline_mode = #tpu.pipeline_mode<synchronous>, transform_indices = @transform_3, window_bounds = array<i64: 32, 128>}, {pipeline_mode = #tpu.pipeline_mode<synchronous>, transform_indices = @transform_4, window_bounds = array<i64: 1, 128>}, {pipeline_mode = #tpu.pipeline_mode<synchronous>, transform_indices = @transform_5, window_bounds = array<i64: 1, 128>}, {}, {transform_indices = @transform_7, window_bounds = array<i64: 128, 256>}]} {
    %c0 = arith.constant 0 : index
    %c0_0 = arith.constant 0 : index
    %0 = vector.load %arg1[%c0, %c0_0] : memref<128x128xbf16, #tpu.memory_space<vmem>>, vector<128x128xbf16>
    %c0_1 = arith.constant 0 : index
    %c0_2 = arith.constant 0 : index
    %1 = vector.load %arg3[%c0_1, %c0_2] : memref<128x128xbf16, #tpu.memory_space<vmem>>, vector<128x128xbf16>
    %cst = arith.constant dense<0.000000e+00> : vector<128x128xf32>
    %2 = tpu.matmul %0, %1, %cst {dimension_numbers = #tpu.dot_dimension_numbers<[1], [0], [0], [1], [0, 0, 1, 1], [], []>} : vector<128x128xbf16>, vector<128x128xbf16>, vector<128x128xf32> -> vector<128x128xf32>
    %c0_3 = arith.constant 0 : index
    %c0_4 = arith.constant 0 : index
    %3 = vector.load %arg5[%c0_3, %c0_4] : memref<1x128xf32, #tpu.memory_space<vmem>>, vector<1x128xf32>
    %4 = vector.broadcast %3 : vector<1x128xf32> to vector<128x128xf32>
    %5 = arith.addf %2, %4 : vector<128x128xf32>
    %cst_5 = arith.constant 0.000000e+00 : f32
    %6 = vector.broadcast %cst_5 : f32 to vector<128x128xf32>
    %7 = arith.maximumf %5, %6 : vector<128x128xf32>
    %c0_6 = arith.constant 0 : index
    %c0_7 = arith.constant 0 : index
    %8 = vector.load %arg2[%c0_6, %c0_7] : memref<128x32xbf16, #tpu.memory_space<vmem>>, vector<128x32xbf16>
    %c0_8 = arith.constant 0 : index
    %c0_9 = arith.constant 0 : index
    %9 = vector.load %arg4[%c0_8, %c0_9] : memref<32x128xbf16, #tpu.memory_space<vmem>>, vector<32x128xbf16>
    %cst_10 = arith.constant dense<0.000000e+00> : vector<128x128xf32>
    %10 = tpu.matmul %8, %9, %cst_10 {dimension_numbers = #tpu.dot_dimension_numbers<[1], [0], [0], [1], [0, 0, 1, 1], [], []>} : vector<128x32xbf16>, vector<32x128xbf16>, vector<128x128xf32> -> vector<128x128xf32>
    %c0_11 = arith.constant 0 : index
    %c0_12 = arith.constant 0 : index
    %11 = vector.load %arg6[%c0_11, %c0_12] : memref<1x128xf32, #tpu.memory_space<vmem>>, vector<1x128xf32>
    %12 = vector.broadcast %11 : vector<1x128xf32> to vector<128x128xf32>
    %13 = arith.addf %10, %12 : vector<128x128xf32>
    %14 = arith.truncf %7 : vector<128x128xf32> to vector<128x128xbf16>
    %c0_13 = arith.constant 0 : index
    %c0_14 = arith.constant 0 : index
    %15 = vector.load %arg8[%c0_13, %c0_14] : memref<128x256xbf16, #tpu.memory_space<vmem>>, vector<128x128xbf16>
    tpu.vector_store %arg8[%c0_13, %c0_14], %14 {strides = array<i32>} : memref<128x256xbf16, #tpu.memory_space<vmem>>, vector<128x128xbf16>,
    %16 = arith.truncf %13 : vector<128x128xf32> to vector<128x128xbf16>
    %c0_15 = arith.constant 0 : index
    %c128 = arith.constant 128 : index
    %17 = vector.load %arg8[%c0_15, %c128] : memref<128x256xbf16, #tpu.memory_space<vmem>>, vector<128x128xbf16>
    tpu.vector_store %arg8[%c0_15, %c128], %16 {strides = array<i32>} : memref<128x256xbf16, #tpu.memory_space<vmem>>, vector<128x128xbf16>,
    return
  }
  func.func @transform_0(%arg0: i32) -> (i32, i32) {
    %c0_i32 = arith.constant 0 : i32
    %c0_i32_0 = arith.constant 0 : i32
    return %arg0, %c0_i32 : i32, i32
  }
  func.func @transform_1(%arg0: i32) -> (i32, i32) {
    %c0_i32 = arith.constant 0 : i32
    %c0_i32_0 = arith.constant 0 : i32
    return %arg0, %c0_i32 : i32, i32
  }
  func.func @transform_2(%arg0: i32) -> (i32, i32) {
    %c0_i32 = arith.constant 0 : i32
    %c0_i32_0 = arith.constant 0 : i32
    %c0_i32_1 = arith.constant 0 : i32
    return %c0_i32, %c0_i32_0 : i32, i32
  }
  func.func @transform_3(%arg0: i32) -> (i32, i32) {
    %c0_i32 = arith.constant 0 : i32
    %c0_i32_0 = arith.constant 0 : i32
    %c0_i32_1 = arith.constant 0 : i32
    return %c0_i32, %c0_i32_0 : i32, i32
  }
  func.func @transform_4(%arg0: i32) -> (i32, i32) {
    %c0_i32 = arith.constant 0 : i32
    %c0_i32_0 = arith.constant 0 : i32
    %c0_i32_1 = arith.constant 0 : i32
    return %c0_i32, %c0_i32_0 : i32, i32
  }
  func.func @transform_5(%arg0: i32) -> (i32, i32) {
    %c0_i32 = arith.constant 0 : i32
    %c0_i32_0 = arith.constant 0 : i32
    %c0_i32_1 = arith.constant 0 : i32
    return %c0_i32, %c0_i32_0 : i32, i32
  }
  func.func @transform_7(%arg0: i32) -> (i32, i32) {
    %c0_i32 = arith.constant 0 : i32
    %c0_i32_0 = arith.constant 0 : i32
    return %arg0, %c0_i32 : i32, i32
  }
}

module attributes {stable_mosaic.version = 11 : i64} {
  func.func @_cell_prologue_kernel(%arg0: i32, %arg1: memref<128x256xbf16, #tpu.memory_space<vmem>>, %arg2: memref<32x128xbf16, #tpu.memory_space<vmem>>, %arg3: memref<32x128xbf16, #tpu.memory_space<vmem>>, %arg4: memref<256x256xbf16, #tpu.memory_space<vmem>>, %arg5: memref<128x128xbf16, #tpu.memory_space<vmem>>, %arg6: memref<1x128xf32, #tpu.memory_space<vmem>>, %arg7: memref<128x128xbf16, #tpu.memory_space<vmem>>, %arg8: memref<32x128xbf16, #tpu.memory_space<vmem>>, %arg9: memref<32x128xbf16, #tpu.memory_space<vmem>>) attributes {dimension_semantics = [#tpu.dimension_semantics<arbitrary>], iteration_bounds = array<i64: 1>, scalar_prefetch = 0 : i64, scratch_operands = 0 : i64, tpu.core_type = #tpu.core_type<tc>, window_params = [{transform_indices = @transform_0, window_bounds = array<i64: 128, 256>}, {pipeline_mode = #tpu.pipeline_mode<synchronous>, transform_indices = @transform_1, window_bounds = array<i64: 32, 128>}, {pipeline_mode = #tpu.pipeline_mode<synchronous>, transform_indices = @transform_2, window_bounds = array<i64: 32, 128>}, {pipeline_mode = #tpu.pipeline_mode<synchronous>, transform_indices = @transform_3, window_bounds = array<i64: 256, 256>}, {pipeline_mode = #tpu.pipeline_mode<synchronous>, transform_indices = @transform_4, window_bounds = array<i64: 128, 128>}, {pipeline_mode = #tpu.pipeline_mode<synchronous>, transform_indices = @transform_5, window_bounds = array<i64: 1, 128>}, {pipeline_mode = #tpu.pipeline_mode<synchronous>, transform_indices = @transform_6, window_bounds = array<i64: 128, 128>}, {pipeline_mode = #tpu.pipeline_mode<synchronous>, transform_indices = @transform_7, window_bounds = array<i64: 32, 128>}, {pipeline_mode = #tpu.pipeline_mode<synchronous>, transform_indices = @transform_8, window_bounds = array<i64: 32, 128>}]} {
    %c0 = arith.constant 0 : index
    %c0_0 = arith.constant 0 : index
    %0 = vector.load %arg1[%c0, %c0_0] : memref<128x256xbf16, #tpu.memory_space<vmem>>, vector<128x256xbf16>
    %c0_1 = arith.constant 0 : index
    %c0_2 = arith.constant 0 : index
    %1 = vector.load %arg4[%c0_1, %c0_2] : memref<256x256xbf16, #tpu.memory_space<vmem>>, vector<256x256xbf16>
    %cst = arith.constant dense<0.000000e+00> : vector<128x256xf32>
    %2 = tpu.matmul %0, %1, %cst {dimension_numbers = #tpu.dot_dimension_numbers<[1], [0], [0], [1], [0, 0, 1, 1], [], []>} : vector<128x256xbf16>, vector<256x256xbf16>, vector<128x256xf32> -> vector<128x256xf32>
    %3 = vector.extract_strided_slice %2 {offsets = [0, 0], sizes = [128, 128], strides = [1, 1]} : vector<128x256xf32> to vector<128x128xf32>
    %4 = arith.truncf %3 : vector<128x128xf32> to vector<128x128xbf16>
    %c0_3 = arith.constant 0 : index
    %c0_4 = arith.constant 0 : index
    %5 = vector.load %arg7[%c0_3, %c0_4] : memref<128x128xbf16, #tpu.memory_space<vmem>>, vector<128x128xbf16>
    tpu.vector_store %arg7[%c0_3, %c0_4], %4 {strides = array<i32>} : memref<128x128xbf16, #tpu.memory_space<vmem>>, vector<128x128xbf16>,
    %6 = vector.extract_strided_slice %2 {offsets = [0, 128], sizes = [128, 128], strides = [1, 1]} : vector<128x256xf32> to vector<128x128xf32>
    %7 = arith.truncf %6 : vector<128x128xf32> to vector<128x128xbf16>
    %c0_5 = arith.constant 0 : index
    %c0_6 = arith.constant 0 : index
    %8 = vector.load %arg2[%c0_5, %c0_6] : memref<32x128xbf16, #tpu.memory_space<vmem>>, vector<32x128xbf16>
    %c0_7 = arith.constant 0 : index
    %c0_8 = arith.constant 0 : index
    %9 = vector.load %arg5[%c0_7, %c0_8] : memref<128x128xbf16, #tpu.memory_space<vmem>>, vector<128x128xbf16>
    %cst_9 = arith.constant dense<0.000000e+00> : vector<32x128xf32>
    %10 = tpu.matmul %8, %9, %cst_9 {dimension_numbers = #tpu.dot_dimension_numbers<[1], [0], [0], [1], [0, 0, 1, 1], [], []>} : vector<32x128xbf16>, vector<128x128xbf16>, vector<32x128xf32> -> vector<32x128xf32>
    %11 = arith.truncf %10 : vector<32x128xf32> to vector<32x128xbf16>
    %c0_10 = arith.constant 0 : index
    %c0_11 = arith.constant 0 : index
    %12 = vector.load %arg8[%c0_10, %c0_11] : memref<32x128xbf16, #tpu.memory_space<vmem>>, vector<32x128xbf16>
    tpu.vector_store %arg8[%c0_10, %c0_11], %11 {strides = array<i32>} : memref<32x128xbf16, #tpu.memory_space<vmem>>, vector<32x128xbf16>,
    %c0_12 = arith.constant 0 : index
    %c0_13 = arith.constant 0 : index
    %13 = vector.load %arg3[%c0_12, %c0_13] : memref<32x128xbf16, #tpu.memory_space<vmem>>, vector<32x128xbf16>
    %cst_14 = arith.constant dense<0.000000e+00> : vector<32x128xf32>
    %14 = tpu.matmul %13, %7, %cst_14 {dimension_numbers = #tpu.dot_dimension_numbers<[1], [0], [0], [1], [0, 0, 1, 1], [], []>} : vector<32x128xbf16>, vector<128x128xbf16>, vector<32x128xf32> -> vector<32x128xf32>
    %c0_15 = arith.constant 0 : index
    %c0_16 = arith.constant 0 : index
    %15 = vector.load %arg6[%c0_15, %c0_16] : memref<1x128xf32, #tpu.memory_space<vmem>>, vector<1x128xf32>
    %16 = vector.broadcast %15 : vector<1x128xf32> to vector<32x128xf32>
    %17 = arith.addf %14, %16 : vector<32x128xf32>
    %18 = arith.truncf %17 : vector<32x128xf32> to vector<32x128xbf16>
    %c0_17 = arith.constant 0 : index
    %c0_18 = arith.constant 0 : index
    %19 = vector.load %arg9[%c0_17, %c0_18] : memref<32x128xbf16, #tpu.memory_space<vmem>>, vector<32x128xbf16>
    tpu.vector_store %arg9[%c0_17, %c0_18], %18 {strides = array<i32>} : memref<32x128xbf16, #tpu.memory_space<vmem>>, vector<32x128xbf16>,
    return
  }
  func.func @transform_0(%arg0: i32) -> (i32, i32) {
    %c0_i32 = arith.constant 0 : i32
    %c1_i32 = arith.constant 1 : i32
    %c0_i32_0 = arith.constant 0 : i32
    return %c0_i32, %c1_i32 : i32, i32
  }
  func.func @transform_1(%arg0: i32) -> (i32, i32) {
    %c0_i32 = arith.constant 0 : i32
    %c0_i32_0 = arith.constant 0 : i32
    %c0_i32_1 = arith.constant 0 : i32
    return %c0_i32, %c0_i32_0 : i32, i32
  }
  func.func @transform_2(%arg0: i32) -> (i32, i32) {
    %c0_i32 = arith.constant 0 : i32
    %c0_i32_0 = arith.constant 0 : i32
    %c0_i32_1 = arith.constant 0 : i32
    return %c0_i32, %c0_i32_0 : i32, i32
  }
  func.func @transform_3(%arg0: i32) -> (i32, i32) {
    %c0_i32 = arith.constant 0 : i32
    %c0_i32_0 = arith.constant 0 : i32
    %c0_i32_1 = arith.constant 0 : i32
    return %c0_i32, %c0_i32_0 : i32, i32
  }
  func.func @transform_4(%arg0: i32) -> (i32, i32) {
    %c0_i32 = arith.constant 0 : i32
    %c0_i32_0 = arith.constant 0 : i32
    %c0_i32_1 = arith.constant 0 : i32
    return %c0_i32, %c0_i32_0 : i32, i32
  }
  func.func @transform_5(%arg0: i32) -> (i32, i32) {
    %c0_i32 = arith.constant 0 : i32
    %c0_i32_0 = arith.constant 0 : i32
    %c0_i32_1 = arith.constant 0 : i32
    return %c0_i32, %c0_i32_0 : i32, i32
  }
  func.func @transform_6(%arg0: i32) -> (i32, i32) {
    %c0_i32 = arith.constant 0 : i32
    %c0_i32_0 = arith.constant 0 : i32
    %c0_i32_1 = arith.constant 0 : i32
    return %c0_i32, %c0_i32_0 : i32, i32
  }
  func.func @transform_7(%arg0: i32) -> (i32, i32) {
    %c0_i32 = arith.constant 0 : i32
    %c0_i32_0 = arith.constant 0 : i32
    %c0_i32_1 = arith.constant 0 : i32
    return %c0_i32, %c0_i32_0 : i32, i32
  }
  func.func @transform_8(%arg0: i32) -> (i32, i32) {
    %c0_i32 = arith.constant 0 : i32
    %c0_i32_0 = arith.constant 0 : i32
    %c0_i32_1 = arith.constant 0 : i32
    return %c0_i32, %c0_i32_0 : i32, i32
  }
}

module attributes {stable_mosaic.version = 11 : i64} {
  func.func @_cell_node_kernel(%arg0: i32, %arg1: memref<128x128xbf16, #tpu.memory_space<vmem>>, %arg2: memref<128x32xbf16, #tpu.memory_space<vmem>>, %arg3: memref<128x128xbf16, #tpu.memory_space<vmem>>, %arg4: memref<32x128xbf16, #tpu.memory_space<vmem>>, %arg5: memref<1x128xf32, #tpu.memory_space<vmem>>, %arg6: memref<1x128xf32, #tpu.memory_space<vmem>>, %arg7: memref<128x768xbf16, #tpu.memory_space<any>>, %arg8: memref<128x256xbf16, #tpu.memory_space<vmem>>) attributes {dimension_semantics = [#tpu.dimension_semantics<parallel>], iteration_bounds = array<i64: 1>, scalar_prefetch = 0 : i64, scratch_operands = 0 : i64, tpu.core_type = #tpu.core_type<tc>, window_params = [{transform_indices = @transform_0, window_bounds = array<i64: 128, 128>}, {transform_indices = @transform_1, window_bounds = array<i64: 128, 32>}, {pipeline_mode = #tpu.pipeline_mode<synchronous>, transform_indices = @transform_2, window_bounds = array<i64: 128, 128>}, {pipeline_mode = #tpu.pipeline_mode<synchronous>, transform_indices = @transform_3, window_bounds = array<i64: 32, 128>}, {pipeline_mode = #tpu.pipeline_mode<synchronous>, transform_indices = @transform_4, window_bounds = array<i64: 1, 128>}, {pipeline_mode = #tpu.pipeline_mode<synchronous>, transform_indices = @transform_5, window_bounds = array<i64: 1, 128>}, {}, {transform_indices = @transform_7, window_bounds = array<i64: 128, 256>}]} {
    %c0 = arith.constant 0 : index
    %c0_0 = arith.constant 0 : index
    %0 = vector.load %arg1[%c0, %c0_0] : memref<128x128xbf16, #tpu.memory_space<vmem>>, vector<128x128xbf16>
    %c0_1 = arith.constant 0 : index
    %c0_2 = arith.constant 0 : index
    %1 = vector.load %arg3[%c0_1, %c0_2] : memref<128x128xbf16, #tpu.memory_space<vmem>>, vector<128x128xbf16>
    %cst = arith.constant dense<0.000000e+00> : vector<128x128xf32>
    %2 = tpu.matmul %0, %1, %cst {dimension_numbers = #tpu.dot_dimension_numbers<[1], [0], [0], [1], [0, 0, 1, 1], [], []>} : vector<128x128xbf16>, vector<128x128xbf16>, vector<128x128xf32> -> vector<128x128xf32>
    %c0_3 = arith.constant 0 : index
    %c0_4 = arith.constant 0 : index
    %3 = vector.load %arg5[%c0_3, %c0_4] : memref<1x128xf32, #tpu.memory_space<vmem>>, vector<1x128xf32>
    %4 = vector.broadcast %3 : vector<1x128xf32> to vector<128x128xf32>
    %5 = arith.addf %2, %4 : vector<128x128xf32>
    %cst_5 = arith.constant 0.000000e+00 : f32
    %6 = vector.broadcast %cst_5 : f32 to vector<128x128xf32>
    %7 = arith.maximumf %5, %6 : vector<128x128xf32>
    %c0_6 = arith.constant 0 : index
    %c0_7 = arith.constant 0 : index
    %8 = vector.load %arg2[%c0_6, %c0_7] : memref<128x32xbf16, #tpu.memory_space<vmem>>, vector<128x32xbf16>
    %c0_8 = arith.constant 0 : index
    %c0_9 = arith.constant 0 : index
    %9 = vector.load %arg4[%c0_8, %c0_9] : memref<32x128xbf16, #tpu.memory_space<vmem>>, vector<32x128xbf16>
    %cst_10 = arith.constant dense<0.000000e+00> : vector<128x128xf32>
    %10 = tpu.matmul %8, %9, %cst_10 {dimension_numbers = #tpu.dot_dimension_numbers<[1], [0], [0], [1], [0, 0, 1, 1], [], []>} : vector<128x32xbf16>, vector<32x128xbf16>, vector<128x128xf32> -> vector<128x128xf32>
    %c0_11 = arith.constant 0 : index
    %c0_12 = arith.constant 0 : index
    %11 = vector.load %arg6[%c0_11, %c0_12] : memref<1x128xf32, #tpu.memory_space<vmem>>, vector<1x128xf32>
    %12 = vector.broadcast %11 : vector<1x128xf32> to vector<128x128xf32>
    %13 = arith.addf %10, %12 : vector<128x128xf32>
    %14 = arith.truncf %7 : vector<128x128xf32> to vector<128x128xbf16>
    %c0_13 = arith.constant 0 : index
    %c0_14 = arith.constant 0 : index
    %15 = vector.load %arg8[%c0_13, %c0_14] : memref<128x256xbf16, #tpu.memory_space<vmem>>, vector<128x128xbf16>
    tpu.vector_store %arg8[%c0_13, %c0_14], %14 {strides = array<i32>} : memref<128x256xbf16, #tpu.memory_space<vmem>>, vector<128x128xbf16>,
    %16 = arith.truncf %13 : vector<128x128xf32> to vector<128x128xbf16>
    %c0_15 = arith.constant 0 : index
    %c128 = arith.constant 128 : index
    %17 = vector.load %arg8[%c0_15, %c128] : memref<128x256xbf16, #tpu.memory_space<vmem>>, vector<128x128xbf16>
    tpu.vector_store %arg8[%c0_15, %c128], %16 {strides = array<i32>} : memref<128x256xbf16, #tpu.memory_space<vmem>>, vector<128x128xbf16>,
    return
  }
  func.func @transform_0(%arg0: i32) -> (i32, i32) {
    %c0_i32 = arith.constant 0 : i32
    %c0_i32_0 = arith.constant 0 : i32
    return %arg0, %c0_i32 : i32, i32
  }
  func.func @transform_1(%arg0: i32) -> (i32, i32) {
    %c0_i32 = arith.constant 0 : i32
    %c0_i32_0 = arith.constant 0 : i32
    return %arg0, %c0_i32 : i32, i32
  }
  func.func @transform_2(%arg0: i32) -> (i32, i32) {
    %c0_i32 = arith.constant 0 : i32
    %c0_i32_0 = arith.constant 0 : i32
    %c0_i32_1 = arith.constant 0 : i32
    return %c0_i32, %c0_i32_0 : i32, i32
  }
  func.func @transform_3(%arg0: i32) -> (i32, i32) {
    %c0_i32 = arith.constant 0 : i32
    %c0_i32_0 = arith.constant 0 : i32
    %c0_i32_1 = arith.constant 0 : i32
    return %c0_i32, %c0_i32_0 : i32, i32
  }
  func.func @transform_4(%arg0: i32) -> (i32, i32) {
    %c0_i32 = arith.constant 0 : i32
    %c0_i32_0 = arith.constant 0 : i32
    %c0_i32_1 = arith.constant 0 : i32
    return %c0_i32, %c0_i32_0 : i32, i32
  }
  func.func @transform_5(%arg0: i32) -> (i32, i32) {
    %c0_i32 = arith.constant 0 : i32
    %c0_i32_0 = arith.constant 0 : i32
    %c0_i32_1 = arith.constant 0 : i32
    return %c0_i32, %c0_i32_0 : i32, i32
  }
  func.func @transform_7(%arg0: i32) -> (i32, i32) {
    %c2_i32 = arith.constant 2 : i32
    %c0_i32 = arith.constant 0 : i32
    return %arg0, %c2_i32 : i32, i32
  }
}

module attributes {stable_mosaic.version = 11 : i64} {
  func.func @_post_kernel(%arg0: i32, %arg1: memref<64x768xbf16, #tpu.memory_space<vmem>>, %arg2: memref<64x768xbf16, #tpu.memory_space<vmem>>, %arg3: memref<768x256xbf16, #tpu.memory_space<vmem>>, %arg4: memref<1x256xf32, #tpu.memory_space<vmem>>, %arg5: memref<256x256xbf16, #tpu.memory_space<vmem>>, %arg6: memref<1x256xf32, #tpu.memory_space<vmem>>, %arg7: memref<768x256xbf16, #tpu.memory_space<vmem>>, %arg8: memref<1x256xf32, #tpu.memory_space<vmem>>, %arg9: memref<256x256xbf16, #tpu.memory_space<vmem>>, %arg10: memref<1x256xf32, #tpu.memory_space<vmem>>, %arg11: memref<1x256xf32, #tpu.memory_space<vmem>>, %arg12: memref<1x1xf32, #tpu.memory_space<vmem>>, %arg13: memref<64x1xf32, #tpu.memory_space<vmem>>) attributes {dimension_semantics = [#tpu.dimension_semantics<parallel>], iteration_bounds = array<i64: 1>, scalar_prefetch = 0 : i64, scratch_operands = 0 : i64, tpu.core_type = #tpu.core_type<tc>, window_params = [{transform_indices = @transform_0, window_bounds = array<i64: 64, 768>}, {transform_indices = @transform_1, window_bounds = array<i64: 64, 768>}, {pipeline_mode = #tpu.pipeline_mode<synchronous>, transform_indices = @transform_2, window_bounds = array<i64: 768, 256>}, {pipeline_mode = #tpu.pipeline_mode<synchronous>, transform_indices = @transform_3, window_bounds = array<i64: 1, 256>}, {pipeline_mode = #tpu.pipeline_mode<synchronous>, transform_indices = @transform_4, window_bounds = array<i64: 256, 256>}, {pipeline_mode = #tpu.pipeline_mode<synchronous>, transform_indices = @transform_5, window_bounds = array<i64: 1, 256>}, {pipeline_mode = #tpu.pipeline_mode<synchronous>, transform_indices = @transform_6, window_bounds = array<i64: 768, 256>}, {pipeline_mode = #tpu.pipeline_mode<synchronous>, transform_indices = @transform_7, window_bounds = array<i64: 1, 256>}, {pipeline_mode = #tpu.pipeline_mode<synchronous>, transform_indices = @transform_8, window_bounds = array<i64: 256, 256>}, {pipeline_mode = #tpu.pipeline_mode<synchronous>, transform_indices = @transform_9, window_bounds = array<i64: 1, 256>}, {pipeline_mode = #tpu.pipeline_mode<synchronous>, transform_indices = @transform_10, window_bounds = array<i64: 1, 256>}, {pipeline_mode = #tpu.pipeline_mode<synchronous>, transform_indices = @transform_11, window_bounds = array<i64: 1, 1>}, {transform_indices = @transform_12, window_bounds = array<i64: 64, 1>}]} {
    %c0 = arith.constant 0 : index
    %c0_0 = arith.constant 0 : index
    %0 = vector.load %arg1[%c0, %c0_0] : memref<64x768xbf16, #tpu.memory_space<vmem>>, vector<64x768xbf16>
    %c0_1 = arith.constant 0 : index
    %c0_2 = arith.constant 0 : index
    %1 = vector.load %arg3[%c0_1, %c0_2] : memref<768x256xbf16, #tpu.memory_space<vmem>>, vector<768x256xbf16>
    %cst = arith.constant dense<0.000000e+00> : vector<64x256xf32>
    %2 = tpu.matmul %0, %1, %cst {dimension_numbers = #tpu.dot_dimension_numbers<[1], [0], [0], [1], [0, 0, 1, 1], [], []>} : vector<64x768xbf16>, vector<768x256xbf16>, vector<64x256xf32> -> vector<64x256xf32>
    %c0_3 = arith.constant 0 : index
    %c0_4 = arith.constant 0 : index
    %3 = vector.load %arg4[%c0_3, %c0_4] : memref<1x256xf32, #tpu.memory_space<vmem>>, vector<1x256xf32>
    %4 = vector.broadcast %3 : vector<1x256xf32> to vector<64x256xf32>
    %5 = arith.addf %2, %4 : vector<64x256xf32>
    %cst_5 = arith.constant 0.000000e+00 : f32
    %6 = vector.broadcast %cst_5 : f32 to vector<64x256xf32>
    %7 = arith.maximumf %5, %6 : vector<64x256xf32>
    %8 = arith.truncf %7 : vector<64x256xf32> to vector<64x256xbf16>
    %c0_6 = arith.constant 0 : index
    %c0_7 = arith.constant 0 : index
    %9 = vector.load %arg5[%c0_6, %c0_7] : memref<256x256xbf16, #tpu.memory_space<vmem>>, vector<256x256xbf16>
    %cst_8 = arith.constant dense<0.000000e+00> : vector<64x256xf32>
    %10 = tpu.matmul %8, %9, %cst_8 {dimension_numbers = #tpu.dot_dimension_numbers<[1], [0], [0], [1], [0, 0, 1, 1], [], []>} : vector<64x256xbf16>, vector<256x256xbf16>, vector<64x256xf32> -> vector<64x256xf32>
    %c0_9 = arith.constant 0 : index
    %c0_10 = arith.constant 0 : index
    %11 = vector.load %arg6[%c0_9, %c0_10] : memref<1x256xf32, #tpu.memory_space<vmem>>, vector<1x256xf32>
    %12 = vector.broadcast %11 : vector<1x256xf32> to vector<64x256xf32>
    %13 = arith.addf %10, %12 : vector<64x256xf32>
    %c0_11 = arith.constant 0 : index
    %c0_12 = arith.constant 0 : index
    %14 = vector.load %arg2[%c0_11, %c0_12] : memref<64x768xbf16, #tpu.memory_space<vmem>>, vector<64x768xbf16>
    %c0_13 = arith.constant 0 : index
    %c0_14 = arith.constant 0 : index
    %15 = vector.load %arg7[%c0_13, %c0_14] : memref<768x256xbf16, #tpu.memory_space<vmem>>, vector<768x256xbf16>
    %cst_15 = arith.constant dense<0.000000e+00> : vector<64x256xf32>
    %16 = tpu.matmul %14, %15, %cst_15 {dimension_numbers = #tpu.dot_dimension_numbers<[1], [0], [0], [1], [0, 0, 1, 1], [], []>} : vector<64x768xbf16>, vector<768x256xbf16>, vector<64x256xf32> -> vector<64x256xf32>
    %c0_16 = arith.constant 0 : index
    %c0_17 = arith.constant 0 : index
    %17 = vector.load %arg8[%c0_16, %c0_17] : memref<1x256xf32, #tpu.memory_space<vmem>>, vector<1x256xf32>
    %18 = vector.broadcast %17 : vector<1x256xf32> to vector<64x256xf32>
    %19 = arith.addf %16, %18 : vector<64x256xf32>
    %cst_18 = arith.constant 0.000000e+00 : f32
    %20 = vector.broadcast %cst_18 : f32 to vector<64x256xf32>
    %21 = arith.maximumf %19, %20 : vector<64x256xf32>
    %22 = arith.truncf %21 : vector<64x256xf32> to vector<64x256xbf16>
    %c0_19 = arith.constant 0 : index
    %c0_20 = arith.constant 0 : index
    %23 = vector.load %arg9[%c0_19, %c0_20] : memref<256x256xbf16, #tpu.memory_space<vmem>>, vector<256x256xbf16>
    %cst_21 = arith.constant dense<0.000000e+00> : vector<64x256xf32>
    %24 = tpu.matmul %22, %23, %cst_21 {dimension_numbers = #tpu.dot_dimension_numbers<[1], [0], [0], [1], [0, 0, 1, 1], [], []>} : vector<64x256xbf16>, vector<256x256xbf16>, vector<64x256xf32> -> vector<64x256xf32>
    %c0_22 = arith.constant 0 : index
    %c0_23 = arith.constant 0 : index
    %25 = vector.load %arg10[%c0_22, %c0_23] : memref<1x256xf32, #tpu.memory_space<vmem>>, vector<1x256xf32>
    %26 = vector.broadcast %25 : vector<1x256xf32> to vector<64x256xf32>
    %27 = arith.addf %24, %26 : vector<64x256xf32>
    %28 = arith.mulf %13, %27 : vector<64x256xf32>
    %c0_24 = arith.constant 0 : index
    %c0_25 = arith.constant 0 : index
    %29 = vector.load %arg11[%c0_24, %c0_25] : memref<1x256xf32, #tpu.memory_space<vmem>>, vector<1x256xf32>
    %30 = vector.broadcast %29 : vector<1x256xf32> to vector<64x256xf32>
    %31 = arith.mulf %28, %30 : vector<64x256xf32>
    %cst_26 = arith.constant dense<0.000000e+00> : vector<64xf32>
    %32 = vector.multi_reduction <add>, %31, %cst_26 [1] : vector<64x256xf32> to vector<64xf32>
    %33 = vector.shape_cast %32 : vector<64xf32> to vector<64x1xf32>
    %c0_27 = arith.constant 0 : index
    %c0_28 = arith.constant 0 : index
    %34 = vector.load %arg12[%c0_27, %c0_28] : memref<1x1xf32, #tpu.memory_space<vmem>>, vector<1x1xf32>
    %35 = vector.broadcast %34 : vector<1x1xf32> to vector<64x1xf32>
    %36 = arith.addf %33, %35 : vector<64x1xf32>
    %c0_29 = arith.constant 0 : index
    %c0_30 = arith.constant 0 : index
    %37 = vector.load %arg13[%c0_29, %c0_30] : memref<64x1xf32, #tpu.memory_space<vmem>>, vector<64x1xf32>
    tpu.vector_store %arg13[%c0_29, %c0_30], %36 {strides = array<i32>} : memref<64x1xf32, #tpu.memory_space<vmem>>, vector<64x1xf32>,
    return
  }
  func.func @transform_0(%arg0: i32) -> (i32, i32) {
    %c0_i32 = arith.constant 0 : i32
    %c0_i32_0 = arith.constant 0 : i32
    return %arg0, %c0_i32 : i32, i32
  }
  func.func @transform_1(%arg0: i32) -> (i32, i32) {
    %c0_i32 = arith.constant 0 : i32
    %c0_i32_0 = arith.constant 0 : i32
    return %arg0, %c0_i32 : i32, i32
  }
  func.func @transform_2(%arg0: i32) -> (i32, i32) {
    %c0_i32 = arith.constant 0 : i32
    %c0_i32_0 = arith.constant 0 : i32
    %c0_i32_1 = arith.constant 0 : i32
    return %c0_i32, %c0_i32_0 : i32, i32
  }
  func.func @transform_3(%arg0: i32) -> (i32, i32) {
    %c0_i32 = arith.constant 0 : i32
    %c0_i32_0 = arith.constant 0 : i32
    %c0_i32_1 = arith.constant 0 : i32
    return %c0_i32, %c0_i32_0 : i32, i32
  }
  func.func @transform_4(%arg0: i32) -> (i32, i32) {
    %c0_i32 = arith.constant 0 : i32
    %c0_i32_0 = arith.constant 0 : i32
    %c0_i32_1 = arith.constant 0 : i32
    return %c0_i32, %c0_i32_0 : i32, i32
  }
  func.func @transform_5(%arg0: i32) -> (i32, i32) {
    %c0_i32 = arith.constant 0 : i32
    %c0_i32_0 = arith.constant 0 : i32
    %c0_i32_1 = arith.constant 0 : i32
    return %c0_i32, %c0_i32_0 : i32, i32
  }
  func.func @transform_6(%arg0: i32) -> (i32, i32) {
    %c0_i32 = arith.constant 0 : i32
    %c0_i32_0 = arith.constant 0 : i32
    %c0_i32_1 = arith.constant 0 : i32
    return %c0_i32, %c0_i32_0 : i32, i32
  }
  func.func @transform_7(%arg0: i32) -> (i32, i32) {
    %c0_i32 = arith.constant 0 : i32
    %c0_i32_0 = arith.constant 0 : i32
    %c0_i32_1 = arith.constant 0 : i32
    return %c0_i32, %c0_i32_0 : i32, i32
  }
  func.func @transform_8(%arg0: i32) -> (i32, i32) {
    %c0_i32 = arith.constant 0 : i32
    %c0_i32_0 = arith.constant 0 : i32
    %c0_i32_1 = arith.constant 0 : i32
    return %c0_i32, %c0_i32_0 : i32, i32
  }
  func.func @transform_9(%arg0: i32) -> (i32, i32) {
    %c0_i32 = arith.constant 0 : i32
    %c0_i32_0 = arith.constant 0 : i32
    %c0_i32_1 = arith.constant 0 : i32
    return %c0_i32, %c0_i32_0 : i32, i32
  }
  func.func @transform_10(%arg0: i32) -> (i32, i32) {
    %c0_i32 = arith.constant 0 : i32
    %c0_i32_0 = arith.constant 0 : i32
    %c0_i32_1 = arith.constant 0 : i32
    return %c0_i32, %c0_i32_0 : i32, i32
  }
  func.func @transform_11(%arg0: i32) -> (i32, i32) {
    %c0_i32 = arith.constant 0 : i32
    %c0_i32_0 = arith.constant 0 : i32
    %c0_i32_1 = arith.constant 0 : i32
    return %c0_i32, %c0_i32_0 : i32, i32
  }
  func.func @transform_12(%arg0: i32) -> (i32, i32) {
    %c0_i32 = arith.constant 0 : i32
    %c0_i32_0 = arith.constant 0 : i32
    return %arg0, %c0_i32 : i32, i32
  }
}

</mosaic_0001>

<llo_original>
// kernel: gnn_model_forward.7
$region0: #{gnn_model_forward.7}
  #allocation0 [shape = 'u32[]', space=smem, size = 0x4, offset = 0x4, fixed_abs, tag = 'smem constant byte address 0x4 - core index']
  #allocation1 [shape = 'u32[144,128]{1,0:T(1,128)}', space=vmem, size = 0x12000, scoped, tag = 'internal scratch']
  %s0 = inlined_call_operand.vmem [shape: bf16[128,64], index: 0, kind: input, shape index: {}]
  %s1 = inlined_call_operand.vmem [shape: bf16[32,64], index: 1, kind: input, shape index: {}]
  %s2 = inlined_call_operand.vmem [shape: bf16[32,128], index: 2, kind: input, shape index: {}]
  %s3 = inlined_call_operand.vmem [shape: bf16[64,256], index: 3, kind: input, shape index: {}]
  %s4 = inlined_call_operand.vmem [shape: bf16[64,128], index: 4, kind: input, shape index: {}]
  %s5 = inlined_call_operand.vmem [shape: f32[1,128], index: 5, kind: input, shape index: {}]
  %s6 = inlined_call_operand.vmem [shape: bf16[128,128], index: 6, kind: output, shape index: {0}]
  %s7 = inlined_call_operand.vmem [shape: bf16[32,128], index: 7, kind: output, shape index: {1}]
  %s8 = inlined_call_operand.vmem [shape: bf16[32,128], index: 8, kind: output, shape index: {2}]
  %9 = xla_tuple %s6, %s7, %s8
  %s10 = sld [smem:[#allocation0]]
  $region50: #{gnn_model_forward.7} parent=0
    _
  %s12 = ssub.s32 1, %s10
  %s13 = scalar_select 0, %s12, %s10
  // Predicated region
  $region2: #{gnn_model_forward.7} parent=0 // pred_check
    _
  $region3: #{gnn_model_forward.7} parent=0 // pred_check_branch
    %15 = sbr.rel (0) target = $region5
  $region4: #{gnn_model_forward.7} parent=0 // pred_region
    _
  $region5: #{gnn_model_forward.7} parent=0 // pred_fallthru
    _
  // Predicated region
  $region6: #{gnn_model_forward.7} parent=0 // pred_check
    _
  $region7: #{gnn_model_forward.7} parent=0 // pred_check_branch
    %17 = sbr.rel (0) target = $region9
  $region8: #{gnn_model_forward.7} parent=0 // pred_region
    _
  $region9: #{gnn_model_forward.7} parent=0 // pred_fallthru
    _
  // Predicated region
  $region10: #{gnn_model_forward.7} parent=0 // pred_check
    _
  $region11: #{gnn_model_forward.7} parent=0 // pred_check_branch
    %19 = sbr.rel (0) target = $region13
  $region12: #{gnn_model_forward.7} parent=0 // pred_region
    _
  $region13: #{gnn_model_forward.7} parent=0 // pred_fallthru
    _
  // Predicated region
  $region14: #{gnn_model_forward.7} parent=0 // pred_check
    _
  $region15: #{gnn_model_forward.7} parent=0 // pred_check_branch
    %21 = sbr.rel (0) target = $region17
  $region16: #{gnn_model_forward.7} parent=0 // pred_region
    _
  $region17: #{gnn_model_forward.7} parent=0 // pred_fallthru
    _
  // Predicated region
  $region18: #{gnn_model_forward.7} parent=0 // pred_check
    _
  $region19: #{gnn_model_forward.7} parent=0 // pred_check_branch
    %23 = sbr.rel (0) target = $region21
  $region20: #{gnn_model_forward.7} parent=0 // pred_region
    _
  $region21: #{gnn_model_forward.7} parent=0 // pred_fallthru
    _
  // Predicated region
  $region22: #{gnn_model_forward.7} parent=0 // pred_check
    _
  $region23: #{gnn_model_forward.7} parent=0 // pred_check_branch
    %25 = sbr.rel (0) target = $region25
  $region24: #{gnn_model_forward.7} parent=0 // pred_region
    _
  $region25: #{gnn_model_forward.7} parent=0 // pred_fallthru
    _
  %v27 = vld [vmem:[%s0] sm:$0xf]
  %v28 = vld [vmem:[%s0 + $0x4] sm:$0xf]
  %v29 = vld [vmem:[%s0 + $0x8] sm:$0xf]
  %v30 = vld [vmem:[%s0 + $0xc] sm:$0xf]
  %v31 = vld [vmem:[%s0 + $0x10] sm:$0xf]
  %v32 = vld [vmem:[%s0 + $0x14] sm:$0xf]
  %v33 = vld [vmem:[%s0 + $0x18] sm:$0xf]
  %v34 = vld [vmem:[%s0 + $0x1c] sm:$0xf]
  %v35 = vld [vmem:[%s0 + $0x20] sm:$0xf]
  %v36 = vld [vmem:[%s0 + $0x24] sm:$0xf]
  %v37 = vld [vmem:[%s0 + $0x28] sm:$0xf]
  %v38 = vld [vmem:[%s0 + $0x2c] sm:$0xf]
  %v39 = vld [vmem:[%s0 + $0x30] sm:$0xf]
  %v40 = vld [vmem:[%s0 + $0x34] sm:$0xf]
  %v41 = vld [vmem:[%s0 + $0x38] sm:$0xf]
  %v42 = vld [vmem:[%s0 + $0x3c] sm:$0xf]
  %v43 = vld [vmem:[%s3] sm:$0xff]
  %v44 = vld [vmem:[%s3 + $0x8] sm:$0xff]
  %v45 = vld [vmem:[%s3 + $0x10] sm:$0xff]
  %v46 = vld [vmem:[%s3 + $0x18] sm:$0xff]
  %v47 = vld [vmem:[%s3 + $0x20] sm:$0xff]
  %v48 = vld [vmem:[%s3 + $0x28] sm:$0xff]
  %v49 = vld [vmem:[%s3 + $0x30] sm:$0xff]
  %v50 = vld [vmem:[%s3 + $0x38] sm:$0xff]
  %v67 = vunpack.c.l.b16 %v27
  %v68 = vunpack.c.l.b16 %v28
  %v69 = vunpack.c.l.b16 %v29
  %v70 = vunpack.c.l.b16 %v30
  %v71 = vunpack.c.l.b16 %v31
  %v72 = vunpack.c.l.b16 %v32
  %v73 = vunpack.c.l.b16 %v33
  %v74 = vunpack.c.l.b16 %v34
  %v75 = vunpack.c.l.b16 %v35
  %v76 = vunpack.c.l.b16 %v36
  %v77 = vunpack.c.l.b16 %v37
  %v78 = vunpack.c.l.b16 %v38
  %v79 = vunpack.c.l.b16 %v39
  %v80 = vunpack.c.l.b16 %v40
  %v81 = vunpack.c.l.b16 %v41
  %v82 = vunpack.c.l.b16 %v42
  %v83 = vpack.c.b16 %v68, %v67
  %v84 = vpack.c.b16 %v70, %v69
  %v85 = vpack.c.b16 %v72, %v71
  %v86 = vpack.c.b16 %v74, %v73
  %v87 = vpack.c.b16 %v76, %v75
  %v88 = vpack.c.b16 %v78, %v77
  %v89 = vpack.c.b16 %v80, %v79
  %v90 = vpack.c.b16 %v82, %v81
  %v99 = vunpack.c.l.b16 %v43
  %v100 = vunpack.c.h.b16 %v43
  %v101 = vunpack.c.l.b16 %v44
  %v102 = vunpack.c.h.b16 %v44
  %v103 = vunpack.c.l.b16 %v45
  %v104 = vunpack.c.h.b16 %v45
  %v105 = vunpack.c.l.b16 %v46
  %v106 = vunpack.c.h.b16 %v46
  %v107 = vunpack.c.l.b16 %v47
  %v108 = vunpack.c.h.b16 %v47
  %v109 = vunpack.c.l.b16 %v48
  %v110 = vunpack.c.h.b16 %v48
  %v111 = vunpack.c.l.b16 %v49
  %v112 = vunpack.c.h.b16 %v49
  %v113 = vunpack.c.l.b16 %v50
  %v114 = vunpack.c.h.b16 %v50
  %v115 = vpack.c.b16 %v101, %v99
  %v116 = vpack.c.b16 %v102, %v100
  %v117 = vpack.c.b16 %v105, %v103
  %v118 = vpack.c.b16 %v106, %v104
  %v119 = vpack.c.b16 %v109, %v107
  %v120 = vpack.c.b16 %v110, %v108
  %v121 = vpack.c.b16 %v113, %v111
  %v122 = vpack.c.b16 %v114, %v112
  %vm131 = vcmask 523264
  %v133 = vsel %vm131, %v83, 0
  %v136 = vsel %vm131, %v84, 0
  %v139 = vsel %vm131, %v85, 0
  %v142 = vsel %vm131, %v86, 0
  %v145 = vsel %vm131, %v87, 0
  %v148 = vsel %vm131, %v88, 0
  %v151 = vsel %vm131, %v89, 0
  %v154 = vsel %vm131, %v90, 0
  %156 = vmatprep.subr.bf16.mxu0 0
  %157 = vmatpush1.bf16.msra.mxu0 0
  %158 = vmatprep.subr.bf16.mxu0 0
  %159 = vmatpush1.bf16.msra.mxu0 0
  %160 = vmatprep.subr.bf16.mxu0 0
  %161 = vmatpush1.bf16.msra.mxu0 0
  %162 = vmatprep.subr.bf16.mxu0 0
  %163 = vmatpush1.bf16.msra.mxu0 0
  %164 = vmatprep.subr.bf16.mxu0 %v122
  %165 = vmatpush1.bf16.msra.mxu0 %v121
  %166 = vmatprep.subr.bf16.mxu0 %v120
  %167 = vmatpush1.bf16.msra.mxu0 %v119
  %168 = vmatprep.subr.bf16.mxu0 %v118
  %169 = vmatpush1.bf16.msra.mxu0 %v117
  %170 = vmatprep.subr.bf16.mxu0 %v116
  %171 = vmatpush1.bf16.msra.mxu0 %v115
  %172 = vmatprep.subr.bf16.mxu0 0
  %173 = vmatpush2.bf16.msra.mxu0 0
  %174 = vmatprep.subr.bf16.mxu0 0
  %175 = vmatpush2.bf16.msra.mxu0 0
  %176 = vmatprep.subr.bf16.mxu0 0
  %177 = vmatpush2.bf16.msra.mxu0 0
  %178 = vmatprep.subr.bf16.mxu0 0
  %179 = vmatpush2.bf16.msra.mxu0 0
  %180 = vmatprep.subr.bf16.mxu0 0
  %181 = vmatpush2.bf16.msra.mxu0 0
  %182 = vmatprep.subr.bf16.mxu0 0
  %183 = vmatpush2.bf16.msra.mxu0 0
  %184 = vmatprep.subr.bf16.mxu0 0
  %185 = vmatpush2.bf16.msra.mxu0 0
  %186 = vmatprep.subr.bf16.mxu0 0
  %187 = vmatpush2.bf16.msra.mxu0 0
  %188 = vmatprep.mubr.bf16.mxu0 0
  %189 = vmatmul.mubr.bf16.gmra.mxu0 %v133
  %v190 = vpop.f32.mrf.mxu0
  %v191 = vadd.f32 0.0, %v190
  %v192 = vpop.f32.mrf.mxu0
  %v193 = vadd.f32 0.0, %v192
  %v194 = vpop.f32.mrf.mxu0
  %v195 = vadd.f32 0.0, %v194
  %v196 = vpop.f32.mrf.mxu0
  %v197 = vadd.f32 0.0, %v196
  %198 = vmatprep.mubr.bf16.mxu0 0
  %199 = vmatmul.mubr.bf16.gmra.mxu0 %v136
  %v200 = vpop.f32.mrf.mxu0
  %v201 = vadd.f32 0.0, %v200
  %v202 = vpop.f32.mrf.mxu0
  %v203 = vadd.f32 0.0, %v202
  %v204 = vpop.f32.mrf.mxu0
  %v205 = vadd.f32 0.0, %v204
  %v206 = vpop.f32.mrf.mxu0
  %v207 = vadd.f32 0.0, %v206
  %208 = vmatprep.mubr.bf16.mxu0 0
  %209 = vmatmul.mubr.bf16.gmra.mxu0 %v139
  %v210 = vpop.f32.mrf.mxu0
  %v211 = vadd.f32 0.0, %v210
  %v212 = vpop.f32.mrf.mxu0
  %v213 = vadd.f32 0.0, %v212
  %v214 = vpop.f32.mrf.mxu0
  %v215 = vadd.f32 0.0, %v214
  %v216 = vpop.f32.mrf.mxu0
  %v217 = vadd.f32 0.0, %v216
  %218 = vmatprep.mubr.bf16.mxu0 0
  %219 = vmatmul.mubr.bf16.gmra.mxu0 %v142
  %v220 = vpop.f32.mrf.mxu0
  %v221 = vadd.f32 0.0, %v220
  %v222 = vpop.f32.mrf.mxu0
  %v223 = vadd.f32 0.0, %v222
  %v224 = vpop.f32.mrf.mxu0
  %v225 = vadd.f32 0.0, %v224
  %v226 = vpop.f32.mrf.mxu0
  %v227 = vadd.f32 0.0, %v226
  %228 = vmatprep.mubr.bf16.mxu0 0
  %229 = vmatmul.mubr.bf16.gmra.mxu0 %v145
  %v230 = vpop.f32.mrf.mxu0
  %v231 = vadd.f32 0.0, %v230
  %v232 = vpop.f32.mrf.mxu0
  %v233 = vadd.f32 0.0, %v232
  %v234 = vpop.f32.mrf.mxu0
  %v235 = vadd.f32 0.0, %v234
  %v236 = vpop.f32.mrf.mxu0
  %v237 = vadd.f32 0.0, %v236
  %238 = vmatprep.mubr.bf16.mxu0 0
  %239 = vmatmul.mubr.bf16.gmra.mxu0 %v148
  %v240 = vpop.f32.mrf.mxu0
  %v241 = vadd.f32 0.0, %v240
  %v242 = vpop.f32.mrf.mxu0
  %v243 = vadd.f32 0.0, %v242
  %v244 = vpop.f32.mrf.mxu0
  %v245 = vadd.f32 0.0, %v244
  %v246 = vpop.f32.mrf.mxu0
  %v247 = vadd.f32 0.0, %v246
  %248 = vmatprep.mubr.bf16.mxu0 0
  %249 = vmatmul.mubr.bf16.gmra.mxu0 %v151
  %v250 = vpop.f32.mrf.mxu0
  %v251 = vadd.f32 0.0, %v250
  %v252 = vpop.f32.mrf.mxu0
  %v253 = vadd.f32 0.0, %v252
  %v254 = vpop.f32.mrf.mxu0
  %v255 = vadd.f32 0.0, %v254
  %v256 = vpop.f32.mrf.mxu0
  %v257 = vadd.f32 0.0, %v256
  %258 = vmatprep.mubr.bf16.mxu0 0
  %259 = vmatmul.mubr.bf16.gmra.mxu0 %v154
  %v260 = vpop.f32.mrf.mxu0
  %v261 = vadd.f32 0.0, %v260
  %v262 = vpop.f32.mrf.mxu0
  %v263 = vadd.f32 0.0, %v262
  %v264 = vpop.f32.mrf.mxu0
  %v265 = vadd.f32 0.0, %v264
  %v266 = vpop.f32.mrf.mxu0
  %v267 = vadd.f32 0.0, %v266
  %268 = vdwg.mxu0
  %v269 = vpack.c.bf16 %v195, %v191
  %v270 = vpack.c.bf16 %v205, %v201
  %v271 = vpack.c.bf16 %v215, %v211
  %v272 = vpack.c.bf16 %v225, %v221
  %v273 = vpack.c.bf16 %v235, %v231
  %v274 = vpack.c.bf16 %v245, %v241
  %v275 = vpack.c.bf16 %v255, %v251
  %v276 = vpack.c.bf16 %v265, %v261
  %v285 = vunpack.c.l.b16 %v269
  %v286 = vunpack.c.h.b16 %v269
  %v287 = vunpack.c.l.b16 %v270
  %v288 = vunpack.c.h.b16 %v270
  %v289 = vunpack.c.l.b16 %v271
  %v290 = vunpack.c.h.b16 %v271
  %v291 = vunpack.c.l.b16 %v272
  %v292 = vunpack.c.h.b16 %v272
  %v293 = vunpack.c.l.b16 %v273
  %v294 = vunpack.c.h.b16 %v273
  %v295 = vunpack.c.l.b16 %v274
  %v296 = vunpack.c.h.b16 %v274
  %v297 = vunpack.c.l.b16 %v275
  %v298 = vunpack.c.h.b16 %v275
  %v299 = vunpack.c.l.b16 %v276
  %v300 = vunpack.c.h.b16 %v276
  %v301 = vpack.c.b16 %v285, %v285
  %v302 = vpack.c.b16 %v286, %v286
  %v303 = vpack.c.b16 %v287, %v287
  %v304 = vpack.c.b16 %v288, %v288
  %v305 = vpack.c.b16 %v289, %v289
  %v306 = vpack.c.b16 %v290, %v290
  %v307 = vpack.c.b16 %v291, %v291
  %v308 = vpack.c.b16 %v292, %v292
  %v309 = vpack.c.b16 %v293, %v293
  %v310 = vpack.c.b16 %v294, %v294
  %v311 = vpack.c.b16 %v295, %v295
  %v312 = vpack.c.b16 %v296, %v296
  %v313 = vpack.c.b16 %v297, %v297
  %v314 = vpack.c.b16 %v298, %v298
  %v315 = vpack.c.b16 %v299, %v299
  %v316 = vpack.c.b16 %v300, %v300
  %333 = vst [vmem:[%s6] sm:$0xf] %v301
  %334 = vst [vmem:[%s6 + $0x4] sm:$0xf] %v302
  %335 = vst [vmem:[%s6 + $0x8] sm:$0xf] %v303
  %336 = vst [vmem:[%s6 + $0xc] sm:$0xf] %v304
  %337 = vst [vmem:[%s6 + $0x10] sm:$0xf] %v305
  %338 = vst [vmem:[%s6 + $0x14] sm:$0xf] %v306
  %339 = vst [vmem:[%s6 + $0x18] sm:$0xf] %v307
  %340 = vst [vmem:[%s6 + $0x1c] sm:$0xf] %v308
  %341 = vst [vmem:[%s6 + $0x20] sm:$0xf] %v309
  %342 = vst [vmem:[%s6 + $0x24] sm:$0xf] %v310
  %343 = vst [vmem:[%s6 + $0x28] sm:$0xf] %v311
  %344 = vst [vmem:[%s6 + $0x2c] sm:$0xf] %v312
  %345 = vst [vmem:[%s6 + $0x30] sm:$0xf] %v313
  %346 = vst [vmem:[%s6 + $0x34] sm:$0xf] %v314
  %347 = vst [vmem:[%s6 + $0x38] sm:$0xf] %v315
  %348 = vst [vmem:[%s6 + $0x3c] sm:$0xf] %v316
  %v349 = vpack.c.bf16 %v197, %v193
  %v350 = vpack.c.bf16 %v207, %v203
  %v351 = vpack.c.bf16 %v217, %v213
  %v352 = vpack.c.bf16 %v227, %v223
  %v353 = vpack.c.bf16 %v237, %v233
  %v354 = vpack.c.bf16 %v247, %v243
  %v355 = vpack.c.bf16 %v257, %v253
  %v356 = vpack.c.bf16 %v267, %v263
  %v357 = vld [vmem:[%s1] sm:$0xf]
  %v358 = vld [vmem:[%s1 + $0x4] sm:$0xf]
  %v359 = vld [vmem:[%s1 + $0x8] sm:$0xf]
  %v360 = vld [vmem:[%s1 + $0xc] sm:$0xf]
  %v361 = vld [vmem:[%s4] sm:$0xf]
  %v362 = vld [vmem:[%s4 + $0x4] sm:$0xf]
  %v363 = vld [vmem:[%s4 + $0x8] sm:$0xf]
  %v364 = vld [vmem:[%s4 + $0xc] sm:$0xf]
  %v365 = vld [vmem:[%s4 + $0x10] sm:$0xf]
  %v366 = vld [vmem:[%s4 + $0x14] sm:$0xf]
  %v367 = vld [vmem:[%s4 + $0x18] sm:$0xf]
  %v368 = vld [vmem:[%s4 + $0x1c] sm:$0xf]
  %v373 = vunpack.c.l.b16 %v357
  %v374 = vunpack.c.l.b16 %v358
  %v375 = vunpack.c.l.b16 %v359
  %v376 = vunpack.c.l.b16 %v360
  %v377 = vpack.c.b16 %v374, %v373
  %v378 = vpack.c.b16 %v376, %v375
  %v387 = vunpack.c.l.b16 %v361
  %v388 = vunpack.c.l.b16 %v362
  %v389 = vunpack.c.l.b16 %v363
  %v390 = vunpack.c.l.b16 %v364
  %v391 = vunpack.c.l.b16 %v365
  %v392 = vunpack.c.l.b16 %v366
  %v393 = vunpack.c.l.b16 %v367
  %v394 = vunpack.c.l.b16 %v368
  %v395 = vpack.c.b16 %v388, %v387
  %v396 = vpack.c.b16 %v390, %v389
  %v397 = vpack.c.b16 %v392, %v391
  %v398 = vpack.c.b16 %v394, %v393
  %v404 = vsel %vm131, %v377, 0
  %v407 = vsel %vm131, %v378, 0
  %409 = vmatprep.subr.bf16.mxu0 0
  %410 = vmatpush1.bf16.msra.mxu0 0
  %411 = vmatprep.subr.bf16.mxu0 0
  %412 = vmatpush1.bf16.msra.mxu0 0
  %413 = vmatprep.subr.bf16.mxu0 0
  %414 = vmatpush1.bf16.msra.mxu0 0
  %415 = vmatprep.subr.bf16.mxu0 0
  %416 = vmatpush1.bf16.msra.mxu0 0
  %417 = vmatprep.subr.bf16.mxu0 0
  %418 = vmatpush1.bf16.msra.mxu0 %v398
  %419 = vmatprep.subr.bf16.mxu0 0
  %420 = vmatpush1.bf16.msra.mxu0 %v397
  %421 = vmatprep.subr.bf16.mxu0 0
  %422 = vmatpush1.bf16.msra.mxu0 %v396
  %423 = vmatprep.subr.bf16.mxu0 0
  %424 = vmatpush1.bf16.msra.mxu0 %v395
  %425 = vmatprep.subr.bf16.mxu0 0
  %426 = vmatpush2.bf16.msra.mxu0 0
  %427 = vmatprep.subr.bf16.mxu0 0
  %428 = vmatpush2.bf16.msra.mxu0 0
  %429 = vmatprep.subr.bf16.mxu0 0
  %430 = vmatpush2.bf16.msra.mxu0 0
  %431 = vmatprep.subr.bf16.mxu0 0
  %432 = vmatpush2.bf16.msra.mxu0 0
  %433 = vmatprep.subr.bf16.mxu0 0
  %434 = vmatpush2.bf16.msra.mxu0 0
  %435 = vmatprep.subr.bf16.mxu0 0
  %436 = vmatpush2.bf16.msra.mxu0 0
  %437 = vmatprep.subr.bf16.mxu0 0
  %438 = vmatpush2.bf16.msra.mxu0 0
  %439 = vmatprep.subr.bf16.mxu0 0
  %440 = vmatpush2.bf16.msra.mxu0 0
  %441 = vmatprep.mubr.bf16.mxu0 0
  %442 = vmatmul.mubr.bf16.gmra.mxu0 %v404
  %v443 = vpop.f32.mrf.mxu0
  %v444 = vadd.f32 0.0, %v443
  %v445 = vpop.f32.mrf.mxu0
  %v446 = vpop.f32.mrf.mxu0
  %v447 = vadd.f32 0.0, %v446
  %v448 = vpop.f32.mrf.mxu0
  %449 = vmatprep.mubr.bf16.mxu0 0
  %450 = vmatmul.mubr.bf16.gmra.mxu0 %v407
  %v451 = vpop.f32.mrf.mxu0
  %v452 = vadd.f32 0.0, %v451
  %v453 = vpop.f32.mrf.mxu0
  %v454 = vpop.f32.mrf.mxu0
  %v455 = vadd.f32 0.0, %v454
  %v456 = vpop.f32.mrf.mxu0
  %457 = vdwg.mxu0
  %v458 = vpack.c.bf16 %v447, %v444
  %v459 = vpack.c.bf16 %v455, %v452
  %v462 = vunpack.c.l.b16 %v458
  %v463 = vunpack.c.h.b16 %v458
  %v464 = vunpack.c.l.b16 %v459
  %v465 = vunpack.c.h.b16 %v459
  %v466 = vpack.c.b16 %v462, %v462
  %v467 = vpack.c.b16 %v463, %v463
  %v468 = vpack.c.b16 %v464, %v464
  %v469 = vpack.c.b16 %v465, %v465
  %474 = vst [vmem:[%s7] sm:$0xf] %v466
  %475 = vst [vmem:[%s7 + $0x4] sm:$0xf] %v467
  %476 = vst [vmem:[%s7 + $0x8] sm:$0xf] %v468
  %477 = vst [vmem:[%s7 + $0xc] sm:$0xf] %v469
  %v478 = vld [vmem:[%s2] sm:$0xf]
  %v479 = vld [vmem:[%s2 + $0x4] sm:$0xf]
  %v480 = vld [vmem:[%s2 + $0x8] sm:$0xf]
  %v481 = vld [vmem:[%s2 + $0xc] sm:$0xf]
  %v482 = vld [vmem:[%s5] sm:$0x1]
  %v484 = vlaneseq
  %v485 = vshrl.u32 %v484, 7
  %v486 = vsub.s32 0, %v485
  %v487 = vrot.slane %v482, %v486
  %v493 = vunpack.c.l.b16 %v478
  %v494 = vunpack.c.l.b16 %v479
  %v495 = vunpack.c.l.b16 %v480
  %v496 = vunpack.c.l.b16 %v481
  %v497 = vpack.c.b16 %v494, %v493
  %v498 = vpack.c.b16 %v496, %v495
  %501 = vmatprep.subr.bf16.mxu0 0
  %502 = vmatpush1.bf16.msra.mxu0 %v356
  %503 = vmatprep.subr.bf16.mxu0 0
  %504 = vmatpush1.bf16.msra.mxu0 %v355
  %505 = vmatprep.subr.bf16.mxu0 0
  %506 = vmatpush1.bf16.msra.mxu0 %v354
  %507 = vmatprep.subr.bf16.mxu0 0
  %508 = vmatpush1.bf16.msra.mxu0 %v353
  %509 = vmatprep.subr.bf16.mxu0 0
  %510 = vmatpush1.bf16.msra.mxu0 %v352
  %511 = vmatprep.subr.bf16.mxu0 0
  %512 = vmatpush1.bf16.msra.mxu0 %v351
  %513 = vmatprep.subr.bf16.mxu0 0
  %514 = vmatpush1.bf16.msra.mxu0 %v350
  %515 = vmatprep.subr.bf16.mxu0 0
  %516 = vmatpush1.bf16.msra.mxu0 %v349
  %517 = vmatprep.subr.bf16.mxu0 0
  %518 = vmatpush2.bf16.msra.mxu0 0
  %519 = vmatprep.subr.bf16.mxu0 0
  %520 = vmatpush2.bf16.msra.mxu0 0
  %521 = vmatprep.subr.bf16.mxu0 0
  %522 = vmatpush2.bf16.msra.mxu0 0
  %523 = vmatprep.subr.bf16.mxu0 0
  %524 = vmatpush2.bf16.msra.mxu0 0
  %525 = vmatprep.subr.bf16.mxu0 0
  %526 = vmatpush2.bf16.msra.mxu0 0
  %527 = vmatprep.subr.bf16.mxu0 0
  %528 = vmatpush2.bf16.msra.mxu0 0
  %529 = vmatprep.subr.bf16.mxu0 0
  %530 = vmatpush2.bf16.msra.mxu0 0
  %531 = vmatprep.subr.bf16.mxu0 0
  %532 = vmatpush2.bf16.msra.mxu0 0
  %533 = vmatprep.mubr.bf16.mxu0 0
  %534 = vmatmul.mubr.bf16.gmra.mxu0 %v497
  %v535 = vpop.f32.mrf.mxu0
  %v536 = vadd.f32 %v487, %v535
  %v537 = vpop.f32.mrf.mxu0
  %v538 = vpop.f32.mrf.mxu0
  %v539 = vadd.f32 %v487, %v538
  %v540 = vpop.f32.mrf.mxu0
  %541 = vmatprep.mubr.bf16.mxu0 0
  %542 = vmatmul.mubr.bf16.gmra.mxu0 %v498
  %v543 = vpop.f32.mrf.mxu0
  %v544 = vadd.f32 %v487, %v543
  %v545 = vpop.f32.mrf.mxu0
  %v546 = vpop.f32.mrf.mxu0
  %v547 = vadd.f32 %v487, %v546
  %v548 = vpop.f32.mrf.mxu0
  %549 = vdwg.mxu0
  %v550 = vpack.c.bf16 %v539, %v536
  %v551 = vpack.c.bf16 %v547, %v544
  %v554 = vunpack.c.l.b16 %v550
  %v555 = vunpack.c.h.b16 %v550
  %v556 = vunpack.c.l.b16 %v551
  %v557 = vunpack.c.h.b16 %v551
  %v558 = vpack.c.b16 %v554, %v554
  %v559 = vpack.c.b16 %v555, %v555
  %v560 = vpack.c.b16 %v556, %v556
  %v561 = vpack.c.b16 %v557, %v557
  %566 = vst [vmem:[%s8] sm:$0xf] %v558
  %567 = vst [vmem:[%s8 + $0x4] sm:$0xf] %v559
  %568 = vst [vmem:[%s8 + $0x8] sm:$0xf] %v560
  %569 = vst [vmem:[%s8 + $0xc] sm:$0xf] %v561
  // Predicated region
  $region26: #{gnn_model_forward.7} parent=0 // pred_check
    _
  $region27: #{gnn_model_forward.7} parent=0 // pred_check_branch
    %571 = sbr.rel (0) target = $region29
  $region28: #{gnn_model_forward.7} parent=0 // pred_region
    _
  $region29: #{gnn_model_forward.7} parent=0 // pred_fallthru
    _
  // Predicated region
  $region30: #{gnn_model_forward.7} parent=0 // pred_check
    _
  $region31: #{gnn_model_forward.7} parent=0 // pred_check_branch
    %573 = sbr.rel (0) target = $region33
  $region32: #{gnn_model_forward.7} parent=0 // pred_region
    _
  $region33: #{gnn_model_forward.7} parent=0 // pred_fallthru
    _
  // Predicated region
  $region34: #{gnn_model_forward.7} parent=0 // pred_check
    _
  $region35: #{gnn_model_forward.7} parent=0 // pred_check_branch
    %575 = sbr.rel (0) target = $region37
  $region36: #{gnn_model_forward.7} parent=0 // pred_region
    _
  $region37: #{gnn_model_forward.7} parent=0 // pred_fallthru
    _
  // Predicated region
  $region38: #{gnn_model_forward.7} parent=0 // pred_check
    _
  $region39: #{gnn_model_forward.7} parent=0 // pred_check_branch
    %577 = sbr.rel (0) target = $region41
  $region40: #{gnn_model_forward.7} parent=0 // pred_region
    _
  $region41: #{gnn_model_forward.7} parent=0 // pred_fallthru
    _
  // Predicated region
  $region42: #{gnn_model_forward.7} parent=0 // pred_check
    _
  $region43: #{gnn_model_forward.7} parent=0 // pred_check_branch
    %579 = sbr.rel (0) target = $region45
  $region44: #{gnn_model_forward.7} parent=0 // pred_region
    _
  $region45: #{gnn_model_forward.7} parent=0 // pred_fallthru
    _
  // Predicated region
  $region46: #{gnn_model_forward.7} parent=0 // pred_check
    _
  $region47: #{gnn_model_forward.7} parent=0 // pred_check_branch
    %581 = sbr.rel (0) target = $region49
  $region48: #{gnn_model_forward.7} parent=0 // pred_region
    _
  $region49: #{gnn_model_forward.7} parent=0 // pred_fallthru
    _

// kernel: gnn_model_forward.9
$region0: #{gnn_model_forward.9}
  #allocation0 [shape = 'u32[]', space=smem, size = 0x4, offset = 0x4, fixed_abs, tag = 'smem constant byte address 0x4 - core index']
  #allocation1 [shape = 'u32[144,128]{1,0:T(1,128)}', space=vmem, size = 0x12000, scoped, tag = 'internal scratch']
  %s0 = inlined_call_operand.vmem [shape: bf16[128,768], index: 0, kind: input, shape index: {}]
  %s1 = inlined_call_operand.vmem [shape: bf16[32,128], index: 1, kind: input, shape index: {}]
  %s2 = inlined_call_operand.vmem [shape: bf16[32,128], index: 2, kind: input, shape index: {}]
  %s3 = inlined_call_operand.vmem [shape: bf16[256,256], index: 3, kind: input, shape index: {}]
  %s4 = inlined_call_operand.vmem [shape: bf16[128,128], index: 4, kind: input, shape index: {}]
  %s5 = inlined_call_operand.vmem [shape: f32[1,128], index: 5, kind: input, shape index: {}]
  %s6 = inlined_call_operand.vmem [shape: bf16[128,128], index: 6, kind: output, shape index: {0}]
  %s7 = inlined_call_operand.vmem [shape: bf16[32,128], index: 7, kind: output, shape index: {1}]
  %s8 = inlined_call_operand.vmem [shape: bf16[32,128], index: 8, kind: output, shape index: {2}]
  %9 = xla_tuple %s6, %s7, %s8
  %s10 = sld [smem:[#allocation0]]
  $region88: #{gnn_model_forward.9} parent=0
    _
  %s12 = ssub.s32 1, %s10
  %s13 = scalar_select 0, %s12, %s10
  $region1: #{gnn_model_forward.9} parent=0
    #allocation2 [shape = 'u8[65536]{0}', space=vmem, size = 0x10000, scoped, tag = 'input window, operand 0, single buffered']
    // Predicated region
    $region2: #{gnn_model_forward.9} parent=1 // pred_check
      _
    $region3: #{gnn_model_forward.9} parent=1 // pred_check_branch
      %15 = sbr.rel (0) target = $region5
    $region4: #{gnn_model_forward.9} parent=1 // pred_region
      // Predicated region
      $region6: #{gnn_model_forward.9} parent=4 // pred_check
        _
      $region7: #{gnn_model_forward.9} parent=4 // pred_check_branch
        %17 = sbr.rel (0) target = $region9
      $region8: #{gnn_model_forward.9} parent=4 // pred_region
        // Predicated region
        $region10: #{gnn_model_forward.9} parent=8 // pred_check
          _
        $region11: #{gnn_model_forward.9} parent=8 // pred_check_branch
          %19 = sbr.rel (0) target = $region13
        $region12: #{gnn_model_forward.9} parent=8 // pred_region
          // Predicated region
          $region25: #{gnn_model_forward.9} parent=12 // pred_check
            _
          $region26: #{gnn_model_forward.9} parent=12 // pred_check_branch
            %65 = sbr.rel (0) target = $region28
          $region27: #{gnn_model_forward.9} parent=12 // pred_region
            loop: start=0, step=1, limit=1
            $region29: #{gnn_model_forward.9} parent=27 // loop_pre_header
              _
            $region30: #{gnn_model_forward.9} parent=27 // loop_header
              %s67 = sphi 0, %s71
              %p68 = scmp.ge.s32.totalorder %s67, 1
              %s72 = sphi %s0, %s0
              %s73 = sphi [#allocation2], [#allocation2]
            $region31: #{gnn_model_forward.9} parent=27 // loop_header_branch
              %70 = sbr.rel (%p68) target = $region35
            $region32: #{gnn_model_forward.9} parent=27 // loop_body
              %v74 = vld [vmem:[%s72] sm:$0xff]
              %75 = vst [vmem:[%s73] sm:$0xff] %v74
              %v76 = vld [vmem:[%s72 + $0x18] sm:$0xff]
              %77 = vst [vmem:[%s73 + $0x8] sm:$0xff] %v76
              %v78 = vld [vmem:[%s72 + $0x30] sm:$0xff]
              %79 = vst [vmem:[%s73 + $0x10] sm:$0xff] %v78
              %v80 = vld [vmem:[%s72 + $0x48] sm:$0xff]
              %81 = vst [vmem:[%s73 + $0x18] sm:$0xff] %v80
              %v82 = vld [vmem:[%s72 + $0x60] sm:$0xff]
              %83 = vst [vmem:[%s73 + $0x20] sm:$0xff] %v82
              %v84 = vld [vmem:[%s72 + $0x78] sm:$0xff]
              %85 = vst [vmem:[%s73 + $0x28] sm:$0xff] %v84
              %v86 = vld [vmem:[%s72 + $0x90] sm:$0xff]
              %87 = vst [vmem:[%s73 + $0x30] sm:$0xff] %v86
              %v88 = vld [vmem:[%s72 + $0xa8] sm:$0xff]
              %89 = vst [vmem:[%s73 + $0x38] sm:$0xff] %v88
              %v90 = vld [vmem:[%s72 + $0xc0] sm:$0xff]
              %91 = vst [vmem:[%s73 + $0x40] sm:$0xff] %v90
              %v92 = vld [vmem:[%s72 + $0xd8] sm:$0xff]
              %93 = vst [vmem:[%s73 + $0x48] sm:$0xff] %v92
              %v94 = vld [vmem:[%s72 + $0xf0] sm:$0xff]
              %95 = vst [vmem:[%s73 + $0x50] sm:$0xff] %v94
              %v96 = vld [vmem:[%s72 + $0x108] sm:$0xff]
              %97 = vst [vmem:[%s73 + $0x58] sm:$0xff] %v96
              %v98 = vld [vmem:[%s72 + $0x120] sm:$0xff]
              %99 = vst [vmem:[%s73 + $0x60] sm:$0xff] %v98
              %v100 = vld [vmem:[%s72 + $0x138] sm:$0xff]
              %101 = vst [vmem:[%s73 + $0x68] sm:$0xff] %v100
              %v102 = vld [vmem:[%s72 + $0x150] sm:$0xff]
              %103 = vst [vmem:[%s73 + $0x70] sm:$0xff] %v102
              %v104 = vld [vmem:[%s72 + $0x168] sm:$0xff]
              %105 = vst [vmem:[%s73 + $0x78] sm:$0xff] %v104
            $region33: #{gnn_model_forward.9} parent=27 // loop_footer
              %s71 = sadd.s32 1, %s67
            $region34: #{gnn_model_forward.9} parent=27 // loop_footer_branch
              %66 = sbr.rel target = $region30
            $region35: #{gnn_model_forward.9} parent=27 // loop_exit
              _
          $region28: #{gnn_model_forward.9} parent=12 // pred_fallthru
            _
          // Predicated region
          $region36: #{gnn_model_forward.9} parent=12 // pred_check
            _
          $region37: #{gnn_model_forward.9} parent=12 // pred_check_branch
            %107 = sbr.rel target = $region39
          $region38: #{gnn_model_forward.9} parent=12 // pred_region
            _
          $region39: #{gnn_model_forward.9} parent=12 // pred_fallthru
            _
        $region13: #{gnn_model_forward.9} parent=8 // pred_fallthru
          _
        // Predicated region
        $region14: #{gnn_model_forward.9} parent=8 // pred_check
          _
        $region15: #{gnn_model_forward.9} parent=8 // pred_check_branch
          %21 = sbr.rel target = $region17
        $region16: #{gnn_model_forward.9} parent=8 // pred_region
          %s23 = ssub.s32 256, 1
          loop: start=0, step=1, limit=1
          $region18: #{gnn_model_forward.9} parent=16 // loop_pre_header
            _
          $region19: #{gnn_model_forward.9} parent=16 // loop_header
            %s25 = sphi 0, %s29
            %p26 = scmp.ge.s32.totalorder %s25, 1
            %s30 = sphi %s0, %s0
            %s31 = sphi [#allocation2], [#allocation2]
          $region20: #{gnn_model_forward.9} parent=16 // loop_header_branch
            %28 = sbr.rel (%p26) target = $region24
          $region21: #{gnn_model_forward.9} parent=16 // loop_body
            %v32 = vld [vmem:[%s30] sm:%s23]
            %33 = vst [vmem:[%s31] sm:%s23] %v32
            %v34 = vld [vmem:[%s30 + $0x18] sm:%s23]
            %35 = vst [vmem:[%s31 + $0x8] sm:%s23] %v34
            %v36 = vld [vmem:[%s30 + $0x30] sm:%s23]
            %37 = vst [vmem:[%s31 + $0x10] sm:%s23] %v36
            %v38 = vld [vmem:[%s30 + $0x48] sm:%s23]
            %39 = vst [vmem:[%s31 + $0x18] sm:%s23] %v38
            %v40 = vld [vmem:[%s30 + $0x60] sm:%s23]
            %41 = vst [vmem:[%s31 + $0x20] sm:%s23] %v40
            %v42 = vld [vmem:[%s30 + $0x78] sm:%s23]
            %43 = vst [vmem:[%s31 + $0x28] sm:%s23] %v42
            %v44 = vld [vmem:[%s30 + $0x90] sm:%s23]
            %45 = vst [vmem:[%s31 + $0x30] sm:%s23] %v44
            %v46 = vld [vmem:[%s30 + $0xa8] sm:%s23]
            %47 = vst [vmem:[%s31 + $0x38] sm:%s23] %v46
            %v48 = vld [vmem:[%s30 + $0xc0] sm:%s23]
            %49 = vst [vmem:[%s31 + $0x40] sm:%s23] %v48
            %v50 = vld [vmem:[%s30 + $0xd8] sm:%s23]
            %51 = vst [vmem:[%s31 + $0x48] sm:%s23] %v50
            %v52 = vld [vmem:[%s30 + $0xf0] sm:%s23]
            %53 = vst [vmem:[%s31 + $0x50] sm:%s23] %v52
            %v54 = vld [vmem:[%s30 + $0x108] sm:%s23]
            %55 = vst [vmem:[%s31 + $0x58] sm:%s23] %v54
            %v56 = vld [vmem:[%s30 + $0x120] sm:%s23]
            %57 = vst [vmem:[%s31 + $0x60] sm:%s23] %v56
            %v58 = vld [vmem:[%s30 + $0x138] sm:%s23]
            %59 = vst [vmem:[%s31 + $0x68] sm:%s23] %v58
            %v60 = vld [vmem:[%s30 + $0x150] sm:%s23]
            %61 = vst [vmem:[%s31 + $0x70] sm:%s23] %v60
            %v62 = vld [vmem:[%s30 + $0x168] sm:%s23]
            %63 = vst [vmem:[%s31 + $0x78] sm:%s23] %v62
          $region22: #{gnn_model_forward.9} parent=16 // loop_footer
            %s29 = sadd.s32 1, %s25
          $region23: #{gnn_model_forward.9} parent=16 // loop_footer_branch
            %24 = sbr.rel target = $region19
          $region24: #{gnn_model_forward.9} parent=16 // loop_exit
            _
        $region17: #{gnn_model_forward.9} parent=8 // pred_fallthru
          _
      $region9: #{gnn_model_forward.9} parent=4 // pred_fallthru
        _
      %108 = vnop
    $region5: #{gnn_model_forward.9} parent=1 // pred_fallthru
      _
    // Predicated region
    $region40: #{gnn_model_forward.9} parent=1 // pred_check
      _
    $region41: #{gnn_model_forward.9} parent=1 // pred_check_branch
      %110 = sbr.rel (0) target = $region43
    $region42: #{gnn_model_forward.9} parent=1 // pred_region
      _
    $region43: #{gnn_model_forward.9} parent=1 // pred_fallthru
      _
    // Predicated region
    $region44: #{gnn_model_forward.9} parent=1 // pred_check
      _
    $region45: #{gnn_model_forward.9} parent=1 // pred_check_branch
      %112 = sbr.rel (0) target = $region47
    $region46: #{gnn_model_forward.9} parent=1 // pred_region
      _
    $region47: #{gnn_model_forward.9} parent=1 // pred_fallthru
      _
    // Predicated region
    $region48: #{gnn_model_forward.9} parent=1 // pred_check
      _
    $region49: #{gnn_model_forward.9} parent=1 // pred_check_branch
      %114 = sbr.rel (0) target = $region51
    $region50: #{gnn_model_forward.9} parent=1 // pred_region
      _
    $region51: #{gnn_model_forward.9} parent=1 // pred_fallthru
      _
    // Predicated region
    $region52: #{gnn_model_forward.9} parent=1 // pred_check
      _
    $region53: #{gnn_model_forward.9} parent=1 // pred_check_branch
      %116 = sbr.rel (0) target = $region55
    $region54: #{gnn_model_forward.9} parent=1 // pred_region
      _
    $region55: #{gnn_model_forward.9} parent=1 // pred_fallthru
      _
    // Predicated region
    $region56: #{gnn_model_forward.9} parent=1 // pred_check
      _
    $region57: #{gnn_model_forward.9} parent=1 // pred_check_branch
      %118 = sbr.rel (0) target = $region59
    $region58: #{gnn_model_forward.9} parent=1 // pred_region
      _
    $region59: #{gnn_model_forward.9} parent=1 // pred_fallthru
      _
    // Predicated region
    $region60: #{gnn_model_forward.9} parent=1 // pred_check
      _
    $region61: #{gnn_model_forward.9} parent=1 // pred_check_branch
      %120 = sbr.rel (0) target = $region63
    $region62: #{gnn_model_forward.9} parent=1 // pred_region
      _
    $region63: #{gnn_model_forward.9} parent=1 // pred_fallthru
      _
    %v122 = vld [vmem:[#allocation2] sm:$0xff]
    %v123 = vld [vmem:[#allocation2 + $0x8] sm:$0xff]
    %v124 = vld [vmem:[#allocation2 + $0x10] sm:$0xff]
    %v125 = vld [vmem:[#allocation2 + $0x18] sm:$0xff]
    %v126 = vld [vmem:[#allocation2 + $0x20] sm:$0xff]
    %v127 = vld [vmem:[#allocation2 + $0x28] sm:$0xff]
    %v128 = vld [vmem:[#allocation2 + $0x30] sm:$0xff]
    %v129 = vld [vmem:[#allocation2 + $0x38] sm:$0xff]
    %v130 = vld [vmem:[#allocation2 + $0x40] sm:$0xff]
    %v131 = vld [vmem:[#allocation2 + $0x48] sm:$0xff]
    %v132 = vld [vmem:[#allocation2 + $0x50] sm:$0xff]
    %v133 = vld [vmem:[#allocation2 + $0x58] sm:$0xff]
    %v134 = vld [vmem:[#allocation2 + $0x60] sm:$0xff]
    %v135 = vld [vmem:[#allocation2 + $0x68] sm:$0xff]
    %v136 = vld [vmem:[#allocation2 + $0x70] sm:$0xff]
    %v137 = vld [vmem:[#allocation2 + $0x78] sm:$0xff]
    %v138 = vld [vmem:[%s3] sm:$0xff]
    %v139 = vld [vmem:[%s3 + $0x8] sm:$0xff]
    %v140 = vld [vmem:[%s3 + $0x10] sm:$0xff]
    %v141 = vld [vmem:[%s3 + $0x18] sm:$0xff]
    %v142 = vld [vmem:[%s3 + $0x20] sm:$0xff]
    %v143 = vld [vmem:[%s3 + $0x28] sm:$0xff]
    %v144 = vld [vmem:[%s3 + $0x30] sm:$0xff]
    %v145 = vld [vmem:[%s3 + $0x38] sm:$0xff]
    %v146 = vld [vmem:[%s3 + $0x40] sm:$0xff]
    %v147 = vld [vmem:[%s3 + $0x48] sm:$0xff]
    %v148 = vld [vmem:[%s3 + $0x50] sm:$0xff]
    %v149 = vld [vmem:[%s3 + $0x58] sm:$0xff]
    %v150 = vld [vmem:[%s3 + $0x60] sm:$0xff]
    %v151 = vld [vmem:[%s3 + $0x68] sm:$0xff]
    %v152 = vld [vmem:[%s3 + $0x70] sm:$0xff]
    %v153 = vld [vmem:[%s3 + $0x78] sm:$0xff]
    %v154 = vld [vmem:[%s3 + $0x80] sm:$0xff]
    %v155 = vld [vmem:[%s3 + $0x88] sm:$0xff]
    %v156 = vld [vmem:[%s3 + $0x90] sm:$0xff]
    %v157 = vld [vmem:[%s3 + $0x98] sm:$0xff]
    %v158 = vld [vmem:[%s3 + $0xa0] sm:$0xff]
    %v159 = vld [vmem:[%s3 + $0xa8] sm:$0xff]
    %v160 = vld [vmem:[%s3 + $0xb0] sm:$0xff]
    %v161 = vld [vmem:[%s3 + $0xb8] sm:$0xff]
    %v162 = vld [vmem:[%s3 + $0xc0] sm:$0xff]
    %v163 = vld [vmem:[%s3 + $0xc8] sm:$0xff]
    %v164 = vld [vmem:[%s3 + $0xd0] sm:$0xff]
    %v165 = vld [vmem:[%s3 + $0xd8] sm:$0xff]
    %v166 = vld [vmem:[%s3 + $0xe0] sm:$0xff]
    %v167 = vld [vmem:[%s3 + $0xe8] sm:$0xff]
    %v168 = vld [vmem:[%s3 + $0xf0] sm:$0xff]
    %v169 = vld [vmem:[%s3 + $0xf8] sm:$0xff]
    %v186 = vunpack.c.l.b16 %v122
    %v187 = vunpack.c.h.b16 %v122
    %v188 = vunpack.c.l.b16 %v123
    %v189 = vunpack.c.h.b16 %v123
    %v190 = vunpack.c.l.b16 %v124
    %v191 = vunpack.c.h.b16 %v124
    %v192 = vunpack.c.l.b16 %v125
    %v193 = vunpack.c.h.b16 %v125
    %v194 = vunpack.c.l.b16 %v126
    %v195 = vunpack.c.h.b16 %v126
    %v196 = vunpack.c.l.b16 %v127
    %v197 = vunpack.c.h.b16 %v127
    %v198 = vunpack.c.l.b16 %v128
    %v199 = vunpack.c.h.b16 %v128
    %v200 = vunpack.c.l.b16 %v129
    %v201 = vunpack.c.h.b16 %v129
    %v202 = vunpack.c.l.b16 %v130
    %v203 = vunpack.c.h.b16 %v130
    %v204 = vunpack.c.l.b16 %v131
    %v205 = vunpack.c.h.b16 %v131
    %v206 = vunpack.c.l.b16 %v132
    %v207 = vunpack.c.h.b16 %v132
    %v208 = vunpack.c.l.b16 %v133
    %v209 = vunpack.c.h.b16 %v133
    %v210 = vunpack.c.l.b16 %v134
    %v211 = vunpack.c.h.b16 %v134
    %v212 = vunpack.c.l.b16 %v135
    %v213 = vunpack.c.h.b16 %v135
    %v214 = vunpack.c.l.b16 %v136
    %v215 = vunpack.c.h.b16 %v136
    %v216 = vunpack.c.l.b16 %v137
    %v217 = vunpack.c.h.b16 %v137
    %v218 = vpack.c.b16 %v188, %v186
    %v219 = vpack.c.b16 %v189, %v187
    %v220 = vpack.c.b16 %v192, %v190
    %v221 = vpack.c.b16 %v193, %v191
    %v222 = vpack.c.b16 %v196, %v194
    %v223 = vpack.c.b16 %v197, %v195
    %v224 = vpack.c.b16 %v200, %v198
    %v225 = vpack.c.b16 %v201, %v199
    %v226 = vpack.c.b16 %v204, %v202
    %v227 = vpack.c.b16 %v205, %v203
    %v228 = vpack.c.b16 %v208, %v206
    %v229 = vpack.c.b16 %v209, %v207
    %v230 = vpack.c.b16 %v212, %v210
    %v231 = vpack.c.b16 %v213, %v211
    %v232 = vpack.c.b16 %v216, %v214
    %v233 = vpack.c.b16 %v217, %v215
    %v282 = vunpack.c.l.b16 %v138
    %v283 = vunpack.c.h.b16 %v138
    %v284 = vunpack.c.l.b16 %v139
    %v285 = vunpack.c.h.b16 %v139
    %v286 = vunpack.c.l.b16 %v140
    %v287 = vunpack.c.h.b16 %v140
    %v288 = vunpack.c.l.b16 %v141
    %v289 = vunpack.c.h.b16 %v141
    %v290 = vunpack.c.l.b16 %v142
    %v291 = vunpack.c.h.b16 %v142
    %v292 = vunpack.c.l.b16 %v143
    %v293 = vunpack.c.h.b16 %v143
    %v294 = vunpack.c.l.b16 %v144
    %v295 = vunpack.c.h.b16 %v144
    %v296 = vunpack.c.l.b16 %v145
    %v297 = vunpack.c.h.b16 %v145
    %v298 = vunpack.c.l.b16 %v146
    %v299 = vunpack.c.h.b16 %v146
    %v300 = vunpack.c.l.b16 %v147
    %v301 = vunpack.c.h.b16 %v147
    %v302 = vunpack.c.l.b16 %v148
    %v303 = vunpack.c.h.b16 %v148
    %v304 = vunpack.c.l.b16 %v149
    %v305 = vunpack.c.h.b16 %v149
    %v306 = vunpack.c.l.b16 %v150
    %v307 = vunpack.c.h.b16 %v150
    %v308 = vunpack.c.l.b16 %v151
    %v309 = vunpack.c.h.b16 %v151
    %v310 = vunpack.c.l.b16 %v152
    %v311 = vunpack.c.h.b16 %v152
    %v312 = vunpack.c.l.b16 %v153
    %v313 = vunpack.c.h.b16 %v153
    %v314 = vunpack.c.l.b16 %v154
    %v315 = vunpack.c.h.b16 %v154
    %v316 = vunpack.c.l.b16 %v155
    %v317 = vunpack.c.h.b16 %v155
    %v318 = vunpack.c.l.b16 %v156
    %v319 = vunpack.c.h.b16 %v156
    %v320 = vunpack.c.l.b16 %v157
    %v321 = vunpack.c.h.b16 %v157
    %v322 = vunpack.c.l.b16 %v158
    %v323 = vunpack.c.h.b16 %v158
    %v324 = vunpack.c.l.b16 %v159
    %v325 = vunpack.c.h.b16 %v159
    %v326 = vunpack.c.l.b16 %v160
    %v327 = vunpack.c.h.b16 %v160
    %v328 = vunpack.c.l.b16 %v161
    %v329 = vunpack.c.h.b16 %v161
    %v330 = vunpack.c.l.b16 %v162
    %v331 = vunpack.c.h.b16 %v162
    %v332 = vunpack.c.l.b16 %v163
    %v333 = vunpack.c.h.b16 %v163
    %v334 = vunpack.c.l.b16 %v164
    %v335 = vunpack.c.h.b16 %v164
    %v336 = vunpack.c.l.b16 %v165
    %v337 = vunpack.c.h.b16 %v165
    %v338 = vunpack.c.l.b16 %v166
    %v339 = vunpack.c.h.b16 %v166
    %v340 = vunpack.c.l.b16 %v167
    %v341 = vunpack.c.h.b16 %v167
    %v342 = vunpack.c.l.b16 %v168
    %v343 = vunpack.c.h.b16 %v168
    %v344 = vunpack.c.l.b16 %v169
    %v345 = vunpack.c.h.b16 %v169
    %v346 = vpack.c.b16 %v284, %v282
    %v347 = vpack.c.b16 %v285, %v283
    %v348 = vpack.c.b16 %v288, %v286
    %v349 = vpack.c.b16 %v289, %v287
    %v350 = vpack.c.b16 %v292, %v290
    %v351 = vpack.c.b16 %v293, %v291
    %v352 = vpack.c.b16 %v296, %v294
    %v353 = vpack.c.b16 %v297, %v295
    %v354 = vpack.c.b16 %v300, %v298
    %v355 = vpack.c.b16 %v301, %v299
    %v356 = vpack.c.b16 %v304, %v302
    %v357 = vpack.c.b16 %v305, %v303
    %v358 = vpack.c.b16 %v308, %v306
    %v359 = vpack.c.b16 %v309, %v307
    %v360 = vpack.c.b16 %v312, %v310
    %v361 = vpack.c.b16 %v313, %v311
    %v362 = vpack.c.b16 %v316, %v314
    %v363 = vpack.c.b16 %v317, %v315
    %v364 = vpack.c.b16 %v320, %v318
    %v365 = vpack.c.b16 %v321, %v319
    %v366 = vpack.c.b16 %v324, %v322
    %v367 = vpack.c.b16 %v325, %v323
    %v368 = vpack.c.b16 %v328, %v326
    %v369 = vpack.c.b16 %v329, %v327
    %v370 = vpack.c.b16 %v332, %v330
    %v371 = vpack.c.b16 %v333, %v331
    %v372 = vpack.c.b16 %v336, %v334
    %v373 = vpack.c.b16 %v337, %v335
    %v374 = vpack.c.b16 %v340, %v338
    %v375 = vpack.c.b16 %v341, %v339
    %v376 = vpack.c.b16 %v344, %v342
    %v377 = vpack.c.b16 %v345, %v343
    %410 = vmatprep.subr.bf16.mxu0 %v361
    %411 = vmatpush1.bf16.msra.mxu0 %v360
    %412 = vmatprep.subr.bf16.mxu0 %v359
    %413 = vmatpush1.bf16.msra.mxu0 %v358
    %414 = vmatprep.subr.bf16.mxu0 %v357
    %415 = vmatpush1.bf16.msra.mxu0 %v356
    %416 = vmatprep.subr.bf16.mxu0 %v355
    %417 = vmatpush1.bf16.msra.mxu0 %v354
    %418 = vmatprep.subr.bf16.mxu0 %v353
    %419 = vmatpush1.bf16.msra.mxu0 %v352
    %420 = vmatprep.subr.bf16.mxu0 %v351
    %421 = vmatpush1.bf16.msra.mxu0 %v350
    %422 = vmatprep.subr.bf16.mxu0 %v349
    %423 = vmatpush1.bf16.msra.mxu0 %v348
    %424 = vmatprep.subr.bf16.mxu0 %v347
    %425 = vmatpush1.bf16.msra.mxu0 %v346
    %426 = vmatprep.subr.bf16.mxu0 %v377
    %427 = vmatpush2.bf16.msra.mxu0 %v376
    %428 = vmatprep.subr.bf16.mxu0 %v375
    %429 = vmatpush2.bf16.msra.mxu0 %v374
    %430 = vmatprep.subr.bf16.mxu0 %v373
    %431 = vmatpush2.bf16.msra.mxu0 %v372
    %432 = vmatprep.subr.bf16.mxu0 %v371
    %433 = vmatpush2.bf16.msra.mxu0 %v370
    %434 = vmatprep.subr.bf16.mxu0 %v369
    %435 = vmatpush2.bf16.msra.mxu0 %v368
    %436 = vmatprep.subr.bf16.mxu0 %v367
    %437 = vmatpush2.bf16.msra.mxu0 %v366
    %438 = vmatprep.subr.bf16.mxu0 %v365
    %439 = vmatpush2.bf16.msra.mxu0 %v364
    %440 = vmatprep.subr.bf16.mxu0 %v363
    %441 = vmatpush2.bf16.msra.mxu0 %v362
    %442 = vmatprep.mubr.bf16.mxu0 %v219
    %443 = vmatmul.mubr.bf16.gmra.mxu0 %v218
    %v444 = vpop.f32.mrf.mxu0
    %v445 = vadd.f32 0.0, %v444
    %v446 = vpop.f32.mrf.mxu0
    %v447 = vadd.f32 0.0, %v446
    %v448 = vpop.f32.mrf.mxu0
    %v449 = vadd.f32 0.0, %v448
    %v450 = vpop.f32.mrf.mxu0
    %v451 = vadd.f32 0.0, %v450
    %452 = vmatprep.mubr.bf16.mxu0 %v221
    %453 = vmatmul.mubr.bf16.gmra.mxu0 %v220
    %v454 = vpop.f32.mrf.mxu0
    %v455 = vadd.f32 0.0, %v454
    %v456 = vpop.f32.mrf.mxu0
    %v457 = vadd.f32 0.0, %v456
    %v458 = vpop.f32.mrf.mxu0
    %v459 = vadd.f32 0.0, %v458
    %v460 = vpop.f32.mrf.mxu0
    %v461 = vadd.f32 0.0, %v460
    %462 = vmatprep.mubr.bf16.mxu0 %v223
    %463 = vmatmul.mubr.bf16.gmra.mxu0 %v222
    %v464 = vpop.f32.mrf.mxu0
    %v465 = vadd.f32 0.0, %v464
    %v466 = vpop.f32.mrf.mxu0
    %v467 = vadd.f32 0.0, %v466
    %v468 = vpop.f32.mrf.mxu0
    %v469 = vadd.f32 0.0, %v468
    %v470 = vpop.f32.mrf.mxu0
    %v471 = vadd.f32 0.0, %v470
    %472 = vmatprep.mubr.bf16.mxu0 %v225
    %473 = vmatmul.mubr.bf16.gmra.mxu0 %v224
    %v474 = vpop.f32.mrf.mxu0
    %v475 = vadd.f32 0.0, %v474
    %v476 = vpop.f32.mrf.mxu0
    %v477 = vadd.f32 0.0, %v476
    %v478 = vpop.f32.mrf.mxu0
    %v479 = vadd.f32 0.0, %v478
    %v480 = vpop.f32.mrf.mxu0
    %v481 = vadd.f32 0.0, %v480
    %482 = vmatprep.mubr.bf16.mxu0 %v227
    %483 = vmatmul.mubr.bf16.gmra.mxu0 %v226
    %v484 = vpop.f32.mrf.mxu0
    %v485 = vadd.f32 0.0, %v484
    %v486 = vpop.f32.mrf.mxu0
    %v487 = vadd.f32 0.0, %v486
    %v488 = vpop.f32.mrf.mxu0
    %v489 = vadd.f32 0.0, %v488
    %v490 = vpop.f32.mrf.mxu0
    %v491 = vadd.f32 0.0, %v490
    %492 = vmatprep.mubr.bf16.mxu0 %v229
    %493 = vmatmul.mubr.bf16.gmra.mxu0 %v228
    %v494 = vpop.f32.mrf.mxu0
    %v495 = vadd.f32 0.0, %v494
    %v496 = vpop.f32.mrf.mxu0
    %v497 = vadd.f32 0.0, %v496
    %v498 = vpop.f32.mrf.mxu0
    %v499 = vadd.f32 0.0, %v498
    %v500 = vpop.f32.mrf.mxu0
    %v501 = vadd.f32 0.0, %v500
    %502 = vmatprep.mubr.bf16.mxu0 %v231
    %503 = vmatmul.mubr.bf16.gmra.mxu0 %v230
    %v504 = vpop.f32.mrf.mxu0
    %v505 = vadd.f32 0.0, %v504
    %v506 = vpop.f32.mrf.mxu0
    %v507 = vadd.f32 0.0, %v506
    %v508 = vpop.f32.mrf.mxu0
    %v509 = vadd.f32 0.0, %v508
    %v510 = vpop.f32.mrf.mxu0
    %v511 = vadd.f32 0.0, %v510
    %512 = vmatprep.mubr.bf16.mxu0 %v233
    %513 = vmatmul.mubr.bf16.gmra.mxu0 %v232
    %v514 = vpop.f32.mrf.mxu0
    %v515 = vadd.f32 0.0, %v514
    %v516 = vpop.f32.mrf.mxu0
    %v517 = vadd.f32 0.0, %v516
    %v518 = vpop.f32.mrf.mxu0
    %v519 = vadd.f32 0.0, %v518
    %v520 = vpop.f32.mrf.mxu0
    %v521 = vadd.f32 0.0, %v520
    %522 = vdwg.mxu0
    %v523 = vpack.c.bf16 %v449, %v445
    %v524 = vpack.c.bf16 %v459, %v455
    %v525 = vpack.c.bf16 %v469, %v465
    %v526 = vpack.c.bf16 %v479, %v475
    %v527 = vpack.c.bf16 %v489, %v485
    %v528 = vpack.c.bf16 %v499, %v495
    %v529 = vpack.c.bf16 %v509, %v505
    %v530 = vpack.c.bf16 %v519, %v515
    %v539 = vunpack.c.l.b16 %v523
    %v540 = vunpack.c.h.b16 %v523
    %v541 = vunpack.c.l.b16 %v524
    %v542 = vunpack.c.h.b16 %v524
    %v543 = vunpack.c.l.b16 %v525
    %v544 = vunpack.c.h.b16 %v525
    %v545 = vunpack.c.l.b16 %v526
    %v546 = vunpack.c.h.b16 %v526
    %v547 = vunpack.c.l.b16 %v527
    %v548 = vunpack.c.h.b16 %v527
    %v549 = vunpack.c.l.b16 %v528
    %v550 = vunpack.c.h.b16 %v528
    %v551 = vunpack.c.l.b16 %v529
    %v552 = vunpack.c.h.b16 %v529
    %v553 = vunpack.c.l.b16 %v530
    %v554 = vunpack.c.h.b16 %v530
    %v555 = vpack.c.b16 %v539, %v539
    %v556 = vpack.c.b16 %v540, %v540
    %v557 = vpack.c.b16 %v541, %v541
    %v558 = vpack.c.b16 %v542, %v542
    %v559 = vpack.c.b16 %v543, %v543
    %v560 = vpack.c.b16 %v544, %v544
    %v561 = vpack.c.b16 %v545, %v545
    %v562 = vpack.c.b16 %v546, %v546
    %v563 = vpack.c.b16 %v547, %v547
    %v564 = vpack.c.b16 %v548, %v548
    %v565 = vpack.c.b16 %v549, %v549
    %v566 = vpack.c.b16 %v550, %v550
    %v567 = vpack.c.b16 %v551, %v551
    %v568 = vpack.c.b16 %v552, %v552
    %v569 = vpack.c.b16 %v553, %v553
    %v570 = vpack.c.b16 %v554, %v554
    %587 = vst [vmem:[%s6] sm:$0xf] %v555
    %588 = vst [vmem:[%s6 + $0x4] sm:$0xf] %v556
    %589 = vst [vmem:[%s6 + $0x8] sm:$0xf] %v557
    %590 = vst [vmem:[%s6 + $0xc] sm:$0xf] %v558
    %591 = vst [vmem:[%s6 + $0x10] sm:$0xf] %v559
    %592 = vst [vmem:[%s6 + $0x14] sm:$0xf] %v560
    %593 = vst [vmem:[%s6 + $0x18] sm:$0xf] %v561
    %594 = vst [vmem:[%s6 + $0x1c] sm:$0xf] %v562
    %595 = vst [vmem:[%s6 + $0x20] sm:$0xf] %v563
    %596 = vst [vmem:[%s6 + $0x24] sm:$0xf] %v564
    %597 = vst [vmem:[%s6 + $0x28] sm:$0xf] %v565
    %598 = vst [vmem:[%s6 + $0x2c] sm:$0xf] %v566
    %599 = vst [vmem:[%s6 + $0x30] sm:$0xf] %v567
    %600 = vst [vmem:[%s6 + $0x34] sm:$0xf] %v568
    %601 = vst [vmem:[%s6 + $0x38] sm:$0xf] %v569
    %602 = vst [vmem:[%s6 + $0x3c] sm:$0xf] %v570
    %v603 = vpack.c.bf16 %v451, %v447
    %v604 = vpack.c.bf16 %v461, %v457
    %v605 = vpack.c.bf16 %v471, %v467
    %v606 = vpack.c.bf16 %v481, %v477
    %v607 = vpack.c.bf16 %v491, %v487
    %v608 = vpack.c.bf16 %v501, %v497
    %v609 = vpack.c.bf16 %v511, %v507
    %v610 = vpack.c.bf16 %v521, %v517
    %v611 = vld [vmem:[%s1] sm:$0xf]
    %v612 = vld [vmem:[%s1 + $0x4] sm:$0xf]
    %v613 = vld [vmem:[%s1 + $0x8] sm:$0xf]
    %v614 = vld [vmem:[%s1 + $0xc] sm:$0xf]
    %v615 = vld [vmem:[%s4] sm:$0xf]
    %v616 = vld [vmem:[%s4 + $0x4] sm:$0xf]
    %v617 = vld [vmem:[%s4 + $0x8] sm:$0xf]
    %v618 = vld [vmem:[%s4 + $0xc] sm:$0xf]
    %v619 = vld [vmem:[%s4 + $0x10] sm:$0xf]
    %v620 = vld [vmem:[%s4 + $0x14] sm:$0xf]
    %v621 = vld [vmem:[%s4 + $0x18] sm:$0xf]
    %v622 = vld [vmem:[%s4 + $0x1c] sm:$0xf]
    %v623 = vld [vmem:[%s4 + $0x20] sm:$0xf]
    %v624 = vld [vmem:[%s4 + $0x24] sm:$0xf]
    %v625 = vld [vmem:[%s4 + $0x28] sm:$0xf]
    %v626 = vld [vmem:[%s4 + $0x2c] sm:$0xf]
    %v627 = vld [vmem:[%s4 + $0x30] sm:$0xf]
    %v628 = vld [vmem:[%s4 + $0x34] sm:$0xf]
    %v629 = vld [vmem:[%s4 + $0x38] sm:$0xf]
    %v630 = vld [vmem:[%s4 + $0x3c] sm:$0xf]
    %v635 = vunpack.c.l.b16 %v611
    %v636 = vunpack.c.l.b16 %v612
    %v637 = vunpack.c.l.b16 %v613
    %v638 = vunpack.c.l.b16 %v614
    %v639 = vpack.c.b16 %v636, %v635
    %v640 = vpack.c.b16 %v638, %v637
    %v659 = vunpack.c.l.b16 %v615
    %v660 = vunpack.c.l.b16 %v616
    %v661 = vunpack.c.l.b16 %v617
    %v662 = vunpack.c.l.b16 %v618
    %v663 = vunpack.c.l.b16 %v619
    %v664 = vunpack.c.l.b16 %v620
    %v665 = vunpack.c.l.b16 %v621
    %v666 = vunpack.c.l.b16 %v622
    %v667 = vunpack.c.l.b16 %v623
    %v668 = vunpack.c.l.b16 %v624
    %v669 = vunpack.c.l.b16 %v625
    %v670 = vunpack.c.l.b16 %v626
    %v671 = vunpack.c.l.b16 %v627
    %v672 = vunpack.c.l.b16 %v628
    %v673 = vunpack.c.l.b16 %v629
    %v674 = vunpack.c.l.b16 %v630
    %v675 = vpack.c.b16 %v660, %v659
    %v676 = vpack.c.b16 %v662, %v661
    %v677 = vpack.c.b16 %v664, %v663
    %v678 = vpack.c.b16 %v666, %v665
    %v679 = vpack.c.b16 %v668, %v667
    %v680 = vpack.c.b16 %v670, %v669
    %v681 = vpack.c.b16 %v672, %v671
    %v682 = vpack.c.b16 %v674, %v673
    %691 = vmatprep.subr.bf16.mxu0 0
    %692 = vmatpush1.bf16.msra.mxu0 %v682
    %693 = vmatprep.subr.bf16.mxu0 0
    %694 = vmatpush1.bf16.msra.mxu0 %v681
    %695 = vmatprep.subr.bf16.mxu0 0
    %696 = vmatpush1.bf16.msra.mxu0 %v680
    %697 = vmatprep.subr.bf16.mxu0 0
    %698 = vmatpush1.bf16.msra.mxu0 %v679
    %699 = vmatprep.subr.bf16.mxu0 0
    %700 = vmatpush1.bf16.msra.mxu0 %v678
    %701 = vmatprep.subr.bf16.mxu0 0
    %702 = vmatpush1.bf16.msra.mxu0 %v677
    %703 = vmatprep.subr.bf16.mxu0 0
    %704 = vmatpush1.bf16.msra.mxu0 %v676
    %705 = vmatprep.subr.bf16.mxu0 0
    %706 = vmatpush1.bf16.msra.mxu0 %v675
    %707 = vmatprep.subr.bf16.mxu0 0
    %708 = vmatpush2.bf16.msra.mxu0 0
    %709 = vmatprep.subr.bf16.mxu0 0
    %710 = vmatpush2.bf16.msra.mxu0 0
    %711 = vmatprep.subr.bf16.mxu0 0
    %712 = vmatpush2.bf16.msra.mxu0 0
    %713 = vmatprep.subr.bf16.mxu0 0
    %714 = vmatpush2.bf16.msra.mxu0 0
    %715 = vmatprep.subr.bf16.mxu0 0
    %716 = vmatpush2.bf16.msra.mxu0 0
    %717 = vmatprep.subr.bf16.mxu0 0
    %718 = vmatpush2.bf16.msra.mxu0 0
    %719 = vmatprep.subr.bf16.mxu0 0
    %720 = vmatpush2.bf16.msra.mxu0 0
    %721 = vmatprep.subr.bf16.mxu0 0
    %722 = vmatpush2.bf16.msra.mxu0 0
    %723 = vmatprep.mubr.bf16.mxu0 0
    %724 = vmatmul.mubr.bf16.gmra.mxu0 %v639
    %v725 = vpop.f32.mrf.mxu0
    %v726 = vadd.f32 0.0, %v725
    %v727 = vpop.f32.mrf.mxu0
    %v728 = vpop.f32.mrf.mxu0
    %v729 = vadd.f32 0.0, %v728
    %v730 = vpop.f32.mrf.mxu0
    %731 = vmatprep.mubr.bf16.mxu0 0
    %732 = vmatmul.mubr.bf16.gmra.mxu0 %v640
    %v733 = vpop.f32.mrf.mxu0
    %v734 = vadd.f32 0.0, %v733
    %v735 = vpop.f32.mrf.mxu0
    %v736 = vpop.f32.mrf.mxu0
    %v737 = vadd.f32 0.0, %v736
    %v738 = vpop.f32.mrf.mxu0
    %739 = vdwg.mxu0
    %v740 = vpack.c.bf16 %v729, %v726
    %v741 = vpack.c.bf16 %v737, %v734
    %v744 = vunpack.c.l.b16 %v740
    %v745 = vunpack.c.h.b16 %v740
    %v746 = vunpack.c.l.b16 %v741
    %v747 = vunpack.c.h.b16 %v741
    %v748 = vpack.c.b16 %v744, %v744
    %v749 = vpack.c.b16 %v745, %v745
    %v750 = vpack.c.b16 %v746, %v746
    %v751 = vpack.c.b16 %v747, %v747
    %756 = vst [vmem:[%s7] sm:$0xf] %v748
    %757 = vst [vmem:[%s7 + $0x4] sm:$0xf] %v749
    %758 = vst [vmem:[%s7 + $0x8] sm:$0xf] %v750
    %759 = vst [vmem:[%s7 + $0xc] sm:$0xf] %v751
    %v760 = vld [vmem:[%s2] sm:$0xf]
    %v761 = vld [vmem:[%s2 + $0x4] sm:$0xf]
    %v762 = vld [vmem:[%s2 + $0x8] sm:$0xf]
    %v763 = vld [vmem:[%s2 + $0xc] sm:$0xf]
    %v764 = vld [vmem:[%s5] sm:$0x1]
    %v766 = vlaneseq
    %v767 = vshrl.u32 %v766, 7
    %v768 = vsub.s32 0, %v767
    %v769 = vrot.slane %v764, %v768
    %v775 = vunpack.c.l.b16 %v760
    %v776 = vunpack.c.l.b16 %v761
    %v777 = vunpack.c.l.b16 %v762
    %v778 = vunpack.c.l.b16 %v763
    %v779 = vpack.c.b16 %v776, %v775
    %v780 = vpack.c.b16 %v778, %v777
    %783 = vmatprep.subr.bf16.mxu0 0
    %784 = vmatpush1.bf16.msra.mxu0 %v610
    %785 = vmatprep.subr.bf16.mxu0 0
    %786 = vmatpush1.bf16.msra.mxu0 %v609
    %787 = vmatprep.subr.bf16.mxu0 0
    %788 = vmatpush1.bf16.msra.mxu0 %v608
    %789 = vmatprep.subr.bf16.mxu0 0
    %790 = vmatpush1.bf16.msra.mxu0 %v607
    %791 = vmatprep.subr.bf16.mxu0 0
    %792 = vmatpush1.bf16.msra.mxu0 %v606
    %793 = vmatprep.subr.bf16.mxu0 0
    %794 = vmatpush1.bf16.msra.mxu0 %v605
    %795 = vmatprep.subr.bf16.mxu0 0
    %796 = vmatpush1.bf16.msra.mxu0 %v604
    %797 = vmatprep.subr.bf16.mxu0 0
    %798 = vmatpush1.bf16.msra.mxu0 %v603
    %799 = vmatprep.subr.bf16.mxu0 0
    %800 = vmatpush2.bf16.msra.mxu0 0
    %801 = vmatprep.subr.bf16.mxu0 0
    %802 = vmatpush2.bf16.msra.mxu0 0
    %803 = vmatprep.subr.bf16.mxu0 0
    %804 = vmatpush2.bf16.msra.mxu0 0
    %805 = vmatprep.subr.bf16.mxu0 0
    %806 = vmatpush2.bf16.msra.mxu0 0
    %807 = vmatprep.subr.bf16.mxu0 0
    %808 = vmatpush2.bf16.msra.mxu0 0
    %809 = vmatprep.subr.bf16.mxu0 0
    %810 = vmatpush2.bf16.msra.mxu0 0
    %811 = vmatprep.subr.bf16.mxu0 0
    %812 = vmatpush2.bf16.msra.mxu0 0
    %813 = vmatprep.subr.bf16.mxu0 0
    %814 = vmatpush2.bf16.msra.mxu0 0
    %815 = vmatprep.mubr.bf16.mxu0 0
    %816 = vmatmul.mubr.bf16.gmra.mxu0 %v779
    %v817 = vpop.f32.mrf.mxu0
    %v818 = vadd.f32 %v769, %v817
    %v819 = vpop.f32.mrf.mxu0
    %v820 = vpop.f32.mrf.mxu0
    %v821 = vadd.f32 %v769, %v820
    %v822 = vpop.f32.mrf.mxu0
    %823 = vmatprep.mubr.bf16.mxu0 0
    %824 = vmatmul.mubr.bf16.gmra.mxu0 %v780
    %v825 = vpop.f32.mrf.mxu0
    %v826 = vadd.f32 %v769, %v825
    %v827 = vpop.f32.mrf.mxu0
    %v828 = vpop.f32.mrf.mxu0
    %v829 = vadd.f32 %v769, %v828
    %v830 = vpop.f32.mrf.mxu0
    %831 = vdwg.mxu0
    %v832 = vpack.c.bf16 %v821, %v818
    %v833 = vpack.c.bf16 %v829, %v826
    %v836 = vunpack.c.l.b16 %v832
    %v837 = vunpack.c.h.b16 %v832
    %v838 = vunpack.c.l.b16 %v833
    %v839 = vunpack.c.h.b16 %v833
    %v840 = vpack.c.b16 %v836, %v836
    %v841 = vpack.c.b16 %v837, %v837
    %v842 = vpack.c.b16 %v838, %v838
    %v843 = vpack.c.b16 %v839, %v839
    %848 = vst [vmem:[%s8] sm:$0xf] %v840
    %849 = vst [vmem:[%s8 + $0x4] sm:$0xf] %v841
    %850 = vst [vmem:[%s8 + $0x8] sm:$0xf] %v842
    %851 = vst [vmem:[%s8 + $0xc] sm:$0xf] %v843
    // Predicated region
    $region64: #{gnn_model_forward.9} parent=1 // pred_check
      _
    $region65: #{gnn_model_forward.9} parent=1 // pred_check_branch
      %853 = sbr.rel (0) target = $region67
    $region66: #{gnn_model_forward.9} parent=1 // pred_region
      _
    $region67: #{gnn_model_forward.9} parent=1 // pred_fallthru
      _
    // Predicated region
    $region68: #{gnn_model_forward.9} parent=1 // pred_check
      _
    $region69: #{gnn_model_forward.9} parent=1 // pred_check_branch
      %855 = sbr.rel (0) target = $region71
    $region70: #{gnn_model_forward.9} parent=1 // pred_region
      _
    $region71: #{gnn_model_forward.9} parent=1 // pred_fallthru
      _
    // Predicated region
    $region72: #{gnn_model_forward.9} parent=1 // pred_check
      _
    $region73: #{gnn_model_forward.9} parent=1 // pred_check_branch
      %857 = sbr.rel (0) target = $region75
    $region74: #{gnn_model_forward.9} parent=1 // pred_region
      _
    $region75: #{gnn_model_forward.9} parent=1 // pred_fallthru
      _
    // Predicated region
    $region76: #{gnn_model_forward.9} parent=1 // pred_check
      _
    $region77: #{gnn_model_forward.9} parent=1 // pred_check_branch
      %859 = sbr.rel (0) target = $region79
    $region78: #{gnn_model_forward.9} parent=1 // pred_region
      _
    $region79: #{gnn_model_forward.9} parent=1 // pred_fallthru
      _
    // Predicated region
    $region80: #{gnn_model_forward.9} parent=1 // pred_check
      _
    $region81: #{gnn_model_forward.9} parent=1 // pred_check_branch
      %861 = sbr.rel (0) target = $region83
    $region82: #{gnn_model_forward.9} parent=1 // pred_region
      _
    $region83: #{gnn_model_forward.9} parent=1 // pred_fallthru
      _
    // Predicated region
    $region84: #{gnn_model_forward.9} parent=1 // pred_check
      _
    $region85: #{gnn_model_forward.9} parent=1 // pred_check_branch
      %863 = sbr.rel (0) target = $region87
    $region86: #{gnn_model_forward.9} parent=1 // pred_region
      _
    $region87: #{gnn_model_forward.9} parent=1 // pred_fallthru
      _

// kernel: gnn_model_forward.8
$region0: #{gnn_model_forward.8}
  #allocation0 [shape = 'u32[]', space=smem, size = 0x4, offset = 0x4, fixed_abs, tag = 'smem constant byte address 0x4 - core index']
  #allocation1 [shape = 'u32[144,128]{1,0:T(1,128)}', space=vmem, size = 0x12000, scoped, tag = 'internal scratch']
  %s0 = inlined_call_operand.vmem [shape: bf16[128,128], index: 0, kind: input, shape index: {}]
  %s1 = inlined_call_operand.vmem [shape: bf16[128,32], index: 1, kind: input, shape index: {}]
  %s2 = inlined_call_operand.vmem [shape: bf16[128,128], index: 2, kind: input, shape index: {}]
  %s3 = inlined_call_operand.vmem [shape: bf16[32,128], index: 3, kind: input, shape index: {}]
  %s4 = inlined_call_operand.vmem [shape: f32[1,128], index: 4, kind: input, shape index: {}]
  %s5 = inlined_call_operand.vmem [shape: f32[1,128], index: 5, kind: input, shape index: {}]
  %s6 = inlined_call_operand.vmem [shape: bf16[128,768], index: 6, kind: input, shape index: {}, may-alias: {6,7}]
  %s7 = inlined_call_operand.vmem [shape: bf16[128,768], index: 7, kind: output, shape index: {}, may-alias: {6,7}]
  %s8 = sld [smem:[#allocation0]]
  $region68: #{gnn_model_forward.8} parent=0
    _
  %s10 = ssub.s32 1, %s8
  %s11 = scalar_select 0, %s10, %s8
  $region1: #{gnn_model_forward.8} parent=0
    #allocation2 [shape = 'u8[65536]{0}', space=vmem, size = 0x10000, scoped, tag = 'output window, operand 0, single buffered']
    // Predicated region
    $region2: #{gnn_model_forward.8} parent=1 // pred_check
      _
    $region3: #{gnn_model_forward.8} parent=1 // pred_check_branch
      %13 = sbr.rel (0) target = $region5
    $region4: #{gnn_model_forward.8} parent=1 // pred_region
      _
    $region5: #{gnn_model_forward.8} parent=1 // pred_fallthru
      _
    // Predicated region
    $region6: #{gnn_model_forward.8} parent=1 // pred_check
      _
    $region7: #{gnn_model_forward.8} parent=1 // pred_check_branch
      %15 = sbr.rel (0) target = $region9
    $region8: #{gnn_model_forward.8} parent=1 // pred_region
      _
    $region9: #{gnn_model_forward.8} parent=1 // pred_fallthru
      _
    // Predicated region
    $region10: #{gnn_model_forward.8} parent=1 // pred_check
      _
    $region11: #{gnn_model_forward.8} parent=1 // pred_check_branch
      %17 = sbr.rel (0) target = $region13
    $region12: #{gnn_model_forward.8} parent=1 // pred_region
      _
    $region13: #{gnn_model_forward.8} parent=1 // pred_fallthru
      _
    // Predicated region
    $region14: #{gnn_model_forward.8} parent=1 // pred_check
      _
    $region15: #{gnn_model_forward.8} parent=1 // pred_check_branch
      %19 = sbr.rel (0) target = $region17
    $region16: #{gnn_model_forward.8} parent=1 // pred_region
      _
    $region17: #{gnn_model_forward.8} parent=1 // pred_fallthru
      _
    // Predicated region
    $region18: #{gnn_model_forward.8} parent=1 // pred_check
      _
    $region19: #{gnn_model_forward.8} parent=1 // pred_check_branch
      %21 = sbr.rel (0) target = $region21
    $region20: #{gnn_model_forward.8} parent=1 // pred_region
      _
    $region21: #{gnn_model_forward.8} parent=1 // pred_fallthru
      _
    // Predicated region
    $region22: #{gnn_model_forward.8} parent=1 // pred_check
      _
    $region23: #{gnn_model_forward.8} parent=1 // pred_check_branch
      %23 = sbr.rel (0) target = $region25
    $region24: #{gnn_model_forward.8} parent=1 // pred_region
      _
    $region25: #{gnn_model_forward.8} parent=1 // pred_fallthru
      _
    %v25 = vld [vmem:[%s0] sm:$0xf]
    %v26 = vld [vmem:[%s0 + $0x4] sm:$0xf]
    %v27 = vld [vmem:[%s0 + $0x8] sm:$0xf]
    %v28 = vld [vmem:[%s0 + $0xc] sm:$0xf]
    %v29 = vld [vmem:[%s0 + $0x10] sm:$0xf]
    %v30 = vld [vmem:[%s0 + $0x14] sm:$0xf]
    %v31 = vld [vmem:[%s0 + $0x18] sm:$0xf]
    %v32 = vld [vmem:[%s0 + $0x1c] sm:$0xf]
    %v33 = vld [vmem:[%s0 + $0x20] sm:$0xf]
    %v34 = vld [vmem:[%s0 + $0x24] sm:$0xf]
    %v35 = vld [vmem:[%s0 + $0x28] sm:$0xf]
    %v36 = vld [vmem:[%s0 + $0x2c] sm:$0xf]
    %v37 = vld [vmem:[%s0 + $0x30] sm:$0xf]
    %v38 = vld [vmem:[%s0 + $0x34] sm:$0xf]
    %v39 = vld [vmem:[%s0 + $0x38] sm:$0xf]
    %v40 = vld [vmem:[%s0 + $0x3c] sm:$0xf]
    %v41 = vld [vmem:[%s2] sm:$0xf]
    %v42 = vld [vmem:[%s2 + $0x4] sm:$0xf]
    %v43 = vld [vmem:[%s2 + $0x8] sm:$0xf]
    %v44 = vld [vmem:[%s2 + $0xc] sm:$0xf]
    %v45 = vld [vmem:[%s2 + $0x10] sm:$0xf]
    %v46 = vld [vmem:[%s2 + $0x14] sm:$0xf]
    %v47 = vld [vmem:[%s2 + $0x18] sm:$0xf]
    %v48 = vld [vmem:[%s2 + $0x1c] sm:$0xf]
    %v49 = vld [vmem:[%s2 + $0x20] sm:$0xf]
    %v50 = vld [vmem:[%s2 + $0x24] sm:$0xf]
    %v51 = vld [vmem:[%s2 + $0x28] sm:$0xf]
    %v52 = vld [vmem:[%s2 + $0x2c] sm:$0xf]
    %v53 = vld [vmem:[%s2 + $0x30] sm:$0xf]
    %v54 = vld [vmem:[%s2 + $0x34] sm:$0xf]
    %v55 = vld [vmem:[%s2 + $0x38] sm:$0xf]
    %v56 = vld [vmem:[%s2 + $0x3c] sm:$0xf]
    %v57 = vld [vmem:[%s4] sm:$0x1]
    %v59 = vlaneseq
    %v60 = vshrl.u32 %v59, 7
    %v61 = vsub.s32 0, %v60
    %v62 = vrot.slane %v57, %v61
    %v80 = vunpack.c.l.b16 %v25
    %v81 = vunpack.c.l.b16 %v26
    %v82 = vunpack.c.l.b16 %v27
    %v83 = vunpack.c.l.b16 %v28
    %v84 = vunpack.c.l.b16 %v29
    %v85 = vunpack.c.l.b16 %v30
    %v86 = vunpack.c.l.b16 %v31
    %v87 = vunpack.c.l.b16 %v32
    %v88 = vunpack.c.l.b16 %v33
    %v89 = vunpack.c.l.b16 %v34
    %v90 = vunpack.c.l.b16 %v35
    %v91 = vunpack.c.l.b16 %v36
    %v92 = vunpack.c.l.b16 %v37
    %v93 = vunpack.c.l.b16 %v38
    %v94 = vunpack.c.l.b16 %v39
    %v95 = vunpack.c.l.b16 %v40
    %v96 = vpack.c.b16 %v81, %v80
    %v97 = vpack.c.b16 %v83, %v82
    %v98 = vpack.c.b16 %v85, %v84
    %v99 = vpack.c.b16 %v87, %v86
    %v100 = vpack.c.b16 %v89, %v88
    %v101 = vpack.c.b16 %v91, %v90
    %v102 = vpack.c.b16 %v93, %v92
    %v103 = vpack.c.b16 %v95, %v94
    %v128 = vunpack.c.l.b16 %v41
    %v129 = vunpack.c.l.b16 %v42
    %v130 = vunpack.c.l.b16 %v43
    %v131 = vunpack.c.l.b16 %v44
    %v132 = vunpack.c.l.b16 %v45
    %v133 = vunpack.c.l.b16 %v46
    %v134 = vunpack.c.l.b16 %v47
    %v135 = vunpack.c.l.b16 %v48
    %v136 = vunpack.c.l.b16 %v49
    %v137 = vunpack.c.l.b16 %v50
    %v138 = vunpack.c.l.b16 %v51
    %v139 = vunpack.c.l.b16 %v52
    %v140 = vunpack.c.l.b16 %v53
    %v141 = vunpack.c.l.b16 %v54
    %v142 = vunpack.c.l.b16 %v55
    %v143 = vunpack.c.l.b16 %v56
    %v144 = vpack.c.b16 %v129, %v128
    %v145 = vpack.c.b16 %v131, %v130
    %v146 = vpack.c.b16 %v133, %v132
    %v147 = vpack.c.b16 %v135, %v134
    %v148 = vpack.c.b16 %v137, %v136
    %v149 = vpack.c.b16 %v139, %v138
    %v150 = vpack.c.b16 %v141, %v140
    %v151 = vpack.c.b16 %v143, %v142
    %160 = vmatprep.subr.bf16.mxu0 0
    %161 = vmatpush1.bf16.msra.mxu0 %v151
    %162 = vmatprep.subr.bf16.mxu0 0
    %163 = vmatpush1.bf16.msra.mxu0 %v150
    %164 = vmatprep.subr.bf16.mxu0 0
    %165 = vmatpush1.bf16.msra.mxu0 %v149
    %166 = vmatprep.subr.bf16.mxu0 0
    %167 = vmatpush1.bf16.msra.mxu0 %v148
    %168 = vmatprep.subr.bf16.mxu0 0
    %169 = vmatpush1.bf16.msra.mxu0 %v147
    %170 = vmatprep.subr.bf16.mxu0 0
    %171 = vmatpush1.bf16.msra.mxu0 %v146
    %172 = vmatprep.subr.bf16.mxu0 0
    %173 = vmatpush1.bf16.msra.mxu0 %v145
    %174 = vmatprep.subr.bf16.mxu0 0
    %175 = vmatpush1.bf16.msra.mxu0 %v144
    %176 = vmatprep.subr.bf16.mxu0 0
    %177 = vmatpush2.bf16.msra.mxu0 0
    %178 = vmatprep.subr.bf16.mxu0 0
    %179 = vmatpush2.bf16.msra.mxu0 0
    %180 = vmatprep.subr.bf16.mxu0 0
    %181 = vmatpush2.bf16.msra.mxu0 0
    %182 = vmatprep.subr.bf16.mxu0 0
    %183 = vmatpush2.bf16.msra.mxu0 0
    %184 = vmatprep.subr.bf16.mxu0 0
    %185 = vmatpush2.bf16.msra.mxu0 0
    %186 = vmatprep.subr.bf16.mxu0 0
    %187 = vmatpush2.bf16.msra.mxu0 0
    %188 = vmatprep.subr.bf16.mxu0 0
    %189 = vmatpush2.bf16.msra.mxu0 0
    %190 = vmatprep.subr.bf16.mxu0 0
    %191 = vmatpush2.bf16.msra.mxu0 0
    %192 = vmatprep.mubr.bf16.mxu0 0
    %193 = vmatmul.mubr.bf16.gmra.mxu0 %v96
    %v194 = vpop.f32.mrf.mxu0
    %v195 = vadd.f32 %v62, %v194
    %v196 = vpop.f32.mrf.mxu0
    %v197 = vpop.f32.mrf.mxu0
    %v198 = vadd.f32 %v62, %v197
    %v199 = vpop.f32.mrf.mxu0
    %200 = vmatprep.mubr.bf16.mxu0 0
    %201 = vmatmul.mubr.bf16.gmra.mxu0 %v97
    %v202 = vpop.f32.mrf.mxu0
    %v203 = vadd.f32 %v62, %v202
    %v204 = vpop.f32.mrf.mxu0
    %v205 = vpop.f32.mrf.mxu0
    %v206 = vadd.f32 %v62, %v205
    %v207 = vpop.f32.mrf.mxu0
    %208 = vmatprep.mubr.bf16.mxu0 0
    %209 = vmatmul.mubr.bf16.gmra.mxu0 %v98
    %v210 = vpop.f32.mrf.mxu0
    %v211 = vadd.f32 %v62, %v210
    %v212 = vpop.f32.mrf.mxu0
    %v213 = vpop.f32.mrf.mxu0
    %v214 = vadd.f32 %v62, %v213
    %v215 = vpop.f32.mrf.mxu0
    %216 = vmatprep.mubr.bf16.mxu0 0
    %217 = vmatmul.mubr.bf16.gmra.mxu0 %v99
    %v218 = vpop.f32.mrf.mxu0
    %v219 = vadd.f32 %v62, %v218
    %v220 = vpop.f32.mrf.mxu0
    %v221 = vpop.f32.mrf.mxu0
    %v222 = vadd.f32 %v62, %v221
    %v223 = vpop.f32.mrf.mxu0
    %224 = vmatprep.mubr.bf16.mxu0 0
    %225 = vmatmul.mubr.bf16.gmra.mxu0 %v100
    %v226 = vpop.f32.mrf.mxu0
    %v227 = vadd.f32 %v62, %v226
    %v228 = vpop.f32.mrf.mxu0
    %v229 = vpop.f32.mrf.mxu0
    %v230 = vadd.f32 %v62, %v229
    %v231 = vpop.f32.mrf.mxu0
    %232 = vmatprep.mubr.bf16.mxu0 0
    %233 = vmatmul.mubr.bf16.gmra.mxu0 %v101
    %v234 = vpop.f32.mrf.mxu0
    %v235 = vadd.f32 %v62, %v234
    %v236 = vpop.f32.mrf.mxu0
    %v237 = vpop.f32.mrf.mxu0
    %v238 = vadd.f32 %v62, %v237
    %v239 = vpop.f32.mrf.mxu0
    %240 = vmatprep.mubr.bf16.mxu0 0
    %241 = vmatmul.mubr.bf16.gmra.mxu0 %v102
    %v242 = vpop.f32.mrf.mxu0
    %v243 = vadd.f32 %v62, %v242
    %v244 = vpop.f32.mrf.mxu0
    %v245 = vpop.f32.mrf.mxu0
    %v246 = vadd.f32 %v62, %v245
    %v247 = vpop.f32.mrf.mxu0
    %248 = vmatprep.mubr.bf16.mxu0 0
    %249 = vmatmul.mubr.bf16.gmra.mxu0 %v103
    %v250 = vpop.f32.mrf.mxu0
    %v251 = vadd.f32 %v62, %v250
    %v252 = vpop.f32.mrf.mxu0
    %v253 = vpop.f32.mrf.mxu0
    %v254 = vadd.f32 %v62, %v253
    %v255 = vpop.f32.mrf.mxu0
    %256 = vdwg.mxu0
    %v257 = vmax.f32 %v195, 0.0
    %v258 = vmax.f32 %v198, 0.0
    %v259 = vmax.f32 %v203, 0.0
    %v260 = vmax.f32 %v206, 0.0
    %v261 = vmax.f32 %v211, 0.0
    %v262 = vmax.f32 %v214, 0.0
    %v263 = vmax.f32 %v219, 0.0
    %v264 = vmax.f32 %v222, 0.0
    %v265 = vmax.f32 %v227, 0.0
    %v266 = vmax.f32 %v230, 0.0
    %v267 = vmax.f32 %v235, 0.0
    %v268 = vmax.f32 %v238, 0.0
    %v269 = vmax.f32 %v243, 0.0
    %v270 = vmax.f32 %v246, 0.0
    %v271 = vmax.f32 %v251, 0.0
    %v272 = vmax.f32 %v254, 0.0
    %v273 = vld [vmem:[%s1] sm:$0xf]
    %v274 = vld [vmem:[%s1 + $0x4] sm:$0xf]
    %v275 = vld [vmem:[%s1 + $0x8] sm:$0xf]
    %v276 = vld [vmem:[%s1 + $0xc] sm:$0xf]
    %v277 = vld [vmem:[%s1 + $0x10] sm:$0xf]
    %v278 = vld [vmem:[%s1 + $0x14] sm:$0xf]
    %v279 = vld [vmem:[%s1 + $0x18] sm:$0xf]
    %v280 = vld [vmem:[%s1 + $0x1c] sm:$0xf]
    %v281 = vld [vmem:[%s1 + $0x20] sm:$0xf]
    %v282 = vld [vmem:[%s1 + $0x24] sm:$0xf]
    %v283 = vld [vmem:[%s1 + $0x28] sm:$0xf]
    %v284 = vld [vmem:[%s1 + $0x2c] sm:$0xf]
    %v285 = vld [vmem:[%s1 + $0x30] sm:$0xf]
    %v286 = vld [vmem:[%s1 + $0x34] sm:$0xf]
    %v287 = vld [vmem:[%s1 + $0x38] sm:$0xf]
    %v288 = vld [vmem:[%s1 + $0x3c] sm:$0xf]
    %v289 = vld [vmem:[%s3] sm:$0xf]
    %v290 = vld [vmem:[%s3 + $0x4] sm:$0xf]
    %v291 = vld [vmem:[%s3 + $0x8] sm:$0xf]
    %v292 = vld [vmem:[%s3 + $0xc] sm:$0xf]
    %v293 = vld [vmem:[%s5] sm:$0x1]
    %v295 = vlaneseq
    %v296 = vshrl.u32 %v295, 7
    %v297 = vsub.s32 0, %v296
    %v298 = vrot.slane %v293, %v297
    %v316 = vunpack.c.l.b16 %v273
    %v317 = vunpack.c.l.b16 %v274
    %v318 = vunpack.c.l.b16 %v275
    %v319 = vunpack.c.l.b16 %v276
    %v320 = vunpack.c.l.b16 %v277
    %v321 = vunpack.c.l.b16 %v278
    %v322 = vunpack.c.l.b16 %v279
    %v323 = vunpack.c.l.b16 %v280
    %v324 = vunpack.c.l.b16 %v281
    %v325 = vunpack.c.l.b16 %v282
    %v326 = vunpack.c.l.b16 %v283
    %v327 = vunpack.c.l.b16 %v284
    %v328 = vunpack.c.l.b16 %v285
    %v329 = vunpack.c.l.b16 %v286
    %v330 = vunpack.c.l.b16 %v287
    %v331 = vunpack.c.l.b16 %v288
    %v332 = vpack.c.b16 %v317, %v316
    %v333 = vpack.c.b16 %v319, %v318
    %v334 = vpack.c.b16 %v321, %v320
    %v335 = vpack.c.b16 %v323, %v322
    %v336 = vpack.c.b16 %v325, %v324
    %v337 = vpack.c.b16 %v327, %v326
    %v338 = vpack.c.b16 %v329, %v328
    %v339 = vpack.c.b16 %v331, %v330
    %v344 = vunpack.c.l.b16 %v289
    %v345 = vunpack.c.l.b16 %v290
    %v346 = vunpack.c.l.b16 %v291
    %v347 = vunpack.c.l.b16 %v292
    %v348 = vpack.c.b16 %v345, %v344
    %v349 = vpack.c.b16 %v347, %v346
    %vm352 = vcmask 261120
    %v354 = vsel %vm352, %v332, 0
    %v357 = vsel %vm352, %v333, 0
    %v360 = vsel %vm352, %v334, 0
    %v363 = vsel %vm352, %v335, 0
    %v366 = vsel %vm352, %v336, 0
    %v369 = vsel %vm352, %v337, 0
    %v372 = vsel %vm352, %v338, 0
    %v375 = vsel %vm352, %v339, 0
    %377 = vmatprep.subr.bf16.mxu0 0
    %378 = vmatpush1.bf16.msra.mxu0 0
    %379 = vmatprep.subr.bf16.mxu0 0
    %380 = vmatpush1.bf16.msra.mxu0 0
    %381 = vmatprep.subr.bf16.mxu0 0
    %382 = vmatpush1.bf16.msra.mxu0 0
    %383 = vmatprep.subr.bf16.mxu0 0
    %384 = vmatpush1.bf16.msra.mxu0 0
    %385 = vmatprep.subr.bf16.mxu0 0
    %386 = vmatpush1.bf16.msra.mxu0 0
    %387 = vmatprep.subr.bf16.mxu0 0
    %388 = vmatpush1.bf16.msra.mxu0 0
    %389 = vmatprep.subr.bf16.mxu0 0
    %390 = vmatpush1.bf16.msra.mxu0 %v349
    %391 = vmatprep.subr.bf16.mxu0 0
    %392 = vmatpush1.bf16.msra.mxu0 %v348
    %393 = vmatprep.subr.bf16.mxu0 0
    %394 = vmatpush2.bf16.msra.mxu0 0
    %395 = vmatprep.subr.bf16.mxu0 0
    %396 = vmatpush2.bf16.msra.mxu0 0
    %397 = vmatprep.subr.bf16.mxu0 0
    %398 = vmatpush2.bf16.msra.mxu0 0
    %399 = vmatprep.subr.bf16.mxu0 0
    %400 = vmatpush2.bf16.msra.mxu0 0
    %401 = vmatprep.subr.bf16.mxu0 0
    %402 = vmatpush2.bf16.msra.mxu0 0
    %403 = vmatprep.subr.bf16.mxu0 0
    %404 = vmatpush2.bf16.msra.mxu0 0
    %405 = vmatprep.subr.bf16.mxu0 0
    %406 = vmatpush2.bf16.msra.mxu0 0
    %407 = vmatprep.subr.bf16.mxu0 0
    %408 = vmatpush2.bf16.msra.mxu0 0
    %409 = vmatprep.mubr.bf16.mxu0 0
    %410 = vmatmul.mubr.bf16.gmra.mxu0 %v354
    %v411 = vpop.f32.mrf.mxu0
    %v412 = vadd.f32 %v298, %v411
    %v413 = vpop.f32.mrf.mxu0
    %v414 = vpop.f32.mrf.mxu0
    %v415 = vadd.f32 %v298, %v414
    %v416 = vpop.f32.mrf.mxu0
    %417 = vmatprep.mubr.bf16.mxu0 0
    %418 = vmatmul.mubr.bf16.gmra.mxu0 %v357
    %v419 = vpop.f32.mrf.mxu0
    %v420 = vadd.f32 %v298, %v419
    %v421 = vpop.f32.mrf.mxu0
    %v422 = vpop.f32.mrf.mxu0
    %v423 = vadd.f32 %v298, %v422
    %v424 = vpop.f32.mrf.mxu0
    %425 = vmatprep.mubr.bf16.mxu0 0
    %426 = vmatmul.mubr.bf16.gmra.mxu0 %v360
    %v427 = vpop.f32.mrf.mxu0
    %v428 = vadd.f32 %v298, %v427
    %v429 = vpop.f32.mrf.mxu0
    %v430 = vpop.f32.mrf.mxu0
    %v431 = vadd.f32 %v298, %v430
    %v432 = vpop.f32.mrf.mxu0
    %433 = vmatprep.mubr.bf16.mxu0 0
    %434 = vmatmul.mubr.bf16.gmra.mxu0 %v363
    %v435 = vpop.f32.mrf.mxu0
    %v436 = vadd.f32 %v298, %v435
    %v437 = vpop.f32.mrf.mxu0
    %v438 = vpop.f32.mrf.mxu0
    %v439 = vadd.f32 %v298, %v438
    %v440 = vpop.f32.mrf.mxu0
    %441 = vmatprep.mubr.bf16.mxu0 0
    %442 = vmatmul.mubr.bf16.gmra.mxu0 %v366
    %v443 = vpop.f32.mrf.mxu0
    %v444 = vadd.f32 %v298, %v443
    %v445 = vpop.f32.mrf.mxu0
    %v446 = vpop.f32.mrf.mxu0
    %v447 = vadd.f32 %v298, %v446
    %v448 = vpop.f32.mrf.mxu0
    %449 = vmatprep.mubr.bf16.mxu0 0
    %450 = vmatmul.mubr.bf16.gmra.mxu0 %v369
    %v451 = vpop.f32.mrf.mxu0
    %v452 = vadd.f32 %v298, %v451
    %v453 = vpop.f32.mrf.mxu0
    %v454 = vpop.f32.mrf.mxu0
    %v455 = vadd.f32 %v298, %v454
    %v456 = vpop.f32.mrf.mxu0
    %457 = vmatprep.mubr.bf16.mxu0 0
    %458 = vmatmul.mubr.bf16.gmra.mxu0 %v372
    %v459 = vpop.f32.mrf.mxu0
    %v460 = vadd.f32 %v298, %v459
    %v461 = vpop.f32.mrf.mxu0
    %v462 = vpop.f32.mrf.mxu0
    %v463 = vadd.f32 %v298, %v462
    %v464 = vpop.f32.mrf.mxu0
    %465 = vmatprep.mubr.bf16.mxu0 0
    %466 = vmatmul.mubr.bf16.gmra.mxu0 %v375
    %v467 = vpop.f32.mrf.mxu0
    %v468 = vadd.f32 %v298, %v467
    %v469 = vpop.f32.mrf.mxu0
    %v470 = vpop.f32.mrf.mxu0
    %v471 = vadd.f32 %v298, %v470
    %v472 = vpop.f32.mrf.mxu0
    %473 = vdwg.mxu0
    %v474 = vpack.c.bf16 %v258, %v257
    %v475 = vpack.c.bf16 %v260, %v259
    %v476 = vpack.c.bf16 %v262, %v261
    %v477 = vpack.c.bf16 %v264, %v263
    %v478 = vpack.c.bf16 %v266, %v265
    %v479 = vpack.c.bf16 %v268, %v267
    %v480 = vpack.c.bf16 %v270, %v269
    %v481 = vpack.c.bf16 %v272, %v271
    %v490 = vunpack.c.l.b16 %v474
    %v491 = vunpack.c.h.b16 %v474
    %v492 = vunpack.c.l.b16 %v475
    %v493 = vunpack.c.h.b16 %v475
    %v494 = vunpack.c.l.b16 %v476
    %v495 = vunpack.c.h.b16 %v476
    %v496 = vunpack.c.l.b16 %v477
    %v497 = vunpack.c.h.b16 %v477
    %v498 = vunpack.c.l.b16 %v478
    %v499 = vunpack.c.h.b16 %v478
    %v500 = vunpack.c.l.b16 %v479
    %v501 = vunpack.c.h.b16 %v479
    %v502 = vunpack.c.l.b16 %v480
    %v503 = vunpack.c.h.b16 %v480
    %v504 = vunpack.c.l.b16 %v481
    %v505 = vunpack.c.h.b16 %v481
    %v506 = vpack.c.b16 %v490, %v490
    %v507 = vpack.c.b16 %v491, %v491
    %v508 = vpack.c.b16 %v492, %v492
    %v509 = vpack.c.b16 %v493, %v493
    %v510 = vpack.c.b16 %v494, %v494
    %v511 = vpack.c.b16 %v495, %v495
    %v512 = vpack.c.b16 %v496, %v496
    %v513 = vpack.c.b16 %v497, %v497
    %v514 = vpack.c.b16 %v498, %v498
    %v515 = vpack.c.b16 %v499, %v499
    %v516 = vpack.c.b16 %v500, %v500
    %v517 = vpack.c.b16 %v501, %v501
    %v518 = vpack.c.b16 %v502, %v502
    %v519 = vpack.c.b16 %v503, %v503
    %v520 = vpack.c.b16 %v504, %v504
    %v521 = vpack.c.b16 %v505, %v505
    %538 = vst [vmem:[#allocation2] sm:$0xf] %v506
    %539 = vst [vmem:[#allocation2 + $0x8] sm:$0xf] %v507
    %540 = vst [vmem:[#allocation2 + $0x10] sm:$0xf] %v508
    %541 = vst [vmem:[#allocation2 + $0x18] sm:$0xf] %v509
    %542 = vst [vmem:[#allocation2 + $0x20] sm:$0xf] %v510
    %543 = vst [vmem:[#allocation2 + $0x28] sm:$0xf] %v511
    %544 = vst [vmem:[#allocation2 + $0x30] sm:$0xf] %v512
    %545 = vst [vmem:[#allocation2 + $0x38] sm:$0xf] %v513
    %546 = vst [vmem:[#allocation2 + $0x40] sm:$0xf] %v514
    %547 = vst [vmem:[#allocation2 + $0x48] sm:$0xf] %v515
    %548 = vst [vmem:[#allocation2 + $0x50] sm:$0xf] %v516
    %549 = vst [vmem:[#allocation2 + $0x58] sm:$0xf] %v517
    %550 = vst [vmem:[#allocation2 + $0x60] sm:$0xf] %v518
    %551 = vst [vmem:[#allocation2 + $0x68] sm:$0xf] %v519
    %552 = vst [vmem:[#allocation2 + $0x70] sm:$0xf] %v520
    %553 = vst [vmem:[#allocation2 + $0x78] sm:$0xf] %v521
    %v554 = vpack.c.bf16 %v415, %v412
    %v555 = vpack.c.bf16 %v423, %v420
    %v556 = vpack.c.bf16 %v431, %v428
    %v557 = vpack.c.bf16 %v439, %v436
    %v558 = vpack.c.bf16 %v447, %v444
    %v559 = vpack.c.bf16 %v455, %v452
    %v560 = vpack.c.bf16 %v463, %v460
    %v561 = vpack.c.bf16 %v471, %v468
    %v570 = vunpack.c.l.b16 %v554
    %v571 = vunpack.c.h.b16 %v554
    %v572 = vunpack.c.l.b16 %v555
    %v573 = vunpack.c.h.b16 %v555
    %v574 = vunpack.c.l.b16 %v556
    %v575 = vunpack.c.h.b16 %v556
    %v576 = vunpack.c.l.b16 %v557
    %v577 = vunpack.c.h.b16 %v557
    %v578 = vunpack.c.l.b16 %v558
    %v579 = vunpack.c.h.b16 %v558
    %v580 = vunpack.c.l.b16 %v559
    %v581 = vunpack.c.h.b16 %v559
    %v582 = vunpack.c.l.b16 %v560
    %v583 = vunpack.c.h.b16 %v560
    %v584 = vunpack.c.l.b16 %v561
    %v585 = vunpack.c.h.b16 %v561
    %v586 = vpack.c.b16 %v570, %v570
    %v587 = vpack.c.b16 %v571, %v571
    %v588 = vpack.c.b16 %v572, %v572
    %v589 = vpack.c.b16 %v573, %v573
    %v590 = vpack.c.b16 %v574, %v574
    %v591 = vpack.c.b16 %v575, %v575
    %v592 = vpack.c.b16 %v576, %v576
    %v593 = vpack.c.b16 %v577, %v577
    %v594 = vpack.c.b16 %v578, %v578
    %v595 = vpack.c.b16 %v579, %v579
    %v596 = vpack.c.b16 %v580, %v580
    %v597 = vpack.c.b16 %v581, %v581
    %v598 = vpack.c.b16 %v582, %v582
    %v599 = vpack.c.b16 %v583, %v583
    %v600 = vpack.c.b16 %v584, %v584
    %v601 = vpack.c.b16 %v585, %v585
    %618 = vst [vmem:[#allocation2 + $0x4] sm:$0xf] %v586
    %619 = vst [vmem:[#allocation2 + $0xc] sm:$0xf] %v587
    %620 = vst [vmem:[#allocation2 + $0x14] sm:$0xf] %v588
    %621 = vst [vmem:[#allocation2 + $0x1c] sm:$0xf] %v589
    %622 = vst [vmem:[#allocation2 + $0x24] sm:$0xf] %v590
    %623 = vst [vmem:[#allocation2 + $0x2c] sm:$0xf] %v591
    %624 = vst [vmem:[#allocation2 + $0x34] sm:$0xf] %v592
    %625 = vst [vmem:[#allocation2 + $0x3c] sm:$0xf] %v593
    %626 = vst [vmem:[#allocation2 + $0x44] sm:$0xf] %v594
    %627 = vst [vmem:[#allocation2 + $0x4c] sm:$0xf] %v595
    %628 = vst [vmem:[#allocation2 + $0x54] sm:$0xf] %v596
    %629 = vst [vmem:[#allocation2 + $0x5c] sm:$0xf] %v597
    %630 = vst [vmem:[#allocation2 + $0x64] sm:$0xf] %v598
    %631 = vst [vmem:[#allocation2 + $0x6c] sm:$0xf] %v599
    %632 = vst [vmem:[#allocation2 + $0x74] sm:$0xf] %v600
    %633 = vst [vmem:[#allocation2 + $0x7c] sm:$0xf] %v601
    // Predicated region
    $region26: #{gnn_model_forward.8} parent=1 // pred_check
      _
    $region27: #{gnn_model_forward.8} parent=1 // pred_check_branch
      %635 = sbr.rel (0) target = $region29
    $region28: #{gnn_model_forward.8} parent=1 // pred_region
      // Predicated region
      $region30: #{gnn_model_forward.8} parent=28 // pred_check
        _
      $region31: #{gnn_model_forward.8} parent=28 // pred_check_branch
        %637 = sbr.rel (0) target = $region33
      $region32: #{gnn_model_forward.8} parent=28 // pred_region
        // Predicated region
        $region34: #{gnn_model_forward.8} parent=32 // pred_check
          _
        $region35: #{gnn_model_forward.8} parent=32 // pred_check_branch
          %639 = sbr.rel (0) target = $region37
        $region36: #{gnn_model_forward.8} parent=32 // pred_region
          // Predicated region
          $region49: #{gnn_model_forward.8} parent=36 // pred_check
            _
          $region50: #{gnn_model_forward.8} parent=36 // pred_check_branch
            %685 = sbr.rel (0) target = $region52
          $region51: #{gnn_model_forward.8} parent=36 // pred_region
            loop: start=0, step=1, limit=1
            $region53: #{gnn_model_forward.8} parent=51 // loop_pre_header
              _
            $region54: #{gnn_model_forward.8} parent=51 // loop_header
              %s687 = sphi 0, %s691
              %p688 = scmp.ge.s32.totalorder %s687, 1
              %s692 = sphi [#allocation2], [#allocation2]
              %s693 = sphi %s7, %s7
            $region55: #{gnn_model_forward.8} parent=51 // loop_header_branch
              %690 = sbr.rel (%p688) target = $region59
            $region56: #{gnn_model_forward.8} parent=51 // loop_body
              %v694 = vld [vmem:[%s692] sm:$0xff]
              %695 = vst [vmem:[%s693] sm:$0xff] %v694
              %v696 = vld [vmem:[%s692 + $0x8] sm:$0xff]
              %697 = vst [vmem:[%s693 + $0x18] sm:$0xff] %v696
              %v698 = vld [vmem:[%s692 + $0x10] sm:$0xff]
              %699 = vst [vmem:[%s693 + $0x30] sm:$0xff] %v698
              %v700 = vld [vmem:[%s692 + $0x18] sm:$0xff]
              %701 = vst [vmem:[%s693 + $0x48] sm:$0xff] %v700
              %v702 = vld [vmem:[%s692 + $0x20] sm:$0xff]
              %703 = vst [vmem:[%s693 + $0x60] sm:$0xff] %v702
              %v704 = vld [vmem:[%s692 + $0x28] sm:$0xff]
              %705 = vst [vmem:[%s693 + $0x78] sm:$0xff] %v704
              %v706 = vld [vmem:[%s692 + $0x30] sm:$0xff]
              %707 = vst [vmem:[%s693 + $0x90] sm:$0xff] %v706
              %v708 = vld [vmem:[%s692 + $0x38] sm:$0xff]
              %709 = vst [vmem:[%s693 + $0xa8] sm:$0xff] %v708
              %v710 = vld [vmem:[%s692 + $0x40] sm:$0xff]
              %711 = vst [vmem:[%s693 + $0xc0] sm:$0xff] %v710
              %v712 = vld [vmem:[%s692 + $0x48] sm:$0xff]
              %713 = vst [vmem:[%s693 + $0xd8] sm:$0xff] %v712
              %v714 = vld [vmem:[%s692 + $0x50] sm:$0xff]
              %715 = vst [vmem:[%s693 + $0xf0] sm:$0xff] %v714
              %v716 = vld [vmem:[%s692 + $0x58] sm:$0xff]
              %717 = vst [vmem:[%s693 + $0x108] sm:$0xff] %v716
              %v718 = vld [vmem:[%s692 + $0x60] sm:$0xff]
              %719 = vst [vmem:[%s693 + $0x120] sm:$0xff] %v718
              %v720 = vld [vmem:[%s692 + $0x68] sm:$0xff]
              %721 = vst [vmem:[%s693 + $0x138] sm:$0xff] %v720
              %v722 = vld [vmem:[%s692 + $0x70] sm:$0xff]
              %723 = vst [vmem:[%s693 + $0x150] sm:$0xff] %v722
              %v724 = vld [vmem:[%s692 + $0x78] sm:$0xff]
              %725 = vst [vmem:[%s693 + $0x168] sm:$0xff] %v724
            $region57: #{gnn_model_forward.8} parent=51 // loop_footer
              %s691 = sadd.s32 1, %s687
            $region58: #{gnn_model_forward.8} parent=51 // loop_footer_branch
              %686 = sbr.rel target = $region54
            $region59: #{gnn_model_forward.8} parent=51 // loop_exit
              _
          $region52: #{gnn_model_forward.8} parent=36 // pred_fallthru
            _
          // Predicated region
          $region60: #{gnn_model_forward.8} parent=36 // pred_check
            _
          $region61: #{gnn_model_forward.8} parent=36 // pred_check_branch
            %727 = sbr.rel target = $region63
          $region62: #{gnn_model_forward.8} parent=36 // pred_region
            _
          $region63: #{gnn_model_forward.8} parent=36 // pred_fallthru
            _
        $region37: #{gnn_model_forward.8} parent=32 // pred_fallthru
          _
        // Predicated region
        $region38: #{gnn_model_forward.8} parent=32 // pred_check
          _
        $region39: #{gnn_model_forward.8} parent=32 // pred_check_branch
          %641 = sbr.rel target = $region41
        $region40: #{gnn_model_forward.8} parent=32 // pred_region
          %s643 = ssub.s32 256, 1
          loop: start=0, step=1, limit=1
          $region42: #{gnn_model_forward.8} parent=40 // loop_pre_header
            _
          $region43: #{gnn_model_forward.8} parent=40 // loop_header
            %s645 = sphi 0, %s649
            %p646 = scmp.ge.s32.totalorder %s645, 1
            %s650 = sphi [#allocation2], [#allocation2]
            %s651 = sphi %s7, %s7
          $region44: #{gnn_model_forward.8} parent=40 // loop_header_branch
            %648 = sbr.rel (%p646) target = $region48
          $region45: #{gnn_model_forward.8} parent=40 // loop_body
            %v652 = vld [vmem:[%s650] sm:%s643]
            %653 = vst [vmem:[%s651] sm:%s643] %v652
            %v654 = vld [vmem:[%s650 + $0x8] sm:%s643]
            %655 = vst [vmem:[%s651 + $0x18] sm:%s643] %v654
            %v656 = vld [vmem:[%s650 + $0x10] sm:%s643]
            %657 = vst [vmem:[%s651 + $0x30] sm:%s643] %v656
            %v658 = vld [vmem:[%s650 + $0x18] sm:%s643]
            %659 = vst [vmem:[%s651 + $0x48] sm:%s643] %v658
            %v660 = vld [vmem:[%s650 + $0x20] sm:%s643]
            %661 = vst [vmem:[%s651 + $0x60] sm:%s643] %v660
            %v662 = vld [vmem:[%s650 + $0x28] sm:%s643]
            %663 = vst [vmem:[%s651 + $0x78] sm:%s643] %v662
            %v664 = vld [vmem:[%s650 + $0x30] sm:%s643]
            %665 = vst [vmem:[%s651 + $0x90] sm:%s643] %v664
            %v666 = vld [vmem:[%s650 + $0x38] sm:%s643]
            %667 = vst [vmem:[%s651 + $0xa8] sm:%s643] %v666
            %v668 = vld [vmem:[%s650 + $0x40] sm:%s643]
            %669 = vst [vmem:[%s651 + $0xc0] sm:%s643] %v668
            %v670 = vld [vmem:[%s650 + $0x48] sm:%s643]
            %671 = vst [vmem:[%s651 + $0xd8] sm:%s643] %v670
            %v672 = vld [vmem:[%s650 + $0x50] sm:%s643]
            %673 = vst [vmem:[%s651 + $0xf0] sm:%s643] %v672
            %v674 = vld [vmem:[%s650 + $0x58] sm:%s643]
            %675 = vst [vmem:[%s651 + $0x108] sm:%s643] %v674
            %v676 = vld [vmem:[%s650 + $0x60] sm:%s643]
            %677 = vst [vmem:[%s651 + $0x120] sm:%s643] %v676
            %v678 = vld [vmem:[%s650 + $0x68] sm:%s643]
            %679 = vst [vmem:[%s651 + $0x138] sm:%s643] %v678
            %v680 = vld [vmem:[%s650 + $0x70] sm:%s643]
            %681 = vst [vmem:[%s651 + $0x150] sm:%s643] %v680
            %v682 = vld [vmem:[%s650 + $0x78] sm:%s643]
            %683 = vst [vmem:[%s651 + $0x168] sm:%s643] %v682
          $region46: #{gnn_model_forward.8} parent=40 // loop_footer
            %s649 = sadd.s32 1, %s645
          $region47: #{gnn_model_forward.8} parent=40 // loop_footer_branch
            %644 = sbr.rel target = $region43
          $region48: #{gnn_model_forward.8} parent=40 // loop_exit
            _
        $region41: #{gnn_model_forward.8} parent=32 // pred_fallthru
          _
      $region33: #{gnn_model_forward.8} parent=28 // pred_fallthru
        _
      %728 = vnop
    $region29: #{gnn_model_forward.8} parent=1 // pred_fallthru
      _
    // Predicated region
    $region64: #{gnn_model_forward.8} parent=1 // pred_check
      _
    $region65: #{gnn_model_forward.8} parent=1 // pred_check_branch
      %730 = sbr.rel (0) target = $region67
    $region66: #{gnn_model_forward.8} parent=1 // pred_region
      _
    $region67: #{gnn_model_forward.8} parent=1 // pred_fallthru
      _

// kernel: gnn_model_forward.10
$region0: #{gnn_model_forward.10}
  #allocation0 [shape = 'u32[]', space=smem, size = 0x4, offset = 0x4, fixed_abs, tag = 'smem constant byte address 0x4 - core index']
  #allocation1 [shape = 'u32[144,128]{1,0:T(1,128)}', space=vmem, size = 0x12000, scoped, tag = 'internal scratch']
  %s0 = inlined_call_operand.vmem [shape: bf16[128,128], index: 0, kind: input, shape index: {}]
  %s1 = inlined_call_operand.vmem [shape: bf16[128,32], index: 1, kind: input, shape index: {}]
  %s2 = inlined_call_operand.vmem [shape: bf16[128,128], index: 2, kind: input, shape index: {}]
  %s3 = inlined_call_operand.vmem [shape: bf16[32,128], index: 3, kind: input, shape index: {}]
  %s4 = inlined_call_operand.vmem [shape: f32[1,128], index: 4, kind: input, shape index: {}]
  %s5 = inlined_call_operand.vmem [shape: f32[1,128], index: 5, kind: input, shape index: {}]
  %s6 = inlined_call_operand.vmem [shape: bf16[128,768], index: 6, kind: input, shape index: {}, may-alias: {6,7}]
  %s7 = inlined_call_operand.vmem [shape: bf16[128,768], index: 7, kind: output, shape index: {}, may-alias: {6,7}]
  %s8 = sld [smem:[#allocation0]]
  $region68: #{gnn_model_forward.10} parent=0
    _
  %s10 = ssub.s32 1, %s8
  %s11 = scalar_select 0, %s10, %s8
  $region1: #{gnn_model_forward.10} parent=0
    #allocation2 [shape = 'u8[65536]{0}', space=vmem, size = 0x10000, scoped, tag = 'output window, operand 0, single buffered']
    // Predicated region
    $region2: #{gnn_model_forward.10} parent=1 // pred_check
      _
    $region3: #{gnn_model_forward.10} parent=1 // pred_check_branch
      %13 = sbr.rel (0) target = $region5
    $region4: #{gnn_model_forward.10} parent=1 // pred_region
      _
    $region5: #{gnn_model_forward.10} parent=1 // pred_fallthru
      _
    // Predicated region
    $region6: #{gnn_model_forward.10} parent=1 // pred_check
      _
    $region7: #{gnn_model_forward.10} parent=1 // pred_check_branch
      %15 = sbr.rel (0) target = $region9
    $region8: #{gnn_model_forward.10} parent=1 // pred_region
      _
    $region9: #{gnn_model_forward.10} parent=1 // pred_fallthru
      _
    // Predicated region
    $region10: #{gnn_model_forward.10} parent=1 // pred_check
      _
    $region11: #{gnn_model_forward.10} parent=1 // pred_check_branch
      %17 = sbr.rel (0) target = $region13
    $region12: #{gnn_model_forward.10} parent=1 // pred_region
      _
    $region13: #{gnn_model_forward.10} parent=1 // pred_fallthru
      _
    // Predicated region
    $region14: #{gnn_model_forward.10} parent=1 // pred_check
      _
    $region15: #{gnn_model_forward.10} parent=1 // pred_check_branch
      %19 = sbr.rel (0) target = $region17
    $region16: #{gnn_model_forward.10} parent=1 // pred_region
      _
    $region17: #{gnn_model_forward.10} parent=1 // pred_fallthru
      _
    // Predicated region
    $region18: #{gnn_model_forward.10} parent=1 // pred_check
      _
    $region19: #{gnn_model_forward.10} parent=1 // pred_check_branch
      %21 = sbr.rel (0) target = $region21
    $region20: #{gnn_model_forward.10} parent=1 // pred_region
      _
    $region21: #{gnn_model_forward.10} parent=1 // pred_fallthru
      _
    // Predicated region
    $region22: #{gnn_model_forward.10} parent=1 // pred_check
      _
    $region23: #{gnn_model_forward.10} parent=1 // pred_check_branch
      %23 = sbr.rel (0) target = $region25
    $region24: #{gnn_model_forward.10} parent=1 // pred_region
      _
    $region25: #{gnn_model_forward.10} parent=1 // pred_fallthru
      _
    %v25 = vld [vmem:[%s0] sm:$0xf]
    %v26 = vld [vmem:[%s0 + $0x4] sm:$0xf]
    %v27 = vld [vmem:[%s0 + $0x8] sm:$0xf]
    %v28 = vld [vmem:[%s0 + $0xc] sm:$0xf]
    %v29 = vld [vmem:[%s0 + $0x10] sm:$0xf]
    %v30 = vld [vmem:[%s0 + $0x14] sm:$0xf]
    %v31 = vld [vmem:[%s0 + $0x18] sm:$0xf]
    %v32 = vld [vmem:[%s0 + $0x1c] sm:$0xf]
    %v33 = vld [vmem:[%s0 + $0x20] sm:$0xf]
    %v34 = vld [vmem:[%s0 + $0x24] sm:$0xf]
    %v35 = vld [vmem:[%s0 + $0x28] sm:$0xf]
    %v36 = vld [vmem:[%s0 + $0x2c] sm:$0xf]
    %v37 = vld [vmem:[%s0 + $0x30] sm:$0xf]
    %v38 = vld [vmem:[%s0 + $0x34] sm:$0xf]
    %v39 = vld [vmem:[%s0 + $0x38] sm:$0xf]
    %v40 = vld [vmem:[%s0 + $0x3c] sm:$0xf]
    %v41 = vld [vmem:[%s2] sm:$0xf]
    %v42 = vld [vmem:[%s2 + $0x4] sm:$0xf]
    %v43 = vld [vmem:[%s2 + $0x8] sm:$0xf]
    %v44 = vld [vmem:[%s2 + $0xc] sm:$0xf]
    %v45 = vld [vmem:[%s2 + $0x10] sm:$0xf]
    %v46 = vld [vmem:[%s2 + $0x14] sm:$0xf]
    %v47 = vld [vmem:[%s2 + $0x18] sm:$0xf]
    %v48 = vld [vmem:[%s2 + $0x1c] sm:$0xf]
    %v49 = vld [vmem:[%s2 + $0x20] sm:$0xf]
    %v50 = vld [vmem:[%s2 + $0x24] sm:$0xf]
    %v51 = vld [vmem:[%s2 + $0x28] sm:$0xf]
    %v52 = vld [vmem:[%s2 + $0x2c] sm:$0xf]
    %v53 = vld [vmem:[%s2 + $0x30] sm:$0xf]
    %v54 = vld [vmem:[%s2 + $0x34] sm:$0xf]
    %v55 = vld [vmem:[%s2 + $0x38] sm:$0xf]
    %v56 = vld [vmem:[%s2 + $0x3c] sm:$0xf]
    %v57 = vld [vmem:[%s4] sm:$0x1]
    %v59 = vlaneseq
    %v60 = vshrl.u32 %v59, 7
    %v61 = vsub.s32 0, %v60
    %v62 = vrot.slane %v57, %v61
    %v80 = vunpack.c.l.b16 %v25
    %v81 = vunpack.c.l.b16 %v26
    %v82 = vunpack.c.l.b16 %v27
    %v83 = vunpack.c.l.b16 %v28
    %v84 = vunpack.c.l.b16 %v29
    %v85 = vunpack.c.l.b16 %v30
    %v86 = vunpack.c.l.b16 %v31
    %v87 = vunpack.c.l.b16 %v32
    %v88 = vunpack.c.l.b16 %v33
    %v89 = vunpack.c.l.b16 %v34
    %v90 = vunpack.c.l.b16 %v35
    %v91 = vunpack.c.l.b16 %v36
    %v92 = vunpack.c.l.b16 %v37
    %v93 = vunpack.c.l.b16 %v38
    %v94 = vunpack.c.l.b16 %v39
    %v95 = vunpack.c.l.b16 %v40
    %v96 = vpack.c.b16 %v81, %v80
    %v97 = vpack.c.b16 %v83, %v82
    %v98 = vpack.c.b16 %v85, %v84
    %v99 = vpack.c.b16 %v87, %v86
    %v100 = vpack.c.b16 %v89, %v88
    %v101 = vpack.c.b16 %v91, %v90
    %v102 = vpack.c.b16 %v93, %v92
    %v103 = vpack.c.b16 %v95, %v94
    %v128 = vunpack.c.l.b16 %v41
    %v129 = vunpack.c.l.b16 %v42
    %v130 = vunpack.c.l.b16 %v43
    %v131 = vunpack.c.l.b16 %v44
    %v132 = vunpack.c.l.b16 %v45
    %v133 = vunpack.c.l.b16 %v46
    %v134 = vunpack.c.l.b16 %v47
    %v135 = vunpack.c.l.b16 %v48
    %v136 = vunpack.c.l.b16 %v49
    %v137 = vunpack.c.l.b16 %v50
    %v138 = vunpack.c.l.b16 %v51
    %v139 = vunpack.c.l.b16 %v52
    %v140 = vunpack.c.l.b16 %v53
    %v141 = vunpack.c.l.b16 %v54
    %v142 = vunpack.c.l.b16 %v55
    %v143 = vunpack.c.l.b16 %v56
    %v144 = vpack.c.b16 %v129, %v128
    %v145 = vpack.c.b16 %v131, %v130
    %v146 = vpack.c.b16 %v133, %v132
    %v147 = vpack.c.b16 %v135, %v134
    %v148 = vpack.c.b16 %v137, %v136
    %v149 = vpack.c.b16 %v139, %v138
    %v150 = vpack.c.b16 %v141, %v140
    %v151 = vpack.c.b16 %v143, %v142
    %160 = vmatprep.subr.bf16.mxu0 0
    %161 = vmatpush1.bf16.msra.mxu0 %v151
    %162 = vmatprep.subr.bf16.mxu0 0
    %163 = vmatpush1.bf16.msra.mxu0 %v150
    %164 = vmatprep.subr.bf16.mxu0 0
    %165 = vmatpush1.bf16.msra.mxu0 %v149
    %166 = vmatprep.subr.bf16.mxu0 0
    %167 = vmatpush1.bf16.msra.mxu0 %v148
    %168 = vmatprep.subr.bf16.mxu0 0
    %169 = vmatpush1.bf16.msra.mxu0 %v147
    %170 = vmatprep.subr.bf16.mxu0 0
    %171 = vmatpush1.bf16.msra.mxu0 %v146
    %172 = vmatprep.subr.bf16.mxu0 0
    %173 = vmatpush1.bf16.msra.mxu0 %v145
    %174 = vmatprep.subr.bf16.mxu0 0
    %175 = vmatpush1.bf16.msra.mxu0 %v144
    %176 = vmatprep.subr.bf16.mxu0 0
    %177 = vmatpush2.bf16.msra.mxu0 0
    %178 = vmatprep.subr.bf16.mxu0 0
    %179 = vmatpush2.bf16.msra.mxu0 0
    %180 = vmatprep.subr.bf16.mxu0 0
    %181 = vmatpush2.bf16.msra.mxu0 0
    %182 = vmatprep.subr.bf16.mxu0 0
    %183 = vmatpush2.bf16.msra.mxu0 0
    %184 = vmatprep.subr.bf16.mxu0 0
    %185 = vmatpush2.bf16.msra.mxu0 0
    %186 = vmatprep.subr.bf16.mxu0 0
    %187 = vmatpush2.bf16.msra.mxu0 0
    %188 = vmatprep.subr.bf16.mxu0 0
    %189 = vmatpush2.bf16.msra.mxu0 0
    %190 = vmatprep.subr.bf16.mxu0 0
    %191 = vmatpush2.bf16.msra.mxu0 0
    %192 = vmatprep.mubr.bf16.mxu0 0
    %193 = vmatmul.mubr.bf16.gmra.mxu0 %v96
    %v194 = vpop.f32.mrf.mxu0
    %v195 = vadd.f32 %v62, %v194
    %v196 = vpop.f32.mrf.mxu0
    %v197 = vpop.f32.mrf.mxu0
    %v198 = vadd.f32 %v62, %v197
    %v199 = vpop.f32.mrf.mxu0
    %200 = vmatprep.mubr.bf16.mxu0 0
    %201 = vmatmul.mubr.bf16.gmra.mxu0 %v97
    %v202 = vpop.f32.mrf.mxu0
    %v203 = vadd.f32 %v62, %v202
    %v204 = vpop.f32.mrf.mxu0
    %v205 = vpop.f32.mrf.mxu0
    %v206 = vadd.f32 %v62, %v205
    %v207 = vpop.f32.mrf.mxu0
    %208 = vmatprep.mubr.bf16.mxu0 0
    %209 = vmatmul.mubr.bf16.gmra.mxu0 %v98
    %v210 = vpop.f32.mrf.mxu0
    %v211 = vadd.f32 %v62, %v210
    %v212 = vpop.f32.mrf.mxu0
    %v213 = vpop.f32.mrf.mxu0
    %v214 = vadd.f32 %v62, %v213
    %v215 = vpop.f32.mrf.mxu0
    %216 = vmatprep.mubr.bf16.mxu0 0
    %217 = vmatmul.mubr.bf16.gmra.mxu0 %v99
    %v218 = vpop.f32.mrf.mxu0
    %v219 = vadd.f32 %v62, %v218
    %v220 = vpop.f32.mrf.mxu0
    %v221 = vpop.f32.mrf.mxu0
    %v222 = vadd.f32 %v62, %v221
    %v223 = vpop.f32.mrf.mxu0
    %224 = vmatprep.mubr.bf16.mxu0 0
    %225 = vmatmul.mubr.bf16.gmra.mxu0 %v100
    %v226 = vpop.f32.mrf.mxu0
    %v227 = vadd.f32 %v62, %v226
    %v228 = vpop.f32.mrf.mxu0
    %v229 = vpop.f32.mrf.mxu0
    %v230 = vadd.f32 %v62, %v229
    %v231 = vpop.f32.mrf.mxu0
    %232 = vmatprep.mubr.bf16.mxu0 0
    %233 = vmatmul.mubr.bf16.gmra.mxu0 %v101
    %v234 = vpop.f32.mrf.mxu0
    %v235 = vadd.f32 %v62, %v234
    %v236 = vpop.f32.mrf.mxu0
    %v237 = vpop.f32.mrf.mxu0
    %v238 = vadd.f32 %v62, %v237
    %v239 = vpop.f32.mrf.mxu0
    %240 = vmatprep.mubr.bf16.mxu0 0
    %241 = vmatmul.mubr.bf16.gmra.mxu0 %v102
    %v242 = vpop.f32.mrf.mxu0
    %v243 = vadd.f32 %v62, %v242
    %v244 = vpop.f32.mrf.mxu0
    %v245 = vpop.f32.mrf.mxu0
    %v246 = vadd.f32 %v62, %v245
    %v247 = vpop.f32.mrf.mxu0
    %248 = vmatprep.mubr.bf16.mxu0 0
    %249 = vmatmul.mubr.bf16.gmra.mxu0 %v103
    %v250 = vpop.f32.mrf.mxu0
    %v251 = vadd.f32 %v62, %v250
    %v252 = vpop.f32.mrf.mxu0
    %v253 = vpop.f32.mrf.mxu0
    %v254 = vadd.f32 %v62, %v253
    %v255 = vpop.f32.mrf.mxu0
    %256 = vdwg.mxu0
    %v257 = vmax.f32 %v195, 0.0
    %v258 = vmax.f32 %v198, 0.0
    %v259 = vmax.f32 %v203, 0.0
    %v260 = vmax.f32 %v206, 0.0
    %v261 = vmax.f32 %v211, 0.0
    %v262 = vmax.f32 %v214, 0.0
    %v263 = vmax.f32 %v219, 0.0
    %v264 = vmax.f32 %v222, 0.0
    %v265 = vmax.f32 %v227, 0.0
    %v266 = vmax.f32 %v230, 0.0
    %v267 = vmax.f32 %v235, 0.0
    %v268 = vmax.f32 %v238, 0.0
    %v269 = vmax.f32 %v243, 0.0
    %v270 = vmax.f32 %v246, 0.0
    %v271 = vmax.f32 %v251, 0.0
    %v272 = vmax.f32 %v254, 0.0
    %v273 = vld [vmem:[%s1] sm:$0xf]
    %v274 = vld [vmem:[%s1 + $0x4] sm:$0xf]
    %v275 = vld [vmem:[%s1 + $0x8] sm:$0xf]
    %v276 = vld [vmem:[%s1 + $0xc] sm:$0xf]
    %v277 = vld [vmem:[%s1 + $0x10] sm:$0xf]
    %v278 = vld [vmem:[%s1 + $0x14] sm:$0xf]
    %v279 = vld [vmem:[%s1 + $0x18] sm:$0xf]
    %v280 = vld [vmem:[%s1 + $0x1c] sm:$0xf]
    %v281 = vld [vmem:[%s1 + $0x20] sm:$0xf]
    %v282 = vld [vmem:[%s1 + $0x24] sm:$0xf]
    %v283 = vld [vmem:[%s1 + $0x28] sm:$0xf]
    %v284 = vld [vmem:[%s1 + $0x2c] sm:$0xf]
    %v285 = vld [vmem:[%s1 + $0x30] sm:$0xf]
    %v286 = vld [vmem:[%s1 + $0x34] sm:$0xf]
    %v287 = vld [vmem:[%s1 + $0x38] sm:$0xf]
    %v288 = vld [vmem:[%s1 + $0x3c] sm:$0xf]
    %v289 = vld [vmem:[%s3] sm:$0xf]
    %v290 = vld [vmem:[%s3 + $0x4] sm:$0xf]
    %v291 = vld [vmem:[%s3 + $0x8] sm:$0xf]
    %v292 = vld [vmem:[%s3 + $0xc] sm:$0xf]
    %v293 = vld [vmem:[%s5] sm:$0x1]
    %v295 = vlaneseq
    %v296 = vshrl.u32 %v295, 7
    %v297 = vsub.s32 0, %v296
    %v298 = vrot.slane %v293, %v297
    %v316 = vunpack.c.l.b16 %v273
    %v317 = vunpack.c.l.b16 %v274
    %v318 = vunpack.c.l.b16 %v275
    %v319 = vunpack.c.l.b16 %v276
    %v320 = vunpack.c.l.b16 %v277
    %v321 = vunpack.c.l.b16 %v278
    %v322 = vunpack.c.l.b16 %v279
    %v323 = vunpack.c.l.b16 %v280
    %v324 = vunpack.c.l.b16 %v281
    %v325 = vunpack.c.l.b16 %v282
    %v326 = vunpack.c.l.b16 %v283
    %v327 = vunpack.c.l.b16 %v284
    %v328 = vunpack.c.l.b16 %v285
    %v329 = vunpack.c.l.b16 %v286
    %v330 = vunpack.c.l.b16 %v287
    %v331 = vunpack.c.l.b16 %v288
    %v332 = vpack.c.b16 %v317, %v316
    %v333 = vpack.c.b16 %v319, %v318
    %v334 = vpack.c.b16 %v321, %v320
    %v335 = vpack.c.b16 %v323, %v322
    %v336 = vpack.c.b16 %v325, %v324
    %v337 = vpack.c.b16 %v327, %v326
    %v338 = vpack.c.b16 %v329, %v328
    %v339 = vpack.c.b16 %v331, %v330
    %v344 = vunpack.c.l.b16 %v289
    %v345 = vunpack.c.l.b16 %v290
    %v346 = vunpack.c.l.b16 %v291
    %v347 = vunpack.c.l.b16 %v292
    %v348 = vpack.c.b16 %v345, %v344
    %v349 = vpack.c.b16 %v347, %v346
    %vm352 = vcmask 261120
    %v354 = vsel %vm352, %v332, 0
    %v357 = vsel %vm352, %v333, 0
    %v360 = vsel %vm352, %v334, 0
    %v363 = vsel %vm352, %v335, 0
    %v366 = vsel %vm352, %v336, 0
    %v369 = vsel %vm352, %v337, 0
    %v372 = vsel %vm352, %v338, 0
    %v375 = vsel %vm352, %v339, 0
    %377 = vmatprep.subr.bf16.mxu0 0
    %378 = vmatpush1.bf16.msra.mxu0 0
    %379 = vmatprep.subr.bf16.mxu0 0
    %380 = vmatpush1.bf16.msra.mxu0 0
    %381 = vmatprep.subr.bf16.mxu0 0
    %382 = vmatpush1.bf16.msra.mxu0 0
    %383 = vmatprep.subr.bf16.mxu0 0
    %384 = vmatpush1.bf16.msra.mxu0 0
    %385 = vmatprep.subr.bf16.mxu0 0
    %386 = vmatpush1.bf16.msra.mxu0 0
    %387 = vmatprep.subr.bf16.mxu0 0
    %388 = vmatpush1.bf16.msra.mxu0 0
    %389 = vmatprep.subr.bf16.mxu0 0
    %390 = vmatpush1.bf16.msra.mxu0 %v349
    %391 = vmatprep.subr.bf16.mxu0 0
    %392 = vmatpush1.bf16.msra.mxu0 %v348
    %393 = vmatprep.subr.bf16.mxu0 0
    %394 = vmatpush2.bf16.msra.mxu0 0
    %395 = vmatprep.subr.bf16.mxu0 0
    %396 = vmatpush2.bf16.msra.mxu0 0
    %397 = vmatprep.subr.bf16.mxu0 0
    %398 = vmatpush2.bf16.msra.mxu0 0
    %399 = vmatprep.subr.bf16.mxu0 0
    %400 = vmatpush2.bf16.msra.mxu0 0
    %401 = vmatprep.subr.bf16.mxu0 0
    %402 = vmatpush2.bf16.msra.mxu0 0
    %403 = vmatprep.subr.bf16.mxu0 0
    %404 = vmatpush2.bf16.msra.mxu0 0
    %405 = vmatprep.subr.bf16.mxu0 0
    %406 = vmatpush2.bf16.msra.mxu0 0
    %407 = vmatprep.subr.bf16.mxu0 0
    %408 = vmatpush2.bf16.msra.mxu0 0
    %409 = vmatprep.mubr.bf16.mxu0 0
    %410 = vmatmul.mubr.bf16.gmra.mxu0 %v354
    %v411 = vpop.f32.mrf.mxu0
    %v412 = vadd.f32 %v298, %v411
    %v413 = vpop.f32.mrf.mxu0
    %v414 = vpop.f32.mrf.mxu0
    %v415 = vadd.f32 %v298, %v414
    %v416 = vpop.f32.mrf.mxu0
    %417 = vmatprep.mubr.bf16.mxu0 0
    %418 = vmatmul.mubr.bf16.gmra.mxu0 %v357
    %v419 = vpop.f32.mrf.mxu0
    %v420 = vadd.f32 %v298, %v419
    %v421 = vpop.f32.mrf.mxu0
    %v422 = vpop.f32.mrf.mxu0
    %v423 = vadd.f32 %v298, %v422
    %v424 = vpop.f32.mrf.mxu0
    %425 = vmatprep.mubr.bf16.mxu0 0
    %426 = vmatmul.mubr.bf16.gmra.mxu0 %v360
    %v427 = vpop.f32.mrf.mxu0
    %v428 = vadd.f32 %v298, %v427
    %v429 = vpop.f32.mrf.mxu0
    %v430 = vpop.f32.mrf.mxu0
    %v431 = vadd.f32 %v298, %v430
    %v432 = vpop.f32.mrf.mxu0
    %433 = vmatprep.mubr.bf16.mxu0 0
    %434 = vmatmul.mubr.bf16.gmra.mxu0 %v363
    %v435 = vpop.f32.mrf.mxu0
    %v436 = vadd.f32 %v298, %v435
    %v437 = vpop.f32.mrf.mxu0
    %v438 = vpop.f32.mrf.mxu0
    %v439 = vadd.f32 %v298, %v438
    %v440 = vpop.f32.mrf.mxu0
    %441 = vmatprep.mubr.bf16.mxu0 0
    %442 = vmatmul.mubr.bf16.gmra.mxu0 %v366
    %v443 = vpop.f32.mrf.mxu0
    %v444 = vadd.f32 %v298, %v443
    %v445 = vpop.f32.mrf.mxu0
    %v446 = vpop.f32.mrf.mxu0
    %v447 = vadd.f32 %v298, %v446
    %v448 = vpop.f32.mrf.mxu0
    %449 = vmatprep.mubr.bf16.mxu0 0
    %450 = vmatmul.mubr.bf16.gmra.mxu0 %v369
    %v451 = vpop.f32.mrf.mxu0
    %v452 = vadd.f32 %v298, %v451
    %v453 = vpop.f32.mrf.mxu0
    %v454 = vpop.f32.mrf.mxu0
    %v455 = vadd.f32 %v298, %v454
    %v456 = vpop.f32.mrf.mxu0
    %457 = vmatprep.mubr.bf16.mxu0 0
    %458 = vmatmul.mubr.bf16.gmra.mxu0 %v372
    %v459 = vpop.f32.mrf.mxu0
    %v460 = vadd.f32 %v298, %v459
    %v461 = vpop.f32.mrf.mxu0
    %v462 = vpop.f32.mrf.mxu0
    %v463 = vadd.f32 %v298, %v462
    %v464 = vpop.f32.mrf.mxu0
    %465 = vmatprep.mubr.bf16.mxu0 0
    %466 = vmatmul.mubr.bf16.gmra.mxu0 %v375
    %v467 = vpop.f32.mrf.mxu0
    %v468 = vadd.f32 %v298, %v467
    %v469 = vpop.f32.mrf.mxu0
    %v470 = vpop.f32.mrf.mxu0
    %v471 = vadd.f32 %v298, %v470
    %v472 = vpop.f32.mrf.mxu0
    %473 = vdwg.mxu0
    %v474 = vpack.c.bf16 %v258, %v257
    %v475 = vpack.c.bf16 %v260, %v259
    %v476 = vpack.c.bf16 %v262, %v261
    %v477 = vpack.c.bf16 %v264, %v263
    %v478 = vpack.c.bf16 %v266, %v265
    %v479 = vpack.c.bf16 %v268, %v267
    %v480 = vpack.c.bf16 %v270, %v269
    %v481 = vpack.c.bf16 %v272, %v271
    %v490 = vunpack.c.l.b16 %v474
    %v491 = vunpack.c.h.b16 %v474
    %v492 = vunpack.c.l.b16 %v475
    %v493 = vunpack.c.h.b16 %v475
    %v494 = vunpack.c.l.b16 %v476
    %v495 = vunpack.c.h.b16 %v476
    %v496 = vunpack.c.l.b16 %v477
    %v497 = vunpack.c.h.b16 %v477
    %v498 = vunpack.c.l.b16 %v478
    %v499 = vunpack.c.h.b16 %v478
    %v500 = vunpack.c.l.b16 %v479
    %v501 = vunpack.c.h.b16 %v479
    %v502 = vunpack.c.l.b16 %v480
    %v503 = vunpack.c.h.b16 %v480
    %v504 = vunpack.c.l.b16 %v481
    %v505 = vunpack.c.h.b16 %v481
    %v506 = vpack.c.b16 %v490, %v490
    %v507 = vpack.c.b16 %v491, %v491
    %v508 = vpack.c.b16 %v492, %v492
    %v509 = vpack.c.b16 %v493, %v493
    %v510 = vpack.c.b16 %v494, %v494
    %v511 = vpack.c.b16 %v495, %v495
    %v512 = vpack.c.b16 %v496, %v496
    %v513 = vpack.c.b16 %v497, %v497
    %v514 = vpack.c.b16 %v498, %v498
    %v515 = vpack.c.b16 %v499, %v499
    %v516 = vpack.c.b16 %v500, %v500
    %v517 = vpack.c.b16 %v501, %v501
    %v518 = vpack.c.b16 %v502, %v502
    %v519 = vpack.c.b16 %v503, %v503
    %v520 = vpack.c.b16 %v504, %v504
    %v521 = vpack.c.b16 %v505, %v505
    %538 = vst [vmem:[#allocation2] sm:$0xf] %v506
    %539 = vst [vmem:[#allocation2 + $0x8] sm:$0xf] %v507
    %540 = vst [vmem:[#allocation2 + $0x10] sm:$0xf] %v508
    %541 = vst [vmem:[#allocation2 + $0x18] sm:$0xf] %v509
    %542 = vst [vmem:[#allocation2 + $0x20] sm:$0xf] %v510
    %543 = vst [vmem:[#allocation2 + $0x28] sm:$0xf] %v511
    %544 = vst [vmem:[#allocation2 + $0x30] sm:$0xf] %v512
    %545 = vst [vmem:[#allocation2 + $0x38] sm:$0xf] %v513
    %546 = vst [vmem:[#allocation2 + $0x40] sm:$0xf] %v514
    %547 = vst [vmem:[#allocation2 + $0x48] sm:$0xf] %v515
    %548 = vst [vmem:[#allocation2 + $0x50] sm:$0xf] %v516
    %549 = vst [vmem:[#allocation2 + $0x58] sm:$0xf] %v517
    %550 = vst [vmem:[#allocation2 + $0x60] sm:$0xf] %v518
    %551 = vst [vmem:[#allocation2 + $0x68] sm:$0xf] %v519
    %552 = vst [vmem:[#allocation2 + $0x70] sm:$0xf] %v520
    %553 = vst [vmem:[#allocation2 + $0x78] sm:$0xf] %v521
    %v554 = vpack.c.bf16 %v415, %v412
    %v555 = vpack.c.bf16 %v423, %v420
    %v556 = vpack.c.bf16 %v431, %v428
    %v557 = vpack.c.bf16 %v439, %v436
    %v558 = vpack.c.bf16 %v447, %v444
    %v559 = vpack.c.bf16 %v455, %v452
    %v560 = vpack.c.bf16 %v463, %v460
    %v561 = vpack.c.bf16 %v471, %v468
    %v570 = vunpack.c.l.b16 %v554
    %v571 = vunpack.c.h.b16 %v554
    %v572 = vunpack.c.l.b16 %v555
    %v573 = vunpack.c.h.b16 %v555
    %v574 = vunpack.c.l.b16 %v556
    %v575 = vunpack.c.h.b16 %v556
    %v576 = vunpack.c.l.b16 %v557
    %v577 = vunpack.c.h.b16 %v557
    %v578 = vunpack.c.l.b16 %v558
    %v579 = vunpack.c.h.b16 %v558
    %v580 = vunpack.c.l.b16 %v559
    %v581 = vunpack.c.h.b16 %v559
    %v582 = vunpack.c.l.b16 %v560
    %v583 = vunpack.c.h.b16 %v560
    %v584 = vunpack.c.l.b16 %v561
    %v585 = vunpack.c.h.b16 %v561
    %v586 = vpack.c.b16 %v570, %v570
    %v587 = vpack.c.b16 %v571, %v571
    %v588 = vpack.c.b16 %v572, %v572
    %v589 = vpack.c.b16 %v573, %v573
    %v590 = vpack.c.b16 %v574, %v574
    %v591 = vpack.c.b16 %v575, %v575
    %v592 = vpack.c.b16 %v576, %v576
    %v593 = vpack.c.b16 %v577, %v577
    %v594 = vpack.c.b16 %v578, %v578
    %v595 = vpack.c.b16 %v579, %v579
    %v596 = vpack.c.b16 %v580, %v580
    %v597 = vpack.c.b16 %v581, %v581
    %v598 = vpack.c.b16 %v582, %v582
    %v599 = vpack.c.b16 %v583, %v583
    %v600 = vpack.c.b16 %v584, %v584
    %v601 = vpack.c.b16 %v585, %v585
    %618 = vst [vmem:[#allocation2 + $0x4] sm:$0xf] %v586
    %619 = vst [vmem:[#allocation2 + $0xc] sm:$0xf] %v587
    %620 = vst [vmem:[#allocation2 + $0x14] sm:$0xf] %v588
    %621 = vst [vmem:[#allocation2 + $0x1c] sm:$0xf] %v589
    %622 = vst [vmem:[#allocation2 + $0x24] sm:$0xf] %v590
    %623 = vst [vmem:[#allocation2 + $0x2c] sm:$0xf] %v591
    %624 = vst [vmem:[#allocation2 + $0x34] sm:$0xf] %v592
    %625 = vst [vmem:[#allocation2 + $0x3c] sm:$0xf] %v593
    %626 = vst [vmem:[#allocation2 + $0x44] sm:$0xf] %v594
    %627 = vst [vmem:[#allocation2 + $0x4c] sm:$0xf] %v595
    %628 = vst [vmem:[#allocation2 + $0x54] sm:$0xf] %v596
    %629 = vst [vmem:[#allocation2 + $0x5c] sm:$0xf] %v597
    %630 = vst [vmem:[#allocation2 + $0x64] sm:$0xf] %v598
    %631 = vst [vmem:[#allocation2 + $0x6c] sm:$0xf] %v599
    %632 = vst [vmem:[#allocation2 + $0x74] sm:$0xf] %v600
    %633 = vst [vmem:[#allocation2 + $0x7c] sm:$0xf] %v601
    // Predicated region
    $region26: #{gnn_model_forward.10} parent=1 // pred_check
      _
    $region27: #{gnn_model_forward.10} parent=1 // pred_check_branch
      %635 = sbr.rel (0) target = $region29
    $region28: #{gnn_model_forward.10} parent=1 // pred_region
      %s636 = scalar_lea.vmem %s7, 8
      // Predicated region
      $region30: #{gnn_model_forward.10} parent=28 // pred_check
        _
      $region31: #{gnn_model_forward.10} parent=28 // pred_check_branch
        %638 = sbr.rel (0) target = $region33
      $region32: #{gnn_model_forward.10} parent=28 // pred_region
        // Predicated region
        $region34: #{gnn_model_forward.10} parent=32 // pred_check
          _
        $region35: #{gnn_model_forward.10} parent=32 // pred_check_branch
          %640 = sbr.rel (0) target = $region37
        $region36: #{gnn_model_forward.10} parent=32 // pred_region
          // Predicated region
          $region49: #{gnn_model_forward.10} parent=36 // pred_check
            _
          $region50: #{gnn_model_forward.10} parent=36 // pred_check_branch
            %686 = sbr.rel (0) target = $region52
          $region51: #{gnn_model_forward.10} parent=36 // pred_region
            loop: start=0, step=1, limit=1
            $region53: #{gnn_model_forward.10} parent=51 // loop_pre_header
              _
            $region54: #{gnn_model_forward.10} parent=51 // loop_header
              %s688 = sphi 0, %s692
              %p689 = scmp.ge.s32.totalorder %s688, 1
              %s693 = sphi [#allocation2], [#allocation2]
              %s694 = sphi %s636, %s636
            $region55: #{gnn_model_forward.10} parent=51 // loop_header_branch
              %691 = sbr.rel (%p689) target = $region59
            $region56: #{gnn_model_forward.10} parent=51 // loop_body
              %v695 = vld [vmem:[%s693] sm:$0xff]
              %696 = vst [vmem:[%s694] sm:$0xff] %v695
              %v697 = vld [vmem:[%s693 + $0x8] sm:$0xff]
              %698 = vst [vmem:[%s694 + $0x18] sm:$0xff] %v697
              %v699 = vld [vmem:[%s693 + $0x10] sm:$0xff]
              %700 = vst [vmem:[%s694 + $0x30] sm:$0xff] %v699
              %v701 = vld [vmem:[%s693 + $0x18] sm:$0xff]
              %702 = vst [vmem:[%s694 + $0x48] sm:$0xff] %v701
              %v703 = vld [vmem:[%s693 + $0x20] sm:$0xff]
              %704 = vst [vmem:[%s694 + $0x60] sm:$0xff] %v703
              %v705 = vld [vmem:[%s693 + $0x28] sm:$0xff]
              %706 = vst [vmem:[%s694 + $0x78] sm:$0xff] %v705
              %v707 = vld [vmem:[%s693 + $0x30] sm:$0xff]
              %708 = vst [vmem:[%s694 + $0x90] sm:$0xff] %v707
              %v709 = vld [vmem:[%s693 + $0x38] sm:$0xff]
              %710 = vst [vmem:[%s694 + $0xa8] sm:$0xff] %v709
              %v711 = vld [vmem:[%s693 + $0x40] sm:$0xff]
              %712 = vst [vmem:[%s694 + $0xc0] sm:$0xff] %v711
              %v713 = vld [vmem:[%s693 + $0x48] sm:$0xff]
              %714 = vst [vmem:[%s694 + $0xd8] sm:$0xff] %v713
              %v715 = vld [vmem:[%s693 + $0x50] sm:$0xff]
              %716 = vst [vmem:[%s694 + $0xf0] sm:$0xff] %v715
              %v717 = vld [vmem:[%s693 + $0x58] sm:$0xff]
              %718 = vst [vmem:[%s694 + $0x108] sm:$0xff] %v717
              %v719 = vld [vmem:[%s693 + $0x60] sm:$0xff]
              %720 = vst [vmem:[%s694 + $0x120] sm:$0xff] %v719
              %v721 = vld [vmem:[%s693 + $0x68] sm:$0xff]
              %722 = vst [vmem:[%s694 + $0x138] sm:$0xff] %v721
              %v723 = vld [vmem:[%s693 + $0x70] sm:$0xff]
              %724 = vst [vmem:[%s694 + $0x150] sm:$0xff] %v723
              %v725 = vld [vmem:[%s693 + $0x78] sm:$0xff]
              %726 = vst [vmem:[%s694 + $0x168] sm:$0xff] %v725
            $region57: #{gnn_model_forward.10} parent=51 // loop_footer
              %s692 = sadd.s32 1, %s688
            $region58: #{gnn_model_forward.10} parent=51 // loop_footer_branch
              %687 = sbr.rel target = $region54
            $region59: #{gnn_model_forward.10} parent=51 // loop_exit
              _
          $region52: #{gnn_model_forward.10} parent=36 // pred_fallthru
            _
          // Predicated region
          $region60: #{gnn_model_forward.10} parent=36 // pred_check
            _
          $region61: #{gnn_model_forward.10} parent=36 // pred_check_branch
            %728 = sbr.rel target = $region63
          $region62: #{gnn_model_forward.10} parent=36 // pred_region
            _
          $region63: #{gnn_model_forward.10} parent=36 // pred_fallthru
            _
        $region37: #{gnn_model_forward.10} parent=32 // pred_fallthru
          _
        // Predicated region
        $region38: #{gnn_model_forward.10} parent=32 // pred_check
          _
        $region39: #{gnn_model_forward.10} parent=32 // pred_check_branch
          %642 = sbr.rel target = $region41
        $region40: #{gnn_model_forward.10} parent=32 // pred_region
          %s644 = ssub.s32 256, 1
          loop: start=0, step=1, limit=1
          $region42: #{gnn_model_forward.10} parent=40 // loop_pre_header
            _
          $region43: #{gnn_model_forward.10} parent=40 // loop_header
            %s646 = sphi 0, %s650
            %p647 = scmp.ge.s32.totalorder %s646, 1
            %s651 = sphi [#allocation2], [#allocation2]
            %s652 = sphi %s636, %s636
          $region44: #{gnn_model_forward.10} parent=40 // loop_header_branch
            %649 = sbr.rel (%p647) target = $region48
          $region45: #{gnn_model_forward.10} parent=40 // loop_body
            %v653 = vld [vmem:[%s651] sm:%s644]
            %654 = vst [vmem:[%s652] sm:%s644] %v653
            %v655 = vld [vmem:[%s651 + $0x8] sm:%s644]
            %656 = vst [vmem:[%s652 + $0x18] sm:%s644] %v655
            %v657 = vld [vmem:[%s651 + $0x10] sm:%s644]
            %658 = vst [vmem:[%s652 + $0x30] sm:%s644] %v657
            %v659 = vld [vmem:[%s651 + $0x18] sm:%s644]
            %660 = vst [vmem:[%s652 + $0x48] sm:%s644] %v659
            %v661 = vld [vmem:[%s651 + $0x20] sm:%s644]
            %662 = vst [vmem:[%s652 + $0x60] sm:%s644] %v661
            %v663 = vld [vmem:[%s651 + $0x28] sm:%s644]
            %664 = vst [vmem:[%s652 + $0x78] sm:%s644] %v663
            %v665 = vld [vmem:[%s651 + $0x30] sm:%s644]
            %666 = vst [vmem:[%s652 + $0x90] sm:%s644] %v665
            %v667 = vld [vmem:[%s651 + $0x38] sm:%s644]
            %668 = vst [vmem:[%s652 + $0xa8] sm:%s644] %v667
            %v669 = vld [vmem:[%s651 + $0x40] sm:%s644]
            %670 = vst [vmem:[%s652 + $0xc0] sm:%s644] %v669
            %v671 = vld [vmem:[%s651 + $0x48] sm:%s644]
            %672 = vst [vmem:[%s652 + $0xd8] sm:%s644] %v671
            %v673 = vld [vmem:[%s651 + $0x50] sm:%s644]
            %674 = vst [vmem:[%s652 + $0xf0] sm:%s644] %v673
            %v675 = vld [vmem:[%s651 + $0x58] sm:%s644]
            %676 = vst [vmem:[%s652 + $0x108] sm:%s644] %v675
            %v677 = vld [vmem:[%s651 + $0x60] sm:%s644]
            %678 = vst [vmem:[%s652 + $0x120] sm:%s644] %v677
            %v679 = vld [vmem:[%s651 + $0x68] sm:%s644]
            %680 = vst [vmem:[%s652 + $0x138] sm:%s644] %v679
            %v681 = vld [vmem:[%s651 + $0x70] sm:%s644]
            %682 = vst [vmem:[%s652 + $0x150] sm:%s644] %v681
            %v683 = vld [vmem:[%s651 + $0x78] sm:%s644]
            %684 = vst [vmem:[%s652 + $0x168] sm:%s644] %v683
          $region46: #{gnn_model_forward.10} parent=40 // loop_footer
            %s650 = sadd.s32 1, %s646
          $region47: #{gnn_model_forward.10} parent=40 // loop_footer_branch
            %645 = sbr.rel target = $region43
          $region48: #{gnn_model_forward.10} parent=40 // loop_exit
            _
        $region41: #{gnn_model_forward.10} parent=32 // pred_fallthru
          _
      $region33: #{gnn_model_forward.10} parent=28 // pred_fallthru
        _
      %729 = vnop
    $region29: #{gnn_model_forward.10} parent=1 // pred_fallthru
      _
    // Predicated region
    $region64: #{gnn_model_forward.10} parent=1 // pred_check
      _
    $region65: #{gnn_model_forward.10} parent=1 // pred_check_branch
      %731 = sbr.rel (0) target = $region67
    $region66: #{gnn_model_forward.10} parent=1 // pred_region
      _
    $region67: #{gnn_model_forward.10} parent=1 // pred_fallthru
      _

// kernel: gnn_model_forward.11
$region0: #{gnn_model_forward.11}
  #allocation0 [shape = 'u32[]', space=smem, size = 0x4, offset = 0x4, fixed_abs, tag = 'smem constant byte address 0x4 - core index']
  #allocation1 [shape = 'u32[144,128]{1,0:T(1,128)}', space=vmem, size = 0x12000, scoped, tag = 'internal scratch']
  %s0 = inlined_call_operand.vmem [shape: bf16[128,768], index: 0, kind: input, shape index: {}]
  %s1 = inlined_call_operand.vmem [shape: bf16[32,128], index: 1, kind: input, shape index: {}]
  %s2 = inlined_call_operand.vmem [shape: bf16[32,128], index: 2, kind: input, shape index: {}]
  %s3 = inlined_call_operand.vmem [shape: bf16[256,256], index: 3, kind: input, shape index: {}]
  %s4 = inlined_call_operand.vmem [shape: bf16[128,128], index: 4, kind: input, shape index: {}]
  %s5 = inlined_call_operand.vmem [shape: f32[1,128], index: 5, kind: input, shape index: {}]
  %s6 = inlined_call_operand.vmem [shape: bf16[128,128], index: 6, kind: output, shape index: {0}]
  %s7 = inlined_call_operand.vmem [shape: bf16[32,128], index: 7, kind: output, shape index: {1}]
  %s8 = inlined_call_operand.hbm [shape: bf16[32,128], index: 8, kind: output, shape index: {2}]
  %9 = xla_tuple %s6, %s7, %s8
  %s10 = sld [smem:[#allocation0]]
  $region88: #{gnn_model_forward.11} parent=0
    _
  %s12 = ssub.s32 1, %s10
  %s13 = scalar_select 0, %s12, %s10
  $region1: #{gnn_model_forward.11} parent=0
    #allocation2 [shape = 'u8[65536]{0}', space=vmem, size = 0x10000, scoped, tag = 'input window, operand 0, single buffered']
    #allocation3 [shape = 'u8[8192]{0}', space=vmem, size = 0x2000, scoped, tag = 'output window, operand 2, single buffered']
    #allocation4 [shape = 's32[1]{0}', space=sflag, size = 0x4, scoped, tag = 'scoped memory for gnn_model_forward.11']
    %14 = vsyncpa [#allocation4], 0
    // Predicated region
    $region2: #{gnn_model_forward.11} parent=1 // pred_check
      _
    $region3: #{gnn_model_forward.11} parent=1 // pred_check_branch
      %16 = sbr.rel (0) target = $region5
    $region4: #{gnn_model_forward.11} parent=1 // pred_region
      %s17 = scalar_lea.vmem %s0, 8
      // Predicated region
      $region6: #{gnn_model_forward.11} parent=4 // pred_check
        _
      $region7: #{gnn_model_forward.11} parent=4 // pred_check_branch
        %19 = sbr.rel (0) target = $region9
      $region8: #{gnn_model_forward.11} parent=4 // pred_region
        // Predicated region
        $region10: #{gnn_model_forward.11} parent=8 // pred_check
          _
        $region11: #{gnn_model_forward.11} parent=8 // pred_check_branch
          %21 = sbr.rel (0) target = $region13
        $region12: #{gnn_model_forward.11} parent=8 // pred_region
          // Predicated region
          $region25: #{gnn_model_forward.11} parent=12 // pred_check
            _
          $region26: #{gnn_model_forward.11} parent=12 // pred_check_branch
            %67 = sbr.rel (0) target = $region28
          $region27: #{gnn_model_forward.11} parent=12 // pred_region
            loop: start=0, step=1, limit=1
            $region29: #{gnn_model_forward.11} parent=27 // loop_pre_header
              _
            $region30: #{gnn_model_forward.11} parent=27 // loop_header
              %s69 = sphi 0, %s73
              %p70 = scmp.ge.s32.totalorder %s69, 1
              %s74 = sphi %s17, %s17
              %s75 = sphi [#allocation2], [#allocation2]
            $region31: #{gnn_model_forward.11} parent=27 // loop_header_branch
              %72 = sbr.rel (%p70) target = $region35
            $region32: #{gnn_model_forward.11} parent=27 // loop_body
              %v76 = vld [vmem:[%s74] sm:$0xff]
              %77 = vst [vmem:[%s75] sm:$0xff] %v76
              %v78 = vld [vmem:[%s74 + $0x18] sm:$0xff]
              %79 = vst [vmem:[%s75 + $0x8] sm:$0xff] %v78
              %v80 = vld [vmem:[%s74 + $0x30] sm:$0xff]
              %81 = vst [vmem:[%s75 + $0x10] sm:$0xff] %v80
              %v82 = vld [vmem:[%s74 + $0x48] sm:$0xff]
              %83 = vst [vmem:[%s75 + $0x18] sm:$0xff] %v82
              %v84 = vld [vmem:[%s74 + $0x60] sm:$0xff]
              %85 = vst [vmem:[%s75 + $0x20] sm:$0xff] %v84
              %v86 = vld [vmem:[%s74 + $0x78] sm:$0xff]
              %87 = vst [vmem:[%s75 + $0x28] sm:$0xff] %v86
              %v88 = vld [vmem:[%s74 + $0x90] sm:$0xff]
              %89 = vst [vmem:[%s75 + $0x30] sm:$0xff] %v88
              %v90 = vld [vmem:[%s74 + $0xa8] sm:$0xff]
              %91 = vst [vmem:[%s75 + $0x38] sm:$0xff] %v90
              %v92 = vld [vmem:[%s74 + $0xc0] sm:$0xff]
              %93 = vst [vmem:[%s75 + $0x40] sm:$0xff] %v92
              %v94 = vld [vmem:[%s74 + $0xd8] sm:$0xff]
              %95 = vst [vmem:[%s75 + $0x48] sm:$0xff] %v94
              %v96 = vld [vmem:[%s74 + $0xf0] sm:$0xff]
              %97 = vst [vmem:[%s75 + $0x50] sm:$0xff] %v96
              %v98 = vld [vmem:[%s74 + $0x108] sm:$0xff]
              %99 = vst [vmem:[%s75 + $0x58] sm:$0xff] %v98
              %v100 = vld [vmem:[%s74 + $0x120] sm:$0xff]
              %101 = vst [vmem:[%s75 + $0x60] sm:$0xff] %v100
              %v102 = vld [vmem:[%s74 + $0x138] sm:$0xff]
              %103 = vst [vmem:[%s75 + $0x68] sm:$0xff] %v102
              %v104 = vld [vmem:[%s74 + $0x150] sm:$0xff]
              %105 = vst [vmem:[%s75 + $0x70] sm:$0xff] %v104
              %v106 = vld [vmem:[%s74 + $0x168] sm:$0xff]
              %107 = vst [vmem:[%s75 + $0x78] sm:$0xff] %v106
            $region33: #{gnn_model_forward.11} parent=27 // loop_footer
              %s73 = sadd.s32 1, %s69
            $region34: #{gnn_model_forward.11} parent=27 // loop_footer_branch
              %68 = sbr.rel target = $region30
            $region35: #{gnn_model_forward.11} parent=27 // loop_exit
              _
          $region28: #{gnn_model_forward.11} parent=12 // pred_fallthru
            _
          // Predicated region
          $region36: #{gnn_model_forward.11} parent=12 // pred_check
            _
          $region37: #{gnn_model_forward.11} parent=12 // pred_check_branch
            %109 = sbr.rel target = $region39
          $region38: #{gnn_model_forward.11} parent=12 // pred_region
            _
          $region39: #{gnn_model_forward.11} parent=12 // pred_fallthru
            _
        $region13: #{gnn_model_forward.11} parent=8 // pred_fallthru
          _
        // Predicated region
        $region14: #{gnn_model_forward.11} parent=8 // pred_check
          _
        $region15: #{gnn_model_forward.11} parent=8 // pred_check_branch
          %23 = sbr.rel target = $region17
        $region16: #{gnn_model_forward.11} parent=8 // pred_region
          %s25 = ssub.s32 256, 1
          loop: start=0, step=1, limit=1
          $region18: #{gnn_model_forward.11} parent=16 // loop_pre_header
            _
          $region19: #{gnn_model_forward.11} parent=16 // loop_header
            %s27 = sphi 0, %s31
            %p28 = scmp.ge.s32.totalorder %s27, 1
            %s32 = sphi %s17, %s17
            %s33 = sphi [#allocation2], [#allocation2]
          $region20: #{gnn_model_forward.11} parent=16 // loop_header_branch
            %30 = sbr.rel (%p28) target = $region24
          $region21: #{gnn_model_forward.11} parent=16 // loop_body
            %v34 = vld [vmem:[%s32] sm:%s25]
            %35 = vst [vmem:[%s33] sm:%s25] %v34
            %v36 = vld [vmem:[%s32 + $0x18] sm:%s25]
            %37 = vst [vmem:[%s33 + $0x8] sm:%s25] %v36
            %v38 = vld [vmem:[%s32 + $0x30] sm:%s25]
            %39 = vst [vmem:[%s33 + $0x10] sm:%s25] %v38
            %v40 = vld [vmem:[%s32 + $0x48] sm:%s25]
            %41 = vst [vmem:[%s33 + $0x18] sm:%s25] %v40
            %v42 = vld [vmem:[%s32 + $0x60] sm:%s25]
            %43 = vst [vmem:[%s33 + $0x20] sm:%s25] %v42
            %v44 = vld [vmem:[%s32 + $0x78] sm:%s25]
            %45 = vst [vmem:[%s33 + $0x28] sm:%s25] %v44
            %v46 = vld [vmem:[%s32 + $0x90] sm:%s25]
            %47 = vst [vmem:[%s33 + $0x30] sm:%s25] %v46
            %v48 = vld [vmem:[%s32 + $0xa8] sm:%s25]
            %49 = vst [vmem:[%s33 + $0x38] sm:%s25] %v48
            %v50 = vld [vmem:[%s32 + $0xc0] sm:%s25]
            %51 = vst [vmem:[%s33 + $0x40] sm:%s25] %v50
            %v52 = vld [vmem:[%s32 + $0xd8] sm:%s25]
            %53 = vst [vmem:[%s33 + $0x48] sm:%s25] %v52
            %v54 = vld [vmem:[%s32 + $0xf0] sm:%s25]
            %55 = vst [vmem:[%s33 + $0x50] sm:%s25] %v54
            %v56 = vld [vmem:[%s32 + $0x108] sm:%s25]
            %57 = vst [vmem:[%s33 + $0x58] sm:%s25] %v56
            %v58 = vld [vmem:[%s32 + $0x120] sm:%s25]
            %59 = vst [vmem:[%s33 + $0x60] sm:%s25] %v58
            %v60 = vld [vmem:[%s32 + $0x138] sm:%s25]
            %61 = vst [vmem:[%s33 + $0x68] sm:%s25] %v60
            %v62 = vld [vmem:[%s32 + $0x150] sm:%s25]
            %63 = vst [vmem:[%s33 + $0x70] sm:%s25] %v62
            %v64 = vld [vmem:[%s32 + $0x168] sm:%s25]
            %65 = vst [vmem:[%s33 + $0x78] sm:%s25] %v64
          $region22: #{gnn_model_forward.11} parent=16 // loop_footer
            %s31 = sadd.s32 1, %s27
          $region23: #{gnn_model_forward.11} parent=16 // loop_footer_branch
            %26 = sbr.rel target = $region19
          $region24: #{gnn_model_forward.11} parent=16 // loop_exit
            _
        $region17: #{gnn_model_forward.11} parent=8 // pred_fallthru
          _
      $region9: #{gnn_model_forward.11} parent=4 // pred_fallthru
        _
      %110 = vnop
    $region5: #{gnn_model_forward.11} parent=1 // pred_fallthru
      _
    // Predicated region
    $region40: #{gnn_model_forward.11} parent=1 // pred_check
      _
    $region41: #{gnn_model_forward.11} parent=1 // pred_check_branch
      %112 = sbr.rel (0) target = $region43
    $region42: #{gnn_model_forward.11} parent=1 // pred_region
      _
    $region43: #{gnn_model_forward.11} parent=1 // pred_fallthru
      _
    // Predicated region
    $region44: #{gnn_model_forward.11} parent=1 // pred_check
      _
    $region45: #{gnn_model_forward.11} parent=1 // pred_check_branch
      %114 = sbr.rel (0) target = $region47
    $region46: #{gnn_model_forward.11} parent=1 // pred_region
      _
    $region47: #{gnn_model_forward.11} parent=1 // pred_fallthru
      _
    // Predicated region
    $region48: #{gnn_model_forward.11} parent=1 // pred_check
      _
    $region49: #{gnn_model_forward.11} parent=1 // pred_check_branch
      %116 = sbr.rel (0) target = $region51
    $region50: #{gnn_model_forward.11} parent=1 // pred_region
      _
    $region51: #{gnn_model_forward.11} parent=1 // pred_fallthru
      _
    // Predicated region
    $region52: #{gnn_model_forward.11} parent=1 // pred_check
      _
    $region53: #{gnn_model_forward.11} parent=1 // pred_check_branch
      %118 = sbr.rel (0) target = $region55
    $region54: #{gnn_model_forward.11} parent=1 // pred_region
      _
    $region55: #{gnn_model_forward.11} parent=1 // pred_fallthru
      _
    // Predicated region
    $region56: #{gnn_model_forward.11} parent=1 // pred_check
      _
    $region57: #{gnn_model_forward.11} parent=1 // pred_check_branch
      %120 = sbr.rel (0) target = $region59
    $region58: #{gnn_model_forward.11} parent=1 // pred_region
      _
    $region59: #{gnn_model_forward.11} parent=1 // pred_fallthru
      _
    // Predicated region
    $region60: #{gnn_model_forward.11} parent=1 // pred_check
      _
    $region61: #{gnn_model_forward.11} parent=1 // pred_check_branch
      %122 = sbr.rel (0) target = $region63
    $region62: #{gnn_model_forward.11} parent=1 // pred_region
      _
    $region63: #{gnn_model_forward.11} parent=1 // pred_fallthru
      _
    %v124 = vld [vmem:[#allocation2] sm:$0xff]
    %v125 = vld [vmem:[#allocation2 + $0x8] sm:$0xff]
    %v126 = vld [vmem:[#allocation2 + $0x10] sm:$0xff]
    %v127 = vld [vmem:[#allocation2 + $0x18] sm:$0xff]
    %v128 = vld [vmem:[#allocation2 + $0x20] sm:$0xff]
    %v129 = vld [vmem:[#allocation2 + $0x28] sm:$0xff]
    %v130 = vld [vmem:[#allocation2 + $0x30] sm:$0xff]
    %v131 = vld [vmem:[#allocation2 + $0x38] sm:$0xff]
    %v132 = vld [vmem:[#allocation2 + $0x40] sm:$0xff]
    %v133 = vld [vmem:[#allocation2 + $0x48] sm:$0xff]
    %v134 = vld [vmem:[#allocation2 + $0x50] sm:$0xff]
    %v135 = vld [vmem:[#allocation2 + $0x58] sm:$0xff]
    %v136 = vld [vmem:[#allocation2 + $0x60] sm:$0xff]
    %v137 = vld [vmem:[#allocation2 + $0x68] sm:$0xff]
    %v138 = vld [vmem:[#allocation2 + $0x70] sm:$0xff]
    %v139 = vld [vmem:[#allocation2 + $0x78] sm:$0xff]
    %v140 = vld [vmem:[%s3] sm:$0xff]
    %v141 = vld [vmem:[%s3 + $0x8] sm:$0xff]
    %v142 = vld [vmem:[%s3 + $0x10] sm:$0xff]
    %v143 = vld [vmem:[%s3 + $0x18] sm:$0xff]
    %v144 = vld [vmem:[%s3 + $0x20] sm:$0xff]
    %v145 = vld [vmem:[%s3 + $0x28] sm:$0xff]
    %v146 = vld [vmem:[%s3 + $0x30] sm:$0xff]
    %v147 = vld [vmem:[%s3 + $0x38] sm:$0xff]
    %v148 = vld [vmem:[%s3 + $0x40] sm:$0xff]
    %v149 = vld [vmem:[%s3 + $0x48] sm:$0xff]
    %v150 = vld [vmem:[%s3 + $0x50] sm:$0xff]
    %v151 = vld [vmem:[%s3 + $0x58] sm:$0xff]
    %v152 = vld [vmem:[%s3 + $0x60] sm:$0xff]
    %v153 = vld [vmem:[%s3 + $0x68] sm:$0xff]
    %v154 = vld [vmem:[%s3 + $0x70] sm:$0xff]
    %v155 = vld [vmem:[%s3 + $0x78] sm:$0xff]
    %v156 = vld [vmem:[%s3 + $0x80] sm:$0xff]
    %v157 = vld [vmem:[%s3 + $0x88] sm:$0xff]
    %v158 = vld [vmem:[%s3 + $0x90] sm:$0xff]
    %v159 = vld [vmem:[%s3 + $0x98] sm:$0xff]
    %v160 = vld [vmem:[%s3 + $0xa0] sm:$0xff]
    %v161 = vld [vmem:[%s3 + $0xa8] sm:$0xff]
    %v162 = vld [vmem:[%s3 + $0xb0] sm:$0xff]
    %v163 = vld [vmem:[%s3 + $0xb8] sm:$0xff]
    %v164 = vld [vmem:[%s3 + $0xc0] sm:$0xff]
    %v165 = vld [vmem:[%s3 + $0xc8] sm:$0xff]
    %v166 = vld [vmem:[%s3 + $0xd0] sm:$0xff]
    %v167 = vld [vmem:[%s3 + $0xd8] sm:$0xff]
    %v168 = vld [vmem:[%s3 + $0xe0] sm:$0xff]
    %v169 = vld [vmem:[%s3 + $0xe8] sm:$0xff]
    %v170 = vld [vmem:[%s3 + $0xf0] sm:$0xff]
    %v171 = vld [vmem:[%s3 + $0xf8] sm:$0xff]
    %v188 = vunpack.c.l.b16 %v124
    %v189 = vunpack.c.h.b16 %v124
    %v190 = vunpack.c.l.b16 %v125
    %v191 = vunpack.c.h.b16 %v125
    %v192 = vunpack.c.l.b16 %v126
    %v193 = vunpack.c.h.b16 %v126
    %v194 = vunpack.c.l.b16 %v127
    %v195 = vunpack.c.h.b16 %v127
    %v196 = vunpack.c.l.b16 %v128
    %v197 = vunpack.c.h.b16 %v128
    %v198 = vunpack.c.l.b16 %v129
    %v199 = vunpack.c.h.b16 %v129
    %v200 = vunpack.c.l.b16 %v130
    %v201 = vunpack.c.h.b16 %v130
    %v202 = vunpack.c.l.b16 %v131
    %v203 = vunpack.c.h.b16 %v131
    %v204 = vunpack.c.l.b16 %v132
    %v205 = vunpack.c.h.b16 %v132
    %v206 = vunpack.c.l.b16 %v133
    %v207 = vunpack.c.h.b16 %v133
    %v208 = vunpack.c.l.b16 %v134
    %v209 = vunpack.c.h.b16 %v134
    %v210 = vunpack.c.l.b16 %v135
    %v211 = vunpack.c.h.b16 %v135
    %v212 = vunpack.c.l.b16 %v136
    %v213 = vunpack.c.h.b16 %v136
    %v214 = vunpack.c.l.b16 %v137
    %v215 = vunpack.c.h.b16 %v137
    %v216 = vunpack.c.l.b16 %v138
    %v217 = vunpack.c.h.b16 %v138
    %v218 = vunpack.c.l.b16 %v139
    %v219 = vunpack.c.h.b16 %v139
    %v220 = vpack.c.b16 %v190, %v188
    %v221 = vpack.c.b16 %v191, %v189
    %v222 = vpack.c.b16 %v194, %v192
    %v223 = vpack.c.b16 %v195, %v193
    %v224 = vpack.c.b16 %v198, %v196
    %v225 = vpack.c.b16 %v199, %v197
    %v226 = vpack.c.b16 %v202, %v200
    %v227 = vpack.c.b16 %v203, %v201
    %v228 = vpack.c.b16 %v206, %v204
    %v229 = vpack.c.b16 %v207, %v205
    %v230 = vpack.c.b16 %v210, %v208
    %v231 = vpack.c.b16 %v211, %v209
    %v232 = vpack.c.b16 %v214, %v212
    %v233 = vpack.c.b16 %v215, %v213
    %v234 = vpack.c.b16 %v218, %v216
    %v235 = vpack.c.b16 %v219, %v217
    %v284 = vunpack.c.l.b16 %v140
    %v285 = vunpack.c.h.b16 %v140
    %v286 = vunpack.c.l.b16 %v141
    %v287 = vunpack.c.h.b16 %v141
    %v288 = vunpack.c.l.b16 %v142
    %v289 = vunpack.c.h.b16 %v142
    %v290 = vunpack.c.l.b16 %v143
    %v291 = vunpack.c.h.b16 %v143
    %v292 = vunpack.c.l.b16 %v144
    %v293 = vunpack.c.h.b16 %v144
    %v294 = vunpack.c.l.b16 %v145
    %v295 = vunpack.c.h.b16 %v145
    %v296 = vunpack.c.l.b16 %v146
    %v297 = vunpack.c.h.b16 %v146
    %v298 = vunpack.c.l.b16 %v147
    %v299 = vunpack.c.h.b16 %v147
    %v300 = vunpack.c.l.b16 %v148
    %v301 = vunpack.c.h.b16 %v148
    %v302 = vunpack.c.l.b16 %v149
    %v303 = vunpack.c.h.b16 %v149
    %v304 = vunpack.c.l.b16 %v150
    %v305 = vunpack.c.h.b16 %v150
    %v306 = vunpack.c.l.b16 %v151
    %v307 = vunpack.c.h.b16 %v151
    %v308 = vunpack.c.l.b16 %v152
    %v309 = vunpack.c.h.b16 %v152
    %v310 = vunpack.c.l.b16 %v153
    %v311 = vunpack.c.h.b16 %v153
    %v312 = vunpack.c.l.b16 %v154
    %v313 = vunpack.c.h.b16 %v154
    %v314 = vunpack.c.l.b16 %v155
    %v315 = vunpack.c.h.b16 %v155
    %v316 = vunpack.c.l.b16 %v156
    %v317 = vunpack.c.h.b16 %v156
    %v318 = vunpack.c.l.b16 %v157
    %v319 = vunpack.c.h.b16 %v157
    %v320 = vunpack.c.l.b16 %v158
    %v321 = vunpack.c.h.b16 %v158
    %v322 = vunpack.c.l.b16 %v159
    %v323 = vunpack.c.h.b16 %v159
    %v324 = vunpack.c.l.b16 %v160
    %v325 = vunpack.c.h.b16 %v160
    %v326 = vunpack.c.l.b16 %v161
    %v327 = vunpack.c.h.b16 %v161
    %v328 = vunpack.c.l.b16 %v162
    %v329 = vunpack.c.h.b16 %v162
    %v330 = vunpack.c.l.b16 %v163
    %v331 = vunpack.c.h.b16 %v163
    %v332 = vunpack.c.l.b16 %v164
    %v333 = vunpack.c.h.b16 %v164
    %v334 = vunpack.c.l.b16 %v165
    %v335 = vunpack.c.h.b16 %v165
    %v336 = vunpack.c.l.b16 %v166
    %v337 = vunpack.c.h.b16 %v166
    %v338 = vunpack.c.l.b16 %v167
    %v339 = vunpack.c.h.b16 %v167
    %v340 = vunpack.c.l.b16 %v168
    %v341 = vunpack.c.h.b16 %v168
    %v342 = vunpack.c.l.b16 %v169
    %v343 = vunpack.c.h.b16 %v169
    %v344 = vunpack.c.l.b16 %v170
    %v345 = vunpack.c.h.b16 %v170
    %v346 = vunpack.c.l.b16 %v171
    %v347 = vunpack.c.h.b16 %v171
    %v348 = vpack.c.b16 %v286, %v284
    %v349 = vpack.c.b16 %v287, %v285
    %v350 = vpack.c.b16 %v290, %v288
    %v351 = vpack.c.b16 %v291, %v289
    %v352 = vpack.c.b16 %v294, %v292
    %v353 = vpack.c.b16 %v295, %v293
    %v354 = vpack.c.b16 %v298, %v296
    %v355 = vpack.c.b16 %v299, %v297
    %v356 = vpack.c.b16 %v302, %v300
    %v357 = vpack.c.b16 %v303, %v301
    %v358 = vpack.c.b16 %v306, %v304
    %v359 = vpack.c.b16 %v307, %v305
    %v360 = vpack.c.b16 %v310, %v308
    %v361 = vpack.c.b16 %v311, %v309
    %v362 = vpack.c.b16 %v314, %v312
    %v363 = vpack.c.b16 %v315, %v313
    %v364 = vpack.c.b16 %v318, %v316
    %v365 = vpack.c.b16 %v319, %v317
    %v366 = vpack.c.b16 %v322, %v320
    %v367 = vpack.c.b16 %v323, %v321
    %v368 = vpack.c.b16 %v326, %v324
    %v369 = vpack.c.b16 %v327, %v325
    %v370 = vpack.c.b16 %v330, %v328
    %v371 = vpack.c.b16 %v331, %v329
    %v372 = vpack.c.b16 %v334, %v332
    %v373 = vpack.c.b16 %v335, %v333
    %v374 = vpack.c.b16 %v338, %v336
    %v375 = vpack.c.b16 %v339, %v337
    %v376 = vpack.c.b16 %v342, %v340
    %v377 = vpack.c.b16 %v343, %v341
    %v378 = vpack.c.b16 %v346, %v344
    %v379 = vpack.c.b16 %v347, %v345
    %412 = vmatprep.subr.bf16.mxu0 %v363
    %413 = vmatpush1.bf16.msra.mxu0 %v362
    %414 = vmatprep.subr.bf16.mxu0 %v361
    %415 = vmatpush1.bf16.msra.mxu0 %v360
    %416 = vmatprep.subr.bf16.mxu0 %v359
    %417 = vmatpush1.bf16.msra.mxu0 %v358
    %418 = vmatprep.subr.bf16.mxu0 %v357
    %419 = vmatpush1.bf16.msra.mxu0 %v356
    %420 = vmatprep.subr.bf16.mxu0 %v355
    %421 = vmatpush1.bf16.msra.mxu0 %v354
    %422 = vmatprep.subr.bf16.mxu0 %v353
    %423 = vmatpush1.bf16.msra.mxu0 %v352
    %424 = vmatprep.subr.bf16.mxu0 %v351
    %425 = vmatpush1.bf16.msra.mxu0 %v350
    %426 = vmatprep.subr.bf16.mxu0 %v349
    %427 = vmatpush1.bf16.msra.mxu0 %v348
    %428 = vmatprep.subr.bf16.mxu0 %v379
    %429 = vmatpush2.bf16.msra.mxu0 %v378
    %430 = vmatprep.subr.bf16.mxu0 %v377
    %431 = vmatpush2.bf16.msra.mxu0 %v376
    %432 = vmatprep.subr.bf16.mxu0 %v375
    %433 = vmatpush2.bf16.msra.mxu0 %v374
    %434 = vmatprep.subr.bf16.mxu0 %v373
    %435 = vmatpush2.bf16.msra.mxu0 %v372
    %436 = vmatprep.subr.bf16.mxu0 %v371
    %437 = vmatpush2.bf16.msra.mxu0 %v370
    %438 = vmatprep.subr.bf16.mxu0 %v369
    %439 = vmatpush2.bf16.msra.mxu0 %v368
    %440 = vmatprep.subr.bf16.mxu0 %v367
    %441 = vmatpush2.bf16.msra.mxu0 %v366
    %442 = vmatprep.subr.bf16.mxu0 %v365
    %443 = vmatpush2.bf16.msra.mxu0 %v364
    %444 = vmatprep.mubr.bf16.mxu0 %v221
    %445 = vmatmul.mubr.bf16.gmra.mxu0 %v220
    %v446 = vpop.f32.mrf.mxu0
    %v447 = vadd.f32 0.0, %v446
    %v448 = vpop.f32.mrf.mxu0
    %v449 = vadd.f32 0.0, %v448
    %v450 = vpop.f32.mrf.mxu0
    %v451 = vadd.f32 0.0, %v450
    %v452 = vpop.f32.mrf.mxu0
    %v453 = vadd.f32 0.0, %v452
    %454 = vmatprep.mubr.bf16.mxu0 %v223
    %455 = vmatmul.mubr.bf16.gmra.mxu0 %v222
    %v456 = vpop.f32.mrf.mxu0
    %v457 = vadd.f32 0.0, %v456
    %v458 = vpop.f32.mrf.mxu0
    %v459 = vadd.f32 0.0, %v458
    %v460 = vpop.f32.mrf.mxu0
    %v461 = vadd.f32 0.0, %v460
    %v462 = vpop.f32.mrf.mxu0
    %v463 = vadd.f32 0.0, %v462
    %464 = vmatprep.mubr.bf16.mxu0 %v225
    %465 = vmatmul.mubr.bf16.gmra.mxu0 %v224
    %v466 = vpop.f32.mrf.mxu0
    %v467 = vadd.f32 0.0, %v466
    %v468 = vpop.f32.mrf.mxu0
    %v469 = vadd.f32 0.0, %v468
    %v470 = vpop.f32.mrf.mxu0
    %v471 = vadd.f32 0.0, %v470
    %v472 = vpop.f32.mrf.mxu0
    %v473 = vadd.f32 0.0, %v472
    %474 = vmatprep.mubr.bf16.mxu0 %v227
    %475 = vmatmul.mubr.bf16.gmra.mxu0 %v226
    %v476 = vpop.f32.mrf.mxu0
    %v477 = vadd.f32 0.0, %v476
    %v478 = vpop.f32.mrf.mxu0
    %v479 = vadd.f32 0.0, %v478
    %v480 = vpop.f32.mrf.mxu0
    %v481 = vadd.f32 0.0, %v480
    %v482 = vpop.f32.mrf.mxu0
    %v483 = vadd.f32 0.0, %v482
    %484 = vmatprep.mubr.bf16.mxu0 %v229
    %485 = vmatmul.mubr.bf16.gmra.mxu0 %v228
    %v486 = vpop.f32.mrf.mxu0
    %v487 = vadd.f32 0.0, %v486
    %v488 = vpop.f32.mrf.mxu0
    %v489 = vadd.f32 0.0, %v488
    %v490 = vpop.f32.mrf.mxu0
    %v491 = vadd.f32 0.0, %v490
    %v492 = vpop.f32.mrf.mxu0
    %v493 = vadd.f32 0.0, %v492
    %494 = vmatprep.mubr.bf16.mxu0 %v231
    %495 = vmatmul.mubr.bf16.gmra.mxu0 %v230
    %v496 = vpop.f32.mrf.mxu0
    %v497 = vadd.f32 0.0, %v496
    %v498 = vpop.f32.mrf.mxu0
    %v499 = vadd.f32 0.0, %v498
    %v500 = vpop.f32.mrf.mxu0
    %v501 = vadd.f32 0.0, %v500
    %v502 = vpop.f32.mrf.mxu0
    %v503 = vadd.f32 0.0, %v502
    %504 = vmatprep.mubr.bf16.mxu0 %v233
    %505 = vmatmul.mubr.bf16.gmra.mxu0 %v232
    %v506 = vpop.f32.mrf.mxu0
    %v507 = vadd.f32 0.0, %v506
    %v508 = vpop.f32.mrf.mxu0
    %v509 = vadd.f32 0.0, %v508
    %v510 = vpop.f32.mrf.mxu0
    %v511 = vadd.f32 0.0, %v510
    %v512 = vpop.f32.mrf.mxu0
    %v513 = vadd.f32 0.0, %v512
    %514 = vmatprep.mubr.bf16.mxu0 %v235
    %515 = vmatmul.mubr.bf16.gmra.mxu0 %v234
    %v516 = vpop.f32.mrf.mxu0
    %v517 = vadd.f32 0.0, %v516
    %v518 = vpop.f32.mrf.mxu0
    %v519 = vadd.f32 0.0, %v518
    %v520 = vpop.f32.mrf.mxu0
    %v521 = vadd.f32 0.0, %v520
    %v522 = vpop.f32.mrf.mxu0
    %v523 = vadd.f32 0.0, %v522
    %524 = vdwg.mxu0
    %v525 = vpack.c.bf16 %v451, %v447
    %v526 = vpack.c.bf16 %v461, %v457
    %v527 = vpack.c.bf16 %v471, %v467
    %v528 = vpack.c.bf16 %v481, %v477
    %v529 = vpack.c.bf16 %v491, %v487
    %v530 = vpack.c.bf16 %v501, %v497
    %v531 = vpack.c.bf16 %v511, %v507
    %v532 = vpack.c.bf16 %v521, %v517
    %v541 = vunpack.c.l.b16 %v525
    %v542 = vunpack.c.h.b16 %v525
    %v543 = vunpack.c.l.b16 %v526
    %v544 = vunpack.c.h.b16 %v526
    %v545 = vunpack.c.l.b16 %v527
    %v546 = vunpack.c.h.b16 %v527
    %v547 = vunpack.c.l.b16 %v528
    %v548 = vunpack.c.h.b16 %v528
    %v549 = vunpack.c.l.b16 %v529
    %v550 = vunpack.c.h.b16 %v529
    %v551 = vunpack.c.l.b16 %v530
    %v552 = vunpack.c.h.b16 %v530
    %v553 = vunpack.c.l.b16 %v531
    %v554 = vunpack.c.h.b16 %v531
    %v555 = vunpack.c.l.b16 %v532
    %v556 = vunpack.c.h.b16 %v532
    %v557 = vpack.c.b16 %v541, %v541
    %v558 = vpack.c.b16 %v542, %v542
    %v559 = vpack.c.b16 %v543, %v543
    %v560 = vpack.c.b16 %v544, %v544
    %v561 = vpack.c.b16 %v545, %v545
    %v562 = vpack.c.b16 %v546, %v546
    %v563 = vpack.c.b16 %v547, %v547
    %v564 = vpack.c.b16 %v548, %v548
    %v565 = vpack.c.b16 %v549, %v549
    %v566 = vpack.c.b16 %v550, %v550
    %v567 = vpack.c.b16 %v551, %v551
    %v568 = vpack.c.b16 %v552, %v552
    %v569 = vpack.c.b16 %v553, %v553
    %v570 = vpack.c.b16 %v554, %v554
    %v571 = vpack.c.b16 %v555, %v555
    %v572 = vpack.c.b16 %v556, %v556
    %589 = vst [vmem:[%s6] sm:$0xf] %v557
    %590 = vst [vmem:[%s6 + $0x4] sm:$0xf] %v558
    %591 = vst [vmem:[%s6 + $0x8] sm:$0xf] %v559
    %592 = vst [vmem:[%s6 + $0xc] sm:$0xf] %v560
    %593 = vst [vmem:[%s6 + $0x10] sm:$0xf] %v561
    %594 = vst [vmem:[%s6 + $0x14] sm:$0xf] %v562
    %595 = vst [vmem:[%s6 + $0x18] sm:$0xf] %v563
    %596 = vst [vmem:[%s6 + $0x1c] sm:$0xf] %v564
    %597 = vst [vmem:[%s6 + $0x20] sm:$0xf] %v565
    %598 = vst [vmem:[%s6 + $0x24] sm:$0xf] %v566
    %599 = vst [vmem:[%s6 + $0x28] sm:$0xf] %v567
    %600 = vst [vmem:[%s6 + $0x2c] sm:$0xf] %v568
    %601 = vst [vmem:[%s6 + $0x30] sm:$0xf] %v569
    %602 = vst [vmem:[%s6 + $0x34] sm:$0xf] %v570
    %603 = vst [vmem:[%s6 + $0x38] sm:$0xf] %v571
    %604 = vst [vmem:[%s6 + $0x3c] sm:$0xf] %v572
    %v605 = vpack.c.bf16 %v453, %v449
    %v606 = vpack.c.bf16 %v463, %v459
    %v607 = vpack.c.bf16 %v473, %v469
    %v608 = vpack.c.bf16 %v483, %v479
    %v609 = vpack.c.bf16 %v493, %v489
    %v610 = vpack.c.bf16 %v503, %v499
    %v611 = vpack.c.bf16 %v513, %v509
    %v612 = vpack.c.bf16 %v523, %v519
    %v613 = vld [vmem:[%s1] sm:$0xf]
    %v614 = vld [vmem:[%s1 + $0x4] sm:$0xf]
    %v615 = vld [vmem:[%s1 + $0x8] sm:$0xf]
    %v616 = vld [vmem:[%s1 + $0xc] sm:$0xf]
    %v617 = vld [vmem:[%s4] sm:$0xf]
    %v618 = vld [vmem:[%s4 + $0x4] sm:$0xf]
    %v619 = vld [vmem:[%s4 + $0x8] sm:$0xf]
    %v620 = vld [vmem:[%s4 + $0xc] sm:$0xf]
    %v621 = vld [vmem:[%s4 + $0x10] sm:$0xf]
    %v622 = vld [vmem:[%s4 + $0x14] sm:$0xf]
    %v623 = vld [vmem:[%s4 + $0x18] sm:$0xf]
    %v624 = vld [vmem:[%s4 + $0x1c] sm:$0xf]
    %v625 = vld [vmem:[%s4 + $0x20] sm:$0xf]
    %v626 = vld [vmem:[%s4 + $0x24] sm:$0xf]
    %v627 = vld [vmem:[%s4 + $0x28] sm:$0xf]
    %v628 = vld [vmem:[%s4 + $0x2c] sm:$0xf]
    %v629 = vld [vmem:[%s4 + $0x30] sm:$0xf]
    %v630 = vld [vmem:[%s4 + $0x34] sm:$0xf]
    %v631 = vld [vmem:[%s4 + $0x38] sm:$0xf]
    %v632 = vld [vmem:[%s4 + $0x3c] sm:$0xf]
    %v637 = vunpack.c.l.b16 %v613
    %v638 = vunpack.c.l.b16 %v614
    %v639 = vunpack.c.l.b16 %v615
    %v640 = vunpack.c.l.b16 %v616
    %v641 = vpack.c.b16 %v638, %v637
    %v642 = vpack.c.b16 %v640, %v639
    %v661 = vunpack.c.l.b16 %v617
    %v662 = vunpack.c.l.b16 %v618
    %v663 = vunpack.c.l.b16 %v619
    %v664 = vunpack.c.l.b16 %v620
    %v665 = vunpack.c.l.b16 %v621
    %v666 = vunpack.c.l.b16 %v622
    %v667 = vunpack.c.l.b16 %v623
    %v668 = vunpack.c.l.b16 %v624
    %v669 = vunpack.c.l.b16 %v625
    %v670 = vunpack.c.l.b16 %v626
    %v671 = vunpack.c.l.b16 %v627
    %v672 = vunpack.c.l.b16 %v628
    %v673 = vunpack.c.l.b16 %v629
    %v674 = vunpack.c.l.b16 %v630
    %v675 = vunpack.c.l.b16 %v631
    %v676 = vunpack.c.l.b16 %v632
    %v677 = vpack.c.b16 %v662, %v661
    %v678 = vpack.c.b16 %v664, %v663
    %v679 = vpack.c.b16 %v666, %v665
    %v680 = vpack.c.b16 %v668, %v667
    %v681 = vpack.c.b16 %v670, %v669
    %v682 = vpack.c.b16 %v672, %v671
    %v683 = vpack.c.b16 %v674, %v673
    %v684 = vpack.c.b16 %v676, %v675
    %693 = vmatprep.subr.bf16.mxu0 0
    %694 = vmatpush1.bf16.msra.mxu0 %v684
    %695 = vmatprep.subr.bf16.mxu0 0
    %696 = vmatpush1.bf16.msra.mxu0 %v683
    %697 = vmatprep.subr.bf16.mxu0 0
    %698 = vmatpush1.bf16.msra.mxu0 %v682
    %699 = vmatprep.subr.bf16.mxu0 0
    %700 = vmatpush1.bf16.msra.mxu0 %v681
    %701 = vmatprep.subr.bf16.mxu0 0
    %702 = vmatpush1.bf16.msra.mxu0 %v680
    %703 = vmatprep.subr.bf16.mxu0 0
    %704 = vmatpush1.bf16.msra.mxu0 %v679
    %705 = vmatprep.subr.bf16.mxu0 0
    %706 = vmatpush1.bf16.msra.mxu0 %v678
    %707 = vmatprep.subr.bf16.mxu0 0
    %708 = vmatpush1.bf16.msra.mxu0 %v677
    %709 = vmatprep.subr.bf16.mxu0 0
    %710 = vmatpush2.bf16.msra.mxu0 0
    %711 = vmatprep.subr.bf16.mxu0 0
    %712 = vmatpush2.bf16.msra.mxu0 0
    %713 = vmatprep.subr.bf16.mxu0 0
    %714 = vmatpush2.bf16.msra.mxu0 0
    %715 = vmatprep.subr.bf16.mxu0 0
    %716 = vmatpush2.bf16.msra.mxu0 0
    %717 = vmatprep.subr.bf16.mxu0 0
    %718 = vmatpush2.bf16.msra.mxu0 0
    %719 = vmatprep.subr.bf16.mxu0 0
    %720 = vmatpush2.bf16.msra.mxu0 0
    %721 = vmatprep.subr.bf16.mxu0 0
    %722 = vmatpush2.bf16.msra.mxu0 0
    %723 = vmatprep.subr.bf16.mxu0 0
    %724 = vmatpush2.bf16.msra.mxu0 0
    %725 = vmatprep.mubr.bf16.mxu0 0
    %726 = vmatmul.mubr.bf16.gmra.mxu0 %v641
    %v727 = vpop.f32.mrf.mxu0
    %v728 = vadd.f32 0.0, %v727
    %v729 = vpop.f32.mrf.mxu0
    %v730 = vpop.f32.mrf.mxu0
    %v731 = vadd.f32 0.0, %v730
    %v732 = vpop.f32.mrf.mxu0
    %733 = vmatprep.mubr.bf16.mxu0 0
    %734 = vmatmul.mubr.bf16.gmra.mxu0 %v642
    %v735 = vpop.f32.mrf.mxu0
    %v736 = vadd.f32 0.0, %v735
    %v737 = vpop.f32.mrf.mxu0
    %v738 = vpop.f32.mrf.mxu0
    %v739 = vadd.f32 0.0, %v738
    %v740 = vpop.f32.mrf.mxu0
    %741 = vdwg.mxu0
    %v742 = vpack.c.bf16 %v731, %v728
    %v743 = vpack.c.bf16 %v739, %v736
    %v746 = vunpack.c.l.b16 %v742
    %v747 = vunpack.c.h.b16 %v742
    %v748 = vunpack.c.l.b16 %v743
    %v749 = vunpack.c.h.b16 %v743
    %v750 = vpack.c.b16 %v746, %v746
    %v751 = vpack.c.b16 %v747, %v747
    %v752 = vpack.c.b16 %v748, %v748
    %v753 = vpack.c.b16 %v749, %v749
    %758 = vst [vmem:[%s7] sm:$0xf] %v750
    %759 = vst [vmem:[%s7 + $0x4] sm:$0xf] %v751
    %760 = vst [vmem:[%s7 + $0x8] sm:$0xf] %v752
    %761 = vst [vmem:[%s7 + $0xc] sm:$0xf] %v753
    %v762 = vld [vmem:[%s2] sm:$0xf]
    %v763 = vld [vmem:[%s2 + $0x4] sm:$0xf]
    %v764 = vld [vmem:[%s2 + $0x8] sm:$0xf]
    %v765 = vld [vmem:[%s2 + $0xc] sm:$0xf]
    %v766 = vld [vmem:[%s5] sm:$0x1]
    %v768 = vlaneseq
    %v769 = vshrl.u32 %v768, 7
    %v770 = vsub.s32 0, %v769
    %v771 = vrot.slane %v766, %v770
    %v777 = vunpack.c.l.b16 %v762
    %v778 = vunpack.c.l.b16 %v763
    %v779 = vunpack.c.l.b16 %v764
    %v780 = vunpack.c.l.b16 %v765
    %v781 = vpack.c.b16 %v778, %v777
    %v782 = vpack.c.b16 %v780, %v779
    %785 = vmatprep.subr.bf16.mxu0 0
    %786 = vmatpush1.bf16.msra.mxu0 %v612
    %787 = vmatprep.subr.bf16.mxu0 0
    %788 = vmatpush1.bf16.msra.mxu0 %v611
    %789 = vmatprep.subr.bf16.mxu0 0
    %790 = vmatpush1.bf16.msra.mxu0 %v610
    %791 = vmatprep.subr.bf16.mxu0 0
    %792 = vmatpush1.bf16.msra.mxu0 %v609
    %793 = vmatprep.subr.bf16.mxu0 0
    %794 = vmatpush1.bf16.msra.mxu0 %v608
    %795 = vmatprep.subr.bf16.mxu0 0
    %796 = vmatpush1.bf16.msra.mxu0 %v607
    %797 = vmatprep.subr.bf16.mxu0 0
    %798 = vmatpush1.bf16.msra.mxu0 %v606
    %799 = vmatprep.subr.bf16.mxu0 0
    %800 = vmatpush1.bf16.msra.mxu0 %v605
    %801 = vmatprep.subr.bf16.mxu0 0
    %802 = vmatpush2.bf16.msra.mxu0 0
    %803 = vmatprep.subr.bf16.mxu0 0
    %804 = vmatpush2.bf16.msra.mxu0 0
    %805 = vmatprep.subr.bf16.mxu0 0
    %806 = vmatpush2.bf16.msra.mxu0 0
    %807 = vmatprep.subr.bf16.mxu0 0
    %808 = vmatpush2.bf16.msra.mxu0 0
    %809 = vmatprep.subr.bf16.mxu0 0
    %810 = vmatpush2.bf16.msra.mxu0 0
    %811 = vmatprep.subr.bf16.mxu0 0
    %812 = vmatpush2.bf16.msra.mxu0 0
    %813 = vmatprep.subr.bf16.mxu0 0
    %814 = vmatpush2.bf16.msra.mxu0 0
    %815 = vmatprep.subr.bf16.mxu0 0
    %816 = vmatpush2.bf16.msra.mxu0 0
    %817 = vmatprep.mubr.bf16.mxu0 0
    %818 = vmatmul.mubr.bf16.gmra.mxu0 %v781
    %v819 = vpop.f32.mrf.mxu0
    %v820 = vadd.f32 %v771, %v819
    %v821 = vpop.f32.mrf.mxu0
    %v822 = vpop.f32.mrf.mxu0
    %v823 = vadd.f32 %v771, %v822
    %v824 = vpop.f32.mrf.mxu0
    %825 = vmatprep.mubr.bf16.mxu0 0
    %826 = vmatmul.mubr.bf16.gmra.mxu0 %v782
    %v827 = vpop.f32.mrf.mxu0
    %v828 = vadd.f32 %v771, %v827
    %v829 = vpop.f32.mrf.mxu0
    %v830 = vpop.f32.mrf.mxu0
    %v831 = vadd.f32 %v771, %v830
    %v832 = vpop.f32.mrf.mxu0
    %833 = vdwg.mxu0
    %v834 = vpack.c.bf16 %v823, %v820
    %v835 = vpack.c.bf16 %v831, %v828
    %v838 = vunpack.c.l.b16 %v834
    %v839 = vunpack.c.h.b16 %v834
    %v840 = vunpack.c.l.b16 %v835
    %v841 = vunpack.c.h.b16 %v835
    %v842 = vpack.c.b16 %v838, %v838
    %v843 = vpack.c.b16 %v839, %v839
    %v844 = vpack.c.b16 %v840, %v840
    %v845 = vpack.c.b16 %v841, %v841
    %850 = vst [vmem:[#allocation3] sm:$0xf] %v842
    %851 = vst [vmem:[#allocation3 + $0x4] sm:$0xf] %v843
    %852 = vst [vmem:[#allocation3 + $0x8] sm:$0xf] %v844
    %853 = vst [vmem:[#allocation3 + $0xc] sm:$0xf] %v845
    // Predicated region
    $region64: #{gnn_model_forward.11} parent=1 // pred_check
      _
    $region65: #{gnn_model_forward.11} parent=1 // pred_check_branch
      %855 = sbr.rel (0) target = $region67
    $region66: #{gnn_model_forward.11} parent=1 // pred_region
      _
    $region67: #{gnn_model_forward.11} parent=1 // pred_fallthru
      _
    // Predicated region
    $region68: #{gnn_model_forward.11} parent=1 // pred_check
      _
    $region69: #{gnn_model_forward.11} parent=1 // pred_check_branch
      %857 = sbr.rel (0) target = $region71
    $region70: #{gnn_model_forward.11} parent=1 // pred_region
      _
    $region71: #{gnn_model_forward.11} parent=1 // pred_fallthru
      _
    // Predicated region
    $region72: #{gnn_model_forward.11} parent=1 // pred_check
      _
    $region73: #{gnn_model_forward.11} parent=1 // pred_check_branch
      %859 = sbr.rel (0) target = $region75
    $region74: #{gnn_model_forward.11} parent=1 // pred_region
      %s861 = ssub.s32 256, 256
      %862 = vsyncadd [#allocation4], %s861
      %s863 = sshll.u32 [#allocation3], 4
      %s864 = int_to_ptr.vmem [resolvable:$true] %s863
      %869 = dma.vmem_to_hbm [thread:$0]  %s864, 256, %s8, [#allocation4], 64, 64, 4
    $region75: #{gnn_model_forward.11} parent=1 // pred_fallthru
      _
    // Predicated region
    $region76: #{gnn_model_forward.11} parent=1 // pred_check
      _
    $region77: #{gnn_model_forward.11} parent=1 // pred_check_branch
      %871 = sbr.rel (0) target = $region79
    $region78: #{gnn_model_forward.11} parent=1 // pred_region
      _
    $region79: #{gnn_model_forward.11} parent=1 // pred_fallthru
      _
    // Predicated region
    $region80: #{gnn_model_forward.11} parent=1 // pred_check
      _
    $region81: #{gnn_model_forward.11} parent=1 // pred_check_branch
      %873 = sbr.rel (0) target = $region83
    $region82: #{gnn_model_forward.11} parent=1 // pred_region
      _
    $region83: #{gnn_model_forward.11} parent=1 // pred_fallthru
      _
    // Predicated region
    $region84: #{gnn_model_forward.11} parent=1 // pred_check
      _
    $region85: #{gnn_model_forward.11} parent=1 // pred_check_branch
      %875 = sbr.rel (0) target = $region87
    $region86: #{gnn_model_forward.11} parent=1 // pred_region
      %876 = dma.done [#allocation4], 256
    $region87: #{gnn_model_forward.11} parent=1 // pred_fallthru
      _
    %877 = vsyncpa [#allocation4], 1

// kernel: gnn_model_forward.12
$region0: #{gnn_model_forward.12}
  #allocation0 [shape = 'u32[]', space=smem, size = 0x4, offset = 0x4, fixed_abs, tag = 'smem constant byte address 0x4 - core index']
  #allocation1 [shape = 'u32[144,128]{1,0:T(1,128)}', space=vmem, size = 0x12000, scoped, tag = 'internal scratch']
  %s0 = inlined_call_operand.vmem [shape: bf16[128,128], index: 0, kind: input, shape index: {}]
  %s1 = inlined_call_operand.vmem [shape: bf16[128,32], index: 1, kind: input, shape index: {}]
  %s2 = inlined_call_operand.vmem [shape: bf16[128,128], index: 2, kind: input, shape index: {}]
  %s3 = inlined_call_operand.vmem [shape: bf16[32,128], index: 3, kind: input, shape index: {}]
  %s4 = inlined_call_operand.vmem [shape: f32[1,128], index: 4, kind: input, shape index: {}]
  %s5 = inlined_call_operand.vmem [shape: f32[1,128], index: 5, kind: input, shape index: {}]
  %s6 = inlined_call_operand.vmem [shape: bf16[128,768], index: 6, kind: input, shape index: {}, may-alias: {6,7}]
  %s7 = inlined_call_operand.vmem [shape: bf16[128,768], index: 7, kind: output, shape index: {}, may-alias: {6,7}]
  %s8 = sld [smem:[#allocation0]]
  $region68: #{gnn_model_forward.12} parent=0
    _
  %s10 = ssub.s32 1, %s8
  %s11 = scalar_select 0, %s10, %s8
  $region1: #{gnn_model_forward.12} parent=0
    #allocation2 [shape = 'u8[65536]{0}', space=vmem, size = 0x10000, scoped, tag = 'output window, operand 0, single buffered']
    // Predicated region
    $region2: #{gnn_model_forward.12} parent=1 // pred_check
      _
    $region3: #{gnn_model_forward.12} parent=1 // pred_check_branch
      %13 = sbr.rel (0) target = $region5
    $region4: #{gnn_model_forward.12} parent=1 // pred_region
      _
    $region5: #{gnn_model_forward.12} parent=1 // pred_fallthru
      _
    // Predicated region
    $region6: #{gnn_model_forward.12} parent=1 // pred_check
      _
    $region7: #{gnn_model_forward.12} parent=1 // pred_check_branch
      %15 = sbr.rel (0) target = $region9
    $region8: #{gnn_model_forward.12} parent=1 // pred_region
      _
    $region9: #{gnn_model_forward.12} parent=1 // pred_fallthru
      _
    // Predicated region
    $region10: #{gnn_model_forward.12} parent=1 // pred_check
      _
    $region11: #{gnn_model_forward.12} parent=1 // pred_check_branch
      %17 = sbr.rel (0) target = $region13
    $region12: #{gnn_model_forward.12} parent=1 // pred_region
      _
    $region13: #{gnn_model_forward.12} parent=1 // pred_fallthru
      _
    // Predicated region
    $region14: #{gnn_model_forward.12} parent=1 // pred_check
      _
    $region15: #{gnn_model_forward.12} parent=1 // pred_check_branch
      %19 = sbr.rel (0) target = $region17
    $region16: #{gnn_model_forward.12} parent=1 // pred_region
      _
    $region17: #{gnn_model_forward.12} parent=1 // pred_fallthru
      _
    // Predicated region
    $region18: #{gnn_model_forward.12} parent=1 // pred_check
      _
    $region19: #{gnn_model_forward.12} parent=1 // pred_check_branch
      %21 = sbr.rel (0) target = $region21
    $region20: #{gnn_model_forward.12} parent=1 // pred_region
      _
    $region21: #{gnn_model_forward.12} parent=1 // pred_fallthru
      _
    // Predicated region
    $region22: #{gnn_model_forward.12} parent=1 // pred_check
      _
    $region23: #{gnn_model_forward.12} parent=1 // pred_check_branch
      %23 = sbr.rel (0) target = $region25
    $region24: #{gnn_model_forward.12} parent=1 // pred_region
      _
    $region25: #{gnn_model_forward.12} parent=1 // pred_fallthru
      _
    %v25 = vld [vmem:[%s0] sm:$0xf]
    %v26 = vld [vmem:[%s0 + $0x4] sm:$0xf]
    %v27 = vld [vmem:[%s0 + $0x8] sm:$0xf]
    %v28 = vld [vmem:[%s0 + $0xc] sm:$0xf]
    %v29 = vld [vmem:[%s0 + $0x10] sm:$0xf]
    %v30 = vld [vmem:[%s0 + $0x14] sm:$0xf]
    %v31 = vld [vmem:[%s0 + $0x18] sm:$0xf]
    %v32 = vld [vmem:[%s0 + $0x1c] sm:$0xf]
    %v33 = vld [vmem:[%s0 + $0x20] sm:$0xf]
    %v34 = vld [vmem:[%s0 + $0x24] sm:$0xf]
    %v35 = vld [vmem:[%s0 + $0x28] sm:$0xf]
    %v36 = vld [vmem:[%s0 + $0x2c] sm:$0xf]
    %v37 = vld [vmem:[%s0 + $0x30] sm:$0xf]
    %v38 = vld [vmem:[%s0 + $0x34] sm:$0xf]
    %v39 = vld [vmem:[%s0 + $0x38] sm:$0xf]
    %v40 = vld [vmem:[%s0 + $0x3c] sm:$0xf]
    %v41 = vld [vmem:[%s2] sm:$0xf]
    %v42 = vld [vmem:[%s2 + $0x4] sm:$0xf]
    %v43 = vld [vmem:[%s2 + $0x8] sm:$0xf]
    %v44 = vld [vmem:[%s2 + $0xc] sm:$0xf]
    %v45 = vld [vmem:[%s2 + $0x10] sm:$0xf]
    %v46 = vld [vmem:[%s2 + $0x14] sm:$0xf]
    %v47 = vld [vmem:[%s2 + $0x18] sm:$0xf]
    %v48 = vld [vmem:[%s2 + $0x1c] sm:$0xf]
    %v49 = vld [vmem:[%s2 + $0x20] sm:$0xf]
    %v50 = vld [vmem:[%s2 + $0x24] sm:$0xf]
    %v51 = vld [vmem:[%s2 + $0x28] sm:$0xf]
    %v52 = vld [vmem:[%s2 + $0x2c] sm:$0xf]
    %v53 = vld [vmem:[%s2 + $0x30] sm:$0xf]
    %v54 = vld [vmem:[%s2 + $0x34] sm:$0xf]
    %v55 = vld [vmem:[%s2 + $0x38] sm:$0xf]
    %v56 = vld [vmem:[%s2 + $0x3c] sm:$0xf]
    %v57 = vld [vmem:[%s4] sm:$0x1]
    %v59 = vlaneseq
    %v60 = vshrl.u32 %v59, 7
    %v61 = vsub.s32 0, %v60
    %v62 = vrot.slane %v57, %v61
    %v80 = vunpack.c.l.b16 %v25
    %v81 = vunpack.c.l.b16 %v26
    %v82 = vunpack.c.l.b16 %v27
    %v83 = vunpack.c.l.b16 %v28
    %v84 = vunpack.c.l.b16 %v29
    %v85 = vunpack.c.l.b16 %v30
    %v86 = vunpack.c.l.b16 %v31
    %v87 = vunpack.c.l.b16 %v32
    %v88 = vunpack.c.l.b16 %v33
    %v89 = vunpack.c.l.b16 %v34
    %v90 = vunpack.c.l.b16 %v35
    %v91 = vunpack.c.l.b16 %v36
    %v92 = vunpack.c.l.b16 %v37
    %v93 = vunpack.c.l.b16 %v38
    %v94 = vunpack.c.l.b16 %v39
    %v95 = vunpack.c.l.b16 %v40
    %v96 = vpack.c.b16 %v81, %v80
    %v97 = vpack.c.b16 %v83, %v82
    %v98 = vpack.c.b16 %v85, %v84
    %v99 = vpack.c.b16 %v87, %v86
    %v100 = vpack.c.b16 %v89, %v88
    %v101 = vpack.c.b16 %v91, %v90
    %v102 = vpack.c.b16 %v93, %v92
    %v103 = vpack.c.b16 %v95, %v94
    %v128 = vunpack.c.l.b16 %v41
    %v129 = vunpack.c.l.b16 %v42
    %v130 = vunpack.c.l.b16 %v43
    %v131 = vunpack.c.l.b16 %v44
    %v132 = vunpack.c.l.b16 %v45
    %v133 = vunpack.c.l.b16 %v46
    %v134 = vunpack.c.l.b16 %v47
    %v135 = vunpack.c.l.b16 %v48
    %v136 = vunpack.c.l.b16 %v49
    %v137 = vunpack.c.l.b16 %v50
    %v138 = vunpack.c.l.b16 %v51
    %v139 = vunpack.c.l.b16 %v52
    %v140 = vunpack.c.l.b16 %v53
    %v141 = vunpack.c.l.b16 %v54
    %v142 = vunpack.c.l.b16 %v55
    %v143 = vunpack.c.l.b16 %v56
    %v144 = vpack.c.b16 %v129, %v128
    %v145 = vpack.c.b16 %v131, %v130
    %v146 = vpack.c.b16 %v133, %v132
    %v147 = vpack.c.b16 %v135, %v134
    %v148 = vpack.c.b16 %v137, %v136
    %v149 = vpack.c.b16 %v139, %v138
    %v150 = vpack.c.b16 %v141, %v140
    %v151 = vpack.c.b16 %v143, %v142
    %160 = vmatprep.subr.bf16.mxu0 0
    %161 = vmatpush1.bf16.msra.mxu0 %v151
    %162 = vmatprep.subr.bf16.mxu0 0
    %163 = vmatpush1.bf16.msra.mxu0 %v150
    %164 = vmatprep.subr.bf16.mxu0 0
    %165 = vmatpush1.bf16.msra.mxu0 %v149
    %166 = vmatprep.subr.bf16.mxu0 0
    %167 = vmatpush1.bf16.msra.mxu0 %v148
    %168 = vmatprep.subr.bf16.mxu0 0
    %169 = vmatpush1.bf16.msra.mxu0 %v147
    %170 = vmatprep.subr.bf16.mxu0 0
    %171 = vmatpush1.bf16.msra.mxu0 %v146
    %172 = vmatprep.subr.bf16.mxu0 0
    %173 = vmatpush1.bf16.msra.mxu0 %v145
    %174 = vmatprep.subr.bf16.mxu0 0
    %175 = vmatpush1.bf16.msra.mxu0 %v144
    %176 = vmatprep.subr.bf16.mxu0 0
    %177 = vmatpush2.bf16.msra.mxu0 0
    %178 = vmatprep.subr.bf16.mxu0 0
    %179 = vmatpush2.bf16.msra.mxu0 0
    %180 = vmatprep.subr.bf16.mxu0 0
    %181 = vmatpush2.bf16.msra.mxu0 0
    %182 = vmatprep.subr.bf16.mxu0 0
    %183 = vmatpush2.bf16.msra.mxu0 0
    %184 = vmatprep.subr.bf16.mxu0 0
    %185 = vmatpush2.bf16.msra.mxu0 0
    %186 = vmatprep.subr.bf16.mxu0 0
    %187 = vmatpush2.bf16.msra.mxu0 0
    %188 = vmatprep.subr.bf16.mxu0 0
    %189 = vmatpush2.bf16.msra.mxu0 0
    %190 = vmatprep.subr.bf16.mxu0 0
    %191 = vmatpush2.bf16.msra.mxu0 0
    %192 = vmatprep.mubr.bf16.mxu0 0
    %193 = vmatmul.mubr.bf16.gmra.mxu0 %v96
    %v194 = vpop.f32.mrf.mxu0
    %v195 = vadd.f32 %v62, %v194
    %v196 = vpop.f32.mrf.mxu0
    %v197 = vpop.f32.mrf.mxu0
    %v198 = vadd.f32 %v62, %v197
    %v199 = vpop.f32.mrf.mxu0
    %200 = vmatprep.mubr.bf16.mxu0 0
    %201 = vmatmul.mubr.bf16.gmra.mxu0 %v97
    %v202 = vpop.f32.mrf.mxu0
    %v203 = vadd.f32 %v62, %v202
    %v204 = vpop.f32.mrf.mxu0
    %v205 = vpop.f32.mrf.mxu0
    %v206 = vadd.f32 %v62, %v205
    %v207 = vpop.f32.mrf.mxu0
    %208 = vmatprep.mubr.bf16.mxu0 0
    %209 = vmatmul.mubr.bf16.gmra.mxu0 %v98
    %v210 = vpop.f32.mrf.mxu0
    %v211 = vadd.f32 %v62, %v210
    %v212 = vpop.f32.mrf.mxu0
    %v213 = vpop.f32.mrf.mxu0
    %v214 = vadd.f32 %v62, %v213
    %v215 = vpop.f32.mrf.mxu0
    %216 = vmatprep.mubr.bf16.mxu0 0
    %217 = vmatmul.mubr.bf16.gmra.mxu0 %v99
    %v218 = vpop.f32.mrf.mxu0
    %v219 = vadd.f32 %v62, %v218
    %v220 = vpop.f32.mrf.mxu0
    %v221 = vpop.f32.mrf.mxu0
    %v222 = vadd.f32 %v62, %v221
    %v223 = vpop.f32.mrf.mxu0
    %224 = vmatprep.mubr.bf16.mxu0 0
    %225 = vmatmul.mubr.bf16.gmra.mxu0 %v100
    %v226 = vpop.f32.mrf.mxu0
    %v227 = vadd.f32 %v62, %v226
    %v228 = vpop.f32.mrf.mxu0
    %v229 = vpop.f32.mrf.mxu0
    %v230 = vadd.f32 %v62, %v229
    %v231 = vpop.f32.mrf.mxu0
    %232 = vmatprep.mubr.bf16.mxu0 0
    %233 = vmatmul.mubr.bf16.gmra.mxu0 %v101
    %v234 = vpop.f32.mrf.mxu0
    %v235 = vadd.f32 %v62, %v234
    %v236 = vpop.f32.mrf.mxu0
    %v237 = vpop.f32.mrf.mxu0
    %v238 = vadd.f32 %v62, %v237
    %v239 = vpop.f32.mrf.mxu0
    %240 = vmatprep.mubr.bf16.mxu0 0
    %241 = vmatmul.mubr.bf16.gmra.mxu0 %v102
    %v242 = vpop.f32.mrf.mxu0
    %v243 = vadd.f32 %v62, %v242
    %v244 = vpop.f32.mrf.mxu0
    %v245 = vpop.f32.mrf.mxu0
    %v246 = vadd.f32 %v62, %v245
    %v247 = vpop.f32.mrf.mxu0
    %248 = vmatprep.mubr.bf16.mxu0 0
    %249 = vmatmul.mubr.bf16.gmra.mxu0 %v103
    %v250 = vpop.f32.mrf.mxu0
    %v251 = vadd.f32 %v62, %v250
    %v252 = vpop.f32.mrf.mxu0
    %v253 = vpop.f32.mrf.mxu0
    %v254 = vadd.f32 %v62, %v253
    %v255 = vpop.f32.mrf.mxu0
    %256 = vdwg.mxu0
    %v257 = vmax.f32 %v195, 0.0
    %v258 = vmax.f32 %v198, 0.0
    %v259 = vmax.f32 %v203, 0.0
    %v260 = vmax.f32 %v206, 0.0
    %v261 = vmax.f32 %v211, 0.0
    %v262 = vmax.f32 %v214, 0.0
    %v263 = vmax.f32 %v219, 0.0
    %v264 = vmax.f32 %v222, 0.0
    %v265 = vmax.f32 %v227, 0.0
    %v266 = vmax.f32 %v230, 0.0
    %v267 = vmax.f32 %v235, 0.0
    %v268 = vmax.f32 %v238, 0.0
    %v269 = vmax.f32 %v243, 0.0
    %v270 = vmax.f32 %v246, 0.0
    %v271 = vmax.f32 %v251, 0.0
    %v272 = vmax.f32 %v254, 0.0
    %v273 = vld [vmem:[%s1] sm:$0xf]
    %v274 = vld [vmem:[%s1 + $0x4] sm:$0xf]
    %v275 = vld [vmem:[%s1 + $0x8] sm:$0xf]
    %v276 = vld [vmem:[%s1 + $0xc] sm:$0xf]
    %v277 = vld [vmem:[%s1 + $0x10] sm:$0xf]
    %v278 = vld [vmem:[%s1 + $0x14] sm:$0xf]
    %v279 = vld [vmem:[%s1 + $0x18] sm:$0xf]
    %v280 = vld [vmem:[%s1 + $0x1c] sm:$0xf]
    %v281 = vld [vmem:[%s1 + $0x20] sm:$0xf]
    %v282 = vld [vmem:[%s1 + $0x24] sm:$0xf]
    %v283 = vld [vmem:[%s1 + $0x28] sm:$0xf]
    %v284 = vld [vmem:[%s1 + $0x2c] sm:$0xf]
    %v285 = vld [vmem:[%s1 + $0x30] sm:$0xf]
    %v286 = vld [vmem:[%s1 + $0x34] sm:$0xf]
    %v287 = vld [vmem:[%s1 + $0x38] sm:$0xf]
    %v288 = vld [vmem:[%s1 + $0x3c] sm:$0xf]
    %v289 = vld [vmem:[%s3] sm:$0xf]
    %v290 = vld [vmem:[%s3 + $0x4] sm:$0xf]
    %v291 = vld [vmem:[%s3 + $0x8] sm:$0xf]
    %v292 = vld [vmem:[%s3 + $0xc] sm:$0xf]
    %v293 = vld [vmem:[%s5] sm:$0x1]
    %v295 = vlaneseq
    %v296 = vshrl.u32 %v295, 7
    %v297 = vsub.s32 0, %v296
    %v298 = vrot.slane %v293, %v297
    %v316 = vunpack.c.l.b16 %v273
    %v317 = vunpack.c.l.b16 %v274
    %v318 = vunpack.c.l.b16 %v275
    %v319 = vunpack.c.l.b16 %v276
    %v320 = vunpack.c.l.b16 %v277
    %v321 = vunpack.c.l.b16 %v278
    %v322 = vunpack.c.l.b16 %v279
    %v323 = vunpack.c.l.b16 %v280
    %v324 = vunpack.c.l.b16 %v281
    %v325 = vunpack.c.l.b16 %v282
    %v326 = vunpack.c.l.b16 %v283
    %v327 = vunpack.c.l.b16 %v284
    %v328 = vunpack.c.l.b16 %v285
    %v329 = vunpack.c.l.b16 %v286
    %v330 = vunpack.c.l.b16 %v287
    %v331 = vunpack.c.l.b16 %v288
    %v332 = vpack.c.b16 %v317, %v316
    %v333 = vpack.c.b16 %v319, %v318
    %v334 = vpack.c.b16 %v321, %v320
    %v335 = vpack.c.b16 %v323, %v322
    %v336 = vpack.c.b16 %v325, %v324
    %v337 = vpack.c.b16 %v327, %v326
    %v338 = vpack.c.b16 %v329, %v328
    %v339 = vpack.c.b16 %v331, %v330
    %v344 = vunpack.c.l.b16 %v289
    %v345 = vunpack.c.l.b16 %v290
    %v346 = vunpack.c.l.b16 %v291
    %v347 = vunpack.c.l.b16 %v292
    %v348 = vpack.c.b16 %v345, %v344
    %v349 = vpack.c.b16 %v347, %v346
    %vm352 = vcmask 261120
    %v354 = vsel %vm352, %v332, 0
    %v357 = vsel %vm352, %v333, 0
    %v360 = vsel %vm352, %v334, 0
    %v363 = vsel %vm352, %v335, 0
    %v366 = vsel %vm352, %v336, 0
    %v369 = vsel %vm352, %v337, 0
    %v372 = vsel %vm352, %v338, 0
    %v375 = vsel %vm352, %v339, 0
    %377 = vmatprep.subr.bf16.mxu0 0
    %378 = vmatpush1.bf16.msra.mxu0 0
    %379 = vmatprep.subr.bf16.mxu0 0
    %380 = vmatpush1.bf16.msra.mxu0 0
    %381 = vmatprep.subr.bf16.mxu0 0
    %382 = vmatpush1.bf16.msra.mxu0 0
    %383 = vmatprep.subr.bf16.mxu0 0
    %384 = vmatpush1.bf16.msra.mxu0 0
    %385 = vmatprep.subr.bf16.mxu0 0
    %386 = vmatpush1.bf16.msra.mxu0 0
    %387 = vmatprep.subr.bf16.mxu0 0
    %388 = vmatpush1.bf16.msra.mxu0 0
    %389 = vmatprep.subr.bf16.mxu0 0
    %390 = vmatpush1.bf16.msra.mxu0 %v349
    %391 = vmatprep.subr.bf16.mxu0 0
    %392 = vmatpush1.bf16.msra.mxu0 %v348
    %393 = vmatprep.subr.bf16.mxu0 0
    %394 = vmatpush2.bf16.msra.mxu0 0
    %395 = vmatprep.subr.bf16.mxu0 0
    %396 = vmatpush2.bf16.msra.mxu0 0
    %397 = vmatprep.subr.bf16.mxu0 0
    %398 = vmatpush2.bf16.msra.mxu0 0
    %399 = vmatprep.subr.bf16.mxu0 0
    %400 = vmatpush2.bf16.msra.mxu0 0
    %401 = vmatprep.subr.bf16.mxu0 0
    %402 = vmatpush2.bf16.msra.mxu0 0
    %403 = vmatprep.subr.bf16.mxu0 0
    %404 = vmatpush2.bf16.msra.mxu0 0
    %405 = vmatprep.subr.bf16.mxu0 0
    %406 = vmatpush2.bf16.msra.mxu0 0
    %407 = vmatprep.subr.bf16.mxu0 0
    %408 = vmatpush2.bf16.msra.mxu0 0
    %409 = vmatprep.mubr.bf16.mxu0 0
    %410 = vmatmul.mubr.bf16.gmra.mxu0 %v354
    %v411 = vpop.f32.mrf.mxu0
    %v412 = vadd.f32 %v298, %v411
    %v413 = vpop.f32.mrf.mxu0
    %v414 = vpop.f32.mrf.mxu0
    %v415 = vadd.f32 %v298, %v414
    %v416 = vpop.f32.mrf.mxu0
    %417 = vmatprep.mubr.bf16.mxu0 0
    %418 = vmatmul.mubr.bf16.gmra.mxu0 %v357
    %v419 = vpop.f32.mrf.mxu0
    %v420 = vadd.f32 %v298, %v419
    %v421 = vpop.f32.mrf.mxu0
    %v422 = vpop.f32.mrf.mxu0
    %v423 = vadd.f32 %v298, %v422
    %v424 = vpop.f32.mrf.mxu0
    %425 = vmatprep.mubr.bf16.mxu0 0
    %426 = vmatmul.mubr.bf16.gmra.mxu0 %v360
    %v427 = vpop.f32.mrf.mxu0
    %v428 = vadd.f32 %v298, %v427
    %v429 = vpop.f32.mrf.mxu0
    %v430 = vpop.f32.mrf.mxu0
    %v431 = vadd.f32 %v298, %v430
    %v432 = vpop.f32.mrf.mxu0
    %433 = vmatprep.mubr.bf16.mxu0 0
    %434 = vmatmul.mubr.bf16.gmra.mxu0 %v363
    %v435 = vpop.f32.mrf.mxu0
    %v436 = vadd.f32 %v298, %v435
    %v437 = vpop.f32.mrf.mxu0
    %v438 = vpop.f32.mrf.mxu0
    %v439 = vadd.f32 %v298, %v438
    %v440 = vpop.f32.mrf.mxu0
    %441 = vmatprep.mubr.bf16.mxu0 0
    %442 = vmatmul.mubr.bf16.gmra.mxu0 %v366
    %v443 = vpop.f32.mrf.mxu0
    %v444 = vadd.f32 %v298, %v443
    %v445 = vpop.f32.mrf.mxu0
    %v446 = vpop.f32.mrf.mxu0
    %v447 = vadd.f32 %v298, %v446
    %v448 = vpop.f32.mrf.mxu0
    %449 = vmatprep.mubr.bf16.mxu0 0
    %450 = vmatmul.mubr.bf16.gmra.mxu0 %v369
    %v451 = vpop.f32.mrf.mxu0
    %v452 = vadd.f32 %v298, %v451
    %v453 = vpop.f32.mrf.mxu0
    %v454 = vpop.f32.mrf.mxu0
    %v455 = vadd.f32 %v298, %v454
    %v456 = vpop.f32.mrf.mxu0
    %457 = vmatprep.mubr.bf16.mxu0 0
    %458 = vmatmul.mubr.bf16.gmra.mxu0 %v372
    %v459 = vpop.f32.mrf.mxu0
    %v460 = vadd.f32 %v298, %v459
    %v461 = vpop.f32.mrf.mxu0
    %v462 = vpop.f32.mrf.mxu0
    %v463 = vadd.f32 %v298, %v462
    %v464 = vpop.f32.mrf.mxu0
    %465 = vmatprep.mubr.bf16.mxu0 0
    %466 = vmatmul.mubr.bf16.gmra.mxu0 %v375
    %v467 = vpop.f32.mrf.mxu0
    %v468 = vadd.f32 %v298, %v467
    %v469 = vpop.f32.mrf.mxu0
    %v470 = vpop.f32.mrf.mxu0
    %v471 = vadd.f32 %v298, %v470
    %v472 = vpop.f32.mrf.mxu0
    %473 = vdwg.mxu0
    %v474 = vpack.c.bf16 %v258, %v257
    %v475 = vpack.c.bf16 %v260, %v259
    %v476 = vpack.c.bf16 %v262, %v261
    %v477 = vpack.c.bf16 %v264, %v263
    %v478 = vpack.c.bf16 %v266, %v265
    %v479 = vpack.c.bf16 %v268, %v267
    %v480 = vpack.c.bf16 %v270, %v269
    %v481 = vpack.c.bf16 %v272, %v271
    %v490 = vunpack.c.l.b16 %v474
    %v491 = vunpack.c.h.b16 %v474
    %v492 = vunpack.c.l.b16 %v475
    %v493 = vunpack.c.h.b16 %v475
    %v494 = vunpack.c.l.b16 %v476
    %v495 = vunpack.c.h.b16 %v476
    %v496 = vunpack.c.l.b16 %v477
    %v497 = vunpack.c.h.b16 %v477
    %v498 = vunpack.c.l.b16 %v478
    %v499 = vunpack.c.h.b16 %v478
    %v500 = vunpack.c.l.b16 %v479
    %v501 = vunpack.c.h.b16 %v479
    %v502 = vunpack.c.l.b16 %v480
    %v503 = vunpack.c.h.b16 %v480
    %v504 = vunpack.c.l.b16 %v481
    %v505 = vunpack.c.h.b16 %v481
    %v506 = vpack.c.b16 %v490, %v490
    %v507 = vpack.c.b16 %v491, %v491
    %v508 = vpack.c.b16 %v492, %v492
    %v509 = vpack.c.b16 %v493, %v493
    %v510 = vpack.c.b16 %v494, %v494
    %v511 = vpack.c.b16 %v495, %v495
    %v512 = vpack.c.b16 %v496, %v496
    %v513 = vpack.c.b16 %v497, %v497
    %v514 = vpack.c.b16 %v498, %v498
    %v515 = vpack.c.b16 %v499, %v499
    %v516 = vpack.c.b16 %v500, %v500
    %v517 = vpack.c.b16 %v501, %v501
    %v518 = vpack.c.b16 %v502, %v502
    %v519 = vpack.c.b16 %v503, %v503
    %v520 = vpack.c.b16 %v504, %v504
    %v521 = vpack.c.b16 %v505, %v505
    %538 = vst [vmem:[#allocation2] sm:$0xf] %v506
    %539 = vst [vmem:[#allocation2 + $0x8] sm:$0xf] %v507
    %540 = vst [vmem:[#allocation2 + $0x10] sm:$0xf] %v508
    %541 = vst [vmem:[#allocation2 + $0x18] sm:$0xf] %v509
    %542 = vst [vmem:[#allocation2 + $0x20] sm:$0xf] %v510
    %543 = vst [vmem:[#allocation2 + $0x28] sm:$0xf] %v511
    %544 = vst [vmem:[#allocation2 + $0x30] sm:$0xf] %v512
    %545 = vst [vmem:[#allocation2 + $0x38] sm:$0xf] %v513
    %546 = vst [vmem:[#allocation2 + $0x40] sm:$0xf] %v514
    %547 = vst [vmem:[#allocation2 + $0x48] sm:$0xf] %v515
    %548 = vst [vmem:[#allocation2 + $0x50] sm:$0xf] %v516
    %549 = vst [vmem:[#allocation2 + $0x58] sm:$0xf] %v517
    %550 = vst [vmem:[#allocation2 + $0x60] sm:$0xf] %v518
    %551 = vst [vmem:[#allocation2 + $0x68] sm:$0xf] %v519
    %552 = vst [vmem:[#allocation2 + $0x70] sm:$0xf] %v520
    %553 = vst [vmem:[#allocation2 + $0x78] sm:$0xf] %v521
    %v554 = vpack.c.bf16 %v415, %v412
    %v555 = vpack.c.bf16 %v423, %v420
    %v556 = vpack.c.bf16 %v431, %v428
    %v557 = vpack.c.bf16 %v439, %v436
    %v558 = vpack.c.bf16 %v447, %v444
    %v559 = vpack.c.bf16 %v455, %v452
    %v560 = vpack.c.bf16 %v463, %v460
    %v561 = vpack.c.bf16 %v471, %v468
    %v570 = vunpack.c.l.b16 %v554
    %v571 = vunpack.c.h.b16 %v554
    %v572 = vunpack.c.l.b16 %v555
    %v573 = vunpack.c.h.b16 %v555
    %v574 = vunpack.c.l.b16 %v556
    %v575 = vunpack.c.h.b16 %v556
    %v576 = vunpack.c.l.b16 %v557
    %v577 = vunpack.c.h.b16 %v557
    %v578 = vunpack.c.l.b16 %v558
    %v579 = vunpack.c.h.b16 %v558
    %v580 = vunpack.c.l.b16 %v559
    %v581 = vunpack.c.h.b16 %v559
    %v582 = vunpack.c.l.b16 %v560
    %v583 = vunpack.c.h.b16 %v560
    %v584 = vunpack.c.l.b16 %v561
    %v585 = vunpack.c.h.b16 %v561
    %v586 = vpack.c.b16 %v570, %v570
    %v587 = vpack.c.b16 %v571, %v571
    %v588 = vpack.c.b16 %v572, %v572
    %v589 = vpack.c.b16 %v573, %v573
    %v590 = vpack.c.b16 %v574, %v574
    %v591 = vpack.c.b16 %v575, %v575
    %v592 = vpack.c.b16 %v576, %v576
    %v593 = vpack.c.b16 %v577, %v577
    %v594 = vpack.c.b16 %v578, %v578
    %v595 = vpack.c.b16 %v579, %v579
    %v596 = vpack.c.b16 %v580, %v580
    %v597 = vpack.c.b16 %v581, %v581
    %v598 = vpack.c.b16 %v582, %v582
    %v599 = vpack.c.b16 %v583, %v583
    %v600 = vpack.c.b16 %v584, %v584
    %v601 = vpack.c.b16 %v585, %v585
    %618 = vst [vmem:[#allocation2 + $0x4] sm:$0xf] %v586
    %619 = vst [vmem:[#allocation2 + $0xc] sm:$0xf] %v587
    %620 = vst [vmem:[#allocation2 + $0x14] sm:$0xf] %v588
    %621 = vst [vmem:[#allocation2 + $0x1c] sm:$0xf] %v589
    %622 = vst [vmem:[#allocation2 + $0x24] sm:$0xf] %v590
    %623 = vst [vmem:[#allocation2 + $0x2c] sm:$0xf] %v591
    %624 = vst [vmem:[#allocation2 + $0x34] sm:$0xf] %v592
    %625 = vst [vmem:[#allocation2 + $0x3c] sm:$0xf] %v593
    %626 = vst [vmem:[#allocation2 + $0x44] sm:$0xf] %v594
    %627 = vst [vmem:[#allocation2 + $0x4c] sm:$0xf] %v595
    %628 = vst [vmem:[#allocation2 + $0x54] sm:$0xf] %v596
    %629 = vst [vmem:[#allocation2 + $0x5c] sm:$0xf] %v597
    %630 = vst [vmem:[#allocation2 + $0x64] sm:$0xf] %v598
    %631 = vst [vmem:[#allocation2 + $0x6c] sm:$0xf] %v599
    %632 = vst [vmem:[#allocation2 + $0x74] sm:$0xf] %v600
    %633 = vst [vmem:[#allocation2 + $0x7c] sm:$0xf] %v601
    // Predicated region
    $region26: #{gnn_model_forward.12} parent=1 // pred_check
      _
    $region27: #{gnn_model_forward.12} parent=1 // pred_check_branch
      %635 = sbr.rel (0) target = $region29
    $region28: #{gnn_model_forward.12} parent=1 // pred_region
      %s636 = scalar_lea.vmem %s7, 16
      // Predicated region
      $region30: #{gnn_model_forward.12} parent=28 // pred_check
        _
      $region31: #{gnn_model_forward.12} parent=28 // pred_check_branch
        %638 = sbr.rel (0) target = $region33
      $region32: #{gnn_model_forward.12} parent=28 // pred_region
        // Predicated region
        $region34: #{gnn_model_forward.12} parent=32 // pred_check
          _
        $region35: #{gnn_model_forward.12} parent=32 // pred_check_branch
          %640 = sbr.rel (0) target = $region37
        $region36: #{gnn_model_forward.12} parent=32 // pred_region
          // Predicated region
          $region49: #{gnn_model_forward.12} parent=36 // pred_check
            _
          $region50: #{gnn_model_forward.12} parent=36 // pred_check_branch
            %686 = sbr.rel (0) target = $region52
          $region51: #{gnn_model_forward.12} parent=36 // pred_region
            loop: start=0, step=1, limit=1
            $region53: #{gnn_model_forward.12} parent=51 // loop_pre_header
              _
            $region54: #{gnn_model_forward.12} parent=51 // loop_header
              %s688 = sphi 0, %s692
              %p689 = scmp.ge.s32.totalorder %s688, 1
              %s693 = sphi [#allocation2], [#allocation2]
              %s694 = sphi %s636, %s636
            $region55: #{gnn_model_forward.12} parent=51 // loop_header_branch
              %691 = sbr.rel (%p689) target = $region59
            $region56: #{gnn_model_forward.12} parent=51 // loop_body
              %v695 = vld [vmem:[%s693] sm:$0xff]
              %696 = vst [vmem:[%s694] sm:$0xff] %v695
              %v697 = vld [vmem:[%s693 + $0x8] sm:$0xff]
              %698 = vst [vmem:[%s694 + $0x18] sm:$0xff] %v697
              %v699 = vld [vmem:[%s693 + $0x10] sm:$0xff]
              %700 = vst [vmem:[%s694 + $0x30] sm:$0xff] %v699
              %v701 = vld [vmem:[%s693 + $0x18] sm:$0xff]
              %702 = vst [vmem:[%s694 + $0x48] sm:$0xff] %v701
              %v703 = vld [vmem:[%s693 + $0x20] sm:$0xff]
              %704 = vst [vmem:[%s694 + $0x60] sm:$0xff] %v703
              %v705 = vld [vmem:[%s693 + $0x28] sm:$0xff]
              %706 = vst [vmem:[%s694 + $0x78] sm:$0xff] %v705
              %v707 = vld [vmem:[%s693 + $0x30] sm:$0xff]
              %708 = vst [vmem:[%s694 + $0x90] sm:$0xff] %v707
              %v709 = vld [vmem:[%s693 + $0x38] sm:$0xff]
              %710 = vst [vmem:[%s694 + $0xa8] sm:$0xff] %v709
              %v711 = vld [vmem:[%s693 + $0x40] sm:$0xff]
              %712 = vst [vmem:[%s694 + $0xc0] sm:$0xff] %v711
              %v713 = vld [vmem:[%s693 + $0x48] sm:$0xff]
              %714 = vst [vmem:[%s694 + $0xd8] sm:$0xff] %v713
              %v715 = vld [vmem:[%s693 + $0x50] sm:$0xff]
              %716 = vst [vmem:[%s694 + $0xf0] sm:$0xff] %v715
              %v717 = vld [vmem:[%s693 + $0x58] sm:$0xff]
              %718 = vst [vmem:[%s694 + $0x108] sm:$0xff] %v717
              %v719 = vld [vmem:[%s693 + $0x60] sm:$0xff]
              %720 = vst [vmem:[%s694 + $0x120] sm:$0xff] %v719
              %v721 = vld [vmem:[%s693 + $0x68] sm:$0xff]
              %722 = vst [vmem:[%s694 + $0x138] sm:$0xff] %v721
              %v723 = vld [vmem:[%s693 + $0x70] sm:$0xff]
              %724 = vst [vmem:[%s694 + $0x150] sm:$0xff] %v723
              %v725 = vld [vmem:[%s693 + $0x78] sm:$0xff]
              %726 = vst [vmem:[%s694 + $0x168] sm:$0xff] %v725
            $region57: #{gnn_model_forward.12} parent=51 // loop_footer
              %s692 = sadd.s32 1, %s688
            $region58: #{gnn_model_forward.12} parent=51 // loop_footer_branch
              %687 = sbr.rel target = $region54
            $region59: #{gnn_model_forward.12} parent=51 // loop_exit
              _
          $region52: #{gnn_model_forward.12} parent=36 // pred_fallthru
            _
          // Predicated region
          $region60: #{gnn_model_forward.12} parent=36 // pred_check
            _
          $region61: #{gnn_model_forward.12} parent=36 // pred_check_branch
            %728 = sbr.rel target = $region63
          $region62: #{gnn_model_forward.12} parent=36 // pred_region
            _
          $region63: #{gnn_model_forward.12} parent=36 // pred_fallthru
            _
        $region37: #{gnn_model_forward.12} parent=32 // pred_fallthru
          _
        // Predicated region
        $region38: #{gnn_model_forward.12} parent=32 // pred_check
          _
        $region39: #{gnn_model_forward.12} parent=32 // pred_check_branch
          %642 = sbr.rel target = $region41
        $region40: #{gnn_model_forward.12} parent=32 // pred_region
          %s644 = ssub.s32 256, 1
          loop: start=0, step=1, limit=1
          $region42: #{gnn_model_forward.12} parent=40 // loop_pre_header
            _
          $region43: #{gnn_model_forward.12} parent=40 // loop_header
            %s646 = sphi 0, %s650
            %p647 = scmp.ge.s32.totalorder %s646, 1
            %s651 = sphi [#allocation2], [#allocation2]
            %s652 = sphi %s636, %s636
          $region44: #{gnn_model_forward.12} parent=40 // loop_header_branch
            %649 = sbr.rel (%p647) target = $region48
          $region45: #{gnn_model_forward.12} parent=40 // loop_body
            %v653 = vld [vmem:[%s651] sm:%s644]
            %654 = vst [vmem:[%s652] sm:%s644] %v653
            %v655 = vld [vmem:[%s651 + $0x8] sm:%s644]
            %656 = vst [vmem:[%s652 + $0x18] sm:%s644] %v655
            %v657 = vld [vmem:[%s651 + $0x10] sm:%s644]
            %658 = vst [vmem:[%s652 + $0x30] sm:%s644] %v657
            %v659 = vld [vmem:[%s651 + $0x18] sm:%s644]
            %660 = vst [vmem:[%s652 + $0x48] sm:%s644] %v659
            %v661 = vld [vmem:[%s651 + $0x20] sm:%s644]
            %662 = vst [vmem:[%s652 + $0x60] sm:%s644] %v661
            %v663 = vld [vmem:[%s651 + $0x28] sm:%s644]
            %664 = vst [vmem:[%s652 + $0x78] sm:%s644] %v663
            %v665 = vld [vmem:[%s651 + $0x30] sm:%s644]
            %666 = vst [vmem:[%s652 + $0x90] sm:%s644] %v665
            %v667 = vld [vmem:[%s651 + $0x38] sm:%s644]
            %668 = vst [vmem:[%s652 + $0xa8] sm:%s644] %v667
            %v669 = vld [vmem:[%s651 + $0x40] sm:%s644]
            %670 = vst [vmem:[%s652 + $0xc0] sm:%s644] %v669
            %v671 = vld [vmem:[%s651 + $0x48] sm:%s644]
            %672 = vst [vmem:[%s652 + $0xd8] sm:%s644] %v671
            %v673 = vld [vmem:[%s651 + $0x50] sm:%s644]
            %674 = vst [vmem:[%s652 + $0xf0] sm:%s644] %v673
            %v675 = vld [vmem:[%s651 + $0x58] sm:%s644]
            %676 = vst [vmem:[%s652 + $0x108] sm:%s644] %v675
            %v677 = vld [vmem:[%s651 + $0x60] sm:%s644]
            %678 = vst [vmem:[%s652 + $0x120] sm:%s644] %v677
            %v679 = vld [vmem:[%s651 + $0x68] sm:%s644]
            %680 = vst [vmem:[%s652 + $0x138] sm:%s644] %v679
            %v681 = vld [vmem:[%s651 + $0x70] sm:%s644]
            %682 = vst [vmem:[%s652 + $0x150] sm:%s644] %v681
            %v683 = vld [vmem:[%s651 + $0x78] sm:%s644]
            %684 = vst [vmem:[%s652 + $0x168] sm:%s644] %v683
          $region46: #{gnn_model_forward.12} parent=40 // loop_footer
            %s650 = sadd.s32 1, %s646
          $region47: #{gnn_model_forward.12} parent=40 // loop_footer_branch
            %645 = sbr.rel target = $region43
          $region48: #{gnn_model_forward.12} parent=40 // loop_exit
            _
        $region41: #{gnn_model_forward.12} parent=32 // pred_fallthru
          _
      $region33: #{gnn_model_forward.12} parent=28 // pred_fallthru
        _
      %729 = vnop
    $region29: #{gnn_model_forward.12} parent=1 // pred_fallthru
      _
    // Predicated region
    $region64: #{gnn_model_forward.12} parent=1 // pred_check
      _
    $region65: #{gnn_model_forward.12} parent=1 // pred_check_branch
      %731 = sbr.rel (0) target = $region67
    $region66: #{gnn_model_forward.12} parent=1 // pred_region
      _
    $region67: #{gnn_model_forward.12} parent=1 // pred_fallthru
      _

// kernel: gnn_model_forward.13
$region0: #{gnn_model_forward.13}
  #allocation0 [shape = 'u32[]', space=smem, size = 0x4, offset = 0x4, fixed_abs, tag = 'smem constant byte address 0x4 - core index']
  #allocation1 [shape = 'u32[144,128]{1,0:T(1,128)}', space=vmem, size = 0x12000, scoped, tag = 'internal scratch']
  #allocation2 [shape = 'f32[1,1]{1,0:T(1,128)S(1)}', space=vmem, size = 0x200, scoped, tag = 'scoped memory for gnn_model_forward.13']
  %s0 = inlined_call_operand.vmem [shape: bf16[64,768], index: 0, kind: input, shape index: {}]
  %s1 = inlined_call_operand.vmem [shape: bf16[64,768], index: 1, kind: input, shape index: {}]
  %s2 = inlined_call_operand.vmem [shape: bf16[768,256], index: 2, kind: input, shape index: {}]
  %s3 = inlined_call_operand.vmem [shape: f32[1,256], index: 3, kind: input, shape index: {}]
  %s4 = inlined_call_operand.vmem [shape: bf16[256,256], index: 4, kind: input, shape index: {}]
  %s5 = inlined_call_operand.vmem [shape: f32[1,256], index: 5, kind: input, shape index: {}]
  %s6 = inlined_call_operand.vmem [shape: bf16[768,256], index: 6, kind: input, shape index: {}]
  %s7 = inlined_call_operand.vmem [shape: f32[1,256], index: 7, kind: input, shape index: {}]
  %s8 = inlined_call_operand.vmem [shape: bf16[256,256], index: 8, kind: input, shape index: {}]
  %s9 = inlined_call_operand.vmem [shape: f32[1,256], index: 9, kind: input, shape index: {}]
  %s10 = inlined_call_operand.vmem [shape: f32[1,256], index: 10, kind: input, shape index: {}]
  %s11 = inlined_call_operand.<no memory space> [shape: f32[1,1], index: 11, kind: input, shape index: {}]
  %s12 = inlined_call_operand.vmem [shape: f32[64,1], index: 12, kind: output, shape index: {}]
  %s13 = sld [smem:[#allocation0]]
  $region58: #{gnn_model_forward.13} parent=0
    _
  %s15 = ssub.s32 1, %s13
  %s16 = scalar_select 0, %s15, %s13
  %v17 = vstv %s11
  %18 = vst [vmem:[#allocation2] sm:$0x1] %v17
  // Predicated region
  $region2: #{gnn_model_forward.13} parent=0 // pred_check
    _
  $region3: #{gnn_model_forward.13} parent=0 // pred_check_branch
    %20 = sbr.rel (0) target = $region5
  $region4: #{gnn_model_forward.13} parent=0 // pred_region
    _
  $region5: #{gnn_model_forward.13} parent=0 // pred_fallthru
    _
  // Predicated region
  $region6: #{gnn_model_forward.13} parent=0 // pred_check
    _
  $region7: #{gnn_model_forward.13} parent=0 // pred_check_branch
    %22 = sbr.rel (0) target = $region9
  $region8: #{gnn_model_forward.13} parent=0 // pred_region
    _
  $region9: #{gnn_model_forward.13} parent=0 // pred_fallthru
    _
  // Predicated region
  $region10: #{gnn_model_forward.13} parent=0 // pred_check
    _
  $region11: #{gnn_model_forward.13} parent=0 // pred_check_branch
    %24 = sbr.rel (0) target = $region13
  $region12: #{gnn_model_forward.13} parent=0 // pred_region
    _
  $region13: #{gnn_model_forward.13} parent=0 // pred_fallthru
    _
  // Predicated region
  $region14: #{gnn_model_forward.13} parent=0 // pred_check
    _
  $region15: #{gnn_model_forward.13} parent=0 // pred_check_branch
    %26 = sbr.rel (0) target = $region17
  $region16: #{gnn_model_forward.13} parent=0 // pred_region
    _
  $region17: #{gnn_model_forward.13} parent=0 // pred_fallthru
    _
  // Predicated region
  $region18: #{gnn_model_forward.13} parent=0 // pred_check
    _
  $region19: #{gnn_model_forward.13} parent=0 // pred_check_branch
    %28 = sbr.rel (0) target = $region21
  $region20: #{gnn_model_forward.13} parent=0 // pred_region
    _
  $region21: #{gnn_model_forward.13} parent=0 // pred_fallthru
    _
  // Predicated region
  $region22: #{gnn_model_forward.13} parent=0 // pred_check
    _
  $region23: #{gnn_model_forward.13} parent=0 // pred_check_branch
    %30 = sbr.rel (0) target = $region25
  $region24: #{gnn_model_forward.13} parent=0 // pred_region
    _
  $region25: #{gnn_model_forward.13} parent=0 // pred_fallthru
    _
  // Predicated region
  $region26: #{gnn_model_forward.13} parent=0 // pred_check
    _
  $region27: #{gnn_model_forward.13} parent=0 // pred_check_branch
    %32 = sbr.rel (0) target = $region29
  $region28: #{gnn_model_forward.13} parent=0 // pred_region
    _
  $region29: #{gnn_model_forward.13} parent=0 // pred_fallthru
    _
  // Predicated region
  $region30: #{gnn_model_forward.13} parent=0 // pred_check
    _
  $region31: #{gnn_model_forward.13} parent=0 // pred_check_branch
    %34 = sbr.rel (0) target = $region33
  $region32: #{gnn_model_forward.13} parent=0 // pred_region
    _
  $region33: #{gnn_model_forward.13} parent=0 // pred_fallthru
    _
  // Predicated region
  $region34: #{gnn_model_forward.13} parent=0 // pred_check
    _
  $region35: #{gnn_model_forward.13} parent=0 // pred_check_branch
    %36 = sbr.rel (0) target = $region37
  $region36: #{gnn_model_forward.13} parent=0 // pred_region
    _
  $region37: #{gnn_model_forward.13} parent=0 // pred_fallthru
    _
  // Predicated region
  $region38: #{gnn_model_forward.13} parent=0 // pred_check
    _
  $region39: #{gnn_model_forward.13} parent=0 // pred_check_branch
    %38 = sbr.rel (0) target = $region41
  $region40: #{gnn_model_forward.13} parent=0 // pred_region
    _
  $region41: #{gnn_model_forward.13} parent=0 // pred_fallthru
    _
  // Predicated region
  $region42: #{gnn_model_forward.13} parent=0 // pred_check
    _
  $region43: #{gnn_model_forward.13} parent=0 // pred_check_branch
    %40 = sbr.rel (0) target = $region45
  $region44: #{gnn_model_forward.13} parent=0 // pred_region
    _
  $region45: #{gnn_model_forward.13} parent=0 // pred_fallthru
    _
  // Predicated region
  $region46: #{gnn_model_forward.13} parent=0 // pred_check
    _
  $region47: #{gnn_model_forward.13} parent=0 // pred_check_branch
    %42 = sbr.rel (0) target = $region49
  $region48: #{gnn_model_forward.13} parent=0 // pred_region
    _
  $region49: #{gnn_model_forward.13} parent=0 // pred_fallthru
    _
  %v43 = vld [vmem:[%s0] sm:$0xff]
  %v44 = vld [vmem:[%s0 + $0x8] sm:$0xff]
  %v45 = vld [vmem:[%s0 + $0x10] sm:$0xff]
  %v46 = vld [vmem:[%s0 + $0x18] sm:$0xff]
  %v47 = vld [vmem:[%s0 + $0x20] sm:$0xff]
  %v48 = vld [vmem:[%s0 + $0x28] sm:$0xff]
  %v49 = vld [vmem:[%s0 + $0x30] sm:$0xff]
  %v50 = vld [vmem:[%s0 + $0x38] sm:$0xff]
  %v51 = vld [vmem:[%s0 + $0x40] sm:$0xff]
  %v52 = vld [vmem:[%s0 + $0x48] sm:$0xff]
  %v53 = vld [vmem:[%s0 + $0x50] sm:$0xff]
  %v54 = vld [vmem:[%s0 + $0x58] sm:$0xff]
  %v55 = vld [vmem:[%s0 + $0x60] sm:$0xff]
  %v56 = vld [vmem:[%s0 + $0x68] sm:$0xff]
  %v57 = vld [vmem:[%s0 + $0x70] sm:$0xff]
  %v58 = vld [vmem:[%s0 + $0x78] sm:$0xff]
  %v59 = vld [vmem:[%s0 + $0x80] sm:$0xff]
  %v60 = vld [vmem:[%s0 + $0x88] sm:$0xff]
  %v61 = vld [vmem:[%s0 + $0x90] sm:$0xff]
  %v62 = vld [vmem:[%s0 + $0x98] sm:$0xff]
  %v63 = vld [vmem:[%s0 + $0xa0] sm:$0xff]
  %v64 = vld [vmem:[%s0 + $0xa8] sm:$0xff]
  %v65 = vld [vmem:[%s0 + $0xb0] sm:$0xff]
  %v66 = vld [vmem:[%s0 + $0xb8] sm:$0xff]
  %v67 = vld [vmem:[%s2] sm:$0xff]
  %v68 = vld [vmem:[%s2 + $0x8] sm:$0xff]
  %v69 = vld [vmem:[%s2 + $0x10] sm:$0xff]
  %v70 = vld [vmem:[%s2 + $0x18] sm:$0xff]
  %v71 = vld [vmem:[%s2 + $0x20] sm:$0xff]
  %v72 = vld [vmem:[%s2 + $0x28] sm:$0xff]
  %v73 = vld [vmem:[%s2 + $0x30] sm:$0xff]
  %v74 = vld [vmem:[%s2 + $0x38] sm:$0xff]
  %v75 = vld [vmem:[%s2 + $0x40] sm:$0xff]
  %v76 = vld [vmem:[%s2 + $0x48] sm:$0xff]
  %v77 = vld [vmem:[%s2 + $0x50] sm:$0xff]
  %v78 = vld [vmem:[%s2 + $0x58] sm:$0xff]
  %v79 = vld [vmem:[%s2 + $0x60] sm:$0xff]
  %v80 = vld [vmem:[%s2 + $0x68] sm:$0xff]
  %v81 = vld [vmem:[%s2 + $0x70] sm:$0xff]
  %v82 = vld [vmem:[%s2 + $0x78] sm:$0xff]
  %v83 = vld [vmem:[%s2 + $0x80] sm:$0xff]
  %v84 = vld [vmem:[%s2 + $0x88] sm:$0xff]
  %v85 = vld [vmem:[%s2 + $0x90] sm:$0xff]
  %v86 = vld [vmem:[%s2 + $0x98] sm:$0xff]
  %v87 = vld [vmem:[%s2 + $0xa0] sm:$0xff]
  %v88 = vld [vmem:[%s2 + $0xa8] sm:$0xff]
  %v89 = vld [vmem:[%s2 + $0xb0] sm:$0xff]
  %v90 = vld [vmem:[%s2 + $0xb8] sm:$0xff]
  %v91 = vld [vmem:[%s2 + $0xc0] sm:$0xff]
  %v92 = vld [vmem:[%s2 + $0xc8] sm:$0xff]
  %v93 = vld [vmem:[%s2 + $0xd0] sm:$0xff]
  %v94 = vld [vmem:[%s2 + $0xd8] sm:$0xff]
  %v95 = vld [vmem:[%s2 + $0xe0] sm:$0xff]
  %v96 = vld [vmem:[%s2 + $0xe8] sm:$0xff]
  %v97 = vld [vmem:[%s2 + $0xf0] sm:$0xff]
  %v98 = vld [vmem:[%s2 + $0xf8] sm:$0xff]
  %v99 = vld [vmem:[%s2 + $0x100] sm:$0xff]
  %v100 = vld [vmem:[%s2 + $0x108] sm:$0xff]
  %v101 = vld [vmem:[%s2 + $0x110] sm:$0xff]
  %v102 = vld [vmem:[%s2 + $0x118] sm:$0xff]
  %v103 = vld [vmem:[%s2 + $0x120] sm:$0xff]
  %v104 = vld [vmem:[%s2 + $0x128] sm:$0xff]
  %v105 = vld [vmem:[%s2 + $0x130] sm:$0xff]
  %v106 = vld [vmem:[%s2 + $0x138] sm:$0xff]
  %v107 = vld [vmem:[%s2 + $0x140] sm:$0xff]
  %v108 = vld [vmem:[%s2 + $0x148] sm:$0xff]
  %v109 = vld [vmem:[%s2 + $0x150] sm:$0xff]
  %v110 = vld [vmem:[%s2 + $0x158] sm:$0xff]
  %v111 = vld [vmem:[%s2 + $0x160] sm:$0xff]
  %v112 = vld [vmem:[%s2 + $0x168] sm:$0xff]
  %v113 = vld [vmem:[%s2 + $0x170] sm:$0xff]
  %v114 = vld [vmem:[%s2 + $0x178] sm:$0xff]
  %v115 = vld [vmem:[%s2 + $0x180] sm:$0xff]
  %v116 = vld [vmem:[%s2 + $0x188] sm:$0xff]
  %v117 = vld [vmem:[%s2 + $0x190] sm:$0xff]
  %v118 = vld [vmem:[%s2 + $0x198] sm:$0xff]
  %v119 = vld [vmem:[%s2 + $0x1a0] sm:$0xff]
  %v120 = vld [vmem:[%s2 + $0x1a8] sm:$0xff]
  %v121 = vld [vmem:[%s2 + $0x1b0] sm:$0xff]
  %v122 = vld [vmem:[%s2 + $0x1b8] sm:$0xff]
  %v123 = vld [vmem:[%s2 + $0x1c0] sm:$0xff]
  %v124 = vld [vmem:[%s2 + $0x1c8] sm:$0xff]
  %v125 = vld [vmem:[%s2 + $0x1d0] sm:$0xff]
  %v126 = vld [vmem:[%s2 + $0x1d8] sm:$0xff]
  %v127 = vld [vmem:[%s2 + $0x1e0] sm:$0xff]
  %v128 = vld [vmem:[%s2 + $0x1e8] sm:$0xff]
  %v129 = vld [vmem:[%s2 + $0x1f0] sm:$0xff]
  %v130 = vld [vmem:[%s2 + $0x1f8] sm:$0xff]
  %v131 = vld [vmem:[%s2 + $0x200] sm:$0xff]
  %v132 = vld [vmem:[%s2 + $0x208] sm:$0xff]
  %v133 = vld [vmem:[%s2 + $0x210] sm:$0xff]
  %v134 = vld [vmem:[%s2 + $0x218] sm:$0xff]
  %v135 = vld [vmem:[%s2 + $0x220] sm:$0xff]
  %v136 = vld [vmem:[%s2 + $0x228] sm:$0xff]
  %v137 = vld [vmem:[%s2 + $0x230] sm:$0xff]
  %v138 = vld [vmem:[%s2 + $0x238] sm:$0xff]
  %v139 = vld [vmem:[%s2 + $0x240] sm:$0xff]
  %v140 = vld [vmem:[%s2 + $0x248] sm:$0xff]
  %v141 = vld [vmem:[%s2 + $0x250] sm:$0xff]
  %v142 = vld [vmem:[%s2 + $0x258] sm:$0xff]
  %v143 = vld [vmem:[%s2 + $0x260] sm:$0xff]
  %v144 = vld [vmem:[%s2 + $0x268] sm:$0xff]
  %v145 = vld [vmem:[%s2 + $0x270] sm:$0xff]
  %v146 = vld [vmem:[%s2 + $0x278] sm:$0xff]
  %v147 = vld [vmem:[%s2 + $0x280] sm:$0xff]
  %v148 = vld [vmem:[%s2 + $0x288] sm:$0xff]
  %v149 = vld [vmem:[%s2 + $0x290] sm:$0xff]
  %v150 = vld [vmem:[%s2 + $0x298] sm:$0xff]
  %v151 = vld [vmem:[%s2 + $0x2a0] sm:$0xff]
  %v152 = vld [vmem:[%s2 + $0x2a8] sm:$0xff]
  %v153 = vld [vmem:[%s2 + $0x2b0] sm:$0xff]
  %v154 = vld [vmem:[%s2 + $0x2b8] sm:$0xff]
  %v155 = vld [vmem:[%s2 + $0x2c0] sm:$0xff]
  %v156 = vld [vmem:[%s2 + $0x2c8] sm:$0xff]
  %v157 = vld [vmem:[%s2 + $0x2d0] sm:$0xff]
  %v158 = vld [vmem:[%s2 + $0x2d8] sm:$0xff]
  %v159 = vld [vmem:[%s2 + $0x2e0] sm:$0xff]
  %v160 = vld [vmem:[%s2 + $0x2e8] sm:$0xff]
  %v161 = vld [vmem:[%s2 + $0x2f0] sm:$0xff]
  %v162 = vld [vmem:[%s2 + $0x2f8] sm:$0xff]
  %v163 = vld [vmem:[%s3] sm:$0x3]
  %v165 = vlaneseq
  %v166 = vshrl.u32 %v165, 7
  %v167 = vsub.s32 0, %v166
  %v168 = vrot.slane %v163, %v167
  %v169 = vlaneseq
  %v170 = vshrl.u32 %v169, 7
  %v171 = vsub.s32 1, %v170
  %v172 = vrot.slane %v163, %v171
  %v199 = vunpack.c.l.b16 %v43
  %v200 = vunpack.c.h.b16 %v43
  %v201 = vunpack.c.l.b16 %v44
  %v202 = vunpack.c.h.b16 %v44
  %v203 = vunpack.c.l.b16 %v45
  %v204 = vunpack.c.h.b16 %v45
  %v205 = vunpack.c.l.b16 %v46
  %v206 = vunpack.c.h.b16 %v46
  %v207 = vunpack.c.l.b16 %v47
  %v208 = vunpack.c.h.b16 %v47
  %v209 = vunpack.c.l.b16 %v48
  %v210 = vunpack.c.h.b16 %v48
  %v211 = vunpack.c.l.b16 %v49
  %v212 = vunpack.c.h.b16 %v49
  %v213 = vunpack.c.l.b16 %v50
  %v214 = vunpack.c.h.b16 %v50
  %v215 = vunpack.c.l.b16 %v51
  %v216 = vunpack.c.h.b16 %v51
  %v217 = vunpack.c.l.b16 %v52
  %v218 = vunpack.c.h.b16 %v52
  %v219 = vunpack.c.l.b16 %v53
  %v220 = vunpack.c.h.b16 %v53
  %v221 = vunpack.c.l.b16 %v54
  %v222 = vunpack.c.h.b16 %v54
  %v223 = vunpack.c.l.b16 %v55
  %v224 = vunpack.c.h.b16 %v55
  %v225 = vunpack.c.l.b16 %v56
  %v226 = vunpack.c.h.b16 %v56
  %v227 = vunpack.c.l.b16 %v57
  %v228 = vunpack.c.h.b16 %v57
  %v229 = vunpack.c.l.b16 %v58
  %v230 = vunpack.c.h.b16 %v58
  %v231 = vunpack.c.l.b16 %v59
  %v232 = vunpack.c.h.b16 %v59
  %v233 = vunpack.c.l.b16 %v60
  %v234 = vunpack.c.h.b16 %v60
  %v235 = vunpack.c.l.b16 %v61
  %v236 = vunpack.c.h.b16 %v61
  %v237 = vunpack.c.l.b16 %v62
  %v238 = vunpack.c.h.b16 %v62
  %v239 = vunpack.c.l.b16 %v63
  %v240 = vunpack.c.h.b16 %v63
  %v241 = vunpack.c.l.b16 %v64
  %v242 = vunpack.c.h.b16 %v64
  %v243 = vunpack.c.l.b16 %v65
  %v244 = vunpack.c.h.b16 %v65
  %v245 = vunpack.c.l.b16 %v66
  %v246 = vunpack.c.h.b16 %v66
  %v247 = vpack.c.b16 %v205, %v199
  %v248 = vpack.c.b16 %v206, %v200
  %v249 = vpack.c.b16 %v207, %v201
  %v250 = vpack.c.b16 %v208, %v202
  %v251 = vpack.c.b16 %v209, %v203
  %v252 = vpack.c.b16 %v210, %v204
  %v253 = vpack.c.b16 %v217, %v211
  %v254 = vpack.c.b16 %v218, %v212
  %v255 = vpack.c.b16 %v219, %v213
  %v256 = vpack.c.b16 %v220, %v214
  %v257 = vpack.c.b16 %v221, %v215
  %v258 = vpack.c.b16 %v222, %v216
  %v259 = vpack.c.b16 %v229, %v223
  %v260 = vpack.c.b16 %v230, %v224
  %v261 = vpack.c.b16 %v231, %v225
  %v262 = vpack.c.b16 %v232, %v226
  %v263 = vpack.c.b16 %v233, %v227
  %v264 = vpack.c.b16 %v234, %v228
  %v265 = vpack.c.b16 %v241, %v235
  %v266 = vpack.c.b16 %v242, %v236
  %v267 = vpack.c.b16 %v243, %v237
  %v268 = vpack.c.b16 %v244, %v238
  %v269 = vpack.c.b16 %v245, %v239
  %v270 = vpack.c.b16 %v246, %v240
  %v391 = vunpack.c.l.b16 %v67
  %v392 = vunpack.c.h.b16 %v67
  %v393 = vunpack.c.l.b16 %v68
  %v394 = vunpack.c.h.b16 %v68
  %v395 = vunpack.c.l.b16 %v69
  %v396 = vunpack.c.h.b16 %v69
  %v397 = vunpack.c.l.b16 %v70
  %v398 = vunpack.c.h.b16 %v70
  %v399 = vunpack.c.l.b16 %v71
  %v400 = vunpack.c.h.b16 %v71
  %v401 = vunpack.c.l.b16 %v72
  %v402 = vunpack.c.h.b16 %v72
  %v403 = vunpack.c.l.b16 %v73
  %v404 = vunpack.c.h.b16 %v73
  %v405 = vunpack.c.l.b16 %v74
  %v406 = vunpack.c.h.b16 %v74
  %v407 = vunpack.c.l.b16 %v75
  %v408 = vunpack.c.h.b16 %v75
  %v409 = vunpack.c.l.b16 %v76
  %v410 = vunpack.c.h.b16 %v76
  %v411 = vunpack.c.l.b16 %v77
  %v412 = vunpack.c.h.b16 %v77
  %v413 = vunpack.c.l.b16 %v78
  %v414 = vunpack.c.h.b16 %v78
  %v415 = vunpack.c.l.b16 %v79
  %v416 = vunpack.c.h.b16 %v79
  %v417 = vunpack.c.l.b16 %v80
  %v418 = vunpack.c.h.b16 %v80
  %v419 = vunpack.c.l.b16 %v81
  %v420 = vunpack.c.h.b16 %v81
  %v421 = vunpack.c.l.b16 %v82
  %v422 = vunpack.c.h.b16 %v82
  %v423 = vunpack.c.l.b16 %v83
  %v424 = vunpack.c.h.b16 %v83
  %v425 = vunpack.c.l.b16 %v84
  %v426 = vunpack.c.h.b16 %v84
  %v427 = vunpack.c.l.b16 %v85
  %v428 = vunpack.c.h.b16 %v85
  %v429 = vunpack.c.l.b16 %v86
  %v430 = vunpack.c.h.b16 %v86
  %v431 = vunpack.c.l.b16 %v87
  %v432 = vunpack.c.h.b16 %v87
  %v433 = vunpack.c.l.b16 %v88
  %v434 = vunpack.c.h.b16 %v88
  %v435 = vunpack.c.l.b16 %v89
  %v436 = vunpack.c.h.b16 %v89
  %v437 = vunpack.c.l.b16 %v90
  %v438 = vunpack.c.h.b16 %v90
  %v439 = vunpack.c.l.b16 %v91
  %v440 = vunpack.c.h.b16 %v91
  %v441 = vunpack.c.l.b16 %v92
  %v442 = vunpack.c.h.b16 %v92
  %v443 = vunpack.c.l.b16 %v93
  %v444 = vunpack.c.h.b16 %v93
  %v445 = vunpack.c.l.b16 %v94
  %v446 = vunpack.c.h.b16 %v94
  %v447 = vunpack.c.l.b16 %v95
  %v448 = vunpack.c.h.b16 %v95
  %v449 = vunpack.c.l.b16 %v96
  %v450 = vunpack.c.h.b16 %v96
  %v451 = vunpack.c.l.b16 %v97
  %v452 = vunpack.c.h.b16 %v97
  %v453 = vunpack.c.l.b16 %v98
  %v454 = vunpack.c.h.b16 %v98
  %v455 = vunpack.c.l.b16 %v99
  %v456 = vunpack.c.h.b16 %v99
  %v457 = vunpack.c.l.b16 %v100
  %v458 = vunpack.c.h.b16 %v100
  %v459 = vunpack.c.l.b16 %v101
  %v460 = vunpack.c.h.b16 %v101
  %v461 = vunpack.c.l.b16 %v102
  %v462 = vunpack.c.h.b16 %v102
  %v463 = vunpack.c.l.b16 %v103
  %v464 = vunpack.c.h.b16 %v103
  %v465 = vunpack.c.l.b16 %v104
  %v466 = vunpack.c.h.b16 %v104
  %v467 = vunpack.c.l.b16 %v105
  %v468 = vunpack.c.h.b16 %v105
  %v469 = vunpack.c.l.b16 %v106
  %v470 = vunpack.c.h.b16 %v106
  %v471 = vunpack.c.l.b16 %v107
  %v472 = vunpack.c.h.b16 %v107
  %v473 = vunpack.c.l.b16 %v108
  %v474 = vunpack.c.h.b16 %v108
  %v475 = vunpack.c.l.b16 %v109
  %v476 = vunpack.c.h.b16 %v109
  %v477 = vunpack.c.l.b16 %v110
  %v478 = vunpack.c.h.b16 %v110
  %v479 = vunpack.c.l.b16 %v111
  %v480 = vunpack.c.h.b16 %v111
  %v481 = vunpack.c.l.b16 %v112
  %v482 = vunpack.c.h.b16 %v112
  %v483 = vunpack.c.l.b16 %v113
  %v484 = vunpack.c.h.b16 %v113
  %v485 = vunpack.c.l.b16 %v114
  %v486 = vunpack.c.h.b16 %v114
  %v487 = vunpack.c.l.b16 %v115
  %v488 = vunpack.c.h.b16 %v115
  %v489 = vunpack.c.l.b16 %v116
  %v490 = vunpack.c.h.b16 %v116
  %v491 = vunpack.c.l.b16 %v117
  %v492 = vunpack.c.h.b16 %v117
  %v493 = vunpack.c.l.b16 %v118
  %v494 = vunpack.c.h.b16 %v118
  %v495 = vunpack.c.l.b16 %v119
  %v496 = vunpack.c.h.b16 %v119
  %v497 = vunpack.c.l.b16 %v120
  %v498 = vunpack.c.h.b16 %v120
  %v499 = vunpack.c.l.b16 %v121
  %v500 = vunpack.c.h.b16 %v121
  %v501 = vunpack.c.l.b16 %v122
  %v502 = vunpack.c.h.b16 %v122
  %v503 = vunpack.c.l.b16 %v123
  %v504 = vunpack.c.h.b16 %v123
  %v505 = vunpack.c.l.b16 %v124
  %v506 = vunpack.c.h.b16 %v124
  %v507 = vunpack.c.l.b16 %v125
  %v508 = vunpack.c.h.b16 %v125
  %v509 = vunpack.c.l.b16 %v126
  %v510 = vunpack.c.h.b16 %v126
  %v511 = vunpack.c.l.b16 %v127
  %v512 = vunpack.c.h.b16 %v127
  %v513 = vunpack.c.l.b16 %v128
  %v514 = vunpack.c.h.b16 %v128
  %v515 = vunpack.c.l.b16 %v129
  %v516 = vunpack.c.h.b16 %v129
  %v517 = vunpack.c.l.b16 %v130
  %v518 = vunpack.c.h.b16 %v130
  %v519 = vunpack.c.l.b16 %v131
  %v520 = vunpack.c.h.b16 %v131
  %v521 = vunpack.c.l.b16 %v132
  %v522 = vunpack.c.h.b16 %v132
  %v523 = vunpack.c.l.b16 %v133
  %v524 = vunpack.c.h.b16 %v133
  %v525 = vunpack.c.l.b16 %v134
  %v526 = vunpack.c.h.b16 %v134
  %v527 = vunpack.c.l.b16 %v135
  %v528 = vunpack.c.h.b16 %v135
  %v529 = vunpack.c.l.b16 %v136
  %v530 = vunpack.c.h.b16 %v136
  %v531 = vunpack.c.l.b16 %v137
  %v532 = vunpack.c.h.b16 %v137
  %v533 = vunpack.c.l.b16 %v138
  %v534 = vunpack.c.h.b16 %v138
  %v535 = vunpack.c.l.b16 %v139
  %v536 = vunpack.c.h.b16 %v139
  %v537 = vunpack.c.l.b16 %v140
  %v538 = vunpack.c.h.b16 %v140
  %v539 = vunpack.c.l.b16 %v141
  %v540 = vunpack.c.h.b16 %v141
  %v541 = vunpack.c.l.b16 %v142
  %v542 = vunpack.c.h.b16 %v142
  %v543 = vunpack.c.l.b16 %v143
  %v544 = vunpack.c.h.b16 %v143
  %v545 = vunpack.c.l.b16 %v144
  %v546 = vunpack.c.h.b16 %v144
  %v547 = vunpack.c.l.b16 %v145
  %v548 = vunpack.c.h.b16 %v145
  %v549 = vunpack.c.l.b16 %v146
  %v550 = vunpack.c.h.b16 %v146
  %v551 = vunpack.c.l.b16 %v147
  %v552 = vunpack.c.h.b16 %v147
  %v553 = vunpack.c.l.b16 %v148
  %v554 = vunpack.c.h.b16 %v148
  %v555 = vunpack.c.l.b16 %v149
  %v556 = vunpack.c.h.b16 %v149
  %v557 = vunpack.c.l.b16 %v150
  %v558 = vunpack.c.h.b16 %v150
  %v559 = vunpack.c.l.b16 %v151
  %v560 = vunpack.c.h.b16 %v151
  %v561 = vunpack.c.l.b16 %v152
  %v562 = vunpack.c.h.b16 %v152
  %v563 = vunpack.c.l.b16 %v153
  %v564 = vunpack.c.h.b16 %v153
  %v565 = vunpack.c.l.b16 %v154
  %v566 = vunpack.c.h.b16 %v154
  %v567 = vunpack.c.l.b16 %v155
  %v568 = vunpack.c.h.b16 %v155
  %v569 = vunpack.c.l.b16 %v156
  %v570 = vunpack.c.h.b16 %v156
  %v571 = vunpack.c.l.b16 %v157
  %v572 = vunpack.c.h.b16 %v157
  %v573 = vunpack.c.l.b16 %v158
  %v574 = vunpack.c.h.b16 %v158
  %v575 = vunpack.c.l.b16 %v159
  %v576 = vunpack.c.h.b16 %v159
  %v577 = vunpack.c.l.b16 %v160
  %v578 = vunpack.c.h.b16 %v160
  %v579 = vunpack.c.l.b16 %v161
  %v580 = vunpack.c.h.b16 %v161
  %v581 = vunpack.c.l.b16 %v162
  %v582 = vunpack.c.h.b16 %v162
  %v583 = vpack.c.b16 %v393, %v391
  %v584 = vpack.c.b16 %v394, %v392
  %v585 = vpack.c.b16 %v397, %v395
  %v586 = vpack.c.b16 %v398, %v396
  %v587 = vpack.c.b16 %v401, %v399
  %v588 = vpack.c.b16 %v402, %v400
  %v589 = vpack.c.b16 %v405, %v403
  %v590 = vpack.c.b16 %v406, %v404
  %v591 = vpack.c.b16 %v409, %v407
  %v592 = vpack.c.b16 %v410, %v408
  %v593 = vpack.c.b16 %v413, %v411
  %v594 = vpack.c.b16 %v414, %v412
  %v595 = vpack.c.b16 %v417, %v415
  %v596 = vpack.c.b16 %v418, %v416
  %v597 = vpack.c.b16 %v421, %v419
  %v598 = vpack.c.b16 %v422, %v420
  %v599 = vpack.c.b16 %v425, %v423
  %v600 = vpack.c.b16 %v426, %v424
  %v601 = vpack.c.b16 %v429, %v427
  %v602 = vpack.c.b16 %v430, %v428
  %v603 = vpack.c.b16 %v433, %v431
  %v604 = vpack.c.b16 %v434, %v432
  %v605 = vpack.c.b16 %v437, %v435
  %v606 = vpack.c.b16 %v438, %v436
  %v607 = vpack.c.b16 %v441, %v439
  %v608 = vpack.c.b16 %v442, %v440
  %v609 = vpack.c.b16 %v445, %v443
  %v610 = vpack.c.b16 %v446, %v444
  %v611 = vpack.c.b16 %v449, %v447
  %v612 = vpack.c.b16 %v450, %v448
  %v613 = vpack.c.b16 %v453, %v451
  %v614 = vpack.c.b16 %v454, %v452
  %v615 = vpack.c.b16 %v457, %v455
  %v616 = vpack.c.b16 %v458, %v456
  %v617 = vpack.c.b16 %v461, %v459
  %v618 = vpack.c.b16 %v462, %v460
  %v619 = vpack.c.b16 %v465, %v463
  %v620 = vpack.c.b16 %v466, %v464
  %v621 = vpack.c.b16 %v469, %v467
  %v622 = vpack.c.b16 %v470, %v468
  %v623 = vpack.c.b16 %v473, %v471
  %v624 = vpack.c.b16 %v474, %v472
  %v625 = vpack.c.b16 %v477, %v475
  %v626 = vpack.c.b16 %v478, %v476
  %v627 = vpack.c.b16 %v481, %v479
  %v628 = vpack.c.b16 %v482, %v480
  %v629 = vpack.c.b16 %v485, %v483
  %v630 = vpack.c.b16 %v486, %v484
  %v631 = vpack.c.b16 %v489, %v487
  %v632 = vpack.c.b16 %v490, %v488
  %v633 = vpack.c.b16 %v493, %v491
  %v634 = vpack.c.b16 %v494, %v492
  %v635 = vpack.c.b16 %v497, %v495
  %v636 = vpack.c.b16 %v498, %v496
  %v637 = vpack.c.b16 %v501, %v499
  %v638 = vpack.c.b16 %v502, %v500
  %v639 = vpack.c.b16 %v505, %v503
  %v640 = vpack.c.b16 %v506, %v504
  %v641 = vpack.c.b16 %v509, %v507
  %v642 = vpack.c.b16 %v510, %v508
  %v643 = vpack.c.b16 %v513, %v511
  %v644 = vpack.c.b16 %v514, %v512
  %v645 = vpack.c.b16 %v517, %v515
  %v646 = vpack.c.b16 %v518, %v516
  %v647 = vpack.c.b16 %v521, %v519
  %v648 = vpack.c.b16 %v522, %v520
  %v649 = vpack.c.b16 %v525, %v523
  %v650 = vpack.c.b16 %v526, %v524
  %v651 = vpack.c.b16 %v529, %v527
  %v652 = vpack.c.b16 %v530, %v528
  %v653 = vpack.c.b16 %v533, %v531
  %v654 = vpack.c.b16 %v534, %v532
  %v655 = vpack.c.b16 %v537, %v535
  %v656 = vpack.c.b16 %v538, %v536
  %v657 = vpack.c.b16 %v541, %v539
  %v658 = vpack.c.b16 %v542, %v540
  %v659 = vpack.c.b16 %v545, %v543
  %v660 = vpack.c.b16 %v546, %v544
  %v661 = vpack.c.b16 %v549, %v547
  %v662 = vpack.c.b16 %v550, %v548
  %v663 = vpack.c.b16 %v553, %v551
  %v664 = vpack.c.b16 %v554, %v552
  %v665 = vpack.c.b16 %v557, %v555
  %v666 = vpack.c.b16 %v558, %v556
  %v667 = vpack.c.b16 %v561, %v559
  %v668 = vpack.c.b16 %v562, %v560
  %v669 = vpack.c.b16 %v565, %v563
  %v670 = vpack.c.b16 %v566, %v564
  %v671 = vpack.c.b16 %v569, %v567
  %v672 = vpack.c.b16 %v570, %v568
  %v673 = vpack.c.b16 %v573, %v571
  %v674 = vpack.c.b16 %v574, %v572
  %v675 = vpack.c.b16 %v577, %v575
  %v676 = vpack.c.b16 %v578, %v576
  %v677 = vpack.c.b16 %v581, %v579
  %v678 = vpack.c.b16 %v582, %v580
  %775 = vmatprep.subr.bf16.mxu0 %v598
  %776 = vmatpush1.bf16.msra.mxu0 %v597
  %777 = vmatprep.subr.bf16.mxu0 %v596
  %778 = vmatpush1.bf16.msra.mxu0 %v595
  %779 = vmatprep.subr.bf16.mxu0 %v594
  %780 = vmatpush1.bf16.msra.mxu0 %v593
  %781 = vmatprep.subr.bf16.mxu0 %v592
  %782 = vmatpush1.bf16.msra.mxu0 %v591
  %783 = vmatprep.subr.bf16.mxu0 %v590
  %784 = vmatpush1.bf16.msra.mxu0 %v589
  %785 = vmatprep.subr.bf16.mxu0 %v588
  %786 = vmatpush1.bf16.msra.mxu0 %v587
  %787 = vmatprep.subr.bf16.mxu0 %v586
  %788 = vmatpush1.bf16.msra.mxu0 %v585
  %789 = vmatprep.subr.bf16.mxu0 %v584
  %790 = vmatpush1.bf16.msra.mxu0 %v583
  %791 = vmatprep.subr.bf16.mxu0 %v614
  %792 = vmatpush2.bf16.msra.mxu0 %v613
  %793 = vmatprep.subr.bf16.mxu0 %v612
  %794 = vmatpush2.bf16.msra.mxu0 %v611
  %795 = vmatprep.subr.bf16.mxu0 %v610
  %796 = vmatpush2.bf16.msra.mxu0 %v609
  %797 = vmatprep.subr.bf16.mxu0 %v608
  %798 = vmatpush2.bf16.msra.mxu0 %v607
  %799 = vmatprep.subr.bf16.mxu0 %v606
  %800 = vmatpush2.bf16.msra.mxu0 %v605
  %801 = vmatprep.subr.bf16.mxu0 %v604
  %802 = vmatpush2.bf16.msra.mxu0 %v603
  %803 = vmatprep.subr.bf16.mxu0 %v602
  %804 = vmatpush2.bf16.msra.mxu0 %v601
  %805 = vmatprep.subr.bf16.mxu0 %v600
  %806 = vmatpush2.bf16.msra.mxu0 %v599
  %807 = vmatprep.mubr.bf16.mxu0 %v248
  %808 = vmatmul.mubr.bf16.gmra.mxu0 %v247
  %v809 = vpop.f32.mrf.mxu0
  %v810 = vadd.f32 %v168, %v809
  %v811 = vpop.f32.mrf.mxu0
  %v812 = vadd.f32 %v172, %v811
  %v813 = vpop.f32.mrf.mxu0
  %v814 = vadd.f32 %v168, %v813
  %v815 = vpop.f32.mrf.mxu0
  %v816 = vadd.f32 %v172, %v815
  %817 = vmatprep.mubr.bf16.mxu0 %v254
  %818 = vmatmul.mubr.bf16.gmra.mxu0 %v253
  %v819 = vpop.f32.mrf.mxu0
  %v820 = vadd.f32 %v168, %v819
  %v821 = vpop.f32.mrf.mxu0
  %v822 = vadd.f32 %v172, %v821
  %v823 = vpop.f32.mrf.mxu0
  %v824 = vadd.f32 %v168, %v823
  %v825 = vpop.f32.mrf.mxu0
  %v826 = vadd.f32 %v172, %v825
  %827 = vmatprep.mubr.bf16.mxu0 %v260
  %828 = vmatmul.mubr.bf16.gmra.mxu0 %v259
  %v829 = vpop.f32.mrf.mxu0
  %v830 = vadd.f32 %v168, %v829
  %v831 = vpop.f32.mrf.mxu0
  %v832 = vadd.f32 %v172, %v831
  %v833 = vpop.f32.mrf.mxu0
  %v834 = vadd.f32 %v168, %v833
  %v835 = vpop.f32.mrf.mxu0
  %v836 = vadd.f32 %v172, %v835
  %837 = vmatprep.mubr.bf16.mxu0 %v266
  %838 = vmatmul.mubr.bf16.gmra.mxu0 %v265
  %v839 = vpop.f32.mrf.mxu0
  %v840 = vadd.f32 %v168, %v839
  %v841 = vpop.f32.mrf.mxu0
  %v842 = vadd.f32 %v172, %v841
  %v843 = vpop.f32.mrf.mxu0
  %v844 = vadd.f32 %v168, %v843
  %v845 = vpop.f32.mrf.mxu0
  %v846 = vadd.f32 %v172, %v845
  %847 = vdwg.mxu0
  %848 = vmatprep.subr.bf16.mxu0 %v630
  %849 = vmatpush1.bf16.msra.mxu0 %v629
  %850 = vmatprep.subr.bf16.mxu0 %v628
  %851 = vmatpush1.bf16.msra.mxu0 %v627
  %852 = vmatprep.subr.bf16.mxu0 %v626
  %853 = vmatpush1.bf16.msra.mxu0 %v625
  %854 = vmatprep.subr.bf16.mxu0 %v624
  %855 = vmatpush1.bf16.msra.mxu0 %v623
  %856 = vmatprep.subr.bf16.mxu0 %v622
  %857 = vmatpush1.bf16.msra.mxu0 %v621
  %858 = vmatprep.subr.bf16.mxu0 %v620
  %859 = vmatpush1.bf16.msra.mxu0 %v619
  %860 = vmatprep.subr.bf16.mxu0 %v618
  %861 = vmatpush1.bf16.msra.mxu0 %v617
  %862 = vmatprep.subr.bf16.mxu0 %v616
  %863 = vmatpush1.bf16.msra.mxu0 %v615
  %864 = vmatprep.subr.bf16.mxu0 %v646
  %865 = vmatpush2.bf16.msra.mxu0 %v645
  %866 = vmatprep.subr.bf16.mxu0 %v644
  %867 = vmatpush2.bf16.msra.mxu0 %v643
  %868 = vmatprep.subr.bf16.mxu0 %v642
  %869 = vmatpush2.bf16.msra.mxu0 %v641
  %870 = vmatprep.subr.bf16.mxu0 %v640
  %871 = vmatpush2.bf16.msra.mxu0 %v639
  %872 = vmatprep.subr.bf16.mxu0 %v638
  %873 = vmatpush2.bf16.msra.mxu0 %v637
  %874 = vmatprep.subr.bf16.mxu0 %v636
  %875 = vmatpush2.bf16.msra.mxu0 %v635
  %876 = vmatprep.subr.bf16.mxu0 %v634
  %877 = vmatpush2.bf16.msra.mxu0 %v633
  %878 = vmatprep.subr.bf16.mxu0 %v632
  %879 = vmatpush2.bf16.msra.mxu0 %v631
  %880 = vmatprep.mubr.bf16.mxu0 %v250
  %881 = vmatmul.mubr.bf16.gmra.mxu0 %v249
  %v882 = vpop.f32.mrf.mxu0
  %v883 = vadd.f32 %v810, %v882
  %v884 = vpop.f32.mrf.mxu0
  %v885 = vadd.f32 %v812, %v884
  %v886 = vpop.f32.mrf.mxu0
  %v887 = vadd.f32 %v814, %v886
  %v888 = vpop.f32.mrf.mxu0
  %v889 = vadd.f32 %v816, %v888
  %890 = vmatprep.mubr.bf16.mxu0 %v256
  %891 = vmatmul.mubr.bf16.gmra.mxu0 %v255
  %v892 = vpop.f32.mrf.mxu0
  %v893 = vadd.f32 %v820, %v892
  %v894 = vpop.f32.mrf.mxu0
  %v895 = vadd.f32 %v822, %v894
  %v896 = vpop.f32.mrf.mxu0
  %v897 = vadd.f32 %v824, %v896
  %v898 = vpop.f32.mrf.mxu0
  %v899 = vadd.f32 %v826, %v898
  %900 = vmatprep.mubr.bf16.mxu0 %v262
  %901 = vmatmul.mubr.bf16.gmra.mxu0 %v261
  %v902 = vpop.f32.mrf.mxu0
  %v903 = vadd.f32 %v830, %v902
  %v904 = vpop.f32.mrf.mxu0
  %v905 = vadd.f32 %v832, %v904
  %v906 = vpop.f32.mrf.mxu0
  %v907 = vadd.f32 %v834, %v906
  %v908 = vpop.f32.mrf.mxu0
  %v909 = vadd.f32 %v836, %v908
  %910 = vmatprep.mubr.bf16.mxu0 %v268
  %911 = vmatmul.mubr.bf16.gmra.mxu0 %v267
  %v912 = vpop.f32.mrf.mxu0
  %v913 = vadd.f32 %v840, %v912
  %v914 = vpop.f32.mrf.mxu0
  %v915 = vadd.f32 %v842, %v914
  %v916 = vpop.f32.mrf.mxu0
  %v917 = vadd.f32 %v844, %v916
  %v918 = vpop.f32.mrf.mxu0
  %v919 = vadd.f32 %v846, %v918
  %920 = vdwg.mxu0
  %921 = vmatprep.subr.bf16.mxu0 %v662
  %922 = vmatpush1.bf16.msra.mxu0 %v661
  %923 = vmatprep.subr.bf16.mxu0 %v660
  %924 = vmatpush1.bf16.msra.mxu0 %v659
  %925 = vmatprep.subr.bf16.mxu0 %v658
  %926 = vmatpush1.bf16.msra.mxu0 %v657
  %927 = vmatprep.subr.bf16.mxu0 %v656
  %928 = vmatpush1.bf16.msra.mxu0 %v655
  %929 = vmatprep.subr.bf16.mxu0 %v654
  %930 = vmatpush1.bf16.msra.mxu0 %v653
  %931 = vmatprep.subr.bf16.mxu0 %v652
  %932 = vmatpush1.bf16.msra.mxu0 %v651
  %933 = vmatprep.subr.bf16.mxu0 %v650
  %934 = vmatpush1.bf16.msra.mxu0 %v649
  %935 = vmatprep.subr.bf16.mxu0 %v648
  %936 = vmatpush1.bf16.msra.mxu0 %v647
  %937 = vmatprep.subr.bf16.mxu0 %v678
  %938 = vmatpush2.bf16.msra.mxu0 %v677
  %939 = vmatprep.subr.bf16.mxu0 %v676
  %940 = vmatpush2.bf16.msra.mxu0 %v675
  %941 = vmatprep.subr.bf16.mxu0 %v674
  %942 = vmatpush2.bf16.msra.mxu0 %v673
  %943 = vmatprep.subr.bf16.mxu0 %v672
  %944 = vmatpush2.bf16.msra.mxu0 %v671
  %945 = vmatprep.subr.bf16.mxu0 %v670
  %946 = vmatpush2.bf16.msra.mxu0 %v669
  %947 = vmatprep.subr.bf16.mxu0 %v668
  %948 = vmatpush2.bf16.msra.mxu0 %v667
  %949 = vmatprep.subr.bf16.mxu0 %v666
  %950 = vmatpush2.bf16.msra.mxu0 %v665
  %951 = vmatprep.subr.bf16.mxu0 %v664
  %952 = vmatpush2.bf16.msra.mxu0 %v663
  %953 = vmatprep.mubr.bf16.mxu0 %v252
  %954 = vmatmul.mubr.bf16.gmra.mxu0 %v251
  %v955 = vpop.f32.mrf.mxu0
  %v956 = vadd.f32 %v883, %v955
  %v957 = vpop.f32.mrf.mxu0
  %v958 = vadd.f32 %v885, %v957
  %v959 = vpop.f32.mrf.mxu0
  %v960 = vadd.f32 %v887, %v959
  %v961 = vpop.f32.mrf.mxu0
  %v962 = vadd.f32 %v889, %v961
  %963 = vmatprep.mubr.bf16.mxu0 %v258
  %964 = vmatmul.mubr.bf16.gmra.mxu0 %v257
  %v965 = vpop.f32.mrf.mxu0
  %v966 = vadd.f32 %v893, %v965
  %v967 = vpop.f32.mrf.mxu0
  %v968 = vadd.f32 %v895, %v967
  %v969 = vpop.f32.mrf.mxu0
  %v970 = vadd.f32 %v897, %v969
  %v971 = vpop.f32.mrf.mxu0
  %v972 = vadd.f32 %v899, %v971
  %973 = vmatprep.mubr.bf16.mxu0 %v264
  %974 = vmatmul.mubr.bf16.gmra.mxu0 %v263
  %v975 = vpop.f32.mrf.mxu0
  %v976 = vadd.f32 %v903, %v975
  %v977 = vpop.f32.mrf.mxu0
  %v978 = vadd.f32 %v905, %v977
  %v979 = vpop.f32.mrf.mxu0
  %v980 = vadd.f32 %v907, %v979
  %v981 = vpop.f32.mrf.mxu0
  %v982 = vadd.f32 %v909, %v981
  %983 = vmatprep.mubr.bf16.mxu0 %v270
  %984 = vmatmul.mubr.bf16.gmra.mxu0 %v269
  %v985 = vpop.f32.mrf.mxu0
  %v986 = vadd.f32 %v913, %v985
  %v987 = vpop.f32.mrf.mxu0
  %v988 = vadd.f32 %v915, %v987
  %v989 = vpop.f32.mrf.mxu0
  %v990 = vadd.f32 %v917, %v989
  %v991 = vpop.f32.mrf.mxu0
  %v992 = vadd.f32 %v919, %v991
  %993 = vdwg.mxu0
  %v994 = vmax.f32 %v956, 0.0
  %v995 = vmax.f32 %v958, 0.0
  %v996 = vmax.f32 %v960, 0.0
  %v997 = vmax.f32 %v962, 0.0
  %v998 = vmax.f32 %v966, 0.0
  %v999 = vmax.f32 %v968, 0.0
  %v1000 = vmax.f32 %v970, 0.0
  %v1001 = vmax.f32 %v972, 0.0
  %v1002 = vmax.f32 %v976, 0.0
  %v1003 = vmax.f32 %v978, 0.0
  %v1004 = vmax.f32 %v980, 0.0
  %v1005 = vmax.f32 %v982, 0.0
  %v1006 = vmax.f32 %v986, 0.0
  %v1007 = vmax.f32 %v988, 0.0
  %v1008 = vmax.f32 %v990, 0.0
  %v1009 = vmax.f32 %v992, 0.0
  %v1010 = vpack.c.bf16 %v996, %v994
  %v1011 = vpack.c.bf16 %v997, %v995
  %v1012 = vpack.c.bf16 %v1000, %v998
  %v1013 = vpack.c.bf16 %v1001, %v999
  %v1014 = vpack.c.bf16 %v1004, %v1002
  %v1015 = vpack.c.bf16 %v1005, %v1003
  %v1016 = vpack.c.bf16 %v1008, %v1006
  %v1017 = vpack.c.bf16 %v1009, %v1007
  %v1018 = vld [vmem:[%s4] sm:$0xff]
  %v1019 = vld [vmem:[%s4 + $0x8] sm:$0xff]
  %v1020 = vld [vmem:[%s4 + $0x10] sm:$0xff]
  %v1021 = vld [vmem:[%s4 + $0x18] sm:$0xff]
  %v1022 = vld [vmem:[%s4 + $0x20] sm:$0xff]
  %v1023 = vld [vmem:[%s4 + $0x28] sm:$0xff]
  %v1024 = vld [vmem:[%s4 + $0x30] sm:$0xff]
  %v1025 = vld [vmem:[%s4 + $0x38] sm:$0xff]
  %v1026 = vld [vmem:[%s4 + $0x40] sm:$0xff]
  %v1027 = vld [vmem:[%s4 + $0x48] sm:$0xff]
  %v1028 = vld [vmem:[%s4 + $0x50] sm:$0xff]
  %v1029 = vld [vmem:[%s4 + $0x58] sm:$0xff]
  %v1030 = vld [vmem:[%s4 + $0x60] sm:$0xff]
  %v1031 = vld [vmem:[%s4 + $0x68] sm:$0xff]
  %v1032 = vld [vmem:[%s4 + $0x70] sm:$0xff]
  %v1033 = vld [vmem:[%s4 + $0x78] sm:$0xff]
  %v1034 = vld [vmem:[%s4 + $0x80] sm:$0xff]
  %v1035 = vld [vmem:[%s4 + $0x88] sm:$0xff]
  %v1036 = vld [vmem:[%s4 + $0x90] sm:$0xff]
  %v1037 = vld [vmem:[%s4 + $0x98] sm:$0xff]
  %v1038 = vld [vmem:[%s4 + $0xa0] sm:$0xff]
  %v1039 = vld [vmem:[%s4 + $0xa8] sm:$0xff]
  %v1040 = vld [vmem:[%s4 + $0xb0] sm:$0xff]
  %v1041 = vld [vmem:[%s4 + $0xb8] sm:$0xff]
  %v1042 = vld [vmem:[%s4 + $0xc0] sm:$0xff]
  %v1043 = vld [vmem:[%s4 + $0xc8] sm:$0xff]
  %v1044 = vld [vmem:[%s4 + $0xd0] sm:$0xff]
  %v1045 = vld [vmem:[%s4 + $0xd8] sm:$0xff]
  %v1046 = vld [vmem:[%s4 + $0xe0] sm:$0xff]
  %v1047 = vld [vmem:[%s4 + $0xe8] sm:$0xff]
  %v1048 = vld [vmem:[%s4 + $0xf0] sm:$0xff]
  %v1049 = vld [vmem:[%s4 + $0xf8] sm:$0xff]
  %v1050 = vld [vmem:[%s5] sm:$0x3]
  %v1052 = vlaneseq
  %v1053 = vshrl.u32 %v1052, 7
  %v1054 = vsub.s32 0, %v1053
  %v1055 = vrot.slane %v1050, %v1054
  %v1056 = vlaneseq
  %v1057 = vshrl.u32 %v1056, 7
  %v1058 = vsub.s32 1, %v1057
  %v1059 = vrot.slane %v1050, %v1058
  %v1094 = vunpack.c.l.b16 %v1018
  %v1095 = vunpack.c.h.b16 %v1018
  %v1096 = vunpack.c.l.b16 %v1019
  %v1097 = vunpack.c.h.b16 %v1019
  %v1098 = vunpack.c.l.b16 %v1020
  %v1099 = vunpack.c.h.b16 %v1020
  %v1100 = vunpack.c.l.b16 %v1021
  %v1101 = vunpack.c.h.b16 %v1021
  %v1102 = vunpack.c.l.b16 %v1022
  %v1103 = vunpack.c.h.b16 %v1022
  %v1104 = vunpack.c.l.b16 %v1023
  %v1105 = vunpack.c.h.b16 %v1023
  %v1106 = vunpack.c.l.b16 %v1024
  %v1107 = vunpack.c.h.b16 %v1024
  %v1108 = vunpack.c.l.b16 %v1025
  %v1109 = vunpack.c.h.b16 %v1025
  %v1110 = vunpack.c.l.b16 %v1026
  %v1111 = vunpack.c.h.b16 %v1026
  %v1112 = vunpack.c.l.b16 %v1027
  %v1113 = vunpack.c.h.b16 %v1027
  %v1114 = vunpack.c.l.b16 %v1028
  %v1115 = vunpack.c.h.b16 %v1028
  %v1116 = vunpack.c.l.b16 %v1029
  %v1117 = vunpack.c.h.b16 %v1029
  %v1118 = vunpack.c.l.b16 %v1030
  %v1119 = vunpack.c.h.b16 %v1030
  %v1120 = vunpack.c.l.b16 %v1031
  %v1121 = vunpack.c.h.b16 %v1031
  %v1122 = vunpack.c.l.b16 %v1032
  %v1123 = vunpack.c.h.b16 %v1032
  %v1124 = vunpack.c.l.b16 %v1033
  %v1125 = vunpack.c.h.b16 %v1033
  %v1126 = vunpack.c.l.b16 %v1034
  %v1127 = vunpack.c.h.b16 %v1034
  %v1128 = vunpack.c.l.b16 %v1035
  %v1129 = vunpack.c.h.b16 %v1035
  %v1130 = vunpack.c.l.b16 %v1036
  %v1131 = vunpack.c.h.b16 %v1036
  %v1132 = vunpack.c.l.b16 %v1037
  %v1133 = vunpack.c.h.b16 %v1037
  %v1134 = vunpack.c.l.b16 %v1038
  %v1135 = vunpack.c.h.b16 %v1038
  %v1136 = vunpack.c.l.b16 %v1039
  %v1137 = vunpack.c.h.b16 %v1039
  %v1138 = vunpack.c.l.b16 %v1040
  %v1139 = vunpack.c.h.b16 %v1040
  %v1140 = vunpack.c.l.b16 %v1041
  %v1141 = vunpack.c.h.b16 %v1041
  %v1142 = vunpack.c.l.b16 %v1042
  %v1143 = vunpack.c.h.b16 %v1042
  %v1144 = vunpack.c.l.b16 %v1043
  %v1145 = vunpack.c.h.b16 %v1043
  %v1146 = vunpack.c.l.b16 %v1044
  %v1147 = vunpack.c.h.b16 %v1044
  %v1148 = vunpack.c.l.b16 %v1045
  %v1149 = vunpack.c.h.b16 %v1045
  %v1150 = vunpack.c.l.b16 %v1046
  %v1151 = vunpack.c.h.b16 %v1046
  %v1152 = vunpack.c.l.b16 %v1047
  %v1153 = vunpack.c.h.b16 %v1047
  %v1154 = vunpack.c.l.b16 %v1048
  %v1155 = vunpack.c.h.b16 %v1048
  %v1156 = vunpack.c.l.b16 %v1049
  %v1157 = vunpack.c.h.b16 %v1049
  %v1158 = vpack.c.b16 %v1096, %v1094
  %v1159 = vpack.c.b16 %v1097, %v1095
  %v1160 = vpack.c.b16 %v1100, %v1098
  %v1161 = vpack.c.b16 %v1101, %v1099
  %v1162 = vpack.c.b16 %v1104, %v1102
  %v1163 = vpack.c.b16 %v1105, %v1103
  %v1164 = vpack.c.b16 %v1108, %v1106
  %v1165 = vpack.c.b16 %v1109, %v1107
  %v1166 = vpack.c.b16 %v1112, %v1110
  %v1167 = vpack.c.b16 %v1113, %v1111
  %v1168 = vpack.c.b16 %v1116, %v1114
  %v1169 = vpack.c.b16 %v1117, %v1115
  %v1170 = vpack.c.b16 %v1120, %v1118
  %v1171 = vpack.c.b16 %v1121, %v1119
  %v1172 = vpack.c.b16 %v1124, %v1122
  %v1173 = vpack.c.b16 %v1125, %v1123
  %v1174 = vpack.c.b16 %v1128, %v1126
  %v1175 = vpack.c.b16 %v1129, %v1127
  %v1176 = vpack.c.b16 %v1132, %v1130
  %v1177 = vpack.c.b16 %v1133, %v1131
  %v1178 = vpack.c.b16 %v1136, %v1134
  %v1179 = vpack.c.b16 %v1137, %v1135
  %v1180 = vpack.c.b16 %v1140, %v1138
  %v1181 = vpack.c.b16 %v1141, %v1139
  %v1182 = vpack.c.b16 %v1144, %v1142
  %v1183 = vpack.c.b16 %v1145, %v1143
  %v1184 = vpack.c.b16 %v1148, %v1146
  %v1185 = vpack.c.b16 %v1149, %v1147
  %v1186 = vpack.c.b16 %v1152, %v1150
  %v1187 = vpack.c.b16 %v1153, %v1151
  %v1188 = vpack.c.b16 %v1156, %v1154
  %v1189 = vpack.c.b16 %v1157, %v1155
  %1222 = vmatprep.subr.bf16.mxu0 %v1173
  %1223 = vmatpush1.bf16.msra.mxu0 %v1172
  %1224 = vmatprep.subr.bf16.mxu0 %v1171
  %1225 = vmatpush1.bf16.msra.mxu0 %v1170
  %1226 = vmatprep.subr.bf16.mxu0 %v1169
  %1227 = vmatpush1.bf16.msra.mxu0 %v1168
  %1228 = vmatprep.subr.bf16.mxu0 %v1167
  %1229 = vmatpush1.bf16.msra.mxu0 %v1166
  %1230 = vmatprep.subr.bf16.mxu0 %v1165
  %1231 = vmatpush1.bf16.msra.mxu0 %v1164
  %1232 = vmatprep.subr.bf16.mxu0 %v1163
  %1233 = vmatpush1.bf16.msra.mxu0 %v1162
  %1234 = vmatprep.subr.bf16.mxu0 %v1161
  %1235 = vmatpush1.bf16.msra.mxu0 %v1160
  %1236 = vmatprep.subr.bf16.mxu0 %v1159
  %1237 = vmatpush1.bf16.msra.mxu0 %v1158
  %1238 = vmatprep.subr.bf16.mxu0 %v1189
  %1239 = vmatpush2.bf16.msra.mxu0 %v1188
  %1240 = vmatprep.subr.bf16.mxu0 %v1187
  %1241 = vmatpush2.bf16.msra.mxu0 %v1186
  %1242 = vmatprep.subr.bf16.mxu0 %v1185
  %1243 = vmatpush2.bf16.msra.mxu0 %v1184
  %1244 = vmatprep.subr.bf16.mxu0 %v1183
  %1245 = vmatpush2.bf16.msra.mxu0 %v1182
  %1246 = vmatprep.subr.bf16.mxu0 %v1181
  %1247 = vmatpush2.bf16.msra.mxu0 %v1180
  %1248 = vmatprep.subr.bf16.mxu0 %v1179
  %1249 = vmatpush2.bf16.msra.mxu0 %v1178
  %1250 = vmatprep.subr.bf16.mxu0 %v1177
  %1251 = vmatpush2.bf16.msra.mxu0 %v1176
  %1252 = vmatprep.subr.bf16.mxu0 %v1175
  %1253 = vmatpush2.bf16.msra.mxu0 %v1174
  %1254 = vmatprep.mubr.bf16.mxu0 %v1011
  %1255 = vmatmul.mubr.bf16.gmra.mxu0 %v1010
  %v1256 = vpop.f32.mrf.mxu0
  %v1257 = vadd.f32 %v1055, %v1256
  %v1258 = vpop.f32.mrf.mxu0
  %v1259 = vadd.f32 %v1059, %v1258
  %v1260 = vpop.f32.mrf.mxu0
  %v1261 = vadd.f32 %v1055, %v1260
  %v1262 = vpop.f32.mrf.mxu0
  %v1263 = vadd.f32 %v1059, %v1262
  %1264 = vmatprep.mubr.bf16.mxu0 %v1013
  %1265 = vmatmul.mubr.bf16.gmra.mxu0 %v1012
  %v1266 = vpop.f32.mrf.mxu0
  %v1267 = vadd.f32 %v1055, %v1266
  %v1268 = vpop.f32.mrf.mxu0
  %v1269 = vadd.f32 %v1059, %v1268
  %v1270 = vpop.f32.mrf.mxu0
  %v1271 = vadd.f32 %v1055, %v1270
  %v1272 = vpop.f32.mrf.mxu0
  %v1273 = vadd.f32 %v1059, %v1272
  %1274 = vmatprep.mubr.bf16.mxu0 %v1015
  %1275 = vmatmul.mubr.bf16.gmra.mxu0 %v1014
  %v1276 = vpop.f32.mrf.mxu0
  %v1277 = vadd.f32 %v1055, %v1276
  %v1278 = vpop.f32.mrf.mxu0
  %v1279 = vadd.f32 %v1059, %v1278
  %v1280 = vpop.f32.mrf.mxu0
  %v1281 = vadd.f32 %v1055, %v1280
  %v1282 = vpop.f32.mrf.mxu0
  %v1283 = vadd.f32 %v1059, %v1282
  %1284 = vmatprep.mubr.bf16.mxu0 %v1017
  %1285 = vmatmul.mubr.bf16.gmra.mxu0 %v1016
  %v1286 = vpop.f32.mrf.mxu0
  %v1287 = vadd.f32 %v1055, %v1286
  %v1288 = vpop.f32.mrf.mxu0
  %v1289 = vadd.f32 %v1059, %v1288
  %v1290 = vpop.f32.mrf.mxu0
  %v1291 = vadd.f32 %v1055, %v1290
  %v1292 = vpop.f32.mrf.mxu0
  %v1293 = vadd.f32 %v1059, %v1292
  %1294 = vdwg.mxu0
  %v1295 = vld [vmem:[%s1] sm:$0xff]
  %v1296 = vld [vmem:[%s1 + $0x8] sm:$0xff]
  %v1297 = vld [vmem:[%s1 + $0x10] sm:$0xff]
  %v1298 = vld [vmem:[%s1 + $0x18] sm:$0xff]
  %v1299 = vld [vmem:[%s1 + $0x20] sm:$0xff]
  %v1300 = vld [vmem:[%s1 + $0x28] sm:$0xff]
  %v1301 = vld [vmem:[%s1 + $0x30] sm:$0xff]
  %v1302 = vld [vmem:[%s1 + $0x38] sm:$0xff]
  %v1303 = vld [vmem:[%s1 + $0x40] sm:$0xff]
  %v1304 = vld [vmem:[%s1 + $0x48] sm:$0xff]
  %v1305 = vld [vmem:[%s1 + $0x50] sm:$0xff]
  %v1306 = vld [vmem:[%s1 + $0x58] sm:$0xff]
  %v1307 = vld [vmem:[%s1 + $0x60] sm:$0xff]
  %v1308 = vld [vmem:[%s1 + $0x68] sm:$0xff]
  %v1309 = vld [vmem:[%s1 + $0x70] sm:$0xff]
  %v1310 = vld [vmem:[%s1 + $0x78] sm:$0xff]
  %v1311 = vld [vmem:[%s1 + $0x80] sm:$0xff]
  %v1312 = vld [vmem:[%s1 + $0x88] sm:$0xff]
  %v1313 = vld [vmem:[%s1 + $0x90] sm:$0xff]
  %v1314 = vld [vmem:[%s1 + $0x98] sm:$0xff]
  %v1315 = vld [vmem:[%s1 + $0xa0] sm:$0xff]
  %v1316 = vld [vmem:[%s1 + $0xa8] sm:$0xff]
  %v1317 = vld [vmem:[%s1 + $0xb0] sm:$0xff]
  %v1318 = vld [vmem:[%s1 + $0xb8] sm:$0xff]
  %v1319 = vld [vmem:[%s6] sm:$0xff]
  %v1320 = vld [vmem:[%s6 + $0x8] sm:$0xff]
  %v1321 = vld [vmem:[%s6 + $0x10] sm:$0xff]
  %v1322 = vld [vmem:[%s6 + $0x18] sm:$0xff]
  %v1323 = vld [vmem:[%s6 + $0x20] sm:$0xff]
  %v1324 = vld [vmem:[%s6 + $0x28] sm:$0xff]
  %v1325 = vld [vmem:[%s6 + $0x30] sm:$0xff]
  %v1326 = vld [vmem:[%s6 + $0x38] sm:$0xff]
  %v1327 = vld [vmem:[%s6 + $0x40] sm:$0xff]
  %v1328 = vld [vmem:[%s6 + $0x48] sm:$0xff]
  %v1329 = vld [vmem:[%s6 + $0x50] sm:$0xff]
  %v1330 = vld [vmem:[%s6 + $0x58] sm:$0xff]
  %v1331 = vld [vmem:[%s6 + $0x60] sm:$0xff]
  %v1332 = vld [vmem:[%s6 + $0x68] sm:$0xff]
  %v1333 = vld [vmem:[%s6 + $0x70] sm:$0xff]
  %v1334 = vld [vmem:[%s6 + $0x78] sm:$0xff]
  %v1335 = vld [vmem:[%s6 + $0x80] sm:$0xff]
  %v1336 = vld [vmem:[%s6 + $0x88] sm:$0xff]
  %v1337 = vld [vmem:[%s6 + $0x90] sm:$0xff]
  %v1338 = vld [vmem:[%s6 + $0x98] sm:$0xff]
  %v1339 = vld [vmem:[%s6 + $0xa0] sm:$0xff]
  %v1340 = vld [vmem:[%s6 + $0xa8] sm:$0xff]
  %v1341 = vld [vmem:[%s6 + $0xb0] sm:$0xff]
  %v1342 = vld [vmem:[%s6 + $0xb8] sm:$0xff]
  %v1343 = vld [vmem:[%s6 + $0xc0] sm:$0xff]
  %v1344 = vld [vmem:[%s6 + $0xc8] sm:$0xff]
  %v1345 = vld [vmem:[%s6 + $0xd0] sm:$0xff]
  %v1346 = vld [vmem:[%s6 + $0xd8] sm:$0xff]
  %v1347 = vld [vmem:[%s6 + $0xe0] sm:$0xff]
  %v1348 = vld [vmem:[%s6 + $0xe8] sm:$0xff]
  %v1349 = vld [vmem:[%s6 + $0xf0] sm:$0xff]
  %v1350 = vld [vmem:[%s6 + $0xf8] sm:$0xff]
  %v1351 = vld [vmem:[%s6 + $0x100] sm:$0xff]
  %v1352 = vld [vmem:[%s6 + $0x108] sm:$0xff]
  %v1353 = vld [vmem:[%s6 + $0x110] sm:$0xff]
  %v1354 = vld [vmem:[%s6 + $0x118] sm:$0xff]
  %v1355 = vld [vmem:[%s6 + $0x120] sm:$0xff]
  %v1356 = vld [vmem:[%s6 + $0x128] sm:$0xff]
  %v1357 = vld [vmem:[%s6 + $0x130] sm:$0xff]
  %v1358 = vld [vmem:[%s6 + $0x138] sm:$0xff]
  %v1359 = vld [vmem:[%s6 + $0x140] sm:$0xff]
  %v1360 = vld [vmem:[%s6 + $0x148] sm:$0xff]
  %v1361 = vld [vmem:[%s6 + $0x150] sm:$0xff]
  %v1362 = vld [vmem:[%s6 + $0x158] sm:$0xff]
  %v1363 = vld [vmem:[%s6 + $0x160] sm:$0xff]
  %v1364 = vld [vmem:[%s6 + $0x168] sm:$0xff]
  %v1365 = vld [vmem:[%s6 + $0x170] sm:$0xff]
  %v1366 = vld [vmem:[%s6 + $0x178] sm:$0xff]
  %v1367 = vld [vmem:[%s6 + $0x180] sm:$0xff]
  %v1368 = vld [vmem:[%s6 + $0x188] sm:$0xff]
  %v1369 = vld [vmem:[%s6 + $0x190] sm:$0xff]
  %v1370 = vld [vmem:[%s6 + $0x198] sm:$0xff]
  %v1371 = vld [vmem:[%s6 + $0x1a0] sm:$0xff]
  %v1372 = vld [vmem:[%s6 + $0x1a8] sm:$0xff]
  %v1373 = vld [vmem:[%s6 + $0x1b0] sm:$0xff]
  %v1374 = vld [vmem:[%s6 + $0x1b8] sm:$0xff]
  %v1375 = vld [vmem:[%s6 + $0x1c0] sm:$0xff]
  %v1376 = vld [vmem:[%s6 + $0x1c8] sm:$0xff]
  %v1377 = vld [vmem:[%s6 + $0x1d0] sm:$0xff]
  %v1378 = vld [vmem:[%s6 + $0x1d8] sm:$0xff]
  %v1379 = vld [vmem:[%s6 + $0x1e0] sm:$0xff]
  %v1380 = vld [vmem:[%s6 + $0x1e8] sm:$0xff]
  %v1381 = vld [vmem:[%s6 + $0x1f0] sm:$0xff]
  %v1382 = vld [vmem:[%s6 + $0x1f8] sm:$0xff]
  %v1383 = vld [vmem:[%s6 + $0x200] sm:$0xff]
  %v1384 = vld [vmem:[%s6 + $0x208] sm:$0xff]
  %v1385 = vld [vmem:[%s6 + $0x210] sm:$0xff]
  %v1386 = vld [vmem:[%s6 + $0x218] sm:$0xff]
  %v1387 = vld [vmem:[%s6 + $0x220] sm:$0xff]
  %v1388 = vld [vmem:[%s6 + $0x228] sm:$0xff]
  %v1389 = vld [vmem:[%s6 + $0x230] sm:$0xff]
  %v1390 = vld [vmem:[%s6 + $0x238] sm:$0xff]
  %v1391 = vld [vmem:[%s6 + $0x240] sm:$0xff]
  %v1392 = vld [vmem:[%s6 + $0x248] sm:$0xff]
  %v1393 = vld [vmem:[%s6 + $0x250] sm:$0xff]
  %v1394 = vld [vmem:[%s6 + $0x258] sm:$0xff]
  %v1395 = vld [vmem:[%s6 + $0x260] sm:$0xff]
  %v1396 = vld [vmem:[%s6 + $0x268] sm:$0xff]
  %v1397 = vld [vmem:[%s6 + $0x270] sm:$0xff]
  %v1398 = vld [vmem:[%s6 + $0x278] sm:$0xff]
  %v1399 = vld [vmem:[%s6 + $0x280] sm:$0xff]
  %v1400 = vld [vmem:[%s6 + $0x288] sm:$0xff]
  %v1401 = vld [vmem:[%s6 + $0x290] sm:$0xff]
  %v1402 = vld [vmem:[%s6 + $0x298] sm:$0xff]
  %v1403 = vld [vmem:[%s6 + $0x2a0] sm:$0xff]
  %v1404 = vld [vmem:[%s6 + $0x2a8] sm:$0xff]
  %v1405 = vld [vmem:[%s6 + $0x2b0] sm:$0xff]
  %v1406 = vld [vmem:[%s6 + $0x2b8] sm:$0xff]
  %v1407 = vld [vmem:[%s6 + $0x2c0] sm:$0xff]
  %v1408 = vld [vmem:[%s6 + $0x2c8] sm:$0xff]
  %v1409 = vld [vmem:[%s6 + $0x2d0] sm:$0xff]
  %v1410 = vld [vmem:[%s6 + $0x2d8] sm:$0xff]
  %v1411 = vld [vmem:[%s6 + $0x2e0] sm:$0xff]
  %v1412 = vld [vmem:[%s6 + $0x2e8] sm:$0xff]
  %v1413 = vld [vmem:[%s6 + $0x2f0] sm:$0xff]
  %v1414 = vld [vmem:[%s6 + $0x2f8] sm:$0xff]
  %v1415 = vld [vmem:[%s7] sm:$0x3]
  %v1417 = vlaneseq
  %v1418 = vshrl.u32 %v1417, 7
  %v1419 = vsub.s32 0, %v1418
  %v1420 = vrot.slane %v1415, %v1419
  %v1421 = vlaneseq
  %v1422 = vshrl.u32 %v1421, 7
  %v1423 = vsub.s32 1, %v1422
  %v1424 = vrot.slane %v1415, %v1423
  %v1451 = vunpack.c.l.b16 %v1295
  %v1452 = vunpack.c.h.b16 %v1295
  %v1453 = vunpack.c.l.b16 %v1296
  %v1454 = vunpack.c.h.b16 %v1296
  %v1455 = vunpack.c.l.b16 %v1297
  %v1456 = vunpack.c.h.b16 %v1297
  %v1457 = vunpack.c.l.b16 %v1298
  %v1458 = vunpack.c.h.b16 %v1298
  %v1459 = vunpack.c.l.b16 %v1299
  %v1460 = vunpack.c.h.b16 %v1299
  %v1461 = vunpack.c.l.b16 %v1300
  %v1462 = vunpack.c.h.b16 %v1300
  %v1463 = vunpack.c.l.b16 %v1301
  %v1464 = vunpack.c.h.b16 %v1301
  %v1465 = vunpack.c.l.b16 %v1302
  %v1466 = vunpack.c.h.b16 %v1302
  %v1467 = vunpack.c.l.b16 %v1303
  %v1468 = vunpack.c.h.b16 %v1303
  %v1469 = vunpack.c.l.b16 %v1304
  %v1470 = vunpack.c.h.b16 %v1304
  %v1471 = vunpack.c.l.b16 %v1305
  %v1472 = vunpack.c.h.b16 %v1305
  %v1473 = vunpack.c.l.b16 %v1306
  %v1474 = vunpack.c.h.b16 %v1306
  %v1475 = vunpack.c.l.b16 %v1307
  %v1476 = vunpack.c.h.b16 %v1307
  %v1477 = vunpack.c.l.b16 %v1308
  %v1478 = vunpack.c.h.b16 %v1308
  %v1479 = vunpack.c.l.b16 %v1309
  %v1480 = vunpack.c.h.b16 %v1309
  %v1481 = vunpack.c.l.b16 %v1310
  %v1482 = vunpack.c.h.b16 %v1310
  %v1483 = vunpack.c.l.b16 %v1311
  %v1484 = vunpack.c.h.b16 %v1311
  %v1485 = vunpack.c.l.b16 %v1312
  %v1486 = vunpack.c.h.b16 %v1312
  %v1487 = vunpack.c.l.b16 %v1313
  %v1488 = vunpack.c.h.b16 %v1313
  %v1489 = vunpack.c.l.b16 %v1314
  %v1490 = vunpack.c.h.b16 %v1314
  %v1491 = vunpack.c.l.b16 %v1315
  %v1492 = vunpack.c.h.b16 %v1315
  %v1493 = vunpack.c.l.b16 %v1316
  %v1494 = vunpack.c.h.b16 %v1316
  %v1495 = vunpack.c.l.b16 %v1317
  %v1496 = vunpack.c.h.b16 %v1317
  %v1497 = vunpack.c.l.b16 %v1318
  %v1498 = vunpack.c.h.b16 %v1318
  %v1499 = vpack.c.b16 %v1457, %v1451
  %v1500 = vpack.c.b16 %v1458, %v1452
  %v1501 = vpack.c.b16 %v1459, %v1453
  %v1502 = vpack.c.b16 %v1460, %v1454
  %v1503 = vpack.c.b16 %v1461, %v1455
  %v1504 = vpack.c.b16 %v1462, %v1456
  %v1505 = vpack.c.b16 %v1469, %v1463
  %v1506 = vpack.c.b16 %v1470, %v1464
  %v1507 = vpack.c.b16 %v1471, %v1465
  %v1508 = vpack.c.b16 %v1472, %v1466
  %v1509 = vpack.c.b16 %v1473, %v1467
  %v1510 = vpack.c.b16 %v1474, %v1468
  %v1511 = vpack.c.b16 %v1481, %v1475
  %v1512 = vpack.c.b16 %v1482, %v1476
  %v1513 = vpack.c.b16 %v1483, %v1477
  %v1514 = vpack.c.b16 %v1484, %v1478
  %v1515 = vpack.c.b16 %v1485, %v1479
  %v1516 = vpack.c.b16 %v1486, %v1480
  %v1517 = vpack.c.b16 %v1493, %v1487
  %v1518 = vpack.c.b16 %v1494, %v1488
  %v1519 = vpack.c.b16 %v1495, %v1489
  %v1520 = vpack.c.b16 %v1496, %v1490
  %v1521 = vpack.c.b16 %v1497, %v1491
  %v1522 = vpack.c.b16 %v1498, %v1492
  %v1643 = vunpack.c.l.b16 %v1319
  %v1644 = vunpack.c.h.b16 %v1319
  %v1645 = vunpack.c.l.b16 %v1320
  %v1646 = vunpack.c.h.b16 %v1320
  %v1647 = vunpack.c.l.b16 %v1321
  %v1648 = vunpack.c.h.b16 %v1321
  %v1649 = vunpack.c.l.b16 %v1322
  %v1650 = vunpack.c.h.b16 %v1322
  %v1651 = vunpack.c.l.b16 %v1323
  %v1652 = vunpack.c.h.b16 %v1323
  %v1653 = vunpack.c.l.b16 %v1324
  %v1654 = vunpack.c.h.b16 %v1324
  %v1655 = vunpack.c.l.b16 %v1325
  %v1656 = vunpack.c.h.b16 %v1325
  %v1657 = vunpack.c.l.b16 %v1326
  %v1658 = vunpack.c.h.b16 %v1326
  %v1659 = vunpack.c.l.b16 %v1327
  %v1660 = vunpack.c.h.b16 %v1327
  %v1661 = vunpack.c.l.b16 %v1328
  %v1662 = vunpack.c.h.b16 %v1328
  %v1663 = vunpack.c.l.b16 %v1329
  %v1664 = vunpack.c.h.b16 %v1329
  %v1665 = vunpack.c.l.b16 %v1330
  %v1666 = vunpack.c.h.b16 %v1330
  %v1667 = vunpack.c.l.b16 %v1331
  %v1668 = vunpack.c.h.b16 %v1331
  %v1669 = vunpack.c.l.b16 %v1332
  %v1670 = vunpack.c.h.b16 %v1332
  %v1671 = vunpack.c.l.b16 %v1333
  %v1672 = vunpack.c.h.b16 %v1333
  %v1673 = vunpack.c.l.b16 %v1334
  %v1674 = vunpack.c.h.b16 %v1334
  %v1675 = vunpack.c.l.b16 %v1335
  %v1676 = vunpack.c.h.b16 %v1335
  %v1677 = vunpack.c.l.b16 %v1336
  %v1678 = vunpack.c.h.b16 %v1336
  %v1679 = vunpack.c.l.b16 %v1337
  %v1680 = vunpack.c.h.b16 %v1337
  %v1681 = vunpack.c.l.b16 %v1338
  %v1682 = vunpack.c.h.b16 %v1338
  %v1683 = vunpack.c.l.b16 %v1339
  %v1684 = vunpack.c.h.b16 %v1339
  %v1685 = vunpack.c.l.b16 %v1340
  %v1686 = vunpack.c.h.b16 %v1340
  %v1687 = vunpack.c.l.b16 %v1341
  %v1688 = vunpack.c.h.b16 %v1341
  %v1689 = vunpack.c.l.b16 %v1342
  %v1690 = vunpack.c.h.b16 %v1342
  %v1691 = vunpack.c.l.b16 %v1343
  %v1692 = vunpack.c.h.b16 %v1343
  %v1693 = vunpack.c.l.b16 %v1344
  %v1694 = vunpack.c.h.b16 %v1344
  %v1695 = vunpack.c.l.b16 %v1345
  %v1696 = vunpack.c.h.b16 %v1345
  %v1697 = vunpack.c.l.b16 %v1346
  %v1698 = vunpack.c.h.b16 %v1346
  %v1699 = vunpack.c.l.b16 %v1347
  %v1700 = vunpack.c.h.b16 %v1347
  %v1701 = vunpack.c.l.b16 %v1348
  %v1702 = vunpack.c.h.b16 %v1348
  %v1703 = vunpack.c.l.b16 %v1349
  %v1704 = vunpack.c.h.b16 %v1349
  %v1705 = vunpack.c.l.b16 %v1350
  %v1706 = vunpack.c.h.b16 %v1350
  %v1707 = vunpack.c.l.b16 %v1351
  %v1708 = vunpack.c.h.b16 %v1351
  %v1709 = vunpack.c.l.b16 %v1352
  %v1710 = vunpack.c.h.b16 %v1352
  %v1711 = vunpack.c.l.b16 %v1353
  %v1712 = vunpack.c.h.b16 %v1353
  %v1713 = vunpack.c.l.b16 %v1354
  %v1714 = vunpack.c.h.b16 %v1354
  %v1715 = vunpack.c.l.b16 %v1355
  %v1716 = vunpack.c.h.b16 %v1355
  %v1717 = vunpack.c.l.b16 %v1356
  %v1718 = vunpack.c.h.b16 %v1356
  %v1719 = vunpack.c.l.b16 %v1357
  %v1720 = vunpack.c.h.b16 %v1357
  %v1721 = vunpack.c.l.b16 %v1358
  %v1722 = vunpack.c.h.b16 %v1358
  %v1723 = vunpack.c.l.b16 %v1359
  %v1724 = vunpack.c.h.b16 %v1359
  %v1725 = vunpack.c.l.b16 %v1360
  %v1726 = vunpack.c.h.b16 %v1360
  %v1727 = vunpack.c.l.b16 %v1361
  %v1728 = vunpack.c.h.b16 %v1361
  %v1729 = vunpack.c.l.b16 %v1362
  %v1730 = vunpack.c.h.b16 %v1362
  %v1731 = vunpack.c.l.b16 %v1363
  %v1732 = vunpack.c.h.b16 %v1363
  %v1733 = vunpack.c.l.b16 %v1364
  %v1734 = vunpack.c.h.b16 %v1364
  %v1735 = vunpack.c.l.b16 %v1365
  %v1736 = vunpack.c.h.b16 %v1365
  %v1737 = vunpack.c.l.b16 %v1366
  %v1738 = vunpack.c.h.b16 %v1366
  %v1739 = vunpack.c.l.b16 %v1367
  %v1740 = vunpack.c.h.b16 %v1367
  %v1741 = vunpack.c.l.b16 %v1368
  %v1742 = vunpack.c.h.b16 %v1368
  %v1743 = vunpack.c.l.b16 %v1369
  %v1744 = vunpack.c.h.b16 %v1369
  %v1745 = vunpack.c.l.b16 %v1370
  %v1746 = vunpack.c.h.b16 %v1370
  %v1747 = vunpack.c.l.b16 %v1371
  %v1748 = vunpack.c.h.b16 %v1371
  %v1749 = vunpack.c.l.b16 %v1372
  %v1750 = vunpack.c.h.b16 %v1372
  %v1751 = vunpack.c.l.b16 %v1373
  %v1752 = vunpack.c.h.b16 %v1373
  %v1753 = vunpack.c.l.b16 %v1374
  %v1754 = vunpack.c.h.b16 %v1374
  %v1755 = vunpack.c.l.b16 %v1375
  %v1756 = vunpack.c.h.b16 %v1375
  %v1757 = vunpack.c.l.b16 %v1376
  %v1758 = vunpack.c.h.b16 %v1376
  %v1759 = vunpack.c.l.b16 %v1377
  %v1760 = vunpack.c.h.b16 %v1377
  %v1761 = vunpack.c.l.b16 %v1378
  %v1762 = vunpack.c.h.b16 %v1378
  %v1763 = vunpack.c.l.b16 %v1379
  %v1764 = vunpack.c.h.b16 %v1379
  %v1765 = vunpack.c.l.b16 %v1380
  %v1766 = vunpack.c.h.b16 %v1380
  %v1767 = vunpack.c.l.b16 %v1381
  %v1768 = vunpack.c.h.b16 %v1381
  %v1769 = vunpack.c.l.b16 %v1382
  %v1770 = vunpack.c.h.b16 %v1382
  %v1771 = vunpack.c.l.b16 %v1383
  %v1772 = vunpack.c.h.b16 %v1383
  %v1773 = vunpack.c.l.b16 %v1384
  %v1774 = vunpack.c.h.b16 %v1384
  %v1775 = vunpack.c.l.b16 %v1385
  %v1776 = vunpack.c.h.b16 %v1385
  %v1777 = vunpack.c.l.b16 %v1386
  %v1778 = vunpack.c.h.b16 %v1386
  %v1779 = vunpack.c.l.b16 %v1387
  %v1780 = vunpack.c.h.b16 %v1387
  %v1781 = vunpack.c.l.b16 %v1388
  %v1782 = vunpack.c.h.b16 %v1388
  %v1783 = vunpack.c.l.b16 %v1389
  %v1784 = vunpack.c.h.b16 %v1389
  %v1785 = vunpack.c.l.b16 %v1390
  %v1786 = vunpack.c.h.b16 %v1390
  %v1787 = vunpack.c.l.b16 %v1391
  %v1788 = vunpack.c.h.b16 %v1391
  %v1789 = vunpack.c.l.b16 %v1392
  %v1790 = vunpack.c.h.b16 %v1392
  %v1791 = vunpack.c.l.b16 %v1393
  %v1792 = vunpack.c.h.b16 %v1393
  %v1793 = vunpack.c.l.b16 %v1394
  %v1794 = vunpack.c.h.b16 %v1394
  %v1795 = vunpack.c.l.b16 %v1395
  %v1796 = vunpack.c.h.b16 %v1395
  %v1797 = vunpack.c.l.b16 %v1396
  %v1798 = vunpack.c.h.b16 %v1396
  %v1799 = vunpack.c.l.b16 %v1397
  %v1800 = vunpack.c.h.b16 %v1397
  %v1801 = vunpack.c.l.b16 %v1398
  %v1802 = vunpack.c.h.b16 %v1398
  %v1803 = vunpack.c.l.b16 %v1399
  %v1804 = vunpack.c.h.b16 %v1399
  %v1805 = vunpack.c.l.b16 %v1400
  %v1806 = vunpack.c.h.b16 %v1400
  %v1807 = vunpack.c.l.b16 %v1401
  %v1808 = vunpack.c.h.b16 %v1401
  %v1809 = vunpack.c.l.b16 %v1402
  %v1810 = vunpack.c.h.b16 %v1402
  %v1811 = vunpack.c.l.b16 %v1403
  %v1812 = vunpack.c.h.b16 %v1403
  %v1813 = vunpack.c.l.b16 %v1404
  %v1814 = vunpack.c.h.b16 %v1404
  %v1815 = vunpack.c.l.b16 %v1405
  %v1816 = vunpack.c.h.b16 %v1405
  %v1817 = vunpack.c.l.b16 %v1406
  %v1818 = vunpack.c.h.b16 %v1406
  %v1819 = vunpack.c.l.b16 %v1407
  %v1820 = vunpack.c.h.b16 %v1407
  %v1821 = vunpack.c.l.b16 %v1408
  %v1822 = vunpack.c.h.b16 %v1408
  %v1823 = vunpack.c.l.b16 %v1409
  %v1824 = vunpack.c.h.b16 %v1409
  %v1825 = vunpack.c.l.b16 %v1410
  %v1826 = vunpack.c.h.b16 %v1410
  %v1827 = vunpack.c.l.b16 %v1411
  %v1828 = vunpack.c.h.b16 %v1411
  %v1829 = vunpack.c.l.b16 %v1412
  %v1830 = vunpack.c.h.b16 %v1412
  %v1831 = vunpack.c.l.b16 %v1413
  %v1832 = vunpack.c.h.b16 %v1413
  %v1833 = vunpack.c.l.b16 %v1414
  %v1834 = vunpack.c.h.b16 %v1414
  %v1835 = vpack.c.b16 %v1645, %v1643
  %v1836 = vpack.c.b16 %v1646, %v1644
  %v1837 = vpack.c.b16 %v1649, %v1647
  %v1838 = vpack.c.b16 %v1650, %v1648
  %v1839 = vpack.c.b16 %v1653, %v1651
  %v1840 = vpack.c.b16 %v1654, %v1652
  %v1841 = vpack.c.b16 %v1657, %v1655
  %v1842 = vpack.c.b16 %v1658, %v1656
  %v1843 = vpack.c.b16 %v1661, %v1659
  %v1844 = vpack.c.b16 %v1662, %v1660
  %v1845 = vpack.c.b16 %v1665, %v1663
  %v1846 = vpack.c.b16 %v1666, %v1664
  %v1847 = vpack.c.b16 %v1669, %v1667
  %v1848 = vpack.c.b16 %v1670, %v1668
  %v1849 = vpack.c.b16 %v1673, %v1671
  %v1850 = vpack.c.b16 %v1674, %v1672
  %v1851 = vpack.c.b16 %v1677, %v1675
  %v1852 = vpack.c.b16 %v1678, %v1676
  %v1853 = vpack.c.b16 %v1681, %v1679
  %v1854 = vpack.c.b16 %v1682, %v1680
  %v1855 = vpack.c.b16 %v1685, %v1683
  %v1856 = vpack.c.b16 %v1686, %v1684
  %v1857 = vpack.c.b16 %v1689, %v1687
  %v1858 = vpack.c.b16 %v1690, %v1688
  %v1859 = vpack.c.b16 %v1693, %v1691
  %v1860 = vpack.c.b16 %v1694, %v1692
  %v1861 = vpack.c.b16 %v1697, %v1695
  %v1862 = vpack.c.b16 %v1698, %v1696
  %v1863 = vpack.c.b16 %v1701, %v1699
  %v1864 = vpack.c.b16 %v1702, %v1700
  %v1865 = vpack.c.b16 %v1705, %v1703
  %v1866 = vpack.c.b16 %v1706, %v1704
  %v1867 = vpack.c.b16 %v1709, %v1707
  %v1868 = vpack.c.b16 %v1710, %v1708
  %v1869 = vpack.c.b16 %v1713, %v1711
  %v1870 = vpack.c.b16 %v1714, %v1712
  %v1871 = vpack.c.b16 %v1717, %v1715
  %v1872 = vpack.c.b16 %v1718, %v1716
  %v1873 = vpack.c.b16 %v1721, %v1719
  %v1874 = vpack.c.b16 %v1722, %v1720
  %v1875 = vpack.c.b16 %v1725, %v1723
  %v1876 = vpack.c.b16 %v1726, %v1724
  %v1877 = vpack.c.b16 %v1729, %v1727
  %v1878 = vpack.c.b16 %v1730, %v1728
  %v1879 = vpack.c.b16 %v1733, %v1731
  %v1880 = vpack.c.b16 %v1734, %v1732
  %v1881 = vpack.c.b16 %v1737, %v1735
  %v1882 = vpack.c.b16 %v1738, %v1736
  %v1883 = vpack.c.b16 %v1741, %v1739
  %v1884 = vpack.c.b16 %v1742, %v1740
  %v1885 = vpack.c.b16 %v1745, %v1743
  %v1886 = vpack.c.b16 %v1746, %v1744
  %v1887 = vpack.c.b16 %v1749, %v1747
  %v1888 = vpack.c.b16 %v1750, %v1748
  %v1889 = vpack.c.b16 %v1753, %v1751
  %v1890 = vpack.c.b16 %v1754, %v1752
  %v1891 = vpack.c.b16 %v1757, %v1755
  %v1892 = vpack.c.b16 %v1758, %v1756
  %v1893 = vpack.c.b16 %v1761, %v1759
  %v1894 = vpack.c.b16 %v1762, %v1760
  %v1895 = vpack.c.b16 %v1765, %v1763
  %v1896 = vpack.c.b16 %v1766, %v1764
  %v1897 = vpack.c.b16 %v1769, %v1767
  %v1898 = vpack.c.b16 %v1770, %v1768
  %v1899 = vpack.c.b16 %v1773, %v1771
  %v1900 = vpack.c.b16 %v1774, %v1772
  %v1901 = vpack.c.b16 %v1777, %v1775
  %v1902 = vpack.c.b16 %v1778, %v1776
  %v1903 = vpack.c.b16 %v1781, %v1779
  %v1904 = vpack.c.b16 %v1782, %v1780
  %v1905 = vpack.c.b16 %v1785, %v1783
  %v1906 = vpack.c.b16 %v1786, %v1784
  %v1907 = vpack.c.b16 %v1789, %v1787
  %v1908 = vpack.c.b16 %v1790, %v1788
  %v1909 = vpack.c.b16 %v1793, %v1791
  %v1910 = vpack.c.b16 %v1794, %v1792
  %v1911 = vpack.c.b16 %v1797, %v1795
  %v1912 = vpack.c.b16 %v1798, %v1796
  %v1913 = vpack.c.b16 %v1801, %v1799
  %v1914 = vpack.c.b16 %v1802, %v1800
  %v1915 = vpack.c.b16 %v1805, %v1803
  %v1916 = vpack.c.b16 %v1806, %v1804
  %v1917 = vpack.c.b16 %v1809, %v1807
  %v1918 = vpack.c.b16 %v1810, %v1808
  %v1919 = vpack.c.b16 %v1813, %v1811
  %v1920 = vpack.c.b16 %v1814, %v1812
  %v1921 = vpack.c.b16 %v1817, %v1815
  %v1922 = vpack.c.b16 %v1818, %v1816
  %v1923 = vpack.c.b16 %v1821, %v1819
  %v1924 = vpack.c.b16 %v1822, %v1820
  %v1925 = vpack.c.b16 %v1825, %v1823
  %v1926 = vpack.c.b16 %v1826, %v1824
  %v1927 = vpack.c.b16 %v1829, %v1827
  %v1928 = vpack.c.b16 %v1830, %v1828
  %v1929 = vpack.c.b16 %v1833, %v1831
  %v1930 = vpack.c.b16 %v1834, %v1832
  %2027 = vmatprep.subr.bf16.mxu0 %v1850
  %2028 = vmatpush1.bf16.msra.mxu0 %v1849
  %2029 = vmatprep.subr.bf16.mxu0 %v1848
  %2030 = vmatpush1.bf16.msra.mxu0 %v1847
  %2031 = vmatprep.subr.bf16.mxu0 %v1846
  %2032 = vmatpush1.bf16.msra.mxu0 %v1845
  %2033 = vmatprep.subr.bf16.mxu0 %v1844
  %2034 = vmatpush1.bf16.msra.mxu0 %v1843
  %2035 = vmatprep.subr.bf16.mxu0 %v1842
  %2036 = vmatpush1.bf16.msra.mxu0 %v1841
  %2037 = vmatprep.subr.bf16.mxu0 %v1840
  %2038 = vmatpush1.bf16.msra.mxu0 %v1839
  %2039 = vmatprep.subr.bf16.mxu0 %v1838
  %2040 = vmatpush1.bf16.msra.mxu0 %v1837
  %2041 = vmatprep.subr.bf16.mxu0 %v1836
  %2042 = vmatpush1.bf16.msra.mxu0 %v1835
  %2043 = vmatprep.subr.bf16.mxu0 %v1866
  %2044 = vmatpush2.bf16.msra.mxu0 %v1865
  %2045 = vmatprep.subr.bf16.mxu0 %v1864
  %2046 = vmatpush2.bf16.msra.mxu0 %v1863
  %2047 = vmatprep.subr.bf16.mxu0 %v1862
  %2048 = vmatpush2.bf16.msra.mxu0 %v1861
  %2049 = vmatprep.subr.bf16.mxu0 %v1860
  %2050 = vmatpush2.bf16.msra.mxu0 %v1859
  %2051 = vmatprep.subr.bf16.mxu0 %v1858
  %2052 = vmatpush2.bf16.msra.mxu0 %v1857
  %2053 = vmatprep.subr.bf16.mxu0 %v1856
  %2054 = vmatpush2.bf16.msra.mxu0 %v1855
  %2055 = vmatprep.subr.bf16.mxu0 %v1854
  %2056 = vmatpush2.bf16.msra.mxu0 %v1853
  %2057 = vmatprep.subr.bf16.mxu0 %v1852
  %2058 = vmatpush2.bf16.msra.mxu0 %v1851
  %2059 = vmatprep.mubr.bf16.mxu0 %v1500
  %2060 = vmatmul.mubr.bf16.gmra.mxu0 %v1499
  %v2061 = vpop.f32.mrf.mxu0
  %v2062 = vadd.f32 %v1420, %v2061
  %v2063 = vpop.f32.mrf.mxu0
  %v2064 = vadd.f32 %v1424, %v2063
  %v2065 = vpop.f32.mrf.mxu0
  %v2066 = vadd.f32 %v1420, %v2065
  %v2067 = vpop.f32.mrf.mxu0
  %v2068 = vadd.f32 %v1424, %v2067
  %2069 = vmatprep.mubr.bf16.mxu0 %v1506
  %2070 = vmatmul.mubr.bf16.gmra.mxu0 %v1505
  %v2071 = vpop.f32.mrf.mxu0
  %v2072 = vadd.f32 %v1420, %v2071
  %v2073 = vpop.f32.mrf.mxu0
  %v2074 = vadd.f32 %v1424, %v2073
  %v2075 = vpop.f32.mrf.mxu0
  %v2076 = vadd.f32 %v1420, %v2075
  %v2077 = vpop.f32.mrf.mxu0
  %v2078 = vadd.f32 %v1424, %v2077
  %2079 = vmatprep.mubr.bf16.mxu0 %v1512
  %2080 = vmatmul.mubr.bf16.gmra.mxu0 %v1511
  %v2081 = vpop.f32.mrf.mxu0
  %v2082 = vadd.f32 %v1420, %v2081
  %v2083 = vpop.f32.mrf.mxu0
  %v2084 = vadd.f32 %v1424, %v2083
  %v2085 = vpop.f32.mrf.mxu0
  %v2086 = vadd.f32 %v1420, %v2085
  %v2087 = vpop.f32.mrf.mxu0
  %v2088 = vadd.f32 %v1424, %v2087
  %2089 = vmatprep.mubr.bf16.mxu0 %v1518
  %2090 = vmatmul.mubr.bf16.gmra.mxu0 %v1517
  %v2091 = vpop.f32.mrf.mxu0
  %v2092 = vadd.f32 %v1420, %v2091
  %v2093 = vpop.f32.mrf.mxu0
  %v2094 = vadd.f32 %v1424, %v2093
  %v2095 = vpop.f32.mrf.mxu0
  %v2096 = vadd.f32 %v1420, %v2095
  %v2097 = vpop.f32.mrf.mxu0
  %v2098 = vadd.f32 %v1424, %v2097
  %2099 = vdwg.mxu0
  %2100 = vmatprep.subr.bf16.mxu0 %v1882
  %2101 = vmatpush1.bf16.msra.mxu0 %v1881
  %2102 = vmatprep.subr.bf16.mxu0 %v1880
  %2103 = vmatpush1.bf16.msra.mxu0 %v1879
  %2104 = vmatprep.subr.bf16.mxu0 %v1878
  %2105 = vmatpush1.bf16.msra.mxu0 %v1877
  %2106 = vmatprep.subr.bf16.mxu0 %v1876
  %2107 = vmatpush1.bf16.msra.mxu0 %v1875
  %2108 = vmatprep.subr.bf16.mxu0 %v1874
  %2109 = vmatpush1.bf16.msra.mxu0 %v1873
  %2110 = vmatprep.subr.bf16.mxu0 %v1872
  %2111 = vmatpush1.bf16.msra.mxu0 %v1871
  %2112 = vmatprep.subr.bf16.mxu0 %v1870
  %2113 = vmatpush1.bf16.msra.mxu0 %v1869
  %2114 = vmatprep.subr.bf16.mxu0 %v1868
  %2115 = vmatpush1.bf16.msra.mxu0 %v1867
  %2116 = vmatprep.subr.bf16.mxu0 %v1898
  %2117 = vmatpush2.bf16.msra.mxu0 %v1897
  %2118 = vmatprep.subr.bf16.mxu0 %v1896
  %2119 = vmatpush2.bf16.msra.mxu0 %v1895
  %2120 = vmatprep.subr.bf16.mxu0 %v1894
  %2121 = vmatpush2.bf16.msra.mxu0 %v1893
  %2122 = vmatprep.subr.bf16.mxu0 %v1892
  %2123 = vmatpush2.bf16.msra.mxu0 %v1891
  %2124 = vmatprep.subr.bf16.mxu0 %v1890
  %2125 = vmatpush2.bf16.msra.mxu0 %v1889
  %2126 = vmatprep.subr.bf16.mxu0 %v1888
  %2127 = vmatpush2.bf16.msra.mxu0 %v1887
  %2128 = vmatprep.subr.bf16.mxu0 %v1886
  %2129 = vmatpush2.bf16.msra.mxu0 %v1885
  %2130 = vmatprep.subr.bf16.mxu0 %v1884
  %2131 = vmatpush2.bf16.msra.mxu0 %v1883
  %2132 = vmatprep.mubr.bf16.mxu0 %v1502
  %2133 = vmatmul.mubr.bf16.gmra.mxu0 %v1501
  %v2134 = vpop.f32.mrf.mxu0
  %v2135 = vadd.f32 %v2062, %v2134
  %v2136 = vpop.f32.mrf.mxu0
  %v2137 = vadd.f32 %v2064, %v2136
  %v2138 = vpop.f32.mrf.mxu0
  %v2139 = vadd.f32 %v2066, %v2138
  %v2140 = vpop.f32.mrf.mxu0
  %v2141 = vadd.f32 %v2068, %v2140
  %2142 = vmatprep.mubr.bf16.mxu0 %v1508
  %2143 = vmatmul.mubr.bf16.gmra.mxu0 %v1507
  %v2144 = vpop.f32.mrf.mxu0
  %v2145 = vadd.f32 %v2072, %v2144
  %v2146 = vpop.f32.mrf.mxu0
  %v2147 = vadd.f32 %v2074, %v2146
  %v2148 = vpop.f32.mrf.mxu0
  %v2149 = vadd.f32 %v2076, %v2148
  %v2150 = vpop.f32.mrf.mxu0
  %v2151 = vadd.f32 %v2078, %v2150
  %2152 = vmatprep.mubr.bf16.mxu0 %v1514
  %2153 = vmatmul.mubr.bf16.gmra.mxu0 %v1513
  %v2154 = vpop.f32.mrf.mxu0
  %v2155 = vadd.f32 %v2082, %v2154
  %v2156 = vpop.f32.mrf.mxu0
  %v2157 = vadd.f32 %v2084, %v2156
  %v2158 = vpop.f32.mrf.mxu0
  %v2159 = vadd.f32 %v2086, %v2158
  %v2160 = vpop.f32.mrf.mxu0
  %v2161 = vadd.f32 %v2088, %v2160
  %2162 = vmatprep.mubr.bf16.mxu0 %v1520
  %2163 = vmatmul.mubr.bf16.gmra.mxu0 %v1519
  %v2164 = vpop.f32.mrf.mxu0
  %v2165 = vadd.f32 %v2092, %v2164
  %v2166 = vpop.f32.mrf.mxu0
  %v2167 = vadd.f32 %v2094, %v2166
  %v2168 = vpop.f32.mrf.mxu0
  %v2169 = vadd.f32 %v2096, %v2168
  %v2170 = vpop.f32.mrf.mxu0
  %v2171 = vadd.f32 %v2098, %v2170
  %2172 = vdwg.mxu0
  %2173 = vmatprep.subr.bf16.mxu0 %v1914
  %2174 = vmatpush1.bf16.msra.mxu0 %v1913
  %2175 = vmatprep.subr.bf16.mxu0 %v1912
  %2176 = vmatpush1.bf16.msra.mxu0 %v1911
  %2177 = vmatprep.subr.bf16.mxu0 %v1910
  %2178 = vmatpush1.bf16.msra.mxu0 %v1909
  %2179 = vmatprep.subr.bf16.mxu0 %v1908
  %2180 = vmatpush1.bf16.msra.mxu0 %v1907
  %2181 = vmatprep.subr.bf16.mxu0 %v1906
  %2182 = vmatpush1.bf16.msra.mxu0 %v1905
  %2183 = vmatprep.subr.bf16.mxu0 %v1904
  %2184 = vmatpush1.bf16.msra.mxu0 %v1903
  %2185 = vmatprep.subr.bf16.mxu0 %v1902
  %2186 = vmatpush1.bf16.msra.mxu0 %v1901
  %2187 = vmatprep.subr.bf16.mxu0 %v1900
  %2188 = vmatpush1.bf16.msra.mxu0 %v1899
  %2189 = vmatprep.subr.bf16.mxu0 %v1930
  %2190 = vmatpush2.bf16.msra.mxu0 %v1929
  %2191 = vmatprep.subr.bf16.mxu0 %v1928
  %2192 = vmatpush2.bf16.msra.mxu0 %v1927
  %2193 = vmatprep.subr.bf16.mxu0 %v1926
  %2194 = vmatpush2.bf16.msra.mxu0 %v1925
  %2195 = vmatprep.subr.bf16.mxu0 %v1924
  %2196 = vmatpush2.bf16.msra.mxu0 %v1923
  %2197 = vmatprep.subr.bf16.mxu0 %v1922
  %2198 = vmatpush2.bf16.msra.mxu0 %v1921
  %2199 = vmatprep.subr.bf16.mxu0 %v1920
  %2200 = vmatpush2.bf16.msra.mxu0 %v1919
  %2201 = vmatprep.subr.bf16.mxu0 %v1918
  %2202 = vmatpush2.bf16.msra.mxu0 %v1917
  %2203 = vmatprep.subr.bf16.mxu0 %v1916
  %2204 = vmatpush2.bf16.msra.mxu0 %v1915
  %2205 = vmatprep.mubr.bf16.mxu0 %v1504
  %2206 = vmatmul.mubr.bf16.gmra.mxu0 %v1503
  %v2207 = vpop.f32.mrf.mxu0
  %v2208 = vadd.f32 %v2135, %v2207
  %v2209 = vpop.f32.mrf.mxu0
  %v2210 = vadd.f32 %v2137, %v2209
  %v2211 = vpop.f32.mrf.mxu0
  %v2212 = vadd.f32 %v2139, %v2211
  %v2213 = vpop.f32.mrf.mxu0
  %v2214 = vadd.f32 %v2141, %v2213
  %2215 = vmatprep.mubr.bf16.mxu0 %v1510
  %2216 = vmatmul.mubr.bf16.gmra.mxu0 %v1509
  %v2217 = vpop.f32.mrf.mxu0
  %v2218 = vadd.f32 %v2145, %v2217
  %v2219 = vpop.f32.mrf.mxu0
  %v2220 = vadd.f32 %v2147, %v2219
  %v2221 = vpop.f32.mrf.mxu0
  %v2222 = vadd.f32 %v2149, %v2221
  %v2223 = vpop.f32.mrf.mxu0
  %v2224 = vadd.f32 %v2151, %v2223
  %2225 = vmatprep.mubr.bf16.mxu0 %v1516
  %2226 = vmatmul.mubr.bf16.gmra.mxu0 %v1515
  %v2227 = vpop.f32.mrf.mxu0
  %v2228 = vadd.f32 %v2155, %v2227
  %v2229 = vpop.f32.mrf.mxu0
  %v2230 = vadd.f32 %v2157, %v2229
  %v2231 = vpop.f32.mrf.mxu0
  %v2232 = vadd.f32 %v2159, %v2231
  %v2233 = vpop.f32.mrf.mxu0
  %v2234 = vadd.f32 %v2161, %v2233
  %2235 = vmatprep.mubr.bf16.mxu0 %v1522
  %2236 = vmatmul.mubr.bf16.gmra.mxu0 %v1521
  %v2237 = vpop.f32.mrf.mxu0
  %v2238 = vadd.f32 %v2165, %v2237
  %v2239 = vpop.f32.mrf.mxu0
  %v2240 = vadd.f32 %v2167, %v2239
  %v2241 = vpop.f32.mrf.mxu0
  %v2242 = vadd.f32 %v2169, %v2241
  %v2243 = vpop.f32.mrf.mxu0
  %v2244 = vadd.f32 %v2171, %v2243
  %2245 = vdwg.mxu0
  %v2246 = vmax.f32 %v2208, 0.0
  %v2247 = vmax.f32 %v2210, 0.0
  %v2248 = vmax.f32 %v2212, 0.0
  %v2249 = vmax.f32 %v2214, 0.0
  %v2250 = vmax.f32 %v2218, 0.0
  %v2251 = vmax.f32 %v2220, 0.0
  %v2252 = vmax.f32 %v2222, 0.0
  %v2253 = vmax.f32 %v2224, 0.0
  %v2254 = vmax.f32 %v2228, 0.0
  %v2255 = vmax.f32 %v2230, 0.0
  %v2256 = vmax.f32 %v2232, 0.0
  %v2257 = vmax.f32 %v2234, 0.0
  %v2258 = vmax.f32 %v2238, 0.0
  %v2259 = vmax.f32 %v2240, 0.0
  %v2260 = vmax.f32 %v2242, 0.0
  %v2261 = vmax.f32 %v2244, 0.0
  %v2262 = vpack.c.bf16 %v2248, %v2246
  %v2263 = vpack.c.bf16 %v2249, %v2247
  %v2264 = vpack.c.bf16 %v2252, %v2250
  %v2265 = vpack.c.bf16 %v2253, %v2251
  %v2266 = vpack.c.bf16 %v2256, %v2254
  %v2267 = vpack.c.bf16 %v2257, %v2255
  %v2268 = vpack.c.bf16 %v2260, %v2258
  %v2269 = vpack.c.bf16 %v2261, %v2259
  %v2270 = vld [vmem:[%s8] sm:$0xff]
  %v2271 = vld [vmem:[%s8 + $0x8] sm:$0xff]
  %v2272 = vld [vmem:[%s8 + $0x10] sm:$0xff]
  %v2273 = vld [vmem:[%s8 + $0x18] sm:$0xff]
  %v2274 = vld [vmem:[%s8 + $0x20] sm:$0xff]
  %v2275 = vld [vmem:[%s8 + $0x28] sm:$0xff]
  %v2276 = vld [vmem:[%s8 + $0x30] sm:$0xff]
  %v2277 = vld [vmem:[%s8 + $0x38] sm:$0xff]
  %v2278 = vld [vmem:[%s8 + $0x40] sm:$0xff]
  %v2279 = vld [vmem:[%s8 + $0x48] sm:$0xff]
  %v2280 = vld [vmem:[%s8 + $0x50] sm:$0xff]
  %v2281 = vld [vmem:[%s8 + $0x58] sm:$0xff]
  %v2282 = vld [vmem:[%s8 + $0x60] sm:$0xff]
  %v2283 = vld [vmem:[%s8 + $0x68] sm:$0xff]
  %v2284 = vld [vmem:[%s8 + $0x70] sm:$0xff]
  %v2285 = vld [vmem:[%s8 + $0x78] sm:$0xff]
  %v2286 = vld [vmem:[%s8 + $0x80] sm:$0xff]
  %v2287 = vld [vmem:[%s8 + $0x88] sm:$0xff]
  %v2288 = vld [vmem:[%s8 + $0x90] sm:$0xff]
  %v2289 = vld [vmem:[%s8 + $0x98] sm:$0xff]
  %v2290 = vld [vmem:[%s8 + $0xa0] sm:$0xff]
  %v2291 = vld [vmem:[%s8 + $0xa8] sm:$0xff]
  %v2292 = vld [vmem:[%s8 + $0xb0] sm:$0xff]
  %v2293 = vld [vmem:[%s8 + $0xb8] sm:$0xff]
  %v2294 = vld [vmem:[%s8 + $0xc0] sm:$0xff]
  %v2295 = vld [vmem:[%s8 + $0xc8] sm:$0xff]
  %v2296 = vld [vmem:[%s8 + $0xd0] sm:$0xff]
  %v2297 = vld [vmem:[%s8 + $0xd8] sm:$0xff]
  %v2298 = vld [vmem:[%s8 + $0xe0] sm:$0xff]
  %v2299 = vld [vmem:[%s8 + $0xe8] sm:$0xff]
  %v2300 = vld [vmem:[%s8 + $0xf0] sm:$0xff]
  %v2301 = vld [vmem:[%s8 + $0xf8] sm:$0xff]
  %v2302 = vld [vmem:[%s9] sm:$0x3]
  %v2304 = vlaneseq
  %v2305 = vshrl.u32 %v2304, 7
  %v2306 = vsub.s32 0, %v2305
  %v2307 = vrot.slane %v2302, %v2306
  %v2308 = vlaneseq
  %v2309 = vshrl.u32 %v2308, 7
  %v2310 = vsub.s32 1, %v2309
  %v2311 = vrot.slane %v2302, %v2310
  %v2346 = vunpack.c.l.b16 %v2270
  %v2347 = vunpack.c.h.b16 %v2270
  %v2348 = vunpack.c.l.b16 %v2271
  %v2349 = vunpack.c.h.b16 %v2271
  %v2350 = vunpack.c.l.b16 %v2272
  %v2351 = vunpack.c.h.b16 %v2272
  %v2352 = vunpack.c.l.b16 %v2273
  %v2353 = vunpack.c.h.b16 %v2273
  %v2354 = vunpack.c.l.b16 %v2274
  %v2355 = vunpack.c.h.b16 %v2274
  %v2356 = vunpack.c.l.b16 %v2275
  %v2357 = vunpack.c.h.b16 %v2275
  %v2358 = vunpack.c.l.b16 %v2276
  %v2359 = vunpack.c.h.b16 %v2276
  %v2360 = vunpack.c.l.b16 %v2277
  %v2361 = vunpack.c.h.b16 %v2277
  %v2362 = vunpack.c.l.b16 %v2278
  %v2363 = vunpack.c.h.b16 %v2278
  %v2364 = vunpack.c.l.b16 %v2279
  %v2365 = vunpack.c.h.b16 %v2279
  %v2366 = vunpack.c.l.b16 %v2280
  %v2367 = vunpack.c.h.b16 %v2280
  %v2368 = vunpack.c.l.b16 %v2281
  %v2369 = vunpack.c.h.b16 %v2281
  %v2370 = vunpack.c.l.b16 %v2282
  %v2371 = vunpack.c.h.b16 %v2282
  %v2372 = vunpack.c.l.b16 %v2283
  %v2373 = vunpack.c.h.b16 %v2283
  %v2374 = vunpack.c.l.b16 %v2284
  %v2375 = vunpack.c.h.b16 %v2284
  %v2376 = vunpack.c.l.b16 %v2285
  %v2377 = vunpack.c.h.b16 %v2285
  %v2378 = vunpack.c.l.b16 %v2286
  %v2379 = vunpack.c.h.b16 %v2286
  %v2380 = vunpack.c.l.b16 %v2287
  %v2381 = vunpack.c.h.b16 %v2287
  %v2382 = vunpack.c.l.b16 %v2288
  %v2383 = vunpack.c.h.b16 %v2288
  %v2384 = vunpack.c.l.b16 %v2289
  %v2385 = vunpack.c.h.b16 %v2289
  %v2386 = vunpack.c.l.b16 %v2290
  %v2387 = vunpack.c.h.b16 %v2290
  %v2388 = vunpack.c.l.b16 %v2291
  %v2389 = vunpack.c.h.b16 %v2291
  %v2390 = vunpack.c.l.b16 %v2292
  %v2391 = vunpack.c.h.b16 %v2292
  %v2392 = vunpack.c.l.b16 %v2293
  %v2393 = vunpack.c.h.b16 %v2293
  %v2394 = vunpack.c.l.b16 %v2294
  %v2395 = vunpack.c.h.b16 %v2294
  %v2396 = vunpack.c.l.b16 %v2295
  %v2397 = vunpack.c.h.b16 %v2295
  %v2398 = vunpack.c.l.b16 %v2296
  %v2399 = vunpack.c.h.b16 %v2296
  %v2400 = vunpack.c.l.b16 %v2297
  %v2401 = vunpack.c.h.b16 %v2297
  %v2402 = vunpack.c.l.b16 %v2298
  %v2403 = vunpack.c.h.b16 %v2298
  %v2404 = vunpack.c.l.b16 %v2299
  %v2405 = vunpack.c.h.b16 %v2299
  %v2406 = vunpack.c.l.b16 %v2300
  %v2407 = vunpack.c.h.b16 %v2300
  %v2408 = vunpack.c.l.b16 %v2301
  %v2409 = vunpack.c.h.b16 %v2301
  %v2410 = vpack.c.b16 %v2348, %v2346
  %v2411 = vpack.c.b16 %v2349, %v2347
  %v2412 = vpack.c.b16 %v2352, %v2350
  %v2413 = vpack.c.b16 %v2353, %v2351
  %v2414 = vpack.c.b16 %v2356, %v2354
  %v2415 = vpack.c.b16 %v2357, %v2355
  %v2416 = vpack.c.b16 %v2360, %v2358
  %v2417 = vpack.c.b16 %v2361, %v2359
  %v2418 = vpack.c.b16 %v2364, %v2362
  %v2419 = vpack.c.b16 %v2365, %v2363
  %v2420 = vpack.c.b16 %v2368, %v2366
  %v2421 = vpack.c.b16 %v2369, %v2367
  %v2422 = vpack.c.b16 %v2372, %v2370
  %v2423 = vpack.c.b16 %v2373, %v2371
  %v2424 = vpack.c.b16 %v2376, %v2374
  %v2425 = vpack.c.b16 %v2377, %v2375
  %v2426 = vpack.c.b16 %v2380, %v2378
  %v2427 = vpack.c.b16 %v2381, %v2379
  %v2428 = vpack.c.b16 %v2384, %v2382
  %v2429 = vpack.c.b16 %v2385, %v2383
  %v2430 = vpack.c.b16 %v2388, %v2386
  %v2431 = vpack.c.b16 %v2389, %v2387
  %v2432 = vpack.c.b16 %v2392, %v2390
  %v2433 = vpack.c.b16 %v2393, %v2391
  %v2434 = vpack.c.b16 %v2396, %v2394
  %v2435 = vpack.c.b16 %v2397, %v2395
  %v2436 = vpack.c.b16 %v2400, %v2398
  %v2437 = vpack.c.b16 %v2401, %v2399
  %v2438 = vpack.c.b16 %v2404, %v2402
  %v2439 = vpack.c.b16 %v2405, %v2403
  %v2440 = vpack.c.b16 %v2408, %v2406
  %v2441 = vpack.c.b16 %v2409, %v2407
  %2474 = vmatprep.subr.bf16.mxu0 %v2425
  %2475 = vmatpush1.bf16.msra.mxu0 %v2424
  %2476 = vmatprep.subr.bf16.mxu0 %v2423
  %2477 = vmatpush1.bf16.msra.mxu0 %v2422
  %2478 = vmatprep.subr.bf16.mxu0 %v2421
  %2479 = vmatpush1.bf16.msra.mxu0 %v2420
  %2480 = vmatprep.subr.bf16.mxu0 %v2419
  %2481 = vmatpush1.bf16.msra.mxu0 %v2418
  %2482 = vmatprep.subr.bf16.mxu0 %v2417
  %2483 = vmatpush1.bf16.msra.mxu0 %v2416
  %2484 = vmatprep.subr.bf16.mxu0 %v2415
  %2485 = vmatpush1.bf16.msra.mxu0 %v2414
  %2486 = vmatprep.subr.bf16.mxu0 %v2413
  %2487 = vmatpush1.bf16.msra.mxu0 %v2412
  %2488 = vmatprep.subr.bf16.mxu0 %v2411
  %2489 = vmatpush1.bf16.msra.mxu0 %v2410
  %2490 = vmatprep.subr.bf16.mxu0 %v2441
  %2491 = vmatpush2.bf16.msra.mxu0 %v2440
  %2492 = vmatprep.subr.bf16.mxu0 %v2439
  %2493 = vmatpush2.bf16.msra.mxu0 %v2438
  %2494 = vmatprep.subr.bf16.mxu0 %v2437
  %2495 = vmatpush2.bf16.msra.mxu0 %v2436
  %2496 = vmatprep.subr.bf16.mxu0 %v2435
  %2497 = vmatpush2.bf16.msra.mxu0 %v2434
  %2498 = vmatprep.subr.bf16.mxu0 %v2433
  %2499 = vmatpush2.bf16.msra.mxu0 %v2432
  %2500 = vmatprep.subr.bf16.mxu0 %v2431
  %2501 = vmatpush2.bf16.msra.mxu0 %v2430
  %2502 = vmatprep.subr.bf16.mxu0 %v2429
  %2503 = vmatpush2.bf16.msra.mxu0 %v2428
  %2504 = vmatprep.subr.bf16.mxu0 %v2427
  %2505 = vmatpush2.bf16.msra.mxu0 %v2426
  %2506 = vmatprep.mubr.bf16.mxu0 %v2263
  %2507 = vmatmul.mubr.bf16.gmra.mxu0 %v2262
  %v2508 = vpop.f32.mrf.mxu0
  %v2509 = vadd.f32 %v2307, %v2508
  %v2510 = vpop.f32.mrf.mxu0
  %v2511 = vadd.f32 %v2311, %v2510
  %v2512 = vpop.f32.mrf.mxu0
  %v2513 = vadd.f32 %v2307, %v2512
  %v2514 = vpop.f32.mrf.mxu0
  %v2515 = vadd.f32 %v2311, %v2514
  %2516 = vmatprep.mubr.bf16.mxu0 %v2265
  %2517 = vmatmul.mubr.bf16.gmra.mxu0 %v2264
  %v2518 = vpop.f32.mrf.mxu0
  %v2519 = vadd.f32 %v2307, %v2518
  %v2520 = vpop.f32.mrf.mxu0
  %v2521 = vadd.f32 %v2311, %v2520
  %v2522 = vpop.f32.mrf.mxu0
  %v2523 = vadd.f32 %v2307, %v2522
  %v2524 = vpop.f32.mrf.mxu0
  %v2525 = vadd.f32 %v2311, %v2524
  %2526 = vmatprep.mubr.bf16.mxu0 %v2267
  %2527 = vmatmul.mubr.bf16.gmra.mxu0 %v2266
  %v2528 = vpop.f32.mrf.mxu0
  %v2529 = vadd.f32 %v2307, %v2528
  %v2530 = vpop.f32.mrf.mxu0
  %v2531 = vadd.f32 %v2311, %v2530
  %v2532 = vpop.f32.mrf.mxu0
  %v2533 = vadd.f32 %v2307, %v2532
  %v2534 = vpop.f32.mrf.mxu0
  %v2535 = vadd.f32 %v2311, %v2534
  %2536 = vmatprep.mubr.bf16.mxu0 %v2269
  %2537 = vmatmul.mubr.bf16.gmra.mxu0 %v2268
  %v2538 = vpop.f32.mrf.mxu0
  %v2539 = vadd.f32 %v2307, %v2538
  %v2540 = vpop.f32.mrf.mxu0
  %v2541 = vadd.f32 %v2311, %v2540
  %v2542 = vpop.f32.mrf.mxu0
  %v2543 = vadd.f32 %v2307, %v2542
  %v2544 = vpop.f32.mrf.mxu0
  %v2545 = vadd.f32 %v2311, %v2544
  %2546 = vdwg.mxu0
  %v2547 = vmul.f32 %v1257, %v2509
  %v2548 = vmul.f32 %v1259, %v2511
  %v2549 = vmul.f32 %v1261, %v2513
  %v2550 = vmul.f32 %v1263, %v2515
  %v2551 = vmul.f32 %v1267, %v2519
  %v2552 = vmul.f32 %v1269, %v2521
  %v2553 = vmul.f32 %v1271, %v2523
  %v2554 = vmul.f32 %v1273, %v2525
  %v2555 = vmul.f32 %v1277, %v2529
  %v2556 = vmul.f32 %v1279, %v2531
  %v2557 = vmul.f32 %v1281, %v2533
  %v2558 = vmul.f32 %v1283, %v2535
  %v2559 = vmul.f32 %v1287, %v2539
  %v2560 = vmul.f32 %v1289, %v2541
  %v2561 = vmul.f32 %v1291, %v2543
  %v2562 = vmul.f32 %v1293, %v2545
  %v2563 = vld [vmem:[%s10] sm:$0x3]
  %v2565 = vlaneseq
  %v2566 = vshrl.u32 %v2565, 7
  %v2567 = vsub.s32 0, %v2566
  %v2568 = vrot.slane %v2563, %v2567
  %v2569 = vlaneseq
  %v2570 = vshrl.u32 %v2569, 7
  %v2571 = vsub.s32 1, %v2570
  %v2572 = vrot.slane %v2563, %v2571
  %v2575 = vmul.f32 %v2547, %v2568
  %v2576 = vmul.f32 %v2548, %v2572
  %v2577 = vmul.f32 %v2549, %v2568
  %v2578 = vmul.f32 %v2550, %v2572
  %v2579 = vmul.f32 %v2551, %v2568
  %v2580 = vmul.f32 %v2552, %v2572
  %v2581 = vmul.f32 %v2553, %v2568
  %v2582 = vmul.f32 %v2554, %v2572
  %v2583 = vmul.f32 %v2555, %v2568
  %v2584 = vmul.f32 %v2556, %v2572
  %v2585 = vmul.f32 %v2557, %v2568
  %v2586 = vmul.f32 %v2558, %v2572
  %v2587 = vmul.f32 %v2559, %v2568
  %v2588 = vmul.f32 %v2560, %v2572
  %v2589 = vmul.f32 %v2561, %v2568
  %v2590 = vmul.f32 %v2562, %v2572
  %v2591 = vadd.f32 %v2575, %v2576
  %2592 = vadd.xlane.f32.xlu0 %v2591
  %v2593 = vpop.xlane.xlu0 %2592
  %v2594 = vadd.f32 %v2577, %v2578
  %2595 = vadd.xlane.f32.xlu0 %v2594
  %v2596 = vpop.xlane.xlu0 %2595
  %v2597 = vadd.f32 %v2579, %v2580
  %2598 = vadd.xlane.f32.xlu0 %v2597
  %v2599 = vpop.xlane.xlu0 %2598
  %v2600 = vadd.f32 %v2581, %v2582
  %2601 = vadd.xlane.f32.xlu0 %v2600
  %v2602 = vpop.xlane.xlu0 %2601
  %v2603 = vadd.f32 %v2583, %v2584
  %2604 = vadd.xlane.f32.xlu0 %v2603
  %v2605 = vpop.xlane.xlu0 %2604
  %v2606 = vadd.f32 %v2585, %v2586
  %2607 = vadd.xlane.f32.xlu0 %v2606
  %v2608 = vpop.xlane.xlu0 %2607
  %v2609 = vadd.f32 %v2587, %v2588
  %2610 = vadd.xlane.f32.xlu0 %v2609
  %v2611 = vpop.xlane.xlu0 %2610
  %v2612 = vadd.f32 %v2589, %v2590
  %2613 = vadd.xlane.f32.xlu0 %v2612
  %v2614 = vpop.xlane.xlu0 %2613
  %v2615 = vld [vmem:[#allocation2] sm:$0x1]
  %v2617 = vlaneseq
  %v2618 = vshrl.u32 %v2617, 7
  %v2619 = vsub.s32 0, %v2618
  %v2620 = vrot.slane %v2615, %v2619
  %v2622 = vadd.f32 %v2593, %v2620
  %v2623 = vadd.f32 %v2596, %v2620
  %v2624 = vadd.f32 %v2599, %v2620
  %v2625 = vadd.f32 %v2602, %v2620
  %v2626 = vadd.f32 %v2605, %v2620
  %v2627 = vadd.f32 %v2608, %v2620
  %v2628 = vadd.f32 %v2611, %v2620
  %v2629 = vadd.f32 %v2614, %v2620
  %vm2630 = vcmask 7168
  %2631 = vst.msk [vmem:[%s12] sm:$0xff] %vm2630, %v2622
  %2632 = vst.msk [vmem:[%s12 + $0x8] sm:$0xff] %vm2630, %v2623
  %2633 = vst.msk [vmem:[%s12 + $0x10] sm:$0xff] %vm2630, %v2624
  %2634 = vst.msk [vmem:[%s12 + $0x18] sm:$0xff] %vm2630, %v2625
  %2635 = vst.msk [vmem:[%s12 + $0x20] sm:$0xff] %vm2630, %v2626
  %2636 = vst.msk [vmem:[%s12 + $0x28] sm:$0xff] %vm2630, %v2627
  %2637 = vst.msk [vmem:[%s12 + $0x30] sm:$0xff] %vm2630, %v2628
  %2638 = vst.msk [vmem:[%s12 + $0x38] sm:$0xff] %vm2630, %v2629
  // Predicated region
  $region50: #{gnn_model_forward.13} parent=0 // pred_check
    _
  $region51: #{gnn_model_forward.13} parent=0 // pred_check_branch
    %2640 = sbr.rel (0) target = $region53
  $region52: #{gnn_model_forward.13} parent=0 // pred_region
    _
  $region53: #{gnn_model_forward.13} parent=0 // pred_fallthru
    _
  // Predicated region
  $region54: #{gnn_model_forward.13} parent=0 // pred_check
    _
  $region55: #{gnn_model_forward.13} parent=0 // pred_check_branch
    %2642 = sbr.rel (0) target = $region57
  $region56: #{gnn_model_forward.13} parent=0 // pred_region
    _
  $region57: #{gnn_model_forward.13} parent=0 // pred_fallthru
    _

</llo_original>
